<compile_context>
chip_gen: v7x
topology: tpu7x:2x2x1
jax: 0.10.0
libtpu: 0.0.40
codegen_flags: <defaults>
</compile_context>

<pallas_src>
import functools

import numpy as np

import jax
import jax.numpy as jnp
from jax import lax
from jax.experimental import pallas as pl
from jax.experimental.pallas import tpu as pltpu


# ----------------------------------------------------------------------------
# small static helpers (shared by wrapper and kernel; all Python ints)
# ----------------------------------------------------------------------------
def _round_up(x, m):
    return ((x + m - 1) // m) * m


def _pad_top(W):
    # top zero rows before the flattened image inside the conv scratch
    return _round_up(W + 1, 8)


def _pad_rows(H, W):
    # total rows of the zero-padded flat scratch for a 3x3 "same" conv
    return _pad_top(W) + H * W + W + 1


# ----------------------------------------------------------------------------
# in-kernel building blocks
# ----------------------------------------------------------------------------
def _fill_pad(pad_ref, act, top, HW):
    # zero the whole (small) scratch, then write the flattened image interior
    pad_ref[...] = jnp.zeros(pad_ref.shape, pad_ref.dtype)
    pad_ref[top:top + HW, :] = act


def _conv3x3_acc(pad_ref, w_ref, H, W, Cout):
    """3x3 'same' conv over a row-major flattened (H*W, Cin) image stored
    (vertically zero padded) in pad_ref.  Returns f32 (H*W, Cout)."""
    HW = H * W
    top = _pad_top(W)
    # j = p mod W  (W is a power of two here)
    jj = lax.broadcasted_iota(jnp.int32, (HW, 1), 0) & (W - 1)
    acc = jnp.zeros((HW, Cout), jnp.float32)
    for dy in (-1, 0, 1):
        for dx in (-1, 0, 1):
            start = top + dy * W + dx
            sh = pad_ref[start:start + HW, :]          # contiguous slice
            if dx == -1:                               # reading j-1: bad at j==0
                sh = jnp.where(jj >= 1, sh, 0.0)
            elif dx == 1:                              # reading j+1: bad at j==W-1
                sh = jnp.where(jj <= W - 2, sh, 0.0)
            tap = (dy + 1) * 3 + (dx + 1)
            acc = acc + jnp.dot(sh.astype(jnp.bfloat16), w_ref[tap],
                                preferred_element_type=jnp.float32)
    return acc


def _maxpool_sel(sel_ref, act_b):
    """2x2/stride-2 max pool via 4 selection matmuls + elementwise max."""
    r = jnp.dot(sel_ref[0], act_b, preferred_element_type=jnp.float32)
    for t in range(1, 4):
        r = jnp.maximum(
            r, jnp.dot(sel_ref[t], act_b, preferred_element_type=jnp.float32))
    return r


def _convt2x2(act, w_ref, sct_ref, b_ref):
    """ConvTranspose(k=2, s=2) + bias + ReLU, interleave done via 0/1 scatter
    matmuls so the output comes out already in flat row-major order."""
    a = act.astype(jnp.bfloat16)
    out = None
    for t in range(4):
        y = jnp.dot(a, w_ref[t], preferred_element_type=jnp.float32)
        c = jnp.dot(sct_ref[t], y, preferred_element_type=jnp.float32)
        out = c if out is None else out + c
    return jnp.maximum(out + b_ref[...], 0.0)


# ----------------------------------------------------------------------------
# fused Generator kernel: one batch item per grid step
# ----------------------------------------------------------------------------
def _generator_kernel(xcol_ref, w1_ref, s1_ref, b1_ref,
                      w2_ref, s2_ref, b2_ref,
                      w3_ref, s3_ref, b3_ref,
                      w4_ref, b4_ref, w5_ref, b5_ref,
                      w6_ref, b6_ref,
                      sel1_ref, sel2_ref, sct1_ref, sct2_ref,
                      o_ref,
                      pad2_ref, pad3_ref, pad6_ref,
                      *, H, W):
    f32 = jnp.float32
    bf16 = jnp.bfloat16
    H2, W2, H4, W4 = H // 2, W // 2, H // 4, W // 4
    HW = H * W

    # -------- encoder stage 1: conv(Cin->64) as one im2col matmul + BN + ReLU
    a1 = jnp.dot(xcol_ref[0], w1_ref[...], preferred_element_type=f32)
    a1 = jnp.maximum(a1 * s1_ref[...] + b1_ref[...], 0.0)          # (HW, 64)

    # -------- maxpool 2x2
    p1 = _maxpool_sel(sel1_ref, a1.astype(bf16))                   # (HW/4, 64)

    # -------- encoder stage 2: conv(64->128) + BN + ReLU
    _fill_pad(pad2_ref, p1, _pad_top(W2), H2 * W2)
    a2 = _conv3x3_acc(pad2_ref, w2_ref, H2, W2, w2_ref.shape[2])
    a2 = jnp.maximum(a2 * s2_ref[...] + b2_ref[...], 0.0)          # (HW/4, 128)

    # -------- maxpool 2x2
    p2 = _maxpool_sel(sel2_ref, a2.astype(bf16))                   # (HW/16, 128)

    # -------- middle: conv(128->256) + BN + ReLU
    _fill_pad(pad3_ref, p2, _pad_top(W4), H4 * W4)
    a3 = _conv3x3_acc(pad3_ref, w3_ref, H4, W4, w3_ref.shape[2])
    a3 = jnp.maximum(a3 * s3_ref[...] + b3_ref[...], 0.0)          # (HW/16, 256)

    # -------- decoder: two ConvTranspose(k=2, s=2) + ReLU
    d1 = _convt2x2(a3, w4_ref, sct1_ref, b4_ref)                   # (HW/4, 128)
    d2 = _convt2x2(d1, w5_ref, sct2_ref, b5_ref)                   # (HW,   64)

    # -------- final conv(64->1): VPU multiply + lane reduction, tanh affine
    top = _pad_top(W)
    _fill_pad(pad6_ref, d2, top, HW)
    jj = lax.broadcasted_iota(jnp.int32, (HW, 1), 0) & (W - 1)
    w6 = w6_ref[...]                                               # (9, 64) f32
    acc = jnp.zeros((HW, w6.shape[1]), f32)
    for dy in (-1, 0, 1):
        for dx in (-1, 0, 1):
            start = top + dy * W + dx
            sh = pad6_ref[start:start + HW, :]
            if dx == -1:
                sh = jnp.where(jj >= 1, sh, 0.0)
            elif dx == 1:
                sh = jnp.where(jj <= W - 2, sh, 0.0)
            tap = (dy + 1) * 3 + (dx + 1)
            acc = acc + sh * w6[tap:tap + 1, :]
    y = jnp.sum(acc, axis=-1, keepdims=True) + b6_ref[...]         # (HW, 1)
    # (tanh(y) + 1) * 1500 + 1500
    o_ref[0] = 1500.0 * jnp.tanh(y) + 3000.0


# ----------------------------------------------------------------------------
# constant selection / scatter matrices (trace-time numpy, tiny)
# ----------------------------------------------------------------------------
def _pool_selection(h, w):
    ho, wo = h // 2, w // 2
    S = np.zeros((4, ho * wo, h * w), np.float32)
    for t in range(4):
        di, dj = divmod(t, 2)
        for po in range(ho * wo):
            io, jo = divmod(po, wo)
            S[t, po, (2 * io + di) * w + (2 * jo + dj)] = 1.0
    return S


def _convt_scatter(h, w):
    hw = h * w
    S = np.zeros((4, 4 * hw, hw), np.float32)
    for t in range(4):
        dy, dx = divmod(t, 2)
        for q in range(hw):
            i, j = divmod(q, w)
            S[t, (2 * i + dy) * (2 * w) + (2 * j + dx), q] = 1.0
    return S


# ----------------------------------------------------------------------------
# public forward (NCHW in / NCHW out, like the PyTorch module)
# ----------------------------------------------------------------------------
def generator_forward(x_nchw, params):
    f32, bf16 = jnp.float32, jnp.bfloat16
    N, Cin, H, W = x_nchw.shape
    HW = H * W
    x = jnp.transpose(x_nchw, (0, 2, 3, 1)).astype(f32)            # NHWC

    # im2col for the first conv (5-channel input is tiny -> one K=45 matmul)
    xp = jnp.pad(x, ((0, 0), (1, 1), (1, 1), (0, 0)))
    cols = [xp[:, ky:ky + H, kx:kx + W, :].reshape(N, HW, Cin)
            for ky in range(3) for kx in range(3)]
    x_col = jnp.concatenate(cols, axis=-1).astype(bf16)            # (N, HW, 45)

    c1 = params["w1"].shape[-1]
    c2 = params["w2"].shape[-1]
    c3 = params["w3"].shape[-1]

    w1 = params["w1"].reshape(9 * Cin, c1).astype(bf16)
    w2 = params["w2"].reshape(9, c1, c2).astype(bf16)
    w3 = params["w3"].reshape(9, c2, c3).astype(bf16)
    w4 = params["w4"].reshape(4, c3, c2).astype(bf16)
    w5 = params["w5"].reshape(4, c2, c1).astype(bf16)
    w6 = params["w6"].reshape(9, c1).astype(f32)

    s1 = params["s1"].reshape(1, c1); b1 = params["b1"].reshape(1, c1)
    s2 = params["s2"].reshape(1, c2); b2 = params["b2"].reshape(1, c2)
    s3 = params["s3"].reshape(1, c3); b3 = params["b3"].reshape(1, c3)
    b4 = params["bias4"].reshape(1, c2)
    b5 = params["bias5"].reshape(1, c1)
    b6 = params["b6"].reshape(1, 1)

    sel1 = jnp.asarray(_pool_selection(H, W), bf16)                # (4, HW/4, HW)
    sel2 = jnp.asarray(_pool_selection(H // 2, W // 2), bf16)      # (4, HW/16, HW/4)
    sct1 = jnp.asarray(_convt_scatter(H // 4, W // 4), f32)        # (4, HW/4, HW/16)
    sct2 = jnp.asarray(_convt_scatter(H // 2, W // 2), f32)        # (4, HW,   HW/4)

    operands = (x_col, w1, s1, b1, w2, s2, b2, w3, s3, b3,
                w4, b4, w5, b5, w6, b6, sel1, sel2, sct1, sct2)

    def _rep(a):
        zeros = (0,) * a.ndim
        return pl.BlockSpec(a.shape, lambda n, _z=zeros: _z)

    in_specs = [pl.BlockSpec((1, HW, 9 * Cin), lambda n: (n, 0, 0))]
    in_specs += [_rep(a) for a in operands[1:]]

    kernel = functools.partial(_generator_kernel, H=H, W=W)
    out = pl.pallas_call(
        kernel,
        out_shape=jax.ShapeDtypeStruct((N, HW, 1), f32),
        grid=(N,),
        in_specs=in_specs,
        out_specs=pl.BlockSpec((1, HW, 1), lambda n: (n, 0, 0)),
        scratch_shapes=[
            pltpu.VMEM((_pad_rows(H // 2, W // 2), c1), f32),      # conv2 pad
            pltpu.VMEM((_pad_rows(H // 4, W // 4), c2), f32),      # conv3 pad
            pltpu.VMEM((_pad_rows(H, W), c1), f32),                # final pad
        ],
        compiler_params=pltpu.CompilerParams(
            dimension_semantics=("parallel",)),
    )(*operands)

    out = out.reshape(N, H, W, 1)
    return jnp.transpose(out, (0, 3, 1, 2))                        # NCHW


# ----------------------------------------------------------------------------
# pure-JAX reference (mirrors the kernel's bf16-input / f32-accumulate math)
# ----------------------------------------------------------------------------
def generator_reference(x_nchw, params):
    f32, bf16 = jnp.float32, jnp.bfloat16
    dn = ("NHWC", "HWIO", "NHWC")
    x = jnp.transpose(x_nchw, (0, 2, 3, 1)).astype(f32)

    def conv_bn_relu(h, w, s, b):
        y = lax.conv_general_dilated(
            h.astype(bf16), w.astype(bf16), (1, 1), "SAME",
            dimension_numbers=dn, preferred_element_type=f32)
        return jnp.maximum(y * s + b, 0.0)

    def maxpool(h):
        n, hh, ww, c = h.shape
        return jnp.max(h.reshape(n, hh // 2, 2, ww // 2, 2, c), axis=(2, 4))

    def convt_relu(h, w, b):
        n, hh, ww, _ = h.shape
        co = w.shape[-1]
        y = jnp.einsum("nijc,uvco->niujvo", h.astype(bf16), w.astype(bf16),
                       preferred_element_type=f32)
        return jnp.maximum(y.reshape(n, 2 * hh, 2 * ww, co) + b, 0.0)

    h = conv_bn_relu(x, params["w1"], params["s1"], params["b1"])
    h = maxpool(h)
    h = conv_bn_relu(h, params["w2"], params["s2"], params["b2"])
    h = maxpool(h)
    h = conv_bn_relu(h, params["w3"], params["s3"], params["b3"])
    h = convt_relu(h, params["w4"], params["bias4"])
    h = convt_relu(h, params["w5"], params["bias5"])
    y = lax.conv_general_dilated(
        h.astype(bf16).astype(f32), params["w6"], (1, 1), "SAME",
        dimension_numbers=dn, preferred_element_type=f32) + params["b6"]
    y = 1500.0 * jnp.tanh(y) + 3000.0
    return jnp.transpose(y, (0, 3, 1, 2))


# ----------------------------------------------------------------------------
# deterministic synthetic parameters (shapes from Generator.__init__)
# ----------------------------------------------------------------------------
def _fold_bn(gamma, beta, mean, var, conv_bias, eps=1e-5):
    scale = gamma / jnp.sqrt(var + eps)
    bias = beta + scale * (conv_bias - mean)
    return scale, bias


def init_params(key, in_channels=5):
    ks = iter(jax.random.split(key, 32))

    def conv_w(kh, kw, cin, cout):
        return 0.1 * jax.random.normal(next(ks), (kh, kw, cin, cout), jnp.float32)

    def vec(c, center=0.0, spread=0.1):
        return center + spread * jax.random.normal(next(ks), (c,), jnp.float32)

    p = {}
    for name, cin, cout in (("1", in_channels, 64), ("2", 64, 128), ("3", 128, 256)):
        w = conv_w(3, 3, cin, cout)
        cb = vec(cout)
        gamma, beta, mean = vec(cout, 1.0), vec(cout), vec(cout)
        var = jax.random.uniform(next(ks), (cout,), jnp.float32, 0.5, 1.5)
        s, b = _fold_bn(gamma, beta, mean, var, cb)
        p["w" + name], p["s" + name], p["b" + name] = w, s, b
    p["w4"] = conv_w(2, 2, 256, 128); p["bias4"] = vec(128)
    p["w5"] = conv_w(2, 2, 128, 64);  p["bias5"] = vec(64)
    p["w6"] = conv_w(3, 3, 64, 1);    p["b6"] = vec(1)
    return p


if __name__ == "__main__":
    key = jax.random.PRNGKey(0)
    kp, kx = jax.random.split(key)
    params = init_params(kp, in_channels=5)
    x = jax.random.normal(kx, (2, 5, 16, 16), jnp.float32)   # NCHW, like PyTorch

    fwd = jax.jit(generator_forward)
    y = fwd(x, params)
    jax.block_until_ready(y)

    assert y.shape == (2, 1, 16, 16), y.shape
    assert bool(jnp.all(jnp.isfinite(y)))
    # tanh in [-1, 1]  =>  (tanh + 1) * 1500 + 1500  in  [1500, 4500] (inclusive)
    assert bool(jnp.all((y >= 1500.0) & (y <= 4500.0)))

    y_ref = generator_reference(x, params)
    max_err = float(jnp.max(jnp.abs(y - y_ref)))
    assert bool(jnp.allclose(y, y_ref, rtol=2e-2, atol=25.0)), max_err

    print("KERNEL_OK")
</pallas_src>

<mosaic_0001>
module attributes {stable_mosaic.version = 11 : i64} {
  func.func @_generator_kernel(%arg0: i32, %arg1: memref<1x256x45xbf16, #tpu.memory_space<vmem>>, %arg2: memref<45x64xbf16, #tpu.memory_space<vmem>>, %arg3: memref<1x64xf32, #tpu.memory_space<vmem>>, %arg4: memref<1x64xf32, #tpu.memory_space<vmem>>, %arg5: memref<9x64x128xbf16, #tpu.memory_space<vmem>>, %arg6: memref<1x128xf32, #tpu.memory_space<vmem>>, %arg7: memref<1x128xf32, #tpu.memory_space<vmem>>, %arg8: memref<9x128x256xbf16, #tpu.memory_space<vmem>>, %arg9: memref<1x256xf32, #tpu.memory_space<vmem>>, %arg10: memref<1x256xf32, #tpu.memory_space<vmem>>, %arg11: memref<4x256x128xbf16, #tpu.memory_space<vmem>>, %arg12: memref<1x128xf32, #tpu.memory_space<vmem>>, %arg13: memref<4x128x64xbf16, #tpu.memory_space<vmem>>, %arg14: memref<1x64xf32, #tpu.memory_space<vmem>>, %arg15: memref<9x64xf32, #tpu.memory_space<vmem>>, %arg16: memref<1x1xf32, #tpu.memory_space<vmem>>, %arg17: memref<4x64x256xbf16, #tpu.memory_space<vmem>>, %arg18: memref<4x16x64xbf16, #tpu.memory_space<vmem>>, %arg19: memref<4x64x16xf32, #tpu.memory_space<vmem>>, %arg20: memref<4x256x64xf32, #tpu.memory_space<vmem>>, %arg21: memref<1x256x1xf32, #tpu.memory_space<vmem>>, %arg22: memref<89x64xf32, #tpu.memory_space<vmem>>, %arg23: memref<29x128xf32, #tpu.memory_space<vmem>>, %arg24: memref<297x64xf32, #tpu.memory_space<vmem>>) attributes {dimension_semantics = [#tpu.dimension_semantics<parallel>], iteration_bounds = array<i64: 2>, scalar_prefetch = 0 : i64, scratch_operands = 3 : i64, tpu.core_type = #tpu.core_type<tc>, window_params = [{transform_indices = @transform_0, window_bounds = array<i64: 1, 256, 45>}, {pipeline_mode = #tpu.pipeline_mode<synchronous>, transform_indices = @transform_1, window_bounds = array<i64: 45, 64>}, {pipeline_mode = #tpu.pipeline_mode<synchronous>, transform_indices = @transform_2, window_bounds = array<i64: 1, 64>}, {pipeline_mode = #tpu.pipeline_mode<synchronous>, transform_indices = @transform_3, window_bounds = array<i64: 1, 64>}, {pipeline_mode = #tpu.pipeline_mode<synchronous>, transform_indices = @transform_4, window_bounds = array<i64: 9, 64, 128>}, {pipeline_mode = #tpu.pipeline_mode<synchronous>, transform_indices = @transform_5, window_bounds = array<i64: 1, 128>}, {pipeline_mode = #tpu.pipeline_mode<synchronous>, transform_indices = @transform_6, window_bounds = array<i64: 1, 128>}, {pipeline_mode = #tpu.pipeline_mode<synchronous>, transform_indices = @transform_7, window_bounds = array<i64: 9, 128, 256>}, {pipeline_mode = #tpu.pipeline_mode<synchronous>, transform_indices = @transform_8, window_bounds = array<i64: 1, 256>}, {pipeline_mode = #tpu.pipeline_mode<synchronous>, transform_indices = @transform_9, window_bounds = array<i64: 1, 256>}, {pipeline_mode = #tpu.pipeline_mode<synchronous>, transform_indices = @transform_10, window_bounds = array<i64: 4, 256, 128>}, {pipeline_mode = #tpu.pipeline_mode<synchronous>, transform_indices = @transform_11, window_bounds = array<i64: 1, 128>}, {pipeline_mode = #tpu.pipeline_mode<synchronous>, transform_indices = @transform_12, window_bounds = array<i64: 4, 128, 64>}, {pipeline_mode = #tpu.pipeline_mode<synchronous>, transform_indices = @transform_13, window_bounds = array<i64: 1, 64>}, {pipeline_mode = #tpu.pipeline_mode<synchronous>, transform_indices = @transform_14, window_bounds = array<i64: 9, 64>}, {pipeline_mode = #tpu.pipeline_mode<synchronous>, transform_indices = @transform_15, window_bounds = array<i64: 1, 1>}, {pipeline_mode = #tpu.pipeline_mode<synchronous>, transform_indices = @transform_16, window_bounds = array<i64: 4, 64, 256>}, {pipeline_mode = #tpu.pipeline_mode<synchronous>, transform_indices = @transform_17, window_bounds = array<i64: 4, 16, 64>}, {pipeline_mode = #tpu.pipeline_mode<synchronous>, transform_indices = @transform_18, window_bounds = array<i64: 4, 64, 16>}, {pipeline_mode = #tpu.pipeline_mode<synchronous>, transform_indices = @transform_19, window_bounds = array<i64: 4, 256, 64>}, {transform_indices = @transform_20, window_bounds = array<i64: 1, 256, 1>}]} {
    %c0 = arith.constant 0 : index
    %c0_0 = arith.constant 0 : index
    %c0_1 = arith.constant 0 : index
    %0 = vector.load %arg1[%c0, %c0_0, %c0_1] : memref<1x256x45xbf16, #tpu.memory_space<vmem>>, vector<1x256x45xbf16>
    %1 = vector.shape_cast %0 : vector<1x256x45xbf16> to vector<256x45xbf16>
    %c0_2 = arith.constant 0 : index
    %c0_3 = arith.constant 0 : index
    %2 = vector.load %arg2[%c0_2, %c0_3] : memref<45x64xbf16, #tpu.memory_space<vmem>>, vector<45x64xbf16>
    %cst = arith.constant dense<0.000000e+00> : vector<256x64xf32>
    %3 = tpu.matmul %1, %2, %cst {dimension_numbers = #tpu.dot_dimension_numbers<[1], [0], [0], [1], [0, 0, 1, 1], [], []>} : vector<256x45xbf16>, vector<45x64xbf16>, vector<256x64xf32> -> vector<256x64xf32>
    %c0_4 = arith.constant 0 : index
    %c0_5 = arith.constant 0 : index
    %4 = vector.load %arg3[%c0_4, %c0_5] : memref<1x64xf32, #tpu.memory_space<vmem>>, vector<1x64xf32>
    %5 = vector.broadcast %4 : vector<1x64xf32> to vector<256x64xf32>
    %6 = arith.mulf %3, %5 : vector<256x64xf32>
    %c0_6 = arith.constant 0 : index
    %c0_7 = arith.constant 0 : index
    %7 = vector.load %arg4[%c0_6, %c0_7] : memref<1x64xf32, #tpu.memory_space<vmem>>, vector<1x64xf32>
    %8 = vector.broadcast %7 : vector<1x64xf32> to vector<256x64xf32>
    %9 = arith.addf %6, %8 : vector<256x64xf32>
    %cst_8 = arith.constant 0.000000e+00 : f32
    %10 = vector.broadcast %cst_8 : f32 to vector<256x64xf32>
    %11 = arith.maximumf %9, %10 : vector<256x64xf32>
    %12 = arith.truncf %11 : vector<256x64xf32> to vector<256x64xbf16>
    %c0_9 = arith.constant 0 : index
    %c0_10 = arith.constant 0 : index
    %c0_11 = arith.constant 0 : index
    %13 = vector.load %arg17[%c0_9, %c0_10, %c0_11] : memref<4x64x256xbf16, #tpu.memory_space<vmem>>, vector<1x64x256xbf16>
    %14 = vector.shape_cast %13 : vector<1x64x256xbf16> to vector<64x256xbf16>
    %cst_12 = arith.constant dense<0.000000e+00> : vector<64x64xf32>
    %15 = tpu.matmul %14, %12, %cst_12 {dimension_numbers = #tpu.dot_dimension_numbers<[1], [0], [0], [1], [0, 0, 1, 1], [], []>} : vector<64x256xbf16>, vector<256x64xbf16>, vector<64x64xf32> -> vector<64x64xf32>
    %c1 = arith.constant 1 : index
    %c0_13 = arith.constant 0 : index
    %c0_14 = arith.constant 0 : index
    %16 = vector.load %arg17[%c1, %c0_13, %c0_14] : memref<4x64x256xbf16, #tpu.memory_space<vmem>>, vector<1x64x256xbf16>
    %17 = vector.shape_cast %16 : vector<1x64x256xbf16> to vector<64x256xbf16>
    %cst_15 = arith.constant dense<0.000000e+00> : vector<64x64xf32>
    %18 = tpu.matmul %17, %12, %cst_15 {dimension_numbers = #tpu.dot_dimension_numbers<[1], [0], [0], [1], [0, 0, 1, 1], [], []>} : vector<64x256xbf16>, vector<256x64xbf16>, vector<64x64xf32> -> vector<64x64xf32>
    %19 = arith.maximumf %15, %18 : vector<64x64xf32>
    %c2 = arith.constant 2 : index
    %c0_16 = arith.constant 0 : index
    %c0_17 = arith.constant 0 : index
    %20 = vector.load %arg17[%c2, %c0_16, %c0_17] : memref<4x64x256xbf16, #tpu.memory_space<vmem>>, vector<1x64x256xbf16>
    %21 = vector.shape_cast %20 : vector<1x64x256xbf16> to vector<64x256xbf16>
    %cst_18 = arith.constant dense<0.000000e+00> : vector<64x64xf32>
    %22 = tpu.matmul %21, %12, %cst_18 {dimension_numbers = #tpu.dot_dimension_numbers<[1], [0], [0], [1], [0, 0, 1, 1], [], []>} : vector<64x256xbf16>, vector<256x64xbf16>, vector<64x64xf32> -> vector<64x64xf32>
    %23 = arith.maximumf %19, %22 : vector<64x64xf32>
    %c3 = arith.constant 3 : index
    %c0_19 = arith.constant 0 : index
    %c0_20 = arith.constant 0 : index
    %24 = vector.load %arg17[%c3, %c0_19, %c0_20] : memref<4x64x256xbf16, #tpu.memory_space<vmem>>, vector<1x64x256xbf16>
    %25 = vector.shape_cast %24 : vector<1x64x256xbf16> to vector<64x256xbf16>
    %cst_21 = arith.constant dense<0.000000e+00> : vector<64x64xf32>
    %26 = tpu.matmul %25, %12, %cst_21 {dimension_numbers = #tpu.dot_dimension_numbers<[1], [0], [0], [1], [0, 0, 1, 1], [], []>} : vector<64x256xbf16>, vector<256x64xbf16>, vector<64x64xf32> -> vector<64x64xf32>
    %27 = arith.maximumf %23, %26 : vector<64x64xf32>
    %cst_22 = arith.constant 0.000000e+00 : f32
    %28 = vector.broadcast %cst_22 : f32 to vector<89x64xf32>
    %c0_23 = arith.constant 0 : index
    %c0_24 = arith.constant 0 : index
    %29 = vector.load %arg22[%c0_23, %c0_24] : memref<89x64xf32, #tpu.memory_space<vmem>>, vector<89x64xf32>
    tpu.vector_store %arg22[%c0_23, %c0_24], %28 {strides = array<i32>} : memref<89x64xf32, #tpu.memory_space<vmem>>, vector<89x64xf32>,
    %c16 = arith.constant 16 : index
    %c0_25 = arith.constant 0 : index
    %30 = vector.load %arg22[%c16, %c0_25] : memref<89x64xf32, #tpu.memory_space<vmem>>, vector<64x64xf32>
    tpu.vector_store %arg22[%c16, %c0_25], %27 {strides = array<i32>} : memref<89x64xf32, #tpu.memory_space<vmem>>, vector<64x64xf32>,
    %31 = tpu.iota {dimensions = array<i32: 0>} : vector<64x1xi32>
    %c7_i32 = arith.constant 7 : i32
    %32 = vector.broadcast %c7_i32 : i32 to vector<64x1xi32>
    %33 = arith.andi %31, %32 : vector<64x1xi32>
    %cst_26 = arith.constant 0.000000e+00 : f32
    %34 = vector.broadcast %cst_26 : f32 to vector<64x128xf32>
    %c7 = arith.constant 7 : index
    %c0_27 = arith.constant 0 : index
    %35 = vector.load %arg22[%c7, %c0_27] : memref<89x64xf32, #tpu.memory_space<vmem>>, vector<64x64xf32>
    %c1_i32 = arith.constant 1 : i32
    %36 = vector.broadcast %c1_i32 : i32 to vector<64x1xi32>
    %37 = arith.cmpi sge, %33, %36 : vector<64x1xi32>
    %cst_28 = arith.constant 0.000000e+00 : f32
    %38 = vector.shape_cast %37 : vector<64x1xi1> to vector<64x1xi1>
    %39 = vector.broadcast %38 : vector<64x1xi1> to vector<64x64xi1>
    %40 = vector.broadcast %cst_28 : f32 to vector<64x64xf32>
    %41 = arith.select %39, %35, %40 : vector<64x64xi1>, vector<64x64xf32>
    %42 = arith.truncf %41 : vector<64x64xf32> to vector<64x64xbf16>
    %c0_29 = arith.constant 0 : index
    %c0_30 = arith.constant 0 : index
    %c0_31 = arith.constant 0 : index
    %43 = vector.load %arg5[%c0_29, %c0_30, %c0_31] : memref<9x64x128xbf16, #tpu.memory_space<vmem>>, vector<1x64x128xbf16>
    %44 = vector.shape_cast %43 : vector<1x64x128xbf16> to vector<64x128xbf16>
    %cst_32 = arith.constant dense<0.000000e+00> : vector<64x128xf32>
    %45 = tpu.matmul %42, %44, %cst_32 {dimension_numbers = #tpu.dot_dimension_numbers<[1], [0], [0], [1], [0, 0, 1, 1], [], []>} : vector<64x64xbf16>, vector<64x128xbf16>, vector<64x128xf32> -> vector<64x128xf32>
    %46 = arith.addf %34, %45 : vector<64x128xf32>
    %c8 = arith.constant 8 : index
    %c0_33 = arith.constant 0 : index
    %47 = vector.load %arg22[%c8, %c0_33] : memref<89x64xf32, #tpu.memory_space<vmem>>, vector<64x64xf32>
    %48 = arith.truncf %47 : vector<64x64xf32> to vector<64x64xbf16>
    %c1_34 = arith.constant 1 : index
    %c0_35 = arith.constant 0 : index
    %c0_36 = arith.constant 0 : index
    %49 = vector.load %arg5[%c1_34, %c0_35, %c0_36] : memref<9x64x128xbf16, #tpu.memory_space<vmem>>, vector<1x64x128xbf16>
    %50 = vector.shape_cast %49 : vector<1x64x128xbf16> to vector<64x128xbf16>
    %cst_37 = arith.constant dense<0.000000e+00> : vector<64x128xf32>
    %51 = tpu.matmul %48, %50, %cst_37 {dimension_numbers = #tpu.dot_dimension_numbers<[1], [0], [0], [1], [0, 0, 1, 1], [], []>} : vector<64x64xbf16>, vector<64x128xbf16>, vector<64x128xf32> -> vector<64x128xf32>
    %52 = arith.addf %46, %51 : vector<64x128xf32>
    %c9 = arith.constant 9 : index
    %c0_38 = arith.constant 0 : index
    %53 = vector.load %arg22[%c9, %c0_38] : memref<89x64xf32, #tpu.memory_space<vmem>>, vector<64x64xf32>
    %c6_i32 = arith.constant 6 : i32
    %54 = vector.broadcast %c6_i32 : i32 to vector<64x1xi32>
    %55 = arith.cmpi sle, %33, %54 : vector<64x1xi32>
    %cst_39 = arith.constant 0.000000e+00 : f32
    %56 = vector.shape_cast %55 : vector<64x1xi1> to vector<64x1xi1>
    %57 = vector.broadcast %56 : vector<64x1xi1> to vector<64x64xi1>
    %58 = vector.broadcast %cst_39 : f32 to vector<64x64xf32>
    %59 = arith.select %57, %53, %58 : vector<64x64xi1>, vector<64x64xf32>
    %60 = arith.truncf %59 : vector<64x64xf32> to vector<64x64xbf16>
    %c2_40 = arith.constant 2 : index
    %c0_41 = arith.constant 0 : index
    %c0_42 = arith.constant 0 : index
    %61 = vector.load %arg5[%c2_40, %c0_41, %c0_42] : memref<9x64x128xbf16, #tpu.memory_space<vmem>>, vector<1x64x128xbf16>
    %62 = vector.shape_cast %61 : vector<1x64x128xbf16> to vector<64x128xbf16>
    %cst_43 = arith.constant dense<0.000000e+00> : vector<64x128xf32>
    %63 = tpu.matmul %60, %62, %cst_43 {dimension_numbers = #tpu.dot_dimension_numbers<[1], [0], [0], [1], [0, 0, 1, 1], [], []>} : vector<64x64xbf16>, vector<64x128xbf16>, vector<64x128xf32> -> vector<64x128xf32>
    %64 = arith.addf %52, %63 : vector<64x128xf32>
    %c15 = arith.constant 15 : index
    %c0_44 = arith.constant 0 : index
    %65 = vector.load %arg22[%c15, %c0_44] : memref<89x64xf32, #tpu.memory_space<vmem>>, vector<64x64xf32>
    %c1_i32_45 = arith.constant 1 : i32
    %66 = vector.broadcast %c1_i32_45 : i32 to vector<64x1xi32>
    %67 = arith.cmpi sge, %33, %66 : vector<64x1xi32>
    %cst_46 = arith.constant 0.000000e+00 : f32
    %68 = vector.shape_cast %67 : vector<64x1xi1> to vector<64x1xi1>
    %69 = vector.broadcast %68 : vector<64x1xi1> to vector<64x64xi1>
    %70 = vector.broadcast %cst_46 : f32 to vector<64x64xf32>
    %71 = arith.select %69, %65, %70 : vector<64x64xi1>, vector<64x64xf32>
    %72 = arith.truncf %71 : vector<64x64xf32> to vector<64x64xbf16>
    %c3_47 = arith.constant 3 : index
    %c0_48 = arith.constant 0 : index
    %c0_49 = arith.constant 0 : index
    %73 = vector.load %arg5[%c3_47, %c0_48, %c0_49] : memref<9x64x128xbf16, #tpu.memory_space<vmem>>, vector<1x64x128xbf16>
    %74 = vector.shape_cast %73 : vector<1x64x128xbf16> to vector<64x128xbf16>
    %cst_50 = arith.constant dense<0.000000e+00> : vector<64x128xf32>
    %75 = tpu.matmul %72, %74, %cst_50 {dimension_numbers = #tpu.dot_dimension_numbers<[1], [0], [0], [1], [0, 0, 1, 1], [], []>} : vector<64x64xbf16>, vector<64x128xbf16>, vector<64x128xf32> -> vector<64x128xf32>
    %76 = arith.addf %64, %75 : vector<64x128xf32>
    %c16_51 = arith.constant 16 : index
    %c0_52 = arith.constant 0 : index
    %77 = vector.load %arg22[%c16_51, %c0_52] : memref<89x64xf32, #tpu.memory_space<vmem>>, vector<64x64xf32>
    %78 = arith.truncf %77 : vector<64x64xf32> to vector<64x64xbf16>
    %c4 = arith.constant 4 : index
    %c0_53 = arith.constant 0 : index
    %c0_54 = arith.constant 0 : index
    %79 = vector.load %arg5[%c4, %c0_53, %c0_54] : memref<9x64x128xbf16, #tpu.memory_space<vmem>>, vector<1x64x128xbf16>
    %80 = vector.shape_cast %79 : vector<1x64x128xbf16> to vector<64x128xbf16>
    %cst_55 = arith.constant dense<0.000000e+00> : vector<64x128xf32>
    %81 = tpu.matmul %78, %80, %cst_55 {dimension_numbers = #tpu.dot_dimension_numbers<[1], [0], [0], [1], [0, 0, 1, 1], [], []>} : vector<64x64xbf16>, vector<64x128xbf16>, vector<64x128xf32> -> vector<64x128xf32>
    %82 = arith.addf %76, %81 : vector<64x128xf32>
    %c17 = arith.constant 17 : index
    %c0_56 = arith.constant 0 : index
    %83 = vector.load %arg22[%c17, %c0_56] : memref<89x64xf32, #tpu.memory_space<vmem>>, vector<64x64xf32>
    %c6_i32_57 = arith.constant 6 : i32
    %84 = vector.broadcast %c6_i32_57 : i32 to vector<64x1xi32>
    %85 = arith.cmpi sle, %33, %84 : vector<64x1xi32>
    %cst_58 = arith.constant 0.000000e+00 : f32
    %86 = vector.shape_cast %85 : vector<64x1xi1> to vector<64x1xi1>
    %87 = vector.broadcast %86 : vector<64x1xi1> to vector<64x64xi1>
    %88 = vector.broadcast %cst_58 : f32 to vector<64x64xf32>
    %89 = arith.select %87, %83, %88 : vector<64x64xi1>, vector<64x64xf32>
    %90 = arith.truncf %89 : vector<64x64xf32> to vector<64x64xbf16>
    %c5 = arith.constant 5 : index
    %c0_59 = arith.constant 0 : index
    %c0_60 = arith.constant 0 : index
    %91 = vector.load %arg5[%c5, %c0_59, %c0_60] : memref<9x64x128xbf16, #tpu.memory_space<vmem>>, vector<1x64x128xbf16>
    %92 = vector.shape_cast %91 : vector<1x64x128xbf16> to vector<64x128xbf16>
    %cst_61 = arith.constant dense<0.000000e+00> : vector<64x128xf32>
    %93 = tpu.matmul %90, %92, %cst_61 {dimension_numbers = #tpu.dot_dimension_numbers<[1], [0], [0], [1], [0, 0, 1, 1], [], []>} : vector<64x64xbf16>, vector<64x128xbf16>, vector<64x128xf32> -> vector<64x128xf32>
    %94 = arith.addf %82, %93 : vector<64x128xf32>
    %c23 = arith.constant 23 : index
    %c0_62 = arith.constant 0 : index
    %95 = vector.load %arg22[%c23, %c0_62] : memref<89x64xf32, #tpu.memory_space<vmem>>, vector<64x64xf32>
    %c1_i32_63 = arith.constant 1 : i32
    %96 = vector.broadcast %c1_i32_63 : i32 to vector<64x1xi32>
    %97 = arith.cmpi sge, %33, %96 : vector<64x1xi32>
    %cst_64 = arith.constant 0.000000e+00 : f32
    %98 = vector.shape_cast %97 : vector<64x1xi1> to vector<64x1xi1>
    %99 = vector.broadcast %98 : vector<64x1xi1> to vector<64x64xi1>
    %100 = vector.broadcast %cst_64 : f32 to vector<64x64xf32>
    %101 = arith.select %99, %95, %100 : vector<64x64xi1>, vector<64x64xf32>
    %102 = arith.truncf %101 : vector<64x64xf32> to vector<64x64xbf16>
    %c6 = arith.constant 6 : index
    %c0_65 = arith.constant 0 : index
    %c0_66 = arith.constant 0 : index
    %103 = vector.load %arg5[%c6, %c0_65, %c0_66] : memref<9x64x128xbf16, #tpu.memory_space<vmem>>, vector<1x64x128xbf16>
    %104 = vector.shape_cast %103 : vector<1x64x128xbf16> to vector<64x128xbf16>
    %cst_67 = arith.constant dense<0.000000e+00> : vector<64x128xf32>
    %105 = tpu.matmul %102, %104, %cst_67 {dimension_numbers = #tpu.dot_dimension_numbers<[1], [0], [0], [1], [0, 0, 1, 1], [], []>} : vector<64x64xbf16>, vector<64x128xbf16>, vector<64x128xf32> -> vector<64x128xf32>
    %106 = arith.addf %94, %105 : vector<64x128xf32>
    %c24 = arith.constant 24 : index
    %c0_68 = arith.constant 0 : index
    %107 = vector.load %arg22[%c24, %c0_68] : memref<89x64xf32, #tpu.memory_space<vmem>>, vector<64x64xf32>
    %108 = arith.truncf %107 : vector<64x64xf32> to vector<64x64xbf16>
    %c7_69 = arith.constant 7 : index
    %c0_70 = arith.constant 0 : index
    %c0_71 = arith.constant 0 : index
    %109 = vector.load %arg5[%c7_69, %c0_70, %c0_71] : memref<9x64x128xbf16, #tpu.memory_space<vmem>>, vector<1x64x128xbf16>
    %110 = vector.shape_cast %109 : vector<1x64x128xbf16> to vector<64x128xbf16>
    %cst_72 = arith.constant dense<0.000000e+00> : vector<64x128xf32>
    %111 = tpu.matmul %108, %110, %cst_72 {dimension_numbers = #tpu.dot_dimension_numbers<[1], [0], [0], [1], [0, 0, 1, 1], [], []>} : vector<64x64xbf16>, vector<64x128xbf16>, vector<64x128xf32> -> vector<64x128xf32>
    %112 = arith.addf %106, %111 : vector<64x128xf32>
    %c25 = arith.constant 25 : index
    %c0_73 = arith.constant 0 : index
    %113 = vector.load %arg22[%c25, %c0_73] : memref<89x64xf32, #tpu.memory_space<vmem>>, vector<64x64xf32>
    %c6_i32_74 = arith.constant 6 : i32
    %114 = vector.broadcast %c6_i32_74 : i32 to vector<64x1xi32>
    %115 = arith.cmpi sle, %33, %114 : vector<64x1xi32>
    %cst_75 = arith.constant 0.000000e+00 : f32
    %116 = vector.shape_cast %115 : vector<64x1xi1> to vector<64x1xi1>
    %117 = vector.broadcast %116 : vector<64x1xi1> to vector<64x64xi1>
    %118 = vector.broadcast %cst_75 : f32 to vector<64x64xf32>
    %119 = arith.select %117, %113, %118 : vector<64x64xi1>, vector<64x64xf32>
    %120 = arith.truncf %119 : vector<64x64xf32> to vector<64x64xbf16>
    %c8_76 = arith.constant 8 : index
    %c0_77 = arith.constant 0 : index
    %c0_78 = arith.constant 0 : index
    %121 = vector.load %arg5[%c8_76, %c0_77, %c0_78] : memref<9x64x128xbf16, #tpu.memory_space<vmem>>, vector<1x64x128xbf16>
    %122 = vector.shape_cast %121 : vector<1x64x128xbf16> to vector<64x128xbf16>
    %cst_79 = arith.constant dense<0.000000e+00> : vector<64x128xf32>
    %123 = tpu.matmul %120, %122, %cst_79 {dimension_numbers = #tpu.dot_dimension_numbers<[1], [0], [0], [1], [0, 0, 1, 1], [], []>} : vector<64x64xbf16>, vector<64x128xbf16>, vector<64x128xf32> -> vector<64x128xf32>
    %124 = arith.addf %112, %123 : vector<64x128xf32>
    %c0_80 = arith.constant 0 : index
    %c0_81 = arith.constant 0 : index
    %125 = vector.load %arg6[%c0_80, %c0_81] : memref<1x128xf32, #tpu.memory_space<vmem>>, vector<1x128xf32>
    %126 = vector.broadcast %125 : vector<1x128xf32> to vector<64x128xf32>
    %127 = arith.mulf %124, %126 : vector<64x128xf32>
    %c0_82 = arith.constant 0 : index
    %c0_83 = arith.constant 0 : index
    %128 = vector.load %arg7[%c0_82, %c0_83] : memref<1x128xf32, #tpu.memory_space<vmem>>, vector<1x128xf32>
    %129 = vector.broadcast %128 : vector<1x128xf32> to vector<64x128xf32>
    %130 = arith.addf %127, %129 : vector<64x128xf32>
    %cst_84 = arith.constant 0.000000e+00 : f32
    %131 = vector.broadcast %cst_84 : f32 to vector<64x128xf32>
    %132 = arith.maximumf %130, %131 : vector<64x128xf32>
    %133 = arith.truncf %132 : vector<64x128xf32> to vector<64x128xbf16>
    %c0_85 = arith.constant 0 : index
    %c0_86 = arith.constant 0 : index
    %c0_87 = arith.constant 0 : index
    %134 = vector.load %arg18[%c0_85, %c0_86, %c0_87] : memref<4x16x64xbf16, #tpu.memory_space<vmem>>, vector<1x16x64xbf16>
    %135 = vector.shape_cast %134 : vector<1x16x64xbf16> to vector<16x64xbf16>
    %cst_88 = arith.constant dense<0.000000e+00> : vector<16x128xf32>
    %136 = tpu.matmul %135, %133, %cst_88 {dimension_numbers = #tpu.dot_dimension_numbers<[1], [0], [0], [1], [0, 0, 1, 1], [], []>} : vector<16x64xbf16>, vector<64x128xbf16>, vector<16x128xf32> -> vector<16x128xf32>
    %c1_89 = arith.constant 1 : index
    %c0_90 = arith.constant 0 : index
    %c0_91 = arith.constant 0 : index
    %137 = vector.load %arg18[%c1_89, %c0_90, %c0_91] : memref<4x16x64xbf16, #tpu.memory_space<vmem>>, vector<1x16x64xbf16>
    %138 = vector.shape_cast %137 : vector<1x16x64xbf16> to vector<16x64xbf16>
    %cst_92 = arith.constant dense<0.000000e+00> : vector<16x128xf32>
    %139 = tpu.matmul %138, %133, %cst_92 {dimension_numbers = #tpu.dot_dimension_numbers<[1], [0], [0], [1], [0, 0, 1, 1], [], []>} : vector<16x64xbf16>, vector<64x128xbf16>, vector<16x128xf32> -> vector<16x128xf32>
    %140 = arith.maximumf %136, %139 : vector<16x128xf32>
    %c2_93 = arith.constant 2 : index
    %c0_94 = arith.constant 0 : index
    %c0_95 = arith.constant 0 : index
    %141 = vector.load %arg18[%c2_93, %c0_94, %c0_95] : memref<4x16x64xbf16, #tpu.memory_space<vmem>>, vector<1x16x64xbf16>
    %142 = vector.shape_cast %141 : vector<1x16x64xbf16> to vector<16x64xbf16>
    %cst_96 = arith.constant dense<0.000000e+00> : vector<16x128xf32>
    %143 = tpu.matmul %142, %133, %cst_96 {dimension_numbers = #tpu.dot_dimension_numbers<[1], [0], [0], [1], [0, 0, 1, 1], [], []>} : vector<16x64xbf16>, vector<64x128xbf16>, vector<16x128xf32> -> vector<16x128xf32>
    %144 = arith.maximumf %140, %143 : vector<16x128xf32>
    %c3_97 = arith.constant 3 : index
    %c0_98 = arith.constant 0 : index
    %c0_99 = arith.constant 0 : index
    %145 = vector.load %arg18[%c3_97, %c0_98, %c0_99] : memref<4x16x64xbf16, #tpu.memory_space<vmem>>, vector<1x16x64xbf16>
    %146 = vector.shape_cast %145 : vector<1x16x64xbf16> to vector<16x64xbf16>
    %cst_100 = arith.constant dense<0.000000e+00> : vector<16x128xf32>
    %147 = tpu.matmul %146, %133, %cst_100 {dimension_numbers = #tpu.dot_dimension_numbers<[1], [0], [0], [1], [0, 0, 1, 1], [], []>} : vector<16x64xbf16>, vector<64x128xbf16>, vector<16x128xf32> -> vector<16x128xf32>
    %148 = arith.maximumf %144, %147 : vector<16x128xf32>
    %cst_101 = arith.constant 0.000000e+00 : f32
    %149 = vector.broadcast %cst_101 : f32 to vector<29x128xf32>
    %c0_102 = arith.constant 0 : index
    %c0_103 = arith.constant 0 : index
    %150 = vector.load %arg23[%c0_102, %c0_103] : memref<29x128xf32, #tpu.memory_space<vmem>>, vector<29x128xf32>
    tpu.vector_store %arg23[%c0_102, %c0_103], %149 {strides = array<i32>} : memref<29x128xf32, #tpu.memory_space<vmem>>, vector<29x128xf32>,
    %c8_104 = arith.constant 8 : index
    %c0_105 = arith.constant 0 : index
    %151 = vector.load %arg23[%c8_104, %c0_105] : memref<29x128xf32, #tpu.memory_space<vmem>>, vector<16x128xf32>
    tpu.vector_store %arg23[%c8_104, %c0_105], %148 {strides = array<i32>} : memref<29x128xf32, #tpu.memory_space<vmem>>, vector<16x128xf32>,
    %152 = tpu.iota {dimensions = array<i32: 0>} : vector<16x1xi32>
    %c3_i32 = arith.constant 3 : i32
    %153 = vector.broadcast %c3_i32 : i32 to vector<16x1xi32>
    %154 = arith.andi %152, %153 : vector<16x1xi32>
    %cst_106 = arith.constant 0.000000e+00 : f32
    %155 = vector.broadcast %cst_106 : f32 to vector<16x256xf32>
    %c3_107 = arith.constant 3 : index
    %c0_108 = arith.constant 0 : index
    %156 = vector.load %arg23[%c3_107, %c0_108] : memref<29x128xf32, #tpu.memory_space<vmem>>, vector<16x128xf32>
    %c1_i32_109 = arith.constant 1 : i32
    %157 = vector.broadcast %c1_i32_109 : i32 to vector<16x1xi32>
    %158 = arith.cmpi sge, %154, %157 : vector<16x1xi32>
    %cst_110 = arith.constant 0.000000e+00 : f32
    %159 = vector.shape_cast %158 : vector<16x1xi1> to vector<16x1xi1>
    %160 = vector.broadcast %159 : vector<16x1xi1> to vector<16x128xi1>
    %161 = vector.broadcast %cst_110 : f32 to vector<16x128xf32>
    %162 = arith.select %160, %156, %161 : vector<16x128xi1>, vector<16x128xf32>
    %163 = arith.truncf %162 : vector<16x128xf32> to vector<16x128xbf16>
    %c0_111 = arith.constant 0 : index
    %c0_112 = arith.constant 0 : index
    %c0_113 = arith.constant 0 : index
    %164 = vector.load %arg8[%c0_111, %c0_112, %c0_113] : memref<9x128x256xbf16, #tpu.memory_space<vmem>>, vector<1x128x256xbf16>
    %165 = vector.shape_cast %164 : vector<1x128x256xbf16> to vector<128x256xbf16>
    %cst_114 = arith.constant dense<0.000000e+00> : vector<16x256xf32>
    %166 = tpu.matmul %163, %165, %cst_114 {dimension_numbers = #tpu.dot_dimension_numbers<[1], [0], [0], [1], [0, 0, 1, 1], [], []>} : vector<16x128xbf16>, vector<128x256xbf16>, vector<16x256xf32> -> vector<16x256xf32>
    %167 = arith.addf %155, %166 : vector<16x256xf32>
    %c4_115 = arith.constant 4 : index
    %c0_116 = arith.constant 0 : index
    %168 = vector.load %arg23[%c4_115, %c0_116] : memref<29x128xf32, #tpu.memory_space<vmem>>, vector<16x128xf32>
    %169 = arith.truncf %168 : vector<16x128xf32> to vector<16x128xbf16>
    %c1_117 = arith.constant 1 : index
    %c0_118 = arith.constant 0 : index
    %c0_119 = arith.constant 0 : index
    %170 = vector.load %arg8[%c1_117, %c0_118, %c0_119] : memref<9x128x256xbf16, #tpu.memory_space<vmem>>, vector<1x128x256xbf16>
    %171 = vector.shape_cast %170 : vector<1x128x256xbf16> to vector<128x256xbf16>
    %cst_120 = arith.constant dense<0.000000e+00> : vector<16x256xf32>
    %172 = tpu.matmul %169, %171, %cst_120 {dimension_numbers = #tpu.dot_dimension_numbers<[1], [0], [0], [1], [0, 0, 1, 1], [], []>} : vector<16x128xbf16>, vector<128x256xbf16>, vector<16x256xf32> -> vector<16x256xf32>
    %173 = arith.addf %167, %172 : vector<16x256xf32>
    %c5_121 = arith.constant 5 : index
    %c0_122 = arith.constant 0 : index
    %174 = vector.load %arg23[%c5_121, %c0_122] : memref<29x128xf32, #tpu.memory_space<vmem>>, vector<16x128xf32>
    %c2_i32 = arith.constant 2 : i32
    %175 = vector.broadcast %c2_i32 : i32 to vector<16x1xi32>
    %176 = arith.cmpi sle, %154, %175 : vector<16x1xi32>
    %cst_123 = arith.constant 0.000000e+00 : f32
    %177 = vector.shape_cast %176 : vector<16x1xi1> to vector<16x1xi1>
    %178 = vector.broadcast %177 : vector<16x1xi1> to vector<16x128xi1>
    %179 = vector.broadcast %cst_123 : f32 to vector<16x128xf32>
    %180 = arith.select %178, %174, %179 : vector<16x128xi1>, vector<16x128xf32>
    %181 = arith.truncf %180 : vector<16x128xf32> to vector<16x128xbf16>
    %c2_124 = arith.constant 2 : index
    %c0_125 = arith.constant 0 : index
    %c0_126 = arith.constant 0 : index
    %182 = vector.load %arg8[%c2_124, %c0_125, %c0_126] : memref<9x128x256xbf16, #tpu.memory_space<vmem>>, vector<1x128x256xbf16>
    %183 = vector.shape_cast %182 : vector<1x128x256xbf16> to vector<128x256xbf16>
    %cst_127 = arith.constant dense<0.000000e+00> : vector<16x256xf32>
    %184 = tpu.matmul %181, %183, %cst_127 {dimension_numbers = #tpu.dot_dimension_numbers<[1], [0], [0], [1], [0, 0, 1, 1], [], []>} : vector<16x128xbf16>, vector<128x256xbf16>, vector<16x256xf32> -> vector<16x256xf32>
    %185 = arith.addf %173, %184 : vector<16x256xf32>
    %c7_128 = arith.constant 7 : index
    %c0_129 = arith.constant 0 : index
    %186 = vector.load %arg23[%c7_128, %c0_129] : memref<29x128xf32, #tpu.memory_space<vmem>>, vector<16x128xf32>
    %c1_i32_130 = arith.constant 1 : i32
    %187 = vector.broadcast %c1_i32_130 : i32 to vector<16x1xi32>
    %188 = arith.cmpi sge, %154, %187 : vector<16x1xi32>
    %cst_131 = arith.constant 0.000000e+00 : f32
    %189 = vector.shape_cast %188 : vector<16x1xi1> to vector<16x1xi1>
    %190 = vector.broadcast %189 : vector<16x1xi1> to vector<16x128xi1>
    %191 = vector.broadcast %cst_131 : f32 to vector<16x128xf32>
    %192 = arith.select %190, %186, %191 : vector<16x128xi1>, vector<16x128xf32>
    %193 = arith.truncf %192 : vector<16x128xf32> to vector<16x128xbf16>
    %c3_132 = arith.constant 3 : index
    %c0_133 = arith.constant 0 : index
    %c0_134 = arith.constant 0 : index
    %194 = vector.load %arg8[%c3_132, %c0_133, %c0_134] : memref<9x128x256xbf16, #tpu.memory_space<vmem>>, vector<1x128x256xbf16>
    %195 = vector.shape_cast %194 : vector<1x128x256xbf16> to vector<128x256xbf16>
    %cst_135 = arith.constant dense<0.000000e+00> : vector<16x256xf32>
    %196 = tpu.matmul %193, %195, %cst_135 {dimension_numbers = #tpu.dot_dimension_numbers<[1], [0], [0], [1], [0, 0, 1, 1], [], []>} : vector<16x128xbf16>, vector<128x256xbf16>, vector<16x256xf32> -> vector<16x256xf32>
    %197 = arith.addf %185, %196 : vector<16x256xf32>
    %c8_136 = arith.constant 8 : index
    %c0_137 = arith.constant 0 : index
    %198 = vector.load %arg23[%c8_136, %c0_137] : memref<29x128xf32, #tpu.memory_space<vmem>>, vector<16x128xf32>
    %199 = arith.truncf %198 : vector<16x128xf32> to vector<16x128xbf16>
    %c4_138 = arith.constant 4 : index
    %c0_139 = arith.constant 0 : index
    %c0_140 = arith.constant 0 : index
    %200 = vector.load %arg8[%c4_138, %c0_139, %c0_140] : memref<9x128x256xbf16, #tpu.memory_space<vmem>>, vector<1x128x256xbf16>
    %201 = vector.shape_cast %200 : vector<1x128x256xbf16> to vector<128x256xbf16>
    %cst_141 = arith.constant dense<0.000000e+00> : vector<16x256xf32>
    %202 = tpu.matmul %199, %201, %cst_141 {dimension_numbers = #tpu.dot_dimension_numbers<[1], [0], [0], [1], [0, 0, 1, 1], [], []>} : vector<16x128xbf16>, vector<128x256xbf16>, vector<16x256xf32> -> vector<16x256xf32>
    %203 = arith.addf %197, %202 : vector<16x256xf32>
    %c9_142 = arith.constant 9 : index
    %c0_143 = arith.constant 0 : index
    %204 = vector.load %arg23[%c9_142, %c0_143] : memref<29x128xf32, #tpu.memory_space<vmem>>, vector<16x128xf32>
    %c2_i32_144 = arith.constant 2 : i32
    %205 = vector.broadcast %c2_i32_144 : i32 to vector<16x1xi32>
    %206 = arith.cmpi sle, %154, %205 : vector<16x1xi32>
    %cst_145 = arith.constant 0.000000e+00 : f32
    %207 = vector.shape_cast %206 : vector<16x1xi1> to vector<16x1xi1>
    %208 = vector.broadcast %207 : vector<16x1xi1> to vector<16x128xi1>
    %209 = vector.broadcast %cst_145 : f32 to vector<16x128xf32>
    %210 = arith.select %208, %204, %209 : vector<16x128xi1>, vector<16x128xf32>
    %211 = arith.truncf %210 : vector<16x128xf32> to vector<16x128xbf16>
    %c5_146 = arith.constant 5 : index
    %c0_147 = arith.constant 0 : index
    %c0_148 = arith.constant 0 : index
    %212 = vector.load %arg8[%c5_146, %c0_147, %c0_148] : memref<9x128x256xbf16, #tpu.memory_space<vmem>>, vector<1x128x256xbf16>
    %213 = vector.shape_cast %212 : vector<1x128x256xbf16> to vector<128x256xbf16>
    %cst_149 = arith.constant dense<0.000000e+00> : vector<16x256xf32>
    %214 = tpu.matmul %211, %213, %cst_149 {dimension_numbers = #tpu.dot_dimension_numbers<[1], [0], [0], [1], [0, 0, 1, 1], [], []>} : vector<16x128xbf16>, vector<128x256xbf16>, vector<16x256xf32> -> vector<16x256xf32>
    %215 = arith.addf %203, %214 : vector<16x256xf32>
    %c11 = arith.constant 11 : index
    %c0_150 = arith.constant 0 : index
    %216 = vector.load %arg23[%c11, %c0_150] : memref<29x128xf32, #tpu.memory_space<vmem>>, vector<16x128xf32>
    %c1_i32_151 = arith.constant 1 : i32
    %217 = vector.broadcast %c1_i32_151 : i32 to vector<16x1xi32>
    %218 = arith.cmpi sge, %154, %217 : vector<16x1xi32>
    %cst_152 = arith.constant 0.000000e+00 : f32
    %219 = vector.shape_cast %218 : vector<16x1xi1> to vector<16x1xi1>
    %220 = vector.broadcast %219 : vector<16x1xi1> to vector<16x128xi1>
    %221 = vector.broadcast %cst_152 : f32 to vector<16x128xf32>
    %222 = arith.select %220, %216, %221 : vector<16x128xi1>, vector<16x128xf32>
    %223 = arith.truncf %222 : vector<16x128xf32> to vector<16x128xbf16>
    %c6_153 = arith.constant 6 : index
    %c0_154 = arith.constant 0 : index
    %c0_155 = arith.constant 0 : index
    %224 = vector.load %arg8[%c6_153, %c0_154, %c0_155] : memref<9x128x256xbf16, #tpu.memory_space<vmem>>, vector<1x128x256xbf16>
    %225 = vector.shape_cast %224 : vector<1x128x256xbf16> to vector<128x256xbf16>
    %cst_156 = arith.constant dense<0.000000e+00> : vector<16x256xf32>
    %226 = tpu.matmul %223, %225, %cst_156 {dimension_numbers = #tpu.dot_dimension_numbers<[1], [0], [0], [1], [0, 0, 1, 1], [], []>} : vector<16x128xbf16>, vector<128x256xbf16>, vector<16x256xf32> -> vector<16x256xf32>
    %227 = arith.addf %215, %226 : vector<16x256xf32>
    %c12 = arith.constant 12 : index
    %c0_157 = arith.constant 0 : index
    %228 = vector.load %arg23[%c12, %c0_157] : memref<29x128xf32, #tpu.memory_space<vmem>>, vector<16x128xf32>
    %229 = arith.truncf %228 : vector<16x128xf32> to vector<16x128xbf16>
    %c7_158 = arith.constant 7 : index
    %c0_159 = arith.constant 0 : index
    %c0_160 = arith.constant 0 : index
    %230 = vector.load %arg8[%c7_158, %c0_159, %c0_160] : memref<9x128x256xbf16, #tpu.memory_space<vmem>>, vector<1x128x256xbf16>
    %231 = vector.shape_cast %230 : vector<1x128x256xbf16> to vector<128x256xbf16>
    %cst_161 = arith.constant dense<0.000000e+00> : vector<16x256xf32>
    %232 = tpu.matmul %229, %231, %cst_161 {dimension_numbers = #tpu.dot_dimension_numbers<[1], [0], [0], [1], [0, 0, 1, 1], [], []>} : vector<16x128xbf16>, vector<128x256xbf16>, vector<16x256xf32> -> vector<16x256xf32>
    %233 = arith.addf %227, %232 : vector<16x256xf32>
    %c13 = arith.constant 13 : index
    %c0_162 = arith.constant 0 : index
    %234 = vector.load %arg23[%c13, %c0_162] : memref<29x128xf32, #tpu.memory_space<vmem>>, vector<16x128xf32>
    %c2_i32_163 = arith.constant 2 : i32
    %235 = vector.broadcast %c2_i32_163 : i32 to vector<16x1xi32>
    %236 = arith.cmpi sle, %154, %235 : vector<16x1xi32>
    %cst_164 = arith.constant 0.000000e+00 : f32
    %237 = vector.shape_cast %236 : vector<16x1xi1> to vector<16x1xi1>
    %238 = vector.broadcast %237 : vector<16x1xi1> to vector<16x128xi1>
    %239 = vector.broadcast %cst_164 : f32 to vector<16x128xf32>
    %240 = arith.select %238, %234, %239 : vector<16x128xi1>, vector<16x128xf32>
    %241 = arith.truncf %240 : vector<16x128xf32> to vector<16x128xbf16>
    %c8_165 = arith.constant 8 : index
    %c0_166 = arith.constant 0 : index
    %c0_167 = arith.constant 0 : index
    %242 = vector.load %arg8[%c8_165, %c0_166, %c0_167] : memref<9x128x256xbf16, #tpu.memory_space<vmem>>, vector<1x128x256xbf16>
    %243 = vector.shape_cast %242 : vector<1x128x256xbf16> to vector<128x256xbf16>
    %cst_168 = arith.constant dense<0.000000e+00> : vector<16x256xf32>
    %244 = tpu.matmul %241, %243, %cst_168 {dimension_numbers = #tpu.dot_dimension_numbers<[1], [0], [0], [1], [0, 0, 1, 1], [], []>} : vector<16x128xbf16>, vector<128x256xbf16>, vector<16x256xf32> -> vector<16x256xf32>
    %245 = arith.addf %233, %244 : vector<16x256xf32>
    %c0_169 = arith.constant 0 : index
    %c0_170 = arith.constant 0 : index
    %246 = vector.load %arg9[%c0_169, %c0_170] : memref<1x256xf32, #tpu.memory_space<vmem>>, vector<1x256xf32>
    %247 = vector.broadcast %246 : vector<1x256xf32> to vector<16x256xf32>
    %248 = arith.mulf %245, %247 : vector<16x256xf32>
    %c0_171 = arith.constant 0 : index
    %c0_172 = arith.constant 0 : index
    %249 = vector.load %arg10[%c0_171, %c0_172] : memref<1x256xf32, #tpu.memory_space<vmem>>, vector<1x256xf32>
    %250 = vector.broadcast %249 : vector<1x256xf32> to vector<16x256xf32>
    %251 = arith.addf %248, %250 : vector<16x256xf32>
    %cst_173 = arith.constant 0.000000e+00 : f32
    %252 = vector.broadcast %cst_173 : f32 to vector<16x256xf32>
    %253 = arith.maximumf %251, %252 : vector<16x256xf32>
    %254 = arith.truncf %253 : vector<16x256xf32> to vector<16x256xbf16>
    %c0_174 = arith.constant 0 : index
    %c0_175 = arith.constant 0 : index
    %c0_176 = arith.constant 0 : index
    %255 = vector.load %arg11[%c0_174, %c0_175, %c0_176] : memref<4x256x128xbf16, #tpu.memory_space<vmem>>, vector<1x256x128xbf16>
    %256 = vector.shape_cast %255 : vector<1x256x128xbf16> to vector<256x128xbf16>
    %cst_177 = arith.constant dense<0.000000e+00> : vector<16x128xf32>
    %257 = tpu.matmul %254, %256, %cst_177 {dimension_numbers = #tpu.dot_dimension_numbers<[1], [0], [0], [1], [0, 0, 1, 1], [], []>} : vector<16x256xbf16>, vector<256x128xbf16>, vector<16x128xf32> -> vector<16x128xf32>
    %c0_178 = arith.constant 0 : index
    %c0_179 = arith.constant 0 : index
    %c0_180 = arith.constant 0 : index
    %258 = vector.load %arg19[%c0_178, %c0_179, %c0_180] : memref<4x64x16xf32, #tpu.memory_space<vmem>>, vector<1x64x16xf32>
    %259 = vector.shape_cast %258 : vector<1x64x16xf32> to vector<64x16xf32>
    %cst_181 = arith.constant dense<0.000000e+00> : vector<64x128xf32>
    %260 = tpu.matmul %259, %257, %cst_181 {dimension_numbers = #tpu.dot_dimension_numbers<[1], [0], [0], [1], [0, 0, 1, 1], [], []>} : vector<64x16xf32>, vector<16x128xf32>, vector<64x128xf32> -> vector<64x128xf32>
    %c1_182 = arith.constant 1 : index
    %c0_183 = arith.constant 0 : index
    %c0_184 = arith.constant 0 : index
    %261 = vector.load %arg11[%c1_182, %c0_183, %c0_184] : memref<4x256x128xbf16, #tpu.memory_space<vmem>>, vector<1x256x128xbf16>
    %262 = vector.shape_cast %261 : vector<1x256x128xbf16> to vector<256x128xbf16>
    %cst_185 = arith.constant dense<0.000000e+00> : vector<16x128xf32>
    %263 = tpu.matmul %254, %262, %cst_185 {dimension_numbers = #tpu.dot_dimension_numbers<[1], [0], [0], [1], [0, 0, 1, 1], [], []>} : vector<16x256xbf16>, vector<256x128xbf16>, vector<16x128xf32> -> vector<16x128xf32>
    %c1_186 = arith.constant 1 : index
    %c0_187 = arith.constant 0 : index
    %c0_188 = arith.constant 0 : index
    %264 = vector.load %arg19[%c1_186, %c0_187, %c0_188] : memref<4x64x16xf32, #tpu.memory_space<vmem>>, vector<1x64x16xf32>
    %265 = vector.shape_cast %264 : vector<1x64x16xf32> to vector<64x16xf32>
    %cst_189 = arith.constant dense<0.000000e+00> : vector<64x128xf32>
    %266 = tpu.matmul %265, %263, %cst_189 {dimension_numbers = #tpu.dot_dimension_numbers<[1], [0], [0], [1], [0, 0, 1, 1], [], []>} : vector<64x16xf32>, vector<16x128xf32>, vector<64x128xf32> -> vector<64x128xf32>
    %267 = arith.addf %260, %266 : vector<64x128xf32>
    %c2_190 = arith.constant 2 : index
    %c0_191 = arith.constant 0 : index
    %c0_192 = arith.constant 0 : index
    %268 = vector.load %arg11[%c2_190, %c0_191, %c0_192] : memref<4x256x128xbf16, #tpu.memory_space<vmem>>, vector<1x256x128xbf16>
    %269 = vector.shape_cast %268 : vector<1x256x128xbf16> to vector<256x128xbf16>
    %cst_193 = arith.constant dense<0.000000e+00> : vector<16x128xf32>
    %270 = tpu.matmul %254, %269, %cst_193 {dimension_numbers = #tpu.dot_dimension_numbers<[1], [0], [0], [1], [0, 0, 1, 1], [], []>} : vector<16x256xbf16>, vector<256x128xbf16>, vector<16x128xf32> -> vector<16x128xf32>
    %c2_194 = arith.constant 2 : index
    %c0_195 = arith.constant 0 : index
    %c0_196 = arith.constant 0 : index
    %271 = vector.load %arg19[%c2_194, %c0_195, %c0_196] : memref<4x64x16xf32, #tpu.memory_space<vmem>>, vector<1x64x16xf32>
    %272 = vector.shape_cast %271 : vector<1x64x16xf32> to vector<64x16xf32>
    %cst_197 = arith.constant dense<0.000000e+00> : vector<64x128xf32>
    %273 = tpu.matmul %272, %270, %cst_197 {dimension_numbers = #tpu.dot_dimension_numbers<[1], [0], [0], [1], [0, 0, 1, 1], [], []>} : vector<64x16xf32>, vector<16x128xf32>, vector<64x128xf32> -> vector<64x128xf32>
    %274 = arith.addf %267, %273 : vector<64x128xf32>
    %c3_198 = arith.constant 3 : index
    %c0_199 = arith.constant 0 : index
    %c0_200 = arith.constant 0 : index
    %275 = vector.load %arg11[%c3_198, %c0_199, %c0_200] : memref<4x256x128xbf16, #tpu.memory_space<vmem>>, vector<1x256x128xbf16>
    %276 = vector.shape_cast %275 : vector<1x256x128xbf16> to vector<256x128xbf16>
    %cst_201 = arith.constant dense<0.000000e+00> : vector<16x128xf32>
    %277 = tpu.matmul %254, %276, %cst_201 {dimension_numbers = #tpu.dot_dimension_numbers<[1], [0], [0], [1], [0, 0, 1, 1], [], []>} : vector<16x256xbf16>, vector<256x128xbf16>, vector<16x128xf32> -> vector<16x128xf32>
    %c3_202 = arith.constant 3 : index
    %c0_203 = arith.constant 0 : index
    %c0_204 = arith.constant 0 : index
    %278 = vector.load %arg19[%c3_202, %c0_203, %c0_204] : memref<4x64x16xf32, #tpu.memory_space<vmem>>, vector<1x64x16xf32>
    %279 = vector.shape_cast %278 : vector<1x64x16xf32> to vector<64x16xf32>
    %cst_205 = arith.constant dense<0.000000e+00> : vector<64x128xf32>
    %280 = tpu.matmul %279, %277, %cst_205 {dimension_numbers = #tpu.dot_dimension_numbers<[1], [0], [0], [1], [0, 0, 1, 1], [], []>} : vector<64x16xf32>, vector<16x128xf32>, vector<64x128xf32> -> vector<64x128xf32>
    %281 = arith.addf %274, %280 : vector<64x128xf32>
    %c0_206 = arith.constant 0 : index
    %c0_207 = arith.constant 0 : index
    %282 = vector.load %arg12[%c0_206, %c0_207] : memref<1x128xf32, #tpu.memory_space<vmem>>, vector<1x128xf32>
    %283 = vector.broadcast %282 : vector<1x128xf32> to vector<64x128xf32>
    %284 = arith.addf %281, %283 : vector<64x128xf32>
    %cst_208 = arith.constant 0.000000e+00 : f32
    %285 = vector.broadcast %cst_208 : f32 to vector<64x128xf32>
    %286 = arith.maximumf %284, %285 : vector<64x128xf32>
    %287 = arith.truncf %286 : vector<64x128xf32> to vector<64x128xbf16>
    %c0_209 = arith.constant 0 : index
    %c0_210 = arith.constant 0 : index
    %c0_211 = arith.constant 0 : index
    %288 = vector.load %arg13[%c0_209, %c0_210, %c0_211] : memref<4x128x64xbf16, #tpu.memory_space<vmem>>, vector<1x128x64xbf16>
    %289 = vector.shape_cast %288 : vector<1x128x64xbf16> to vector<128x64xbf16>
    %cst_212 = arith.constant dense<0.000000e+00> : vector<64x64xf32>
    %290 = tpu.matmul %287, %289, %cst_212 {dimension_numbers = #tpu.dot_dimension_numbers<[1], [0], [0], [1], [0, 0, 1, 1], [], []>} : vector<64x128xbf16>, vector<128x64xbf16>, vector<64x64xf32> -> vector<64x64xf32>
    %c0_213 = arith.constant 0 : index
    %c0_214 = arith.constant 0 : index
    %c0_215 = arith.constant 0 : index
    %291 = vector.load %arg20[%c0_213, %c0_214, %c0_215] : memref<4x256x64xf32, #tpu.memory_space<vmem>>, vector<1x256x64xf32>
    %292 = vector.shape_cast %291 : vector<1x256x64xf32> to vector<256x64xf32>
    %cst_216 = arith.constant dense<0.000000e+00> : vector<256x64xf32>
    %293 = tpu.matmul %292, %290, %cst_216 {dimension_numbers = #tpu.dot_dimension_numbers<[1], [0], [0], [1], [0, 0, 1, 1], [], []>} : vector<256x64xf32>, vector<64x64xf32>, vector<256x64xf32> -> vector<256x64xf32>
    %c1_217 = arith.constant 1 : index
    %c0_218 = arith.constant 0 : index
    %c0_219 = arith.constant 0 : index
    %294 = vector.load %arg13[%c1_217, %c0_218, %c0_219] : memref<4x128x64xbf16, #tpu.memory_space<vmem>>, vector<1x128x64xbf16>
    %295 = vector.shape_cast %294 : vector<1x128x64xbf16> to vector<128x64xbf16>
    %cst_220 = arith.constant dense<0.000000e+00> : vector<64x64xf32>
    %296 = tpu.matmul %287, %295, %cst_220 {dimension_numbers = #tpu.dot_dimension_numbers<[1], [0], [0], [1], [0, 0, 1, 1], [], []>} : vector<64x128xbf16>, vector<128x64xbf16>, vector<64x64xf32> -> vector<64x64xf32>
    %c1_221 = arith.constant 1 : index
    %c0_222 = arith.constant 0 : index
    %c0_223 = arith.constant 0 : index
    %297 = vector.load %arg20[%c1_221, %c0_222, %c0_223] : memref<4x256x64xf32, #tpu.memory_space<vmem>>, vector<1x256x64xf32>
    %298 = vector.shape_cast %297 : vector<1x256x64xf32> to vector<256x64xf32>
    %cst_224 = arith.constant dense<0.000000e+00> : vector<256x64xf32>
    %299 = tpu.matmul %298, %296, %cst_224 {dimension_numbers = #tpu.dot_dimension_numbers<[1], [0], [0], [1], [0, 0, 1, 1], [], []>} : vector<256x64xf32>, vector<64x64xf32>, vector<256x64xf32> -> vector<256x64xf32>
    %300 = arith.addf %293, %299 : vector<256x64xf32>
    %c2_225 = arith.constant 2 : index
    %c0_226 = arith.constant 0 : index
    %c0_227 = arith.constant 0 : index
    %301 = vector.load %arg13[%c2_225, %c0_226, %c0_227] : memref<4x128x64xbf16, #tpu.memory_space<vmem>>, vector<1x128x64xbf16>
    %302 = vector.shape_cast %301 : vector<1x128x64xbf16> to vector<128x64xbf16>
    %cst_228 = arith.constant dense<0.000000e+00> : vector<64x64xf32>
    %303 = tpu.matmul %287, %302, %cst_228 {dimension_numbers = #tpu.dot_dimension_numbers<[1], [0], [0], [1], [0, 0, 1, 1], [], []>} : vector<64x128xbf16>, vector<128x64xbf16>, vector<64x64xf32> -> vector<64x64xf32>
    %c2_229 = arith.constant 2 : index
    %c0_230 = arith.constant 0 : index
    %c0_231 = arith.constant 0 : index
    %304 = vector.load %arg20[%c2_229, %c0_230, %c0_231] : memref<4x256x64xf32, #tpu.memory_space<vmem>>, vector<1x256x64xf32>
    %305 = vector.shape_cast %304 : vector<1x256x64xf32> to vector<256x64xf32>
    %cst_232 = arith.constant dense<0.000000e+00> : vector<256x64xf32>
    %306 = tpu.matmul %305, %303, %cst_232 {dimension_numbers = #tpu.dot_dimension_numbers<[1], [0], [0], [1], [0, 0, 1, 1], [], []>} : vector<256x64xf32>, vector<64x64xf32>, vector<256x64xf32> -> vector<256x64xf32>
    %307 = arith.addf %300, %306 : vector<256x64xf32>
    %c3_233 = arith.constant 3 : index
    %c0_234 = arith.constant 0 : index
    %c0_235 = arith.constant 0 : index
    %308 = vector.load %arg13[%c3_233, %c0_234, %c0_235] : memref<4x128x64xbf16, #tpu.memory_space<vmem>>, vector<1x128x64xbf16>
    %309 = vector.shape_cast %308 : vector<1x128x64xbf16> to vector<128x64xbf16>
    %cst_236 = arith.constant dense<0.000000e+00> : vector<64x64xf32>
    %310 = tpu.matmul %287, %309, %cst_236 {dimension_numbers = #tpu.dot_dimension_numbers<[1], [0], [0], [1], [0, 0, 1, 1], [], []>} : vector<64x128xbf16>, vector<128x64xbf16>, vector<64x64xf32> -> vector<64x64xf32>
    %c3_237 = arith.constant 3 : index
    %c0_238 = arith.constant 0 : index
    %c0_239 = arith.constant 0 : index
    %311 = vector.load %arg20[%c3_237, %c0_238, %c0_239] : memref<4x256x64xf32, #tpu.memory_space<vmem>>, vector<1x256x64xf32>
    %312 = vector.shape_cast %311 : vector<1x256x64xf32> to vector<256x64xf32>
    %cst_240 = arith.constant dense<0.000000e+00> : vector<256x64xf32>
    %313 = tpu.matmul %312, %310, %cst_240 {dimension_numbers = #tpu.dot_dimension_numbers<[1], [0], [0], [1], [0, 0, 1, 1], [], []>} : vector<256x64xf32>, vector<64x64xf32>, vector<256x64xf32> -> vector<256x64xf32>
    %314 = arith.addf %307, %313 : vector<256x64xf32>
    %c0_241 = arith.constant 0 : index
    %c0_242 = arith.constant 0 : index
    %315 = vector.load %arg14[%c0_241, %c0_242] : memref<1x64xf32, #tpu.memory_space<vmem>>, vector<1x64xf32>
    %316 = vector.broadcast %315 : vector<1x64xf32> to vector<256x64xf32>
    %317 = arith.addf %314, %316 : vector<256x64xf32>
    %cst_243 = arith.constant 0.000000e+00 : f32
    %318 = vector.broadcast %cst_243 : f32 to vector<256x64xf32>
    %319 = arith.maximumf %317, %318 : vector<256x64xf32>
    %cst_244 = arith.constant 0.000000e+00 : f32
    %320 = vector.broadcast %cst_244 : f32 to vector<297x64xf32>
    %c0_245 = arith.constant 0 : index
    %c0_246 = arith.constant 0 : index
    %321 = vector.load %arg24[%c0_245, %c0_246] : memref<297x64xf32, #tpu.memory_space<vmem>>, vector<297x64xf32>
    tpu.vector_store %arg24[%c0_245, %c0_246], %320 {strides = array<i32>} : memref<297x64xf32, #tpu.memory_space<vmem>>, vector<297x64xf32>,
    %c24_247 = arith.constant 24 : index
    %c0_248 = arith.constant 0 : index
    %322 = vector.load %arg24[%c24_247, %c0_248] : memref<297x64xf32, #tpu.memory_space<vmem>>, vector<256x64xf32>
    tpu.vector_store %arg24[%c24_247, %c0_248], %319 {strides = array<i32>} : memref<297x64xf32, #tpu.memory_space<vmem>>, vector<256x64xf32>,
    %323 = tpu.iota {dimensions = array<i32: 0>} : vector<256x1xi32>
    %c15_i32 = arith.constant 15 : i32
    %324 = vector.broadcast %c15_i32 : i32 to vector<256x1xi32>
    %325 = arith.andi %323, %324 : vector<256x1xi32>
    %c0_249 = arith.constant 0 : index
    %c0_250 = arith.constant 0 : index
    %326 = vector.load %arg15[%c0_249, %c0_250] : memref<9x64xf32, #tpu.memory_space<vmem>>, vector<9x64xf32>
    %cst_251 = arith.constant 0.000000e+00 : f32
    %327 = vector.broadcast %cst_251 : f32 to vector<256x64xf32>
    %c7_252 = arith.constant 7 : index
    %c0_253 = arith.constant 0 : index
    %328 = vector.load %arg24[%c7_252, %c0_253] : memref<297x64xf32, #tpu.memory_space<vmem>>, vector<256x64xf32>
    %c1_i32_254 = arith.constant 1 : i32
    %329 = vector.broadcast %c1_i32_254 : i32 to vector<256x1xi32>
    %330 = arith.cmpi sge, %325, %329 : vector<256x1xi32>
    %cst_255 = arith.constant 0.000000e+00 : f32
    %331 = vector.shape_cast %330 : vector<256x1xi1> to vector<256x1xi1>
    %332 = vector.broadcast %331 : vector<256x1xi1> to vector<256x64xi1>
    %333 = vector.broadcast %cst_255 : f32 to vector<256x64xf32>
    %334 = arith.select %332, %328, %333 : vector<256x64xi1>, vector<256x64xf32>
    %335 = vector.extract_strided_slice %326 {offsets = [0, 0], sizes = [1, 64], strides = [1, 1]} : vector<9x64xf32> to vector<1x64xf32>
    %336 = vector.broadcast %335 : vector<1x64xf32> to vector<256x64xf32>
    %337 = arith.mulf %334, %336 : vector<256x64xf32>
    %338 = arith.addf %327, %337 : vector<256x64xf32>
    %c8_256 = arith.constant 8 : index
    %c0_257 = arith.constant 0 : index
    %339 = vector.load %arg24[%c8_256, %c0_257] : memref<297x64xf32, #tpu.memory_space<vmem>>, vector<256x64xf32>
    %340 = vector.extract_strided_slice %326 {offsets = [1, 0], sizes = [1, 64], strides = [1, 1]} : vector<9x64xf32> to vector<1x64xf32>
    %341 = vector.broadcast %340 : vector<1x64xf32> to vector<256x64xf32>
    %342 = arith.mulf %339, %341 : vector<256x64xf32>
    %343 = arith.addf %338, %342 : vector<256x64xf32>
    %c9_258 = arith.constant 9 : index
    %c0_259 = arith.constant 0 : index
    %344 = vector.load %arg24[%c9_258, %c0_259] : memref<297x64xf32, #tpu.memory_space<vmem>>, vector<256x64xf32>
    %c14_i32 = arith.constant 14 : i32
    %345 = vector.broadcast %c14_i32 : i32 to vector<256x1xi32>
    %346 = arith.cmpi sle, %325, %345 : vector<256x1xi32>
    %cst_260 = arith.constant 0.000000e+00 : f32
    %347 = vector.shape_cast %346 : vector<256x1xi1> to vector<256x1xi1>
    %348 = vector.broadcast %347 : vector<256x1xi1> to vector<256x64xi1>
    %349 = vector.broadcast %cst_260 : f32 to vector<256x64xf32>
    %350 = arith.select %348, %344, %349 : vector<256x64xi1>, vector<256x64xf32>
    %351 = vector.extract_strided_slice %326 {offsets = [2, 0], sizes = [1, 64], strides = [1, 1]} : vector<9x64xf32> to vector<1x64xf32>
    %352 = vector.broadcast %351 : vector<1x64xf32> to vector<256x64xf32>
    %353 = arith.mulf %350, %352 : vector<256x64xf32>
    %354 = arith.addf %343, %353 : vector<256x64xf32>
    %c23_261 = arith.constant 23 : index
    %c0_262 = arith.constant 0 : index
    %355 = vector.load %arg24[%c23_261, %c0_262] : memref<297x64xf32, #tpu.memory_space<vmem>>, vector<256x64xf32>
    %c1_i32_263 = arith.constant 1 : i32
    %356 = vector.broadcast %c1_i32_263 : i32 to vector<256x1xi32>
    %357 = arith.cmpi sge, %325, %356 : vector<256x1xi32>
    %cst_264 = arith.constant 0.000000e+00 : f32
    %358 = vector.shape_cast %357 : vector<256x1xi1> to vector<256x1xi1>
    %359 = vector.broadcast %358 : vector<256x1xi1> to vector<256x64xi1>
    %360 = vector.broadcast %cst_264 : f32 to vector<256x64xf32>
    %361 = arith.select %359, %355, %360 : vector<256x64xi1>, vector<256x64xf32>
    %362 = vector.extract_strided_slice %326 {offsets = [3, 0], sizes = [1, 64], strides = [1, 1]} : vector<9x64xf32> to vector<1x64xf32>
    %363 = vector.broadcast %362 : vector<1x64xf32> to vector<256x64xf32>
    %364 = arith.mulf %361, %363 : vector<256x64xf32>
    %365 = arith.addf %354, %364 : vector<256x64xf32>
    %c24_265 = arith.constant 24 : index
    %c0_266 = arith.constant 0 : index
    %366 = vector.load %arg24[%c24_265, %c0_266] : memref<297x64xf32, #tpu.memory_space<vmem>>, vector<256x64xf32>
    %367 = vector.extract_strided_slice %326 {offsets = [4, 0], sizes = [1, 64], strides = [1, 1]} : vector<9x64xf32> to vector<1x64xf32>
    %368 = vector.broadcast %367 : vector<1x64xf32> to vector<256x64xf32>
    %369 = arith.mulf %366, %368 : vector<256x64xf32>
    %370 = arith.addf %365, %369 : vector<256x64xf32>
    %c25_267 = arith.constant 25 : index
    %c0_268 = arith.constant 0 : index
    %371 = vector.load %arg24[%c25_267, %c0_268] : memref<297x64xf32, #tpu.memory_space<vmem>>, vector<256x64xf32>
    %c14_i32_269 = arith.constant 14 : i32
    %372 = vector.broadcast %c14_i32_269 : i32 to vector<256x1xi32>
    %373 = arith.cmpi sle, %325, %372 : vector<256x1xi32>
    %cst_270 = arith.constant 0.000000e+00 : f32
    %374 = vector.shape_cast %373 : vector<256x1xi1> to vector<256x1xi1>
    %375 = vector.broadcast %374 : vector<256x1xi1> to vector<256x64xi1>
    %376 = vector.broadcast %cst_270 : f32 to vector<256x64xf32>
    %377 = arith.select %375, %371, %376 : vector<256x64xi1>, vector<256x64xf32>
    %378 = vector.extract_strided_slice %326 {offsets = [5, 0], sizes = [1, 64], strides = [1, 1]} : vector<9x64xf32> to vector<1x64xf32>
    %379 = vector.broadcast %378 : vector<1x64xf32> to vector<256x64xf32>
    %380 = arith.mulf %377, %379 : vector<256x64xf32>
    %381 = arith.addf %370, %380 : vector<256x64xf32>
    %c39 = arith.constant 39 : index
    %c0_271 = arith.constant 0 : index
    %382 = vector.load %arg24[%c39, %c0_271] : memref<297x64xf32, #tpu.memory_space<vmem>>, vector<256x64xf32>
    %c1_i32_272 = arith.constant 1 : i32
    %383 = vector.broadcast %c1_i32_272 : i32 to vector<256x1xi32>
    %384 = arith.cmpi sge, %325, %383 : vector<256x1xi32>
    %cst_273 = arith.constant 0.000000e+00 : f32
    %385 = vector.shape_cast %384 : vector<256x1xi1> to vector<256x1xi1>
    %386 = vector.broadcast %385 : vector<256x1xi1> to vector<256x64xi1>
    %387 = vector.broadcast %cst_273 : f32 to vector<256x64xf32>
    %388 = arith.select %386, %382, %387 : vector<256x64xi1>, vector<256x64xf32>
    %389 = vector.extract_strided_slice %326 {offsets = [6, 0], sizes = [1, 64], strides = [1, 1]} : vector<9x64xf32> to vector<1x64xf32>
    %390 = vector.broadcast %389 : vector<1x64xf32> to vector<256x64xf32>
    %391 = arith.mulf %388, %390 : vector<256x64xf32>
    %392 = arith.addf %381, %391 : vector<256x64xf32>
    %c40 = arith.constant 40 : index
    %c0_274 = arith.constant 0 : index
    %393 = vector.load %arg24[%c40, %c0_274] : memref<297x64xf32, #tpu.memory_space<vmem>>, vector<256x64xf32>
    %394 = vector.extract_strided_slice %326 {offsets = [7, 0], sizes = [1, 64], strides = [1, 1]} : vector<9x64xf32> to vector<1x64xf32>
    %395 = vector.broadcast %394 : vector<1x64xf32> to vector<256x64xf32>
    %396 = arith.mulf %393, %395 : vector<256x64xf32>
    %397 = arith.addf %392, %396 : vector<256x64xf32>
    %c41 = arith.constant 41 : index
    %c0_275 = arith.constant 0 : index
    %398 = vector.load %arg24[%c41, %c0_275] : memref<297x64xf32, #tpu.memory_space<vmem>>, vector<256x64xf32>
    %c14_i32_276 = arith.constant 14 : i32
    %399 = vector.broadcast %c14_i32_276 : i32 to vector<256x1xi32>
    %400 = arith.cmpi sle, %325, %399 : vector<256x1xi32>
    %cst_277 = arith.constant 0.000000e+00 : f32
    %401 = vector.shape_cast %400 : vector<256x1xi1> to vector<256x1xi1>
    %402 = vector.broadcast %401 : vector<256x1xi1> to vector<256x64xi1>
    %403 = vector.broadcast %cst_277 : f32 to vector<256x64xf32>
    %404 = arith.select %402, %398, %403 : vector<256x64xi1>, vector<256x64xf32>
    %405 = vector.extract_strided_slice %326 {offsets = [8, 0], sizes = [1, 64], strides = [1, 1]} : vector<9x64xf32> to vector<1x64xf32>
    %406 = vector.broadcast %405 : vector<1x64xf32> to vector<256x64xf32>
    %407 = arith.mulf %404, %406 : vector<256x64xf32>
    %408 = arith.addf %397, %407 : vector<256x64xf32>
    %cst_278 = arith.constant dense<0.000000e+00> : vector<256xf32>
    %409 = vector.multi_reduction <add>, %408, %cst_278 [1] : vector<256x64xf32> to vector<256xf32>
    %410 = vector.shape_cast %409 : vector<256xf32> to vector<256x1xf32>
    %c0_279 = arith.constant 0 : index
    %c0_280 = arith.constant 0 : index
    %411 = vector.load %arg16[%c0_279, %c0_280] : memref<1x1xf32, #tpu.memory_space<vmem>>, vector<1x1xf32>
    %412 = vector.broadcast %411 : vector<1x1xf32> to vector<256x1xf32>
    %413 = arith.addf %410, %412 : vector<256x1xf32>
    %414 = math.tanh %413 : vector<256x1xf32>
    %cst_281 = arith.constant 1.500000e+03 : f32
    %415 = vector.broadcast %cst_281 : f32 to vector<256x1xf32>
    %416 = arith.mulf %415, %414 : vector<256x1xf32>
    %cst_282 = arith.constant 3.000000e+03 : f32
    %417 = vector.broadcast %cst_282 : f32 to vector<256x1xf32>
    %418 = arith.addf %416, %417 : vector<256x1xf32>
    %c0_283 = arith.constant 0 : index
    %c0_284 = arith.constant 0 : index
    %c0_285 = arith.constant 0 : index
    %419 = vector.load %arg21[%c0_283, %c0_284, %c0_285] : memref<1x256x1xf32, #tpu.memory_space<vmem>>, vector<1x256x1xf32>
    %420 = vector.shape_cast %419 : vector<1x256x1xf32> to vector<256x1xf32>
    %421 = vector.shape_cast %418 : vector<256x1xf32> to vector<1x256x1xf32>
    tpu.vector_store %arg21[%c0_283, %c0_284, %c0_285], %421 {strides = array<i32>} : memref<1x256x1xf32, #tpu.memory_space<vmem>>, vector<1x256x1xf32>,
    return
  }
  func.func @transform_0(%arg0: i32) -> (i32, i32, i32) {
    %c0_i32 = arith.constant 0 : i32
    %c0_i32_0 = arith.constant 0 : i32
    %c0_i32_1 = arith.constant 0 : i32
    return %arg0, %c0_i32, %c0_i32_0 : i32, i32, i32
  }
  func.func @transform_1(%arg0: i32) -> (i32, i32) {
    %c0_i32 = arith.constant 0 : i32
    %c0_i32_0 = arith.constant 0 : i32
    %c0_i32_1 = arith.constant 0 : i32
    return %c0_i32, %c0_i32_0 : i32, i32
  }
  func.func @transform_2(%arg0: i32) -> (i32, i32) {
    %c0_i32 = arith.constant 0 : i32
    %c0_i32_0 = arith.constant 0 : i32
    %c0_i32_1 = arith.constant 0 : i32
    return %c0_i32, %c0_i32_0 : i32, i32
  }
  func.func @transform_3(%arg0: i32) -> (i32, i32) {
    %c0_i32 = arith.constant 0 : i32
    %c0_i32_0 = arith.constant 0 : i32
    %c0_i32_1 = arith.constant 0 : i32
    return %c0_i32, %c0_i32_0 : i32, i32
  }
  func.func @transform_4(%arg0: i32) -> (i32, i32, i32) {
    %c0_i32 = arith.constant 0 : i32
    %c0_i32_0 = arith.constant 0 : i32
    %c0_i32_1 = arith.constant 0 : i32
    %c0_i32_2 = arith.constant 0 : i32
    return %c0_i32, %c0_i32_0, %c0_i32_1 : i32, i32, i32
  }
  func.func @transform_5(%arg0: i32) -> (i32, i32) {
    %c0_i32 = arith.constant 0 : i32
    %c0_i32_0 = arith.constant 0 : i32
    %c0_i32_1 = arith.constant 0 : i32
    return %c0_i32, %c0_i32_0 : i32, i32
  }
  func.func @transform_6(%arg0: i32) -> (i32, i32) {
    %c0_i32 = arith.constant 0 : i32
    %c0_i32_0 = arith.constant 0 : i32
    %c0_i32_1 = arith.constant 0 : i32
    return %c0_i32, %c0_i32_0 : i32, i32
  }
  func.func @transform_7(%arg0: i32) -> (i32, i32, i32) {
    %c0_i32 = arith.constant 0 : i32
    %c0_i32_0 = arith.constant 0 : i32
    %c0_i32_1 = arith.constant 0 : i32
    %c0_i32_2 = arith.constant 0 : i32
    return %c0_i32, %c0_i32_0, %c0_i32_1 : i32, i32, i32
  }
  func.func @transform_8(%arg0: i32) -> (i32, i32) {
    %c0_i32 = arith.constant 0 : i32
    %c0_i32_0 = arith.constant 0 : i32
    %c0_i32_1 = arith.constant 0 : i32
    return %c0_i32, %c0_i32_0 : i32, i32
  }
  func.func @transform_9(%arg0: i32) -> (i32, i32) {
    %c0_i32 = arith.constant 0 : i32
    %c0_i32_0 = arith.constant 0 : i32
    %c0_i32_1 = arith.constant 0 : i32
    return %c0_i32, %c0_i32_0 : i32, i32
  }
  func.func @transform_10(%arg0: i32) -> (i32, i32, i32) {
    %c0_i32 = arith.constant 0 : i32
    %c0_i32_0 = arith.constant 0 : i32
    %c0_i32_1 = arith.constant 0 : i32
    %c0_i32_2 = arith.constant 0 : i32
    return %c0_i32, %c0_i32_0, %c0_i32_1 : i32, i32, i32
  }
  func.func @transform_11(%arg0: i32) -> (i32, i32) {
    %c0_i32 = arith.constant 0 : i32
    %c0_i32_0 = arith.constant 0 : i32
    %c0_i32_1 = arith.constant 0 : i32
    return %c0_i32, %c0_i32_0 : i32, i32
  }
  func.func @transform_12(%arg0: i32) -> (i32, i32, i32) {
    %c0_i32 = arith.constant 0 : i32
    %c0_i32_0 = arith.constant 0 : i32
    %c0_i32_1 = arith.constant 0 : i32
    %c0_i32_2 = arith.constant 0 : i32
    return %c0_i32, %c0_i32_0, %c0_i32_1 : i32, i32, i32
  }
  func.func @transform_13(%arg0: i32) -> (i32, i32) {
    %c0_i32 = arith.constant 0 : i32
    %c0_i32_0 = arith.constant 0 : i32
    %c0_i32_1 = arith.constant 0 : i32
    return %c0_i32, %c0_i32_0 : i32, i32
  }
  func.func @transform_14(%arg0: i32) -> (i32, i32) {
    %c0_i32 = arith.constant 0 : i32
    %c0_i32_0 = arith.constant 0 : i32
    %c0_i32_1 = arith.constant 0 : i32
    return %c0_i32, %c0_i32_0 : i32, i32
  }
  func.func @transform_15(%arg0: i32) -> (i32, i32) {
    %c0_i32 = arith.constant 0 : i32
    %c0_i32_0 = arith.constant 0 : i32
    %c0_i32_1 = arith.constant 0 : i32
    return %c0_i32, %c0_i32_0 : i32, i32
  }
  func.func @transform_16(%arg0: i32) -> (i32, i32, i32) {
    %c0_i32 = arith.constant 0 : i32
    %c0_i32_0 = arith.constant 0 : i32
    %c0_i32_1 = arith.constant 0 : i32
    %c0_i32_2 = arith.constant 0 : i32
    return %c0_i32, %c0_i32_0, %c0_i32_1 : i32, i32, i32
  }
  func.func @transform_17(%arg0: i32) -> (i32, i32, i32) {
    %c0_i32 = arith.constant 0 : i32
    %c0_i32_0 = arith.constant 0 : i32
    %c0_i32_1 = arith.constant 0 : i32
    %c0_i32_2 = arith.constant 0 : i32
    return %c0_i32, %c0_i32_0, %c0_i32_1 : i32, i32, i32
  }
  func.func @transform_18(%arg0: i32) -> (i32, i32, i32) {
    %c0_i32 = arith.constant 0 : i32
    %c0_i32_0 = arith.constant 0 : i32
    %c0_i32_1 = arith.constant 0 : i32
    %c0_i32_2 = arith.constant 0 : i32
    return %c0_i32, %c0_i32_0, %c0_i32_1 : i32, i32, i32
  }
  func.func @transform_19(%arg0: i32) -> (i32, i32, i32) {
    %c0_i32 = arith.constant 0 : i32
    %c0_i32_0 = arith.constant 0 : i32
    %c0_i32_1 = arith.constant 0 : i32
    %c0_i32_2 = arith.constant 0 : i32
    return %c0_i32, %c0_i32_0, %c0_i32_1 : i32, i32, i32
  }
  func.func @transform_20(%arg0: i32) -> (i32, i32, i32) {
    %c0_i32 = arith.constant 0 : i32
    %c0_i32_0 = arith.constant 0 : i32
    %c0_i32_1 = arith.constant 0 : i32
    return %arg0, %c0_i32, %c0_i32_0 : i32, i32, i32
  }
}

</mosaic_0001>

<llo_original>
// kernel: generator_forward.1
$region0: #{generator_forward.1}
  #allocation0 [shape = 'u32[]', space=smem, size = 0x4, offset = 0x4, fixed_abs, tag = 'smem constant byte address 0x4 - core index']
  #allocation1 [shape = 'u32[144,128]{1,0:T(1,128)}', space=vmem, size = 0x12000, scoped, tag = 'internal scratch']
  #allocation2 [shape = 'f32[89,64]{1,0:T(8,128)}', space=vmem, size = 0xc000, scoped, tag = 'scratch operand']
  #allocation3 [shape = 'f32[29,128]{1,0:T(8,128)}', space=vmem, size = 0x4000, scoped, tag = 'scratch operand']
  #allocation4 [shape = 'f32[297,64]{1,0:T(8,128)}', space=vmem, size = 0x26000, scoped, tag = 'scratch operand']
  #allocation5 [shape = 'f32[1,1]{1,0:T(1,128)S(1)}', space=vmem, size = 0x200, scoped, tag = 'scoped memory for generator_forward.1']
  %s0 = inlined_call_operand.vmem [shape: bf16[2,256,45], index: 0, kind: input, shape index: {}]
  %s1 = inlined_call_operand.vmem [shape: bf16[45,64], index: 1, kind: input, shape index: {}]
  %s2 = inlined_call_operand.vmem [shape: f32[1,64], index: 2, kind: input, shape index: {}]
  %s3 = inlined_call_operand.vmem [shape: f32[1,64], index: 3, kind: input, shape index: {}]
  %s4 = inlined_call_operand.vmem [shape: bf16[9,64,128], index: 4, kind: input, shape index: {}]
  %s5 = inlined_call_operand.vmem [shape: f32[1,128], index: 5, kind: input, shape index: {}]
  %s6 = inlined_call_operand.vmem [shape: f32[1,128], index: 6, kind: input, shape index: {}]
  %s7 = inlined_call_operand.vmem [shape: bf16[9,128,256], index: 7, kind: input, shape index: {}]
  %s8 = inlined_call_operand.vmem [shape: f32[1,256], index: 8, kind: input, shape index: {}]
  %s9 = inlined_call_operand.vmem [shape: f32[1,256], index: 9, kind: input, shape index: {}]
  %s10 = inlined_call_operand.vmem [shape: bf16[4,256,128], index: 10, kind: input, shape index: {}]
  %s11 = inlined_call_operand.vmem [shape: f32[1,128], index: 11, kind: input, shape index: {}]
  %s12 = inlined_call_operand.vmem [shape: bf16[4,128,64], index: 12, kind: input, shape index: {}]
  %s13 = inlined_call_operand.vmem [shape: f32[1,64], index: 13, kind: input, shape index: {}]
  %s14 = inlined_call_operand.vmem [shape: f32[9,64], index: 14, kind: input, shape index: {}]
  %s15 = inlined_call_operand.<no memory space> [shape: f32[1,1], index: 15, kind: input, shape index: {}]
  %s16 = inlined_call_operand.vmem [shape: bf16[4,64,256], index: 16, kind: input, shape index: {}]
  %s17 = inlined_call_operand.vmem [shape: bf16[4,16,64], index: 17, kind: input, shape index: {}]
  %s18 = inlined_call_operand.vmem [shape: f32[4,64,16], index: 18, kind: input, shape index: {}]
  %s19 = inlined_call_operand.vmem [shape: f32[4,256,64], index: 19, kind: input, shape index: {}]
  %s20 = inlined_call_operand.vmem [shape: f32[2,256,1], index: 20, kind: output, shape index: {}]
  %s21 = sld [smem:[#allocation0]]
  $region113: #{generator_forward.1} parent=0
    _
  %s23 = ssub.s32 1, %s21
  %s24 = scalar_select 0, %s23, %s21
  %v25 = vstv %s15
  %26 = vst [vmem:[#allocation5] sm:$0x1] %v25
  loop: start=0, step=1, limit=4
  $region2: #{generator_forward.1} parent=0 // loop_pre_header
    _
  $region3: #{generator_forward.1} parent=0 // loop_header
    %s28 = sphi 0, %s32
    %p29 = scmp.ge.s32.totalorder %s28, 4
    %s38 = sphi 0, %s40
    %s41 = sphi 0, %s38
    %s42 = sphi 0, %s41
    %s58 = sphi 0, %s42
    %s62 = sphi 0, %s62
    %s64 = sphi 0, %s62
    %s65 = sphi 0, %s64
    %s79 = sphi 0, %s65
    %s83 = sphi 0, %s83
    %s85 = sphi 0, %s83
    %s86 = sphi 0, %s85
    %s100 = sphi 0, %s86
    %s104 = sphi 0, %s104
    %s106 = sphi 0, %s104
    %s107 = sphi 0, %s106
    %s121 = sphi 0, %s107
    %s125 = sphi 0, %s125
    %s127 = sphi 0, %s125
    %s128 = sphi 0, %s127
    %s142 = sphi 0, %s128
    %s146 = sphi 0, %s146
    %s148 = sphi 0, %s146
    %s149 = sphi 0, %s148
    %s163 = sphi 0, %s149
    %s167 = sphi 0, %s167
    %s169 = sphi 0, %s167
    %s170 = sphi 0, %s169
    %s184 = sphi 0, %s170
    %s188 = sphi 0, %s188
    %s190 = sphi 0, %s188
    %s191 = sphi 0, %s190
    %s205 = sphi 0, %s191
    %s209 = sphi 0, %s209
    %s211 = sphi 0, %s209
    %s212 = sphi 0, %s211
    %s226 = sphi 0, %s212
    %s230 = sphi 0, %s230
    %s232 = sphi 0, %s230
    %s233 = sphi 0, %s232
    %s247 = sphi 0, %s233
    %s251 = sphi 0, %s251
    %s253 = sphi 0, %s251
    %s254 = sphi 0, %s253
    %s268 = sphi 0, %s254
    %s272 = sphi 0, %s272
    %s274 = sphi 0, %s272
    %s275 = sphi 0, %s274
    %s289 = sphi 0, %s275
    %s293 = sphi 0, %s293
    %s295 = sphi 0, %s293
    %s296 = sphi 0, %s295
    %s310 = sphi 0, %s296
    %s314 = sphi 0, %s314
    %s316 = sphi 0, %s314
    %s317 = sphi 0, %s316
    %s331 = sphi 0, %s317
    %s335 = sphi 0, %s335
    %s337 = sphi 0, %s335
    %s338 = sphi 0, %s337
    %s352 = sphi 0, %s338
    %s356 = sphi 0, %s356
    %s358 = sphi 0, %s356
    %s359 = sphi 0, %s358
    %s373 = sphi 0, %s359
    %s377 = sphi 0, %s377
    %s379 = sphi 0, %s377
    %s380 = sphi 0, %s379
    %s394 = sphi 0, %s380
    %s398 = sphi 0, %s398
    %s400 = sphi 0, %s398
    %s401 = sphi 0, %s400
    %s415 = sphi 0, %s401
    %s419 = sphi 0, %s419
    %s421 = sphi 0, %s419
    %s422 = sphi 0, %s421
    %s436 = sphi 0, %s422
    %s440 = sphi 0, %s440
    %s442 = sphi 0, %s440
    %s443 = sphi 0, %s442
    %s457 = sphi 0, %s443
    %s463 = sphi 0, %s465
    %s466 = sphi 0, %s463
    %s467 = sphi 0, %s466
    %s483 = sphi 0, %s467
  $region4: #{generator_forward.1} parent=0 // loop_header_branch
    %31 = sbr.rel (%p29) target = $region8
  $region5: #{generator_forward.1} parent=0 // loop_body
    %s33 = ssub.s32 %s28, 1
    %s34 = ssub.s32 %s28, 2
    %s35 = sadd.s32 %s28, 1
    %s36 = ssub.s32 %s28, %s35
    %p37 = scmp.eq.s32.totalorder %s36, 0
    %s39 = sadd.s32 %s38, 1
    %s40 = scalar_select %p37, %s38, %s39
    %p43 = pneg %p37
    %p44 = scmp.eq.s32.totalorder %s28, 1
    %p45 = por %p43, %p44
    %p46 = scmp.ne.s32.totalorder %s38, %s41
    %p47 = scmp.eq.s32.totalorder %s28, 0
    %p48 = por %p46, %p47
    %p49 = scmp.ne.s32.totalorder %s38, %s41
    %p50 = scmp.eq.s32.totalorder %s33, 1
    %p51 = por %p49, %p50
    %p52 = scmp.ne.s32.totalorder %s41, %s42
    %p53 = scmp.eq.s32.totalorder %s33, 0
    %p54 = por %p52, %p53
    %p55 = scmp.ne.s32.totalorder %s41, %s42
    %p56 = scmp.eq.s32.totalorder %s34, 1
    %p57 = por %p55, %p56
    %p59 = scmp.ne.s32.totalorder %s42, %s58
    %p60 = scmp.eq.s32.totalorder %s34, 0
    %p61 = por %p59, %p60
    %s63 = sadd.s32 %s62, 1
    %p66 = scmp.eq.s32.totalorder %s28, 1
    %p67 = scmp.ne.s32.totalorder %s62, %s64
    %p68 = scmp.eq.s32.totalorder %s28, 0
    %p69 = por %p67, %p68
    %p70 = scmp.ne.s32.totalorder %s62, %s64
    %p71 = scmp.eq.s32.totalorder %s33, 1
    %p72 = por %p70, %p71
    %p73 = scmp.ne.s32.totalorder %s64, %s65
    %p74 = scmp.eq.s32.totalorder %s33, 0
    %p75 = por %p73, %p74
    %p76 = scmp.ne.s32.totalorder %s64, %s65
    %p77 = scmp.eq.s32.totalorder %s34, 1
    %p78 = por %p76, %p77
    %p80 = scmp.ne.s32.totalorder %s65, %s79
    %p81 = scmp.eq.s32.totalorder %s34, 0
    %p82 = por %p80, %p81
    %s84 = sadd.s32 %s83, 1
    %p87 = scmp.eq.s32.totalorder %s28, 1
    %p88 = scmp.ne.s32.totalorder %s83, %s85
    %p89 = scmp.eq.s32.totalorder %s28, 0
    %p90 = por %p88, %p89
    %p91 = scmp.ne.s32.totalorder %s83, %s85
    %p92 = scmp.eq.s32.totalorder %s33, 1
    %p93 = por %p91, %p92
    %p94 = scmp.ne.s32.totalorder %s85, %s86
    %p95 = scmp.eq.s32.totalorder %s33, 0
    %p96 = por %p94, %p95
    %p97 = scmp.ne.s32.totalorder %s85, %s86
    %p98 = scmp.eq.s32.totalorder %s34, 1
    %p99 = por %p97, %p98
    %p101 = scmp.ne.s32.totalorder %s86, %s100
    %p102 = scmp.eq.s32.totalorder %s34, 0
    %p103 = por %p101, %p102
    %s105 = sadd.s32 %s104, 1
    %p108 = scmp.eq.s32.totalorder %s28, 1
    %p109 = scmp.ne.s32.totalorder %s104, %s106
    %p110 = scmp.eq.s32.totalorder %s28, 0
    %p111 = por %p109, %p110
    %p112 = scmp.ne.s32.totalorder %s104, %s106
    %p113 = scmp.eq.s32.totalorder %s33, 1
    %p114 = por %p112, %p113
    %p115 = scmp.ne.s32.totalorder %s106, %s107
    %p116 = scmp.eq.s32.totalorder %s33, 0
    %p117 = por %p115, %p116
    %p118 = scmp.ne.s32.totalorder %s106, %s107
    %p119 = scmp.eq.s32.totalorder %s34, 1
    %p120 = por %p118, %p119
    %p122 = scmp.ne.s32.totalorder %s107, %s121
    %p123 = scmp.eq.s32.totalorder %s34, 0
    %p124 = por %p122, %p123
    %s126 = sadd.s32 %s125, 1
    %p129 = scmp.eq.s32.totalorder %s28, 1
    %p130 = scmp.ne.s32.totalorder %s125, %s127
    %p131 = scmp.eq.s32.totalorder %s28, 0
    %p132 = por %p130, %p131
    %p133 = scmp.ne.s32.totalorder %s125, %s127
    %p134 = scmp.eq.s32.totalorder %s33, 1
    %p135 = por %p133, %p134
    %p136 = scmp.ne.s32.totalorder %s127, %s128
    %p137 = scmp.eq.s32.totalorder %s33, 0
    %p138 = por %p136, %p137
    %p139 = scmp.ne.s32.totalorder %s127, %s128
    %p140 = scmp.eq.s32.totalorder %s34, 1
    %p141 = por %p139, %p140
    %p143 = scmp.ne.s32.totalorder %s128, %s142
    %p144 = scmp.eq.s32.totalorder %s34, 0
    %p145 = por %p143, %p144
    %s147 = sadd.s32 %s146, 1
    %p150 = scmp.eq.s32.totalorder %s28, 1
    %p151 = scmp.ne.s32.totalorder %s146, %s148
    %p152 = scmp.eq.s32.totalorder %s28, 0
    %p153 = por %p151, %p152
    %p154 = scmp.ne.s32.totalorder %s146, %s148
    %p155 = scmp.eq.s32.totalorder %s33, 1
    %p156 = por %p154, %p155
    %p157 = scmp.ne.s32.totalorder %s148, %s149
    %p158 = scmp.eq.s32.totalorder %s33, 0
    %p159 = por %p157, %p158
    %p160 = scmp.ne.s32.totalorder %s148, %s149
    %p161 = scmp.eq.s32.totalorder %s34, 1
    %p162 = por %p160, %p161
    %p164 = scmp.ne.s32.totalorder %s149, %s163
    %p165 = scmp.eq.s32.totalorder %s34, 0
    %p166 = por %p164, %p165
    %s168 = sadd.s32 %s167, 1
    %p171 = scmp.eq.s32.totalorder %s28, 1
    %p172 = scmp.ne.s32.totalorder %s167, %s169
    %p173 = scmp.eq.s32.totalorder %s28, 0
    %p174 = por %p172, %p173
    %p175 = scmp.ne.s32.totalorder %s167, %s169
    %p176 = scmp.eq.s32.totalorder %s33, 1
    %p177 = por %p175, %p176
    %p178 = scmp.ne.s32.totalorder %s169, %s170
    %p179 = scmp.eq.s32.totalorder %s33, 0
    %p180 = por %p178, %p179
    %p181 = scmp.ne.s32.totalorder %s169, %s170
    %p182 = scmp.eq.s32.totalorder %s34, 1
    %p183 = por %p181, %p182
    %p185 = scmp.ne.s32.totalorder %s170, %s184
    %p186 = scmp.eq.s32.totalorder %s34, 0
    %p187 = por %p185, %p186
    %s189 = sadd.s32 %s188, 1
    %p192 = scmp.eq.s32.totalorder %s28, 1
    %p193 = scmp.ne.s32.totalorder %s188, %s190
    %p194 = scmp.eq.s32.totalorder %s28, 0
    %p195 = por %p193, %p194
    %p196 = scmp.ne.s32.totalorder %s188, %s190
    %p197 = scmp.eq.s32.totalorder %s33, 1
    %p198 = por %p196, %p197
    %p199 = scmp.ne.s32.totalorder %s190, %s191
    %p200 = scmp.eq.s32.totalorder %s33, 0
    %p201 = por %p199, %p200
    %p202 = scmp.ne.s32.totalorder %s190, %s191
    %p203 = scmp.eq.s32.totalorder %s34, 1
    %p204 = por %p202, %p203
    %p206 = scmp.ne.s32.totalorder %s191, %s205
    %p207 = scmp.eq.s32.totalorder %s34, 0
    %p208 = por %p206, %p207
    %s210 = sadd.s32 %s209, 1
    %p213 = scmp.eq.s32.totalorder %s28, 1
    %p214 = scmp.ne.s32.totalorder %s209, %s211
    %p215 = scmp.eq.s32.totalorder %s28, 0
    %p216 = por %p214, %p215
    %p217 = scmp.ne.s32.totalorder %s209, %s211
    %p218 = scmp.eq.s32.totalorder %s33, 1
    %p219 = por %p217, %p218
    %p220 = scmp.ne.s32.totalorder %s211, %s212
    %p221 = scmp.eq.s32.totalorder %s33, 0
    %p222 = por %p220, %p221
    %p223 = scmp.ne.s32.totalorder %s211, %s212
    %p224 = scmp.eq.s32.totalorder %s34, 1
    %p225 = por %p223, %p224
    %p227 = scmp.ne.s32.totalorder %s212, %s226
    %p228 = scmp.eq.s32.totalorder %s34, 0
    %p229 = por %p227, %p228
    %s231 = sadd.s32 %s230, 1
    %p234 = scmp.eq.s32.totalorder %s28, 1
    %p235 = scmp.ne.s32.totalorder %s230, %s232
    %p236 = scmp.eq.s32.totalorder %s28, 0
    %p237 = por %p235, %p236
    %p238 = scmp.ne.s32.totalorder %s230, %s232
    %p239 = scmp.eq.s32.totalorder %s33, 1
    %p240 = por %p238, %p239
    %p241 = scmp.ne.s32.totalorder %s232, %s233
    %p242 = scmp.eq.s32.totalorder %s33, 0
    %p243 = por %p241, %p242
    %p244 = scmp.ne.s32.totalorder %s232, %s233
    %p245 = scmp.eq.s32.totalorder %s34, 1
    %p246 = por %p244, %p245
    %p248 = scmp.ne.s32.totalorder %s233, %s247
    %p249 = scmp.eq.s32.totalorder %s34, 0
    %p250 = por %p248, %p249
    %s252 = sadd.s32 %s251, 1
    %p255 = scmp.eq.s32.totalorder %s28, 1
    %p256 = scmp.ne.s32.totalorder %s251, %s253
    %p257 = scmp.eq.s32.totalorder %s28, 0
    %p258 = por %p256, %p257
    %p259 = scmp.ne.s32.totalorder %s251, %s253
    %p260 = scmp.eq.s32.totalorder %s33, 1
    %p261 = por %p259, %p260
    %p262 = scmp.ne.s32.totalorder %s253, %s254
    %p263 = scmp.eq.s32.totalorder %s33, 0
    %p264 = por %p262, %p263
    %p265 = scmp.ne.s32.totalorder %s253, %s254
    %p266 = scmp.eq.s32.totalorder %s34, 1
    %p267 = por %p265, %p266
    %p269 = scmp.ne.s32.totalorder %s254, %s268
    %p270 = scmp.eq.s32.totalorder %s34, 0
    %p271 = por %p269, %p270
    %s273 = sadd.s32 %s272, 1
    %p276 = scmp.eq.s32.totalorder %s28, 1
    %p277 = scmp.ne.s32.totalorder %s272, %s274
    %p278 = scmp.eq.s32.totalorder %s28, 0
    %p279 = por %p277, %p278
    %p280 = scmp.ne.s32.totalorder %s272, %s274
    %p281 = scmp.eq.s32.totalorder %s33, 1
    %p282 = por %p280, %p281
    %p283 = scmp.ne.s32.totalorder %s274, %s275
    %p284 = scmp.eq.s32.totalorder %s33, 0
    %p285 = por %p283, %p284
    %p286 = scmp.ne.s32.totalorder %s274, %s275
    %p287 = scmp.eq.s32.totalorder %s34, 1
    %p288 = por %p286, %p287
    %p290 = scmp.ne.s32.totalorder %s275, %s289
    %p291 = scmp.eq.s32.totalorder %s34, 0
    %p292 = por %p290, %p291
    %s294 = sadd.s32 %s293, 1
    %p297 = scmp.eq.s32.totalorder %s28, 1
    %p298 = scmp.ne.s32.totalorder %s293, %s295
    %p299 = scmp.eq.s32.totalorder %s28, 0
    %p300 = por %p298, %p299
    %p301 = scmp.ne.s32.totalorder %s293, %s295
    %p302 = scmp.eq.s32.totalorder %s33, 1
    %p303 = por %p301, %p302
    %p304 = scmp.ne.s32.totalorder %s295, %s296
    %p305 = scmp.eq.s32.totalorder %s33, 0
    %p306 = por %p304, %p305
    %p307 = scmp.ne.s32.totalorder %s295, %s296
    %p308 = scmp.eq.s32.totalorder %s34, 1
    %p309 = por %p307, %p308
    %p311 = scmp.ne.s32.totalorder %s296, %s310
    %p312 = scmp.eq.s32.totalorder %s34, 0
    %p313 = por %p311, %p312
    %s315 = sadd.s32 %s314, 1
    %p318 = scmp.eq.s32.totalorder %s28, 1
    %p319 = scmp.ne.s32.totalorder %s314, %s316
    %p320 = scmp.eq.s32.totalorder %s28, 0
    %p321 = por %p319, %p320
    %p322 = scmp.ne.s32.totalorder %s314, %s316
    %p323 = scmp.eq.s32.totalorder %s33, 1
    %p324 = por %p322, %p323
    %p325 = scmp.ne.s32.totalorder %s316, %s317
    %p326 = scmp.eq.s32.totalorder %s33, 0
    %p327 = por %p325, %p326
    %p328 = scmp.ne.s32.totalorder %s316, %s317
    %p329 = scmp.eq.s32.totalorder %s34, 1
    %p330 = por %p328, %p329
    %p332 = scmp.ne.s32.totalorder %s317, %s331
    %p333 = scmp.eq.s32.totalorder %s34, 0
    %p334 = por %p332, %p333
    %s336 = sadd.s32 %s335, 1
    %p339 = scmp.eq.s32.totalorder %s28, 1
    %p340 = scmp.ne.s32.totalorder %s335, %s337
    %p341 = scmp.eq.s32.totalorder %s28, 0
    %p342 = por %p340, %p341
    %p343 = scmp.ne.s32.totalorder %s335, %s337
    %p344 = scmp.eq.s32.totalorder %s33, 1
    %p345 = por %p343, %p344
    %p346 = scmp.ne.s32.totalorder %s337, %s338
    %p347 = scmp.eq.s32.totalorder %s33, 0
    %p348 = por %p346, %p347
    %p349 = scmp.ne.s32.totalorder %s337, %s338
    %p350 = scmp.eq.s32.totalorder %s34, 1
    %p351 = por %p349, %p350
    %p353 = scmp.ne.s32.totalorder %s338, %s352
    %p354 = scmp.eq.s32.totalorder %s34, 0
    %p355 = por %p353, %p354
    %s357 = sadd.s32 %s356, 1
    %p360 = scmp.eq.s32.totalorder %s28, 1
    %p361 = scmp.ne.s32.totalorder %s356, %s358
    %p362 = scmp.eq.s32.totalorder %s28, 0
    %p363 = por %p361, %p362
    %p364 = scmp.ne.s32.totalorder %s356, %s358
    %p365 = scmp.eq.s32.totalorder %s33, 1
    %p366 = por %p364, %p365
    %p367 = scmp.ne.s32.totalorder %s358, %s359
    %p368 = scmp.eq.s32.totalorder %s33, 0
    %p369 = por %p367, %p368
    %p370 = scmp.ne.s32.totalorder %s358, %s359
    %p371 = scmp.eq.s32.totalorder %s34, 1
    %p372 = por %p370, %p371
    %p374 = scmp.ne.s32.totalorder %s359, %s373
    %p375 = scmp.eq.s32.totalorder %s34, 0
    %p376 = por %p374, %p375
    %s378 = sadd.s32 %s377, 1
    %p381 = scmp.eq.s32.totalorder %s28, 1
    %p382 = scmp.ne.s32.totalorder %s377, %s379
    %p383 = scmp.eq.s32.totalorder %s28, 0
    %p384 = por %p382, %p383
    %p385 = scmp.ne.s32.totalorder %s377, %s379
    %p386 = scmp.eq.s32.totalorder %s33, 1
    %p387 = por %p385, %p386
    %p388 = scmp.ne.s32.totalorder %s379, %s380
    %p389 = scmp.eq.s32.totalorder %s33, 0
    %p390 = por %p388, %p389
    %p391 = scmp.ne.s32.totalorder %s379, %s380
    %p392 = scmp.eq.s32.totalorder %s34, 1
    %p393 = por %p391, %p392
    %p395 = scmp.ne.s32.totalorder %s380, %s394
    %p396 = scmp.eq.s32.totalorder %s34, 0
    %p397 = por %p395, %p396
    %s399 = sadd.s32 %s398, 1
    %p402 = scmp.eq.s32.totalorder %s28, 1
    %p403 = scmp.ne.s32.totalorder %s398, %s400
    %p404 = scmp.eq.s32.totalorder %s28, 0
    %p405 = por %p403, %p404
    %p406 = scmp.ne.s32.totalorder %s398, %s400
    %p407 = scmp.eq.s32.totalorder %s33, 1
    %p408 = por %p406, %p407
    %p409 = scmp.ne.s32.totalorder %s400, %s401
    %p410 = scmp.eq.s32.totalorder %s33, 0
    %p411 = por %p409, %p410
    %p412 = scmp.ne.s32.totalorder %s400, %s401
    %p413 = scmp.eq.s32.totalorder %s34, 1
    %p414 = por %p412, %p413
    %p416 = scmp.ne.s32.totalorder %s401, %s415
    %p417 = scmp.eq.s32.totalorder %s34, 0
    %p418 = por %p416, %p417
    %s420 = sadd.s32 %s419, 1
    %p423 = scmp.eq.s32.totalorder %s28, 1
    %p424 = scmp.ne.s32.totalorder %s419, %s421
    %p425 = scmp.eq.s32.totalorder %s28, 0
    %p426 = por %p424, %p425
    %p427 = scmp.ne.s32.totalorder %s419, %s421
    %p428 = scmp.eq.s32.totalorder %s33, 1
    %p429 = por %p427, %p428
    %p430 = scmp.ne.s32.totalorder %s421, %s422
    %p431 = scmp.eq.s32.totalorder %s33, 0
    %p432 = por %p430, %p431
    %p433 = scmp.ne.s32.totalorder %s421, %s422
    %p434 = scmp.eq.s32.totalorder %s34, 1
    %p435 = por %p433, %p434
    %p437 = scmp.ne.s32.totalorder %s422, %s436
    %p438 = scmp.eq.s32.totalorder %s34, 0
    %p439 = por %p437, %p438
    %s441 = sadd.s32 %s440, 1
    %p444 = scmp.eq.s32.totalorder %s28, 1
    %p445 = scmp.ne.s32.totalorder %s440, %s442
    %p446 = scmp.eq.s32.totalorder %s28, 0
    %p447 = por %p445, %p446
    %p448 = scmp.ne.s32.totalorder %s440, %s442
    %p449 = scmp.eq.s32.totalorder %s33, 1
    %p450 = por %p448, %p449
    %p451 = scmp.ne.s32.totalorder %s442, %s443
    %p452 = scmp.eq.s32.totalorder %s33, 0
    %p453 = por %p451, %p452
    %p454 = scmp.ne.s32.totalorder %s442, %s443
    %p455 = scmp.eq.s32.totalorder %s34, 1
    %p456 = por %p454, %p455
    %p458 = scmp.ne.s32.totalorder %s443, %s457
    %p459 = scmp.eq.s32.totalorder %s34, 0
    %p460 = por %p458, %p459
    %s461 = ssub.s32 %s28, %s35
    %p462 = scmp.eq.s32.totalorder %s461, 0
    %s464 = sadd.s32 %s463, 1
    %s465 = scalar_select %p462, %s463, %s464
    %p468 = pneg %p462
    %p469 = scmp.eq.s32.totalorder %s28, 1
    %p470 = por %p468, %p469
    %p471 = scmp.ne.s32.totalorder %s463, %s466
    %p472 = scmp.eq.s32.totalorder %s28, 0
    %p473 = por %p471, %p472
    %p474 = scmp.ne.s32.totalorder %s463, %s466
    %p475 = scmp.eq.s32.totalorder %s33, 1
    %p476 = por %p474, %p475
    %p477 = scmp.ne.s32.totalorder %s466, %s467
    %p478 = scmp.eq.s32.totalorder %s33, 0
    %p479 = por %p477, %p478
    %p480 = scmp.ne.s32.totalorder %s466, %s467
    %p481 = scmp.eq.s32.totalorder %s34, 1
    %p482 = por %p480, %p481
    %p484 = scmp.ne.s32.totalorder %s467, %s483
    %p485 = scmp.eq.s32.totalorder %s34, 0
    %p486 = por %p484, %p485
    %p487 = scmp.le.s32.totalorder 1, %s28
    %p488 = scmp.lt.s32.totalorder %s28, 3
    %p489 = pnand %p487, %p488
    %p490 = pneg %p489
    // Predicated region
    $region9: #{generator_forward.1} parent=5 // pred_check
      _
    $region10: #{generator_forward.1} parent=5 // pred_check_branch
      %492 = sbr.rel (%p489) target = $region12
    $region11: #{generator_forward.1} parent=5 // pred_region
      %s493 = ssub.s32 %s28, 1
      // Predicated region
      $region13: #{generator_forward.1} parent=11 // pred_check
        %p494 = pneg %p75
      $region14: #{generator_forward.1} parent=11 // pred_check_branch
        %496 = sbr.rel (%p494) target = $region16
      $region15: #{generator_forward.1} parent=11 // pred_region
        _
      $region16: #{generator_forward.1} parent=11 // pred_fallthru
        _
      // Predicated region
      $region17: #{generator_forward.1} parent=11 // pred_check
        %p497 = pneg %p96
      $region18: #{generator_forward.1} parent=11 // pred_check_branch
        %499 = sbr.rel (%p497) target = $region20
      $region19: #{generator_forward.1} parent=11 // pred_region
        _
      $region20: #{generator_forward.1} parent=11 // pred_fallthru
        _
      // Predicated region
      $region21: #{generator_forward.1} parent=11 // pred_check
        %p500 = pneg %p117
      $region22: #{generator_forward.1} parent=11 // pred_check_branch
        %502 = sbr.rel (%p500) target = $region24
      $region23: #{generator_forward.1} parent=11 // pred_region
        _
      $region24: #{generator_forward.1} parent=11 // pred_fallthru
        _
      // Predicated region
      $region25: #{generator_forward.1} parent=11 // pred_check
        %p503 = pneg %p138
      $region26: #{generator_forward.1} parent=11 // pred_check_branch
        %505 = sbr.rel (%p503) target = $region28
      $region27: #{generator_forward.1} parent=11 // pred_region
        _
      $region28: #{generator_forward.1} parent=11 // pred_fallthru
        _
      // Predicated region
      $region29: #{generator_forward.1} parent=11 // pred_check
        %p506 = pneg %p159
      $region30: #{generator_forward.1} parent=11 // pred_check_branch
        %508 = sbr.rel (%p506) target = $region32
      $region31: #{generator_forward.1} parent=11 // pred_region
        _
      $region32: #{generator_forward.1} parent=11 // pred_fallthru
        _
      // Predicated region
      $region33: #{generator_forward.1} parent=11 // pred_check
        %p509 = pneg %p180
      $region34: #{generator_forward.1} parent=11 // pred_check_branch
        %511 = sbr.rel (%p509) target = $region36
      $region35: #{generator_forward.1} parent=11 // pred_region
        _
      $region36: #{generator_forward.1} parent=11 // pred_fallthru
        _
      // Predicated region
      $region37: #{generator_forward.1} parent=11 // pred_check
        %p512 = pneg %p201
      $region38: #{generator_forward.1} parent=11 // pred_check_branch
        %514 = sbr.rel (%p512) target = $region40
      $region39: #{generator_forward.1} parent=11 // pred_region
        _
      $region40: #{generator_forward.1} parent=11 // pred_fallthru
        _
      // Predicated region
      $region41: #{generator_forward.1} parent=11 // pred_check
        %p515 = pneg %p222
      $region42: #{generator_forward.1} parent=11 // pred_check_branch
        %517 = sbr.rel (%p515) target = $region44
      $region43: #{generator_forward.1} parent=11 // pred_region
        _
      $region44: #{generator_forward.1} parent=11 // pred_fallthru
        _
      // Predicated region
      $region45: #{generator_forward.1} parent=11 // pred_check
        %p518 = pneg %p243
      $region46: #{generator_forward.1} parent=11 // pred_check_branch
        %520 = sbr.rel (%p518) target = $region48
      $region47: #{generator_forward.1} parent=11 // pred_region
        _
      $region48: #{generator_forward.1} parent=11 // pred_fallthru
        _
      // Predicated region
      $region49: #{generator_forward.1} parent=11 // pred_check
        %p521 = pneg %p264
      $region50: #{generator_forward.1} parent=11 // pred_check_branch
        %523 = sbr.rel (%p521) target = $region52
      $region51: #{generator_forward.1} parent=11 // pred_region
        _
      $region52: #{generator_forward.1} parent=11 // pred_fallthru
        _
      // Predicated region
      $region53: #{generator_forward.1} parent=11 // pred_check
        %p524 = pneg %p285
      $region54: #{generator_forward.1} parent=11 // pred_check_branch
        %526 = sbr.rel (%p524) target = $region56
      $region55: #{generator_forward.1} parent=11 // pred_region
        _
      $region56: #{generator_forward.1} parent=11 // pred_fallthru
        _
      // Predicated region
      $region57: #{generator_forward.1} parent=11 // pred_check
        %p527 = pneg %p306
      $region58: #{generator_forward.1} parent=11 // pred_check_branch
        %529 = sbr.rel (%p527) target = $region60
      $region59: #{generator_forward.1} parent=11 // pred_region
        _
      $region60: #{generator_forward.1} parent=11 // pred_fallthru
        _
      // Predicated region
      $region61: #{generator_forward.1} parent=11 // pred_check
        %p530 = pneg %p327
      $region62: #{generator_forward.1} parent=11 // pred_check_branch
        %532 = sbr.rel (%p530) target = $region64
      $region63: #{generator_forward.1} parent=11 // pred_region
        _
      $region64: #{generator_forward.1} parent=11 // pred_fallthru
        _
      // Predicated region
      $region65: #{generator_forward.1} parent=11 // pred_check
        %p533 = pneg %p348
      $region66: #{generator_forward.1} parent=11 // pred_check_branch
        %535 = sbr.rel (%p533) target = $region68
      $region67: #{generator_forward.1} parent=11 // pred_region
        _
      $region68: #{generator_forward.1} parent=11 // pred_fallthru
        _
      // Predicated region
      $region69: #{generator_forward.1} parent=11 // pred_check
        %p536 = pneg %p369
      $region70: #{generator_forward.1} parent=11 // pred_check_branch
        %538 = sbr.rel (%p536) target = $region72
      $region71: #{generator_forward.1} parent=11 // pred_region
        _
      $region72: #{generator_forward.1} parent=11 // pred_fallthru
        _
      // Predicated region
      $region73: #{generator_forward.1} parent=11 // pred_check
        %p539 = pneg %p390
      $region74: #{generator_forward.1} parent=11 // pred_check_branch
        %541 = sbr.rel (%p539) target = $region76
      $region75: #{generator_forward.1} parent=11 // pred_region
        _
      $region76: #{generator_forward.1} parent=11 // pred_fallthru
        _
      // Predicated region
      $region77: #{generator_forward.1} parent=11 // pred_check
        %p542 = pneg %p411
      $region78: #{generator_forward.1} parent=11 // pred_check_branch
        %544 = sbr.rel (%p542) target = $region80
      $region79: #{generator_forward.1} parent=11 // pred_region
        _
      $region80: #{generator_forward.1} parent=11 // pred_fallthru
        _
      // Predicated region
      $region81: #{generator_forward.1} parent=11 // pred_check
        %p545 = pneg %p432
      $region82: #{generator_forward.1} parent=11 // pred_check_branch
        %547 = sbr.rel (%p545) target = $region84
      $region83: #{generator_forward.1} parent=11 // pred_region
        _
      $region84: #{generator_forward.1} parent=11 // pred_fallthru
        _
      // Predicated region
      $region85: #{generator_forward.1} parent=11 // pred_check
        %p548 = pneg %p453
      $region86: #{generator_forward.1} parent=11 // pred_check_branch
        %550 = sbr.rel (%p548) target = $region88
      $region87: #{generator_forward.1} parent=11 // pred_region
        _
      $region88: #{generator_forward.1} parent=11 // pred_fallthru
        _
    $region12: #{generator_forward.1} parent=5 // pred_fallthru
      _
    %p551 = scmp.lt.s32.totalorder %s28, 2
    // Predicated region
    $region89: #{generator_forward.1} parent=5 // pred_check
      %p552 = pneg %p551
    $region90: #{generator_forward.1} parent=5 // pred_check_branch
      %554 = sbr.rel (%p552) target = $region92
    $region91: #{generator_forward.1} parent=5 // pred_region
      // Predicated region
      $region93: #{generator_forward.1} parent=91 // pred_check
        %p555 = pneg %p48
      $region94: #{generator_forward.1} parent=91 // pred_check_branch
        %557 = sbr.rel (%p555) target = $region96
      $region95: #{generator_forward.1} parent=91 // pred_region
        %p558 = scmp.lt.s32.totalorder %s28, 1
        %s559 = scalar_select %p558, %s28, 1
        %s560 = smul.addr %s559, 32
        %s561 = smul.addr %s560, 4
        %s562 = scalar_lea.vmem %s0, %s561
      $region96: #{generator_forward.1} parent=91 // pred_fallthru
        _
    $region92: #{generator_forward.1} parent=5 // pred_fallthru
      _
    %p563 = scmp.le.s32.totalorder 1, %s28
    %p564 = scmp.lt.s32.totalorder %s28, 3
    %p565 = pnand %p563, %p564
    %p566 = pneg %p565
    // Predicated region
    $region97: #{generator_forward.1} parent=5 // pred_check
      _
    $region98: #{generator_forward.1} parent=5 // pred_check_branch
      %568 = sbr.rel (%p565) target = $region100
    $region99: #{generator_forward.1} parent=5 // pred_region
      %s569 = ssub.s32 %s28, 1
      %p570 = scmp.lt.s32.totalorder %s33, 1
      %s571 = scalar_select %p570, %s33, 1
      %s572 = smul.addr %s571, 32
      %s573 = smul.addr %s572, 4
      %s574 = scalar_lea.vmem %s0, %s573
      %p575 = pneg %p54
      %p576 = pneg %p51
      %p577 = pneg %p75
      %p578 = pneg %p72
      %p579 = pneg %p96
      %p580 = pneg %p93
      %p581 = pneg %p117
      %p582 = pneg %p114
      %p583 = pneg %p138
      %p584 = pneg %p135
      %p585 = pneg %p159
      %p586 = pneg %p156
      %p587 = pneg %p180
      %p588 = pneg %p177
      %p589 = pneg %p201
      %p590 = pneg %p198
      %p591 = pneg %p222
      %p592 = pneg %p219
      %p593 = pneg %p243
      %p594 = pneg %p240
      %p595 = pneg %p264
      %p596 = pneg %p261
      %p597 = pneg %p285
      %p598 = pneg %p282
      %p599 = pneg %p306
      %p600 = pneg %p303
      %p601 = pneg %p327
      %p602 = pneg %p324
      %p603 = pneg %p348
      %p604 = pneg %p345
      %p605 = pneg %p369
      %p606 = pneg %p366
      %p607 = pneg %p390
      %p608 = pneg %p387
      %p609 = pneg %p411
      %p610 = pneg %p408
      %p611 = pneg %p432
      %p612 = pneg %p429
      %p613 = pneg %p453
      %p614 = pneg %p450
      %p615 = pneg %p479
      %p616 = pneg %p476
      %p617 = scmp.lt.s32.totalorder %s33, 1
      %s618 = scalar_select %p617, %s33, 1
      %s619 = smul.addr %s618, 32
      %s620 = smul.addr %s619, 8
      %s621 = scalar_lea.vmem %s20, %s620
      %p622 = scmp.lt.s32.totalorder %s33, 1
      %s623 = scalar_select %p622, %s33, 1
      %s624 = smul.addr %s623, 32
      %s625 = smul.addr %s624, 4
      %s626 = scalar_lea.vmem %s0, %s625
      %p627 = scmp.lt.s32.totalorder %s33, 1
      %s628 = scalar_select %p627, %s33, 1
      %s629 = smul.addr %s628, 32
      %s630 = smul.addr %s629, 8
      %s631 = scalar_lea.vmem %s20, %s630
      %v633 = vld [vmem:[%s626] sm:$0xf]
      %v634 = vld [vmem:[%s626 + $0x4] sm:$0xf]
      %v635 = vld [vmem:[%s626 + $0x8] sm:$0xf]
      %v636 = vld [vmem:[%s626 + $0xc] sm:$0xf]
      %v637 = vld [vmem:[%s626 + $0x10] sm:$0xf]
      %v638 = vld [vmem:[%s626 + $0x14] sm:$0xf]
      %v639 = vld [vmem:[%s626 + $0x18] sm:$0xf]
      %v640 = vld [vmem:[%s626 + $0x1c] sm:$0xf]
      %v641 = vld [vmem:[%s626 + $0x20] sm:$0xf]
      %v642 = vld [vmem:[%s626 + $0x24] sm:$0xf]
      %v643 = vld [vmem:[%s626 + $0x28] sm:$0xf]
      %v644 = vld [vmem:[%s626 + $0x2c] sm:$0xf]
      %v645 = vld [vmem:[%s626 + $0x30] sm:$0xf]
      %v646 = vld [vmem:[%s626 + $0x34] sm:$0xf]
      %v647 = vld [vmem:[%s626 + $0x38] sm:$0xf]
      %v648 = vld [vmem:[%s626 + $0x3c] sm:$0xf]
      %v649 = vld [vmem:[%s626 + $0x40] sm:$0xf]
      %v650 = vld [vmem:[%s626 + $0x44] sm:$0xf]
      %v651 = vld [vmem:[%s626 + $0x48] sm:$0xf]
      %v652 = vld [vmem:[%s626 + $0x4c] sm:$0xf]
      %v653 = vld [vmem:[%s626 + $0x50] sm:$0xf]
      %v654 = vld [vmem:[%s626 + $0x54] sm:$0xf]
      %v655 = vld [vmem:[%s626 + $0x58] sm:$0xf]
      %v656 = vld [vmem:[%s626 + $0x5c] sm:$0xf]
      %v657 = vld [vmem:[%s626 + $0x60] sm:$0xf]
      %v658 = vld [vmem:[%s626 + $0x64] sm:$0xf]
      %v659 = vld [vmem:[%s626 + $0x68] sm:$0xf]
      %v660 = vld [vmem:[%s626 + $0x6c] sm:$0xf]
      %v661 = vld [vmem:[%s626 + $0x70] sm:$0xf]
      %v662 = vld [vmem:[%s626 + $0x74] sm:$0xf]
      %v663 = vld [vmem:[%s626 + $0x78] sm:$0xf]
      %v664 = vld [vmem:[%s626 + $0x7c] sm:$0xf]
      %v665 = vld [vmem:[%s1] sm:$0xf]
      %v666 = vld [vmem:[%s1 + $0x4] sm:$0xf]
      %v667 = vld [vmem:[%s1 + $0x8] sm:$0xf]
      %v668 = vld [vmem:[%s1 + $0xc] sm:$0xf]
      %v669 = vld [vmem:[%s1 + $0x10] sm:$0xf]
      %v670 = vld [vmem:[%s1 + $0x14] sm:$0x7]
      %v703 = vunpack.c.l.b16 %v633
      %v704 = vunpack.c.l.b16 %v634
      %v705 = vunpack.c.l.b16 %v635
      %v706 = vunpack.c.l.b16 %v636
      %v707 = vunpack.c.l.b16 %v637
      %v708 = vunpack.c.l.b16 %v638
      %v709 = vunpack.c.l.b16 %v639
      %v710 = vunpack.c.l.b16 %v640
      %v711 = vunpack.c.l.b16 %v641
      %v712 = vunpack.c.l.b16 %v642
      %v713 = vunpack.c.l.b16 %v643
      %v714 = vunpack.c.l.b16 %v644
      %v715 = vunpack.c.l.b16 %v645
      %v716 = vunpack.c.l.b16 %v646
      %v717 = vunpack.c.l.b16 %v647
      %v718 = vunpack.c.l.b16 %v648
      %v719 = vunpack.c.l.b16 %v649
      %v720 = vunpack.c.l.b16 %v650
      %v721 = vunpack.c.l.b16 %v651
      %v722 = vunpack.c.l.b16 %v652
      %v723 = vunpack.c.l.b16 %v653
      %v724 = vunpack.c.l.b16 %v654
      %v725 = vunpack.c.l.b16 %v655
      %v726 = vunpack.c.l.b16 %v656
      %v727 = vunpack.c.l.b16 %v657
      %v728 = vunpack.c.l.b16 %v658
      %v729 = vunpack.c.l.b16 %v659
      %v730 = vunpack.c.l.b16 %v660
      %v731 = vunpack.c.l.b16 %v661
      %v732 = vunpack.c.l.b16 %v662
      %v733 = vunpack.c.l.b16 %v663
      %v734 = vunpack.c.l.b16 %v664
      %v735 = vpack.c.b16 %v704, %v703
      %v736 = vpack.c.b16 %v706, %v705
      %v737 = vpack.c.b16 %v708, %v707
      %v738 = vpack.c.b16 %v710, %v709
      %v739 = vpack.c.b16 %v712, %v711
      %v740 = vpack.c.b16 %v714, %v713
      %v741 = vpack.c.b16 %v716, %v715
      %v742 = vpack.c.b16 %v718, %v717
      %v743 = vpack.c.b16 %v720, %v719
      %v744 = vpack.c.b16 %v722, %v721
      %v745 = vpack.c.b16 %v724, %v723
      %v746 = vpack.c.b16 %v726, %v725
      %v747 = vpack.c.b16 %v728, %v727
      %v748 = vpack.c.b16 %v730, %v729
      %v749 = vpack.c.b16 %v732, %v731
      %v750 = vpack.c.b16 %v734, %v733
      %v757 = vunpack.c.l.b16 %v665
      %v758 = vunpack.c.l.b16 %v666
      %v759 = vunpack.c.l.b16 %v667
      %v760 = vunpack.c.l.b16 %v668
      %v761 = vunpack.c.l.b16 %v669
      %v762 = vunpack.c.l.b16 %v670
      %v763 = vpack.c.b16 %v758, %v757
      %v764 = vpack.c.b16 %v760, %v759
      %v765 = vpack.c.b16 %v762, %v761
      %vm768 = vcmask 367616
      %v770 = vsel %vm768, %v735, 0
      %v773 = vsel %vm768, %v736, 0
      %v776 = vsel %vm768, %v737, 0
      %v779 = vsel %vm768, %v738, 0
      %v782 = vsel %vm768, %v739, 0
      %v785 = vsel %vm768, %v740, 0
      %v788 = vsel %vm768, %v741, 0
      %v791 = vsel %vm768, %v742, 0
      %v794 = vsel %vm768, %v743, 0
      %v797 = vsel %vm768, %v744, 0
      %v800 = vsel %vm768, %v745, 0
      %v803 = vsel %vm768, %v746, 0
      %v806 = vsel %vm768, %v747, 0
      %v809 = vsel %vm768, %v748, 0
      %v812 = vsel %vm768, %v749, 0
      %v815 = vsel %vm768, %v750, 0
      %vm817 = vcmask 1045504
      %vm818 = vcmask 1046528
      %v819 = vsel %vm817, 4294967295, 65535
      %v820 = vsel %vm818, %v819, 0
      %v822 = vand.u32 %v765, %v820
      %824 = vmatprep.subr.bf16.mxu0 0
      %825 = vmatpush1.bf16.msra.mxu0 %v763
      %826 = vmatprep.subr.bf16.mxu0 0
      %827 = vmatpush1.bf16.msra.mxu0 %v764
      %828 = vmatprep.subr.bf16.mxu0 0
      %829 = vmatpush1.bf16.msra.mxu0 %v822
      %830 = vmatprep.subr.bf16.mxu0 0
      %831 = vmatpush1.bf16.msra.mxu0 0
      %832 = vmatprep.subr.bf16.mxu0 0
      %833 = vmatpush1.bf16.msra.mxu0 0
      %834 = vmatprep.subr.bf16.mxu0 0
      %835 = vmatpush1.bf16.msra.mxu0 0
      %836 = vmatprep.subr.bf16.mxu0 0
      %837 = vmatpush1.bf16.msra.mxu0 0
      %838 = vmatprep.subr.bf16.mxu0 0
      %839 = vmatpush1.bf16.msra.mxu0 0
      %840 = vmatprep.subr.bf16.mxu0 0
      %841 = vmatpush1.bf16.msra.mxu0 0
      %842 = vmatprep.subr.bf16.mxu0 0
      %843 = vmatpush1.bf16.msra.mxu0 0
      %844 = vmatprep.subr.bf16.mxu0 0
      %845 = vmatpush1.bf16.msra.mxu0 0
      %846 = vmatprep.subr.bf16.mxu0 0
      %847 = vmatpush1.bf16.msra.mxu0 0
      %848 = vmatprep.subr.bf16.mxu0 0
      %849 = vmatpush1.bf16.msra.mxu0 0
      %850 = vmatprep.subr.bf16.mxu0 0
      %851 = vmatpush1.bf16.msra.mxu0 0
      %852 = vmatprep.subr.bf16.mxu0 0
      %853 = vmatpush1.bf16.msra.mxu0 0
      %854 = vmatprep.subr.bf16.mxu0 0
      %855 = vmatpush1.bf16.msra.mxu0 0
      %856 = vmatprep.mubr.bf16.mxu0 0
      %857 = vmatmul.mubr.bf16.gmra.mrb[0].mxu0 %v770
      %v858 = vpop.f32.mrb[0].mxu0
      %v859 = vadd.f32 0.0, %v858
      %v860 = vpop.f32.mrb[0].mxu0
      %v861 = vpop.f32.mrb[0].mxu0
      %v862 = vadd.f32 0.0, %v861
      %v863 = vpop.f32.mrb[0].mxu0
      %864 = vmatprep.mubr.bf16.mxu0 0
      %865 = vmatmul.mubr.bf16.gmra.mrb[0].mxu0 %v773
      %v866 = vpop.f32.mrb[0].mxu0
      %v867 = vadd.f32 0.0, %v866
      %v868 = vpop.f32.mrb[0].mxu0
      %v869 = vpop.f32.mrb[0].mxu0
      %v870 = vadd.f32 0.0, %v869
      %v871 = vpop.f32.mrb[0].mxu0
      %872 = vmatprep.mubr.bf16.mxu0 0
      %873 = vmatmul.mubr.bf16.gmra.mrb[0].mxu0 %v776
      %v874 = vpop.f32.mrb[0].mxu0
      %v875 = vadd.f32 0.0, %v874
      %v876 = vpop.f32.mrb[0].mxu0
      %v877 = vpop.f32.mrb[0].mxu0
      %v878 = vadd.f32 0.0, %v877
      %v879 = vpop.f32.mrb[0].mxu0
      %880 = vmatprep.mubr.bf16.mxu0 0
      %881 = vmatmul.mubr.bf16.gmra.mrb[0].mxu0 %v779
      %v882 = vpop.f32.mrb[0].mxu0
      %v883 = vadd.f32 0.0, %v882
      %v884 = vpop.f32.mrb[0].mxu0
      %v885 = vpop.f32.mrb[0].mxu0
      %v886 = vadd.f32 0.0, %v885
      %v887 = vpop.f32.mrb[0].mxu0
      %888 = vmatprep.mubr.bf16.mxu0 0
      %889 = vmatmul.mubr.bf16.gmra.mrb[0].mxu0 %v782
      %v890 = vpop.f32.mrb[0].mxu0
      %v891 = vadd.f32 0.0, %v890
      %v892 = vpop.f32.mrb[0].mxu0
      %v893 = vpop.f32.mrb[0].mxu0
      %v894 = vadd.f32 0.0, %v893
      %v895 = vpop.f32.mrb[0].mxu0
      %896 = vmatprep.mubr.bf16.mxu0 0
      %897 = vmatmul.mubr.bf16.gmra.mrb[0].mxu0 %v785
      %v898 = vpop.f32.mrb[0].mxu0
      %v899 = vadd.f32 0.0, %v898
      %v900 = vpop.f32.mrb[0].mxu0
      %v901 = vpop.f32.mrb[0].mxu0
      %v902 = vadd.f32 0.0, %v901
      %v903 = vpop.f32.mrb[0].mxu0
      %904 = vmatprep.mubr.bf16.mxu0 0
      %905 = vmatmul.mubr.bf16.gmra.mrb[0].mxu0 %v788
      %v906 = vpop.f32.mrb[0].mxu0
      %v907 = vadd.f32 0.0, %v906
      %v908 = vpop.f32.mrb[0].mxu0
      %v909 = vpop.f32.mrb[0].mxu0
      %v910 = vadd.f32 0.0, %v909
      %v911 = vpop.f32.mrb[0].mxu0
      %912 = vmatprep.mubr.bf16.mxu0 0
      %913 = vmatmul.mubr.bf16.gmra.mrb[0].mxu0 %v791
      %v914 = vpop.f32.mrb[0].mxu0
      %v915 = vadd.f32 0.0, %v914
      %v916 = vpop.f32.mrb[0].mxu0
      %v917 = vpop.f32.mrb[0].mxu0
      %v918 = vadd.f32 0.0, %v917
      %v919 = vpop.f32.mrb[0].mxu0
      %920 = vmatprep.mubr.bf16.mxu0 0
      %921 = vmatmul.mubr.bf16.gmra.mrb[0].mxu0 %v794
      %v922 = vpop.f32.mrb[0].mxu0
      %v923 = vadd.f32 0.0, %v922
      %v924 = vpop.f32.mrb[0].mxu0
      %v925 = vpop.f32.mrb[0].mxu0
      %v926 = vadd.f32 0.0, %v925
      %v927 = vpop.f32.mrb[0].mxu0
      %928 = vmatprep.mubr.bf16.mxu0 0
      %929 = vmatmul.mubr.bf16.gmra.mrb[0].mxu0 %v797
      %v930 = vpop.f32.mrb[0].mxu0
      %v931 = vadd.f32 0.0, %v930
      %v932 = vpop.f32.mrb[0].mxu0
      %v933 = vpop.f32.mrb[0].mxu0
      %v934 = vadd.f32 0.0, %v933
      %v935 = vpop.f32.mrb[0].mxu0
      %936 = vmatprep.mubr.bf16.mxu0 0
      %937 = vmatmul.mubr.bf16.gmra.mrb[0].mxu0 %v800
      %v938 = vpop.f32.mrb[0].mxu0
      %v939 = vadd.f32 0.0, %v938
      %v940 = vpop.f32.mrb[0].mxu0
      %v941 = vpop.f32.mrb[0].mxu0
      %v942 = vadd.f32 0.0, %v941
      %v943 = vpop.f32.mrb[0].mxu0
      %944 = vmatprep.mubr.bf16.mxu0 0
      %945 = vmatmul.mubr.bf16.gmra.mrb[0].mxu0 %v803
      %v946 = vpop.f32.mrb[0].mxu0
      %v947 = vadd.f32 0.0, %v946
      %v948 = vpop.f32.mrb[0].mxu0
      %v949 = vpop.f32.mrb[0].mxu0
      %v950 = vadd.f32 0.0, %v949
      %v951 = vpop.f32.mrb[0].mxu0
      %952 = vmatprep.mubr.bf16.mxu0 0
      %953 = vmatmul.mubr.bf16.gmra.mrb[0].mxu0 %v806
      %v954 = vpop.f32.mrb[0].mxu0
      %v955 = vadd.f32 0.0, %v954
      %v956 = vpop.f32.mrb[0].mxu0
      %v957 = vpop.f32.mrb[0].mxu0
      %v958 = vadd.f32 0.0, %v957
      %v959 = vpop.f32.mrb[0].mxu0
      %960 = vmatprep.mubr.bf16.mxu0 0
      %961 = vmatmul.mubr.bf16.gmra.mrb[0].mxu0 %v809
      %v962 = vpop.f32.mrb[0].mxu0
      %v963 = vadd.f32 0.0, %v962
      %v964 = vpop.f32.mrb[0].mxu0
      %v965 = vpop.f32.mrb[0].mxu0
      %v966 = vadd.f32 0.0, %v965
      %v967 = vpop.f32.mrb[0].mxu0
      %968 = vmatprep.mubr.bf16.mxu0 0
      %969 = vmatmul.mubr.bf16.gmra.mrb[0].mxu0 %v812
      %v970 = vpop.f32.mrb[0].mxu0
      %v971 = vadd.f32 0.0, %v970
      %v972 = vpop.f32.mrb[0].mxu0
      %v973 = vpop.f32.mrb[0].mxu0
      %v974 = vadd.f32 0.0, %v973
      %v975 = vpop.f32.mrb[0].mxu0
      %976 = vmatprep.mubr.bf16.mxu0 0
      %977 = vmatmul.mubr.bf16.gmra.mrb[0].mxu0 %v815
      %v978 = vpop.f32.mrb[0].mxu0
      %v979 = vadd.f32 0.0, %v978
      %v980 = vpop.f32.mrb[0].mxu0
      %v981 = vpop.f32.mrb[0].mxu0
      %v982 = vadd.f32 0.0, %v981
      %v983 = vpop.f32.mrb[0].mxu0
      %984 = vdwg.mxu0
      %v985 = vld [vmem:[%s2] sm:$0x1]
      %v987 = vlaneseq
      %v988 = vshrl.u32 %v987, 7
      %v989 = vsub.s32 0, %v988
      %v990 = vrot.slane %v985, %v989
      %v992 = vmul.f32 %v859, %v990
      %v993 = vmul.f32 %v862, %v990
      %v994 = vmul.f32 %v867, %v990
      %v995 = vmul.f32 %v870, %v990
      %v996 = vmul.f32 %v875, %v990
      %v997 = vmul.f32 %v878, %v990
      %v998 = vmul.f32 %v883, %v990
      %v999 = vmul.f32 %v886, %v990
      %v1000 = vmul.f32 %v891, %v990
      %v1001 = vmul.f32 %v894, %v990
      %v1002 = vmul.f32 %v899, %v990
      %v1003 = vmul.f32 %v902, %v990
      %v1004 = vmul.f32 %v907, %v990
      %v1005 = vmul.f32 %v910, %v990
      %v1006 = vmul.f32 %v915, %v990
      %v1007 = vmul.f32 %v918, %v990
      %v1008 = vmul.f32 %v923, %v990
      %v1009 = vmul.f32 %v926, %v990
      %v1010 = vmul.f32 %v931, %v990
      %v1011 = vmul.f32 %v934, %v990
      %v1012 = vmul.f32 %v939, %v990
      %v1013 = vmul.f32 %v942, %v990
      %v1014 = vmul.f32 %v947, %v990
      %v1015 = vmul.f32 %v950, %v990
      %v1016 = vmul.f32 %v955, %v990
      %v1017 = vmul.f32 %v958, %v990
      %v1018 = vmul.f32 %v963, %v990
      %v1019 = vmul.f32 %v966, %v990
      %v1020 = vmul.f32 %v971, %v990
      %v1021 = vmul.f32 %v974, %v990
      %v1022 = vmul.f32 %v979, %v990
      %v1023 = vmul.f32 %v982, %v990
      %v1024 = vld [vmem:[%s3] sm:$0x1]
      %v1026 = vlaneseq
      %v1027 = vshrl.u32 %v1026, 7
      %v1028 = vsub.s32 0, %v1027
      %v1029 = vrot.slane %v1024, %v1028
      %v1031 = vadd.f32 %v992, %v1029
      %v1032 = vadd.f32 %v993, %v1029
      %v1033 = vadd.f32 %v994, %v1029
      %v1034 = vadd.f32 %v995, %v1029
      %v1035 = vadd.f32 %v996, %v1029
      %v1036 = vadd.f32 %v997, %v1029
      %v1037 = vadd.f32 %v998, %v1029
      %v1038 = vadd.f32 %v999, %v1029
      %v1039 = vadd.f32 %v1000, %v1029
      %v1040 = vadd.f32 %v1001, %v1029
      %v1041 = vadd.f32 %v1002, %v1029
      %v1042 = vadd.f32 %v1003, %v1029
      %v1043 = vadd.f32 %v1004, %v1029
      %v1044 = vadd.f32 %v1005, %v1029
      %v1045 = vadd.f32 %v1006, %v1029
      %v1046 = vadd.f32 %v1007, %v1029
      %v1047 = vadd.f32 %v1008, %v1029
      %v1048 = vadd.f32 %v1009, %v1029
      %v1049 = vadd.f32 %v1010, %v1029
      %v1050 = vadd.f32 %v1011, %v1029
      %v1051 = vadd.f32 %v1012, %v1029
      %v1052 = vadd.f32 %v1013, %v1029
      %v1053 = vadd.f32 %v1014, %v1029
      %v1054 = vadd.f32 %v1015, %v1029
      %v1055 = vadd.f32 %v1016, %v1029
      %v1056 = vadd.f32 %v1017, %v1029
      %v1057 = vadd.f32 %v1018, %v1029
      %v1058 = vadd.f32 %v1019, %v1029
      %v1059 = vadd.f32 %v1020, %v1029
      %v1060 = vadd.f32 %v1021, %v1029
      %v1061 = vadd.f32 %v1022, %v1029
      %v1062 = vadd.f32 %v1023, %v1029
      %v1063 = vmax.f32 %v1031, 0.0
      %v1064 = vmax.f32 %v1032, 0.0
      %v1065 = vmax.f32 %v1033, 0.0
      %v1066 = vmax.f32 %v1034, 0.0
      %v1067 = vmax.f32 %v1035, 0.0
      %v1068 = vmax.f32 %v1036, 0.0
      %v1069 = vmax.f32 %v1037, 0.0
      %v1070 = vmax.f32 %v1038, 0.0
      %v1071 = vmax.f32 %v1039, 0.0
      %v1072 = vmax.f32 %v1040, 0.0
      %v1073 = vmax.f32 %v1041, 0.0
      %v1074 = vmax.f32 %v1042, 0.0
      %v1075 = vmax.f32 %v1043, 0.0
      %v1076 = vmax.f32 %v1044, 0.0
      %v1077 = vmax.f32 %v1045, 0.0
      %v1078 = vmax.f32 %v1046, 0.0
      %v1079 = vmax.f32 %v1047, 0.0
      %v1080 = vmax.f32 %v1048, 0.0
      %v1081 = vmax.f32 %v1049, 0.0
      %v1082 = vmax.f32 %v1050, 0.0
      %v1083 = vmax.f32 %v1051, 0.0
      %v1084 = vmax.f32 %v1052, 0.0
      %v1085 = vmax.f32 %v1053, 0.0
      %v1086 = vmax.f32 %v1054, 0.0
      %v1087 = vmax.f32 %v1055, 0.0
      %v1088 = vmax.f32 %v1056, 0.0
      %v1089 = vmax.f32 %v1057, 0.0
      %v1090 = vmax.f32 %v1058, 0.0
      %v1091 = vmax.f32 %v1059, 0.0
      %v1092 = vmax.f32 %v1060, 0.0
      %v1093 = vmax.f32 %v1061, 0.0
      %v1094 = vmax.f32 %v1062, 0.0
      %v1095 = vpack.c.bf16 %v1064, %v1063
      %v1096 = vpack.c.bf16 %v1066, %v1065
      %v1097 = vpack.c.bf16 %v1068, %v1067
      %v1098 = vpack.c.bf16 %v1070, %v1069
      %v1099 = vpack.c.bf16 %v1072, %v1071
      %v1100 = vpack.c.bf16 %v1074, %v1073
      %v1101 = vpack.c.bf16 %v1076, %v1075
      %v1102 = vpack.c.bf16 %v1078, %v1077
      %v1103 = vpack.c.bf16 %v1080, %v1079
      %v1104 = vpack.c.bf16 %v1082, %v1081
      %v1105 = vpack.c.bf16 %v1084, %v1083
      %v1106 = vpack.c.bf16 %v1086, %v1085
      %v1107 = vpack.c.bf16 %v1088, %v1087
      %v1108 = vpack.c.bf16 %v1090, %v1089
      %v1109 = vpack.c.bf16 %v1092, %v1091
      %v1110 = vpack.c.bf16 %v1094, %v1093
      %v1111 = vld [vmem:[%s16] sm:$0xff]
      %v1112 = vld [vmem:[%s16 + $0x8] sm:$0xff]
      %v1113 = vld [vmem:[%s16 + $0x10] sm:$0xff]
      %v1114 = vld [vmem:[%s16 + $0x18] sm:$0xff]
      %v1115 = vld [vmem:[%s16 + $0x20] sm:$0xff]
      %v1116 = vld [vmem:[%s16 + $0x28] sm:$0xff]
      %v1117 = vld [vmem:[%s16 + $0x30] sm:$0xff]
      %v1118 = vld [vmem:[%s16 + $0x38] sm:$0xff]
      %v1127 = vunpack.c.l.b16 %v1111
      %v1128 = vunpack.c.h.b16 %v1111
      %v1129 = vunpack.c.l.b16 %v1112
      %v1130 = vunpack.c.h.b16 %v1112
      %v1131 = vunpack.c.l.b16 %v1113
      %v1132 = vunpack.c.h.b16 %v1113
      %v1133 = vunpack.c.l.b16 %v1114
      %v1134 = vunpack.c.h.b16 %v1114
      %v1135 = vunpack.c.l.b16 %v1115
      %v1136 = vunpack.c.h.b16 %v1115
      %v1137 = vunpack.c.l.b16 %v1116
      %v1138 = vunpack.c.h.b16 %v1116
      %v1139 = vunpack.c.l.b16 %v1117
      %v1140 = vunpack.c.h.b16 %v1117
      %v1141 = vunpack.c.l.b16 %v1118
      %v1142 = vunpack.c.h.b16 %v1118
      %v1143 = vpack.c.b16 %v1129, %v1127
      %v1144 = vpack.c.b16 %v1130, %v1128
      %v1145 = vpack.c.b16 %v1133, %v1131
      %v1146 = vpack.c.b16 %v1134, %v1132
      %v1147 = vpack.c.b16 %v1137, %v1135
      %v1148 = vpack.c.b16 %v1138, %v1136
      %v1149 = vpack.c.b16 %v1141, %v1139
      %v1150 = vpack.c.b16 %v1142, %v1140
      %1159 = vmatprep.subr.bf16.mxu0 0
      %1160 = vmatpush1.bf16.msra.mxu0 %v1095
      %1161 = vmatprep.subr.bf16.mxu0 0
      %1162 = vmatpush1.bf16.msra.mxu0 %v1096
      %1163 = vmatprep.subr.bf16.mxu0 0
      %1164 = vmatpush1.bf16.msra.mxu0 %v1097
      %1165 = vmatprep.subr.bf16.mxu0 0
      %1166 = vmatpush1.bf16.msra.mxu0 %v1098
      %1167 = vmatprep.subr.bf16.mxu0 0
      %1168 = vmatpush1.bf16.msra.mxu0 %v1099
      %1169 = vmatprep.subr.bf16.mxu0 0
      %1170 = vmatpush1.bf16.msra.mxu0 %v1100
      %1171 = vmatprep.subr.bf16.mxu0 0
      %1172 = vmatpush1.bf16.msra.mxu0 %v1101
      %1173 = vmatprep.subr.bf16.mxu0 0
      %1174 = vmatpush1.bf16.msra.mxu0 %v1102
      %1175 = vmatprep.subr.bf16.mxu0 0
      %1176 = vmatpush1.bf16.msra.mxu0 %v1103
      %1177 = vmatprep.subr.bf16.mxu0 0
      %1178 = vmatpush1.bf16.msra.mxu0 %v1104
      %1179 = vmatprep.subr.bf16.mxu0 0
      %1180 = vmatpush1.bf16.msra.mxu0 %v1105
      %1181 = vmatprep.subr.bf16.mxu0 0
      %1182 = vmatpush1.bf16.msra.mxu0 %v1106
      %1183 = vmatprep.subr.bf16.mxu0 0
      %1184 = vmatpush1.bf16.msra.mxu0 %v1107
      %1185 = vmatprep.subr.bf16.mxu0 0
      %1186 = vmatpush1.bf16.msra.mxu0 %v1108
      %1187 = vmatprep.subr.bf16.mxu0 0
      %1188 = vmatpush1.bf16.msra.mxu0 %v1109
      %1189 = vmatprep.subr.bf16.mxu0 0
      %1190 = vmatpush1.bf16.msra.mxu0 %v1110
      %1191 = vmatprep.mubr.bf16.mxu0 %v1144
      %1192 = vmatmul.mubr.bf16.gmra.mrb[0].mxu0 %v1143
      %v1193 = vpop.f32.mrb[0].mxu0
      %v1194 = vadd.f32 0.0, %v1193
      %v1195 = vpop.f32.mrb[0].mxu0
      %v1196 = vpop.f32.mrb[0].mxu0
      %v1197 = vadd.f32 0.0, %v1196
      %v1198 = vpop.f32.mrb[0].mxu0
      %1199 = vmatprep.mubr.bf16.mxu0 %v1146
      %1200 = vmatmul.mubr.bf16.gmra.mrb[0].mxu0 %v1145
      %v1201 = vpop.f32.mrb[0].mxu0
      %v1202 = vadd.f32 0.0, %v1201
      %v1203 = vpop.f32.mrb[0].mxu0
      %v1204 = vpop.f32.mrb[0].mxu0
      %v1205 = vadd.f32 0.0, %v1204
      %v1206 = vpop.f32.mrb[0].mxu0
      %1207 = vmatprep.mubr.bf16.mxu0 %v1148
      %1208 = vmatmul.mubr.bf16.gmra.mrb[0].mxu0 %v1147
      %v1209 = vpop.f32.mrb[0].mxu0
      %v1210 = vadd.f32 0.0, %v1209
      %v1211 = vpop.f32.mrb[0].mxu0
      %v1212 = vpop.f32.mrb[0].mxu0
      %v1213 = vadd.f32 0.0, %v1212
      %v1214 = vpop.f32.mrb[0].mxu0
      %1215 = vmatprep.mubr.bf16.mxu0 %v1150
      %1216 = vmatmul.mubr.bf16.gmra.mrb[0].mxu0 %v1149
      %v1217 = vpop.f32.mrb[0].mxu0
      %v1218 = vadd.f32 0.0, %v1217
      %v1219 = vpop.f32.mrb[0].mxu0
      %v1220 = vpop.f32.mrb[0].mxu0
      %v1221 = vadd.f32 0.0, %v1220
      %v1222 = vpop.f32.mrb[0].mxu0
      %1223 = vdwg.mxu0
      %s1224 = scalar_lea.vmem %s16, 64
      %v1225 = vld [vmem:[%s1224] sm:$0xff]
      %v1226 = vld [vmem:[%s1224 + $0x8] sm:$0xff]
      %v1227 = vld [vmem:[%s1224 + $0x10] sm:$0xff]
      %v1228 = vld [vmem:[%s1224 + $0x18] sm:$0xff]
      %v1229 = vld [vmem:[%s1224 + $0x20] sm:$0xff]
      %v1230 = vld [vmem:[%s1224 + $0x28] sm:$0xff]
      %v1231 = vld [vmem:[%s1224 + $0x30] sm:$0xff]
      %v1232 = vld [vmem:[%s1224 + $0x38] sm:$0xff]
      %v1241 = vunpack.c.l.b16 %v1225
      %v1242 = vunpack.c.h.b16 %v1225
      %v1243 = vunpack.c.l.b16 %v1226
      %v1244 = vunpack.c.h.b16 %v1226
      %v1245 = vunpack.c.l.b16 %v1227
      %v1246 = vunpack.c.h.b16 %v1227
      %v1247 = vunpack.c.l.b16 %v1228
      %v1248 = vunpack.c.h.b16 %v1228
      %v1249 = vunpack.c.l.b16 %v1229
      %v1250 = vunpack.c.h.b16 %v1229
      %v1251 = vunpack.c.l.b16 %v1230
      %v1252 = vunpack.c.h.b16 %v1230
      %v1253 = vunpack.c.l.b16 %v1231
      %v1254 = vunpack.c.h.b16 %v1231
      %v1255 = vunpack.c.l.b16 %v1232
      %v1256 = vunpack.c.h.b16 %v1232
      %v1257 = vpack.c.b16 %v1243, %v1241
      %v1258 = vpack.c.b16 %v1244, %v1242
      %v1259 = vpack.c.b16 %v1247, %v1245
      %v1260 = vpack.c.b16 %v1248, %v1246
      %v1261 = vpack.c.b16 %v1251, %v1249
      %v1262 = vpack.c.b16 %v1252, %v1250
      %v1263 = vpack.c.b16 %v1255, %v1253
      %v1264 = vpack.c.b16 %v1256, %v1254
      %1273 = vmatprep.subr.bf16.mxu0 0
      %1274 = vmatpush1.bf16.msra.mxu0 %v1095
      %1275 = vmatprep.subr.bf16.mxu0 0
      %1276 = vmatpush1.bf16.msra.mxu0 %v1096
      %1277 = vmatprep.subr.bf16.mxu0 0
      %1278 = vmatpush1.bf16.msra.mxu0 %v1097
      %1279 = vmatprep.subr.bf16.mxu0 0
      %1280 = vmatpush1.bf16.msra.mxu0 %v1098
      %1281 = vmatprep.subr.bf16.mxu0 0
      %1282 = vmatpush1.bf16.msra.mxu0 %v1099
      %1283 = vmatprep.subr.bf16.mxu0 0
      %1284 = vmatpush1.bf16.msra.mxu0 %v1100
      %1285 = vmatprep.subr.bf16.mxu0 0
      %1286 = vmatpush1.bf16.msra.mxu0 %v1101
      %1287 = vmatprep.subr.bf16.mxu0 0
      %1288 = vmatpush1.bf16.msra.mxu0 %v1102
      %1289 = vmatprep.subr.bf16.mxu0 0
      %1290 = vmatpush1.bf16.msra.mxu0 %v1103
      %1291 = vmatprep.subr.bf16.mxu0 0
      %1292 = vmatpush1.bf16.msra.mxu0 %v1104
      %1293 = vmatprep.subr.bf16.mxu0 0
      %1294 = vmatpush1.bf16.msra.mxu0 %v1105
      %1295 = vmatprep.subr.bf16.mxu0 0
      %1296 = vmatpush1.bf16.msra.mxu0 %v1106
      %1297 = vmatprep.subr.bf16.mxu0 0
      %1298 = vmatpush1.bf16.msra.mxu0 %v1107
      %1299 = vmatprep.subr.bf16.mxu0 0
      %1300 = vmatpush1.bf16.msra.mxu0 %v1108
      %1301 = vmatprep.subr.bf16.mxu0 0
      %1302 = vmatpush1.bf16.msra.mxu0 %v1109
      %1303 = vmatprep.subr.bf16.mxu0 0
      %1304 = vmatpush1.bf16.msra.mxu0 %v1110
      %1305 = vmatprep.mubr.bf16.mxu0 %v1258
      %1306 = vmatmul.mubr.bf16.gmra.mrb[0].mxu0 %v1257
      %v1307 = vpop.f32.mrb[0].mxu0
      %v1308 = vadd.f32 0.0, %v1307
      %v1309 = vpop.f32.mrb[0].mxu0
      %v1310 = vpop.f32.mrb[0].mxu0
      %v1311 = vadd.f32 0.0, %v1310
      %v1312 = vpop.f32.mrb[0].mxu0
      %1313 = vmatprep.mubr.bf16.mxu0 %v1260
      %1314 = vmatmul.mubr.bf16.gmra.mrb[0].mxu0 %v1259
      %v1315 = vpop.f32.mrb[0].mxu0
      %v1316 = vadd.f32 0.0, %v1315
      %v1317 = vpop.f32.mrb[0].mxu0
      %v1318 = vpop.f32.mrb[0].mxu0
      %v1319 = vadd.f32 0.0, %v1318
      %v1320 = vpop.f32.mrb[0].mxu0
      %1321 = vmatprep.mubr.bf16.mxu0 %v1262
      %1322 = vmatmul.mubr.bf16.gmra.mrb[0].mxu0 %v1261
      %v1323 = vpop.f32.mrb[0].mxu0
      %v1324 = vadd.f32 0.0, %v1323
      %v1325 = vpop.f32.mrb[0].mxu0
      %v1326 = vpop.f32.mrb[0].mxu0
      %v1327 = vadd.f32 0.0, %v1326
      %v1328 = vpop.f32.mrb[0].mxu0
      %1329 = vmatprep.mubr.bf16.mxu0 %v1264
      %1330 = vmatmul.mubr.bf16.gmra.mrb[0].mxu0 %v1263
      %v1331 = vpop.f32.mrb[0].mxu0
      %v1332 = vadd.f32 0.0, %v1331
      %v1333 = vpop.f32.mrb[0].mxu0
      %v1334 = vpop.f32.mrb[0].mxu0
      %v1335 = vadd.f32 0.0, %v1334
      %v1336 = vpop.f32.mrb[0].mxu0
      %1337 = vdwg.mxu0
      %v1338 = vmax.f32 %v1194, %v1308
      %v1339 = vmax.f32 %v1197, %v1311
      %v1340 = vmax.f32 %v1202, %v1316
      %v1341 = vmax.f32 %v1205, %v1319
      %v1342 = vmax.f32 %v1210, %v1324
      %v1343 = vmax.f32 %v1213, %v1327
      %v1344 = vmax.f32 %v1218, %v1332
      %v1345 = vmax.f32 %v1221, %v1335
      %s1346 = scalar_lea.vmem %s16, 128
      %v1347 = vld [vmem:[%s1346] sm:$0xff]
      %v1348 = vld [vmem:[%s1346 + $0x8] sm:$0xff]
      %v1349 = vld [vmem:[%s1346 + $0x10] sm:$0xff]
      %v1350 = vld [vmem:[%s1346 + $0x18] sm:$0xff]
      %v1351 = vld [vmem:[%s1346 + $0x20] sm:$0xff]
      %v1352 = vld [vmem:[%s1346 + $0x28] sm:$0xff]
      %v1353 = vld [vmem:[%s1346 + $0x30] sm:$0xff]
      %v1354 = vld [vmem:[%s1346 + $0x38] sm:$0xff]
      %v1363 = vunpack.c.l.b16 %v1347
      %v1364 = vunpack.c.h.b16 %v1347
      %v1365 = vunpack.c.l.b16 %v1348
      %v1366 = vunpack.c.h.b16 %v1348
      %v1367 = vunpack.c.l.b16 %v1349
      %v1368 = vunpack.c.h.b16 %v1349
      %v1369 = vunpack.c.l.b16 %v1350
      %v1370 = vunpack.c.h.b16 %v1350
      %v1371 = vunpack.c.l.b16 %v1351
      %v1372 = vunpack.c.h.b16 %v1351
      %v1373 = vunpack.c.l.b16 %v1352
      %v1374 = vunpack.c.h.b16 %v1352
      %v1375 = vunpack.c.l.b16 %v1353
      %v1376 = vunpack.c.h.b16 %v1353
      %v1377 = vunpack.c.l.b16 %v1354
      %v1378 = vunpack.c.h.b16 %v1354
      %v1379 = vpack.c.b16 %v1365, %v1363
      %v1380 = vpack.c.b16 %v1366, %v1364
      %v1381 = vpack.c.b16 %v1369, %v1367
      %v1382 = vpack.c.b16 %v1370, %v1368
      %v1383 = vpack.c.b16 %v1373, %v1371
      %v1384 = vpack.c.b16 %v1374, %v1372
      %v1385 = vpack.c.b16 %v1377, %v1375
      %v1386 = vpack.c.b16 %v1378, %v1376
      %1395 = vmatprep.subr.bf16.mxu0 0
      %1396 = vmatpush1.bf16.msra.mxu0 %v1095
      %1397 = vmatprep.subr.bf16.mxu0 0
      %1398 = vmatpush1.bf16.msra.mxu0 %v1096
      %1399 = vmatprep.subr.bf16.mxu0 0
      %1400 = vmatpush1.bf16.msra.mxu0 %v1097
      %1401 = vmatprep.subr.bf16.mxu0 0
      %1402 = vmatpush1.bf16.msra.mxu0 %v1098
      %1403 = vmatprep.subr.bf16.mxu0 0
      %1404 = vmatpush1.bf16.msra.mxu0 %v1099
      %1405 = vmatprep.subr.bf16.mxu0 0
      %1406 = vmatpush1.bf16.msra.mxu0 %v1100
      %1407 = vmatprep.subr.bf16.mxu0 0
      %1408 = vmatpush1.bf16.msra.mxu0 %v1101
      %1409 = vmatprep.subr.bf16.mxu0 0
      %1410 = vmatpush1.bf16.msra.mxu0 %v1102
      %1411 = vmatprep.subr.bf16.mxu0 0
      %1412 = vmatpush1.bf16.msra.mxu0 %v1103
      %1413 = vmatprep.subr.bf16.mxu0 0
      %1414 = vmatpush1.bf16.msra.mxu0 %v1104
      %1415 = vmatprep.subr.bf16.mxu0 0
      %1416 = vmatpush1.bf16.msra.mxu0 %v1105
      %1417 = vmatprep.subr.bf16.mxu0 0
      %1418 = vmatpush1.bf16.msra.mxu0 %v1106
      %1419 = vmatprep.subr.bf16.mxu0 0
      %1420 = vmatpush1.bf16.msra.mxu0 %v1107
      %1421 = vmatprep.subr.bf16.mxu0 0
      %1422 = vmatpush1.bf16.msra.mxu0 %v1108
      %1423 = vmatprep.subr.bf16.mxu0 0
      %1424 = vmatpush1.bf16.msra.mxu0 %v1109
      %1425 = vmatprep.subr.bf16.mxu0 0
      %1426 = vmatpush1.bf16.msra.mxu0 %v1110
      %1427 = vmatprep.mubr.bf16.mxu0 %v1380
      %1428 = vmatmul.mubr.bf16.gmra.mrb[0].mxu0 %v1379
      %v1429 = vpop.f32.mrb[0].mxu0
      %v1430 = vadd.f32 0.0, %v1429
      %v1431 = vpop.f32.mrb[0].mxu0
      %v1432 = vpop.f32.mrb[0].mxu0
      %v1433 = vadd.f32 0.0, %v1432
      %v1434 = vpop.f32.mrb[0].mxu0
      %1435 = vmatprep.mubr.bf16.mxu0 %v1382
      %1436 = vmatmul.mubr.bf16.gmra.mrb[0].mxu0 %v1381
      %v1437 = vpop.f32.mrb[0].mxu0
      %v1438 = vadd.f32 0.0, %v1437
      %v1439 = vpop.f32.mrb[0].mxu0
      %v1440 = vpop.f32.mrb[0].mxu0
      %v1441 = vadd.f32 0.0, %v1440
      %v1442 = vpop.f32.mrb[0].mxu0
      %1443 = vmatprep.mubr.bf16.mxu0 %v1384
      %1444 = vmatmul.mubr.bf16.gmra.mrb[0].mxu0 %v1383
      %v1445 = vpop.f32.mrb[0].mxu0
      %v1446 = vadd.f32 0.0, %v1445
      %v1447 = vpop.f32.mrb[0].mxu0
      %v1448 = vpop.f32.mrb[0].mxu0
      %v1449 = vadd.f32 0.0, %v1448
      %v1450 = vpop.f32.mrb[0].mxu0
      %1451 = vmatprep.mubr.bf16.mxu0 %v1386
      %1452 = vmatmul.mubr.bf16.gmra.mrb[0].mxu0 %v1385
      %v1453 = vpop.f32.mrb[0].mxu0
      %v1454 = vadd.f32 0.0, %v1453
      %v1455 = vpop.f32.mrb[0].mxu0
      %v1456 = vpop.f32.mrb[0].mxu0
      %v1457 = vadd.f32 0.0, %v1456
      %v1458 = vpop.f32.mrb[0].mxu0
      %1459 = vdwg.mxu0
      %v1460 = vmax.f32 %v1338, %v1430
      %v1461 = vmax.f32 %v1339, %v1433
      %v1462 = vmax.f32 %v1340, %v1438
      %v1463 = vmax.f32 %v1341, %v1441
      %v1464 = vmax.f32 %v1342, %v1446
      %v1465 = vmax.f32 %v1343, %v1449
      %v1466 = vmax.f32 %v1344, %v1454
      %v1467 = vmax.f32 %v1345, %v1457
      %s1468 = scalar_lea.vmem %s16, 192
      %v1469 = vld [vmem:[%s1468] sm:$0xff]
      %v1470 = vld [vmem:[%s1468 + $0x8] sm:$0xff]
      %v1471 = vld [vmem:[%s1468 + $0x10] sm:$0xff]
      %v1472 = vld [vmem:[%s1468 + $0x18] sm:$0xff]
      %v1473 = vld [vmem:[%s1468 + $0x20] sm:$0xff]
      %v1474 = vld [vmem:[%s1468 + $0x28] sm:$0xff]
      %v1475 = vld [vmem:[%s1468 + $0x30] sm:$0xff]
      %v1476 = vld [vmem:[%s1468 + $0x38] sm:$0xff]
      %v1485 = vunpack.c.l.b16 %v1469
      %v1486 = vunpack.c.h.b16 %v1469
      %v1487 = vunpack.c.l.b16 %v1470
      %v1488 = vunpack.c.h.b16 %v1470
      %v1489 = vunpack.c.l.b16 %v1471
      %v1490 = vunpack.c.h.b16 %v1471
      %v1491 = vunpack.c.l.b16 %v1472
      %v1492 = vunpack.c.h.b16 %v1472
      %v1493 = vunpack.c.l.b16 %v1473
      %v1494 = vunpack.c.h.b16 %v1473
      %v1495 = vunpack.c.l.b16 %v1474
      %v1496 = vunpack.c.h.b16 %v1474
      %v1497 = vunpack.c.l.b16 %v1475
      %v1498 = vunpack.c.h.b16 %v1475
      %v1499 = vunpack.c.l.b16 %v1476
      %v1500 = vunpack.c.h.b16 %v1476
      %v1501 = vpack.c.b16 %v1487, %v1485
      %v1502 = vpack.c.b16 %v1488, %v1486
      %v1503 = vpack.c.b16 %v1491, %v1489
      %v1504 = vpack.c.b16 %v1492, %v1490
      %v1505 = vpack.c.b16 %v1495, %v1493
      %v1506 = vpack.c.b16 %v1496, %v1494
      %v1507 = vpack.c.b16 %v1499, %v1497
      %v1508 = vpack.c.b16 %v1500, %v1498
      %1517 = vmatprep.subr.bf16.mxu0 0
      %1518 = vmatpush1.bf16.msra.mxu0 %v1095
      %1519 = vmatprep.subr.bf16.mxu0 0
      %1520 = vmatpush1.bf16.msra.mxu0 %v1096
      %1521 = vmatprep.subr.bf16.mxu0 0
      %1522 = vmatpush1.bf16.msra.mxu0 %v1097
      %1523 = vmatprep.subr.bf16.mxu0 0
      %1524 = vmatpush1.bf16.msra.mxu0 %v1098
      %1525 = vmatprep.subr.bf16.mxu0 0
      %1526 = vmatpush1.bf16.msra.mxu0 %v1099
      %1527 = vmatprep.subr.bf16.mxu0 0
      %1528 = vmatpush1.bf16.msra.mxu0 %v1100
      %1529 = vmatprep.subr.bf16.mxu0 0
      %1530 = vmatpush1.bf16.msra.mxu0 %v1101
      %1531 = vmatprep.subr.bf16.mxu0 0
      %1532 = vmatpush1.bf16.msra.mxu0 %v1102
      %1533 = vmatprep.subr.bf16.mxu0 0
      %1534 = vmatpush1.bf16.msra.mxu0 %v1103
      %1535 = vmatprep.subr.bf16.mxu0 0
      %1536 = vmatpush1.bf16.msra.mxu0 %v1104
      %1537 = vmatprep.subr.bf16.mxu0 0
      %1538 = vmatpush1.bf16.msra.mxu0 %v1105
      %1539 = vmatprep.subr.bf16.mxu0 0
      %1540 = vmatpush1.bf16.msra.mxu0 %v1106
      %1541 = vmatprep.subr.bf16.mxu0 0
      %1542 = vmatpush1.bf16.msra.mxu0 %v1107
      %1543 = vmatprep.subr.bf16.mxu0 0
      %1544 = vmatpush1.bf16.msra.mxu0 %v1108
      %1545 = vmatprep.subr.bf16.mxu0 0
      %1546 = vmatpush1.bf16.msra.mxu0 %v1109
      %1547 = vmatprep.subr.bf16.mxu0 0
      %1548 = vmatpush1.bf16.msra.mxu0 %v1110
      %1549 = vmatprep.mubr.bf16.mxu0 %v1502
      %1550 = vmatmul.mubr.bf16.gmra.mrb[0].mxu0 %v1501
      %v1551 = vpop.f32.mrb[0].mxu0
      %v1552 = vadd.f32 0.0, %v1551
      %v1553 = vpop.f32.mrb[0].mxu0
      %v1554 = vpop.f32.mrb[0].mxu0
      %v1555 = vadd.f32 0.0, %v1554
      %v1556 = vpop.f32.mrb[0].mxu0
      %1557 = vmatprep.mubr.bf16.mxu0 %v1504
      %1558 = vmatmul.mubr.bf16.gmra.mrb[0].mxu0 %v1503
      %v1559 = vpop.f32.mrb[0].mxu0
      %v1560 = vadd.f32 0.0, %v1559
      %v1561 = vpop.f32.mrb[0].mxu0
      %v1562 = vpop.f32.mrb[0].mxu0
      %v1563 = vadd.f32 0.0, %v1562
      %v1564 = vpop.f32.mrb[0].mxu0
      %1565 = vmatprep.mubr.bf16.mxu0 %v1506
      %1566 = vmatmul.mubr.bf16.gmra.mrb[0].mxu0 %v1505
      %v1567 = vpop.f32.mrb[0].mxu0
      %v1568 = vadd.f32 0.0, %v1567
      %v1569 = vpop.f32.mrb[0].mxu0
      %v1570 = vpop.f32.mrb[0].mxu0
      %v1571 = vadd.f32 0.0, %v1570
      %v1572 = vpop.f32.mrb[0].mxu0
      %1573 = vmatprep.mubr.bf16.mxu0 %v1508
      %1574 = vmatmul.mubr.bf16.gmra.mrb[0].mxu0 %v1507
      %v1575 = vpop.f32.mrb[0].mxu0
      %v1576 = vadd.f32 0.0, %v1575
      %v1577 = vpop.f32.mrb[0].mxu0
      %v1578 = vpop.f32.mrb[0].mxu0
      %v1579 = vadd.f32 0.0, %v1578
      %v1580 = vpop.f32.mrb[0].mxu0
      %1581 = vdwg.mxu0
      %v1582 = vmax.f32 %v1460, %v1552
      %v1583 = vmax.f32 %v1461, %v1555
      %v1584 = vmax.f32 %v1462, %v1560
      %v1585 = vmax.f32 %v1463, %v1563
      %v1586 = vmax.f32 %v1464, %v1568
      %v1587 = vmax.f32 %v1465, %v1571
      %v1588 = vmax.f32 %v1466, %v1576
      %v1589 = vmax.f32 %v1467, %v1579
      %vm1590 = vcmask 523264
      %1591 = vst.msk [vmem:[#allocation2] sm:$0xff] %vm1590, 0.0
      %1592 = vst.msk [vmem:[#allocation2 + $0x8] sm:$0xff] %vm1590, 0.0
      %1593 = vst.msk [vmem:[#allocation2 + $0x10] sm:$0xff] %vm1590, 0.0
      %1594 = vst.msk [vmem:[#allocation2 + $0x18] sm:$0xff] %vm1590, 0.0
      %1595 = vst.msk [vmem:[#allocation2 + $0x20] sm:$0xff] %vm1590, 0.0
      %1596 = vst.msk [vmem:[#allocation2 + $0x28] sm:$0xff] %vm1590, 0.0
      %1597 = vst.msk [vmem:[#allocation2 + $0x30] sm:$0xff] %vm1590, 0.0
      %1598 = vst.msk [vmem:[#allocation2 + $0x38] sm:$0xff] %vm1590, 0.0
      %1599 = vst.msk [vmem:[#allocation2 + $0x40] sm:$0xff] %vm1590, 0.0
      %1600 = vst.msk [vmem:[#allocation2 + $0x48] sm:$0xff] %vm1590, 0.0
      %1601 = vst.msk [vmem:[#allocation2 + $0x50] sm:$0xff] %vm1590, 0.0
      %vm1602 = vcmask 516096
      %1603 = vst.msk [vmem:[#allocation2 + $0x58] sm:$0x1] %vm1602, 0.0
      %1604 = vst.msk [vmem:[#allocation2 + $0x10] sm:$0xff] %vm1590, %v1582
      %1605 = vst.msk [vmem:[#allocation2 + $0x18] sm:$0xff] %vm1590, %v1583
      %1606 = vst.msk [vmem:[#allocation2 + $0x20] sm:$0xff] %vm1590, %v1584
      %1607 = vst.msk [vmem:[#allocation2 + $0x28] sm:$0xff] %vm1590, %v1585
      %1608 = vst.msk [vmem:[#allocation2 + $0x30] sm:$0xff] %vm1590, %v1586
      %1609 = vst.msk [vmem:[#allocation2 + $0x38] sm:$0xff] %vm1590, %v1587
      %1610 = vst.msk [vmem:[#allocation2 + $0x40] sm:$0xff] %vm1590, %v1588
      %1611 = vst.msk [vmem:[#allocation2 + $0x48] sm:$0xff] %vm1590, %v1589
      %v1612 = vlaneseq
      %v1613 = vshrl.u32 %v1612, 7
      %v1614 = vadd.s32 %v1613, 8
      %v1615 = vadd.s32 %v1613, 16
      %v1616 = vadd.s32 %v1613, 24
      %v1617 = vadd.s32 %v1613, 32
      %v1618 = vadd.s32 %v1613, 40
      %v1619 = vadd.s32 %v1613, 48
      %v1620 = vadd.s32 %v1613, 56
      %v1621 = vand.u32 %v1613, 7
      %v1622 = vand.u32 %v1614, 7
      %v1623 = vand.u32 %v1615, 7
      %v1624 = vand.u32 %v1616, 7
      %v1625 = vand.u32 %v1617, 7
      %v1626 = vand.u32 %v1618, 7
      %v1627 = vand.u32 %v1619, 7
      %v1628 = vand.u32 %v1620, 7
      %v1629 = vld [vmem:[#allocation2 + $0x7] sm:$0xff]
      %v1630 = vld [vmem:[#allocation2 + $0xf] sm:$0xff]
      %v1631 = vld [vmem:[#allocation2 + $0x17] sm:$0xff]
      %v1632 = vld [vmem:[#allocation2 + $0x1f] sm:$0xff]
      %v1633 = vld [vmem:[#allocation2 + $0x27] sm:$0xff]
      %v1634 = vld [vmem:[#allocation2 + $0x2f] sm:$0xff]
      %v1635 = vld [vmem:[#allocation2 + $0x37] sm:$0xff]
      %v1636 = vld [vmem:[#allocation2 + $0x3f] sm:$0xff]
      %vm1637 = vcmp.ge.s32.totalorder %v1621, 1
      %vm1638 = vcmp.ge.s32.totalorder %v1622, 1
      %vm1639 = vcmp.ge.s32.totalorder %v1623, 1
      %vm1640 = vcmp.ge.s32.totalorder %v1624, 1
      %vm1641 = vcmp.ge.s32.totalorder %v1625, 1
      %vm1642 = vcmp.ge.s32.totalorder %v1626, 1
      %vm1643 = vcmp.ge.s32.totalorder %v1627, 1
      %vm1644 = vcmp.ge.s32.totalorder %v1628, 1
      %v1645 = vsel %vm1637, 1, 0
      %v1646 = vsel %vm1638, 1, 0
      %v1647 = vsel %vm1639, 1, 0
      %v1648 = vsel %vm1640, 1, 0
      %v1649 = vsel %vm1641, 1, 0
      %v1650 = vsel %vm1642, 1, 0
      %v1651 = vsel %vm1643, 1, 0
      %v1652 = vsel %vm1644, 1, 0
      %vm1653 = vcmp.eq.s32.totalorder %v1645, 1
      %vm1654 = vcmp.eq.s32.totalorder %v1646, 1
      %vm1655 = vcmp.eq.s32.totalorder %v1647, 1
      %vm1656 = vcmp.eq.s32.totalorder %v1648, 1
      %vm1657 = vcmp.eq.s32.totalorder %v1649, 1
      %vm1658 = vcmp.eq.s32.totalorder %v1650, 1
      %vm1659 = vcmp.eq.s32.totalorder %v1651, 1
      %vm1660 = vcmp.eq.s32.totalorder %v1652, 1
      %v1661 = vsel %vm1653, %v1629, 0.0
      %v1662 = vsel %vm1654, %v1630, 0.0
      %v1663 = vsel %vm1655, %v1631, 0.0
      %v1664 = vsel %vm1656, %v1632, 0.0
      %v1665 = vsel %vm1657, %v1633, 0.0
      %v1666 = vsel %vm1658, %v1634, 0.0
      %v1667 = vsel %vm1659, %v1635, 0.0
      %v1668 = vsel %vm1660, %v1636, 0.0
      %v1669 = vpack.c.bf16 %v1662, %v1661
      %v1670 = vpack.c.bf16 %v1664, %v1663
      %v1671 = vpack.c.bf16 %v1666, %v1665
      %v1672 = vpack.c.bf16 %v1668, %v1667
      %v1673 = vld [vmem:[%s4] sm:$0xf]
      %v1674 = vld [vmem:[%s4 + $0x4] sm:$0xf]
      %v1675 = vld [vmem:[%s4 + $0x8] sm:$0xf]
      %v1676 = vld [vmem:[%s4 + $0xc] sm:$0xf]
      %v1677 = vld [vmem:[%s4 + $0x10] sm:$0xf]
      %v1678 = vld [vmem:[%s4 + $0x14] sm:$0xf]
      %v1679 = vld [vmem:[%s4 + $0x18] sm:$0xf]
      %v1680 = vld [vmem:[%s4 + $0x1c] sm:$0xf]
      %v1681 = vld [vmem:[#allocation2 + $0x8] sm:$0xff]
      %v1682 = vld [vmem:[#allocation2 + $0x10] sm:$0xff]
      %v1683 = vld [vmem:[#allocation2 + $0x18] sm:$0xff]
      %v1684 = vld [vmem:[#allocation2 + $0x20] sm:$0xff]
      %v1685 = vld [vmem:[#allocation2 + $0x28] sm:$0xff]
      %v1686 = vld [vmem:[#allocation2 + $0x30] sm:$0xff]
      %v1687 = vld [vmem:[#allocation2 + $0x38] sm:$0xff]
      %v1688 = vld [vmem:[#allocation2 + $0x40] sm:$0xff]
      %v1689 = vpack.c.bf16 %v1682, %v1681
      %v1690 = vpack.c.bf16 %v1684, %v1683
      %v1691 = vpack.c.bf16 %v1686, %v1685
      %v1692 = vpack.c.bf16 %v1688, %v1687
      %s1693 = scalar_lea.vmem %s4, 32
      %v1694 = vld [vmem:[%s1693] sm:$0xf]
      %v1695 = vld [vmem:[%s1693 + $0x4] sm:$0xf]
      %v1696 = vld [vmem:[%s1693 + $0x8] sm:$0xf]
      %v1697 = vld [vmem:[%s1693 + $0xc] sm:$0xf]
      %v1698 = vld [vmem:[%s1693 + $0x10] sm:$0xf]
      %v1699 = vld [vmem:[%s1693 + $0x14] sm:$0xf]
      %v1700 = vld [vmem:[%s1693 + $0x18] sm:$0xf]
      %v1701 = vld [vmem:[%s1693 + $0x1c] sm:$0xf]
      %v1710 = vunpack.c.l.b16 %v1694
      %v1711 = vunpack.c.l.b16 %v1695
      %v1712 = vunpack.c.l.b16 %v1696
      %v1713 = vunpack.c.l.b16 %v1697
      %v1714 = vunpack.c.l.b16 %v1698
      %v1715 = vunpack.c.l.b16 %v1699
      %v1716 = vunpack.c.l.b16 %v1700
      %v1717 = vunpack.c.l.b16 %v1701
      %v1718 = vpack.c.b16 %v1711, %v1710
      %v1719 = vpack.c.b16 %v1713, %v1712
      %v1720 = vpack.c.b16 %v1715, %v1714
      %v1721 = vpack.c.b16 %v1717, %v1716
      %v1727 = vsel %vm1590, %v1689, 0
      %v1730 = vsel %vm1590, %v1690, 0
      %v1733 = vsel %vm1590, %v1691, 0
      %v1736 = vsel %vm1590, %v1692, 0
      %1738 = vmatprep.subr.bf16.mxu0 0
      %1739 = vmatpush1.bf16.msra.mxu0 %v1718
      %1740 = vmatprep.subr.bf16.mxu0 0
      %1741 = vmatpush1.bf16.msra.mxu0 %v1719
      %1742 = vmatprep.subr.bf16.mxu0 0
      %1743 = vmatpush1.bf16.msra.mxu0 %v1720
      %1744 = vmatprep.subr.bf16.mxu0 0
      %1745 = vmatpush1.bf16.msra.mxu0 %v1721
      %1746 = vmatprep.subr.bf16.mxu0 0
      %1747 = vmatpush1.bf16.msra.mxu0 0
      %1748 = vmatprep.subr.bf16.mxu0 0
      %1749 = vmatpush1.bf16.msra.mxu0 0
      %1750 = vmatprep.subr.bf16.mxu0 0
      %1751 = vmatpush1.bf16.msra.mxu0 0
      %1752 = vmatprep.subr.bf16.mxu0 0
      %1753 = vmatpush1.bf16.msra.mxu0 0
      %1754 = vmatprep.subr.bf16.mxu0 0
      %1755 = vmatpush1.bf16.msra.mxu0 0
      %1756 = vmatprep.subr.bf16.mxu0 0
      %1757 = vmatpush1.bf16.msra.mxu0 0
      %1758 = vmatprep.subr.bf16.mxu0 0
      %1759 = vmatpush1.bf16.msra.mxu0 0
      %1760 = vmatprep.subr.bf16.mxu0 0
      %1761 = vmatpush1.bf16.msra.mxu0 0
      %1762 = vmatprep.subr.bf16.mxu0 0
      %1763 = vmatpush1.bf16.msra.mxu0 0
      %1764 = vmatprep.subr.bf16.mxu0 0
      %1765 = vmatpush1.bf16.msra.mxu0 0
      %1766 = vmatprep.subr.bf16.mxu0 0
      %1767 = vmatpush1.bf16.msra.mxu0 0
      %1768 = vmatprep.subr.bf16.mxu0 0
      %1769 = vmatpush1.bf16.msra.mxu0 0
      %1770 = vmatprep.mubr.bf16.mxu0 0
      %1771 = vmatmul.mubr.bf16.gmra.mrb[0].mxu0 %v1727
      %v1772 = vpop.f32.mrb[0].mxu0
      %v1773 = vadd.f32 0.0, %v1772
      %v1774 = vpop.f32.mrb[0].mxu0
      %v1775 = vpop.f32.mrb[0].mxu0
      %v1776 = vadd.f32 0.0, %v1775
      %v1777 = vpop.f32.mrb[0].mxu0
      %1778 = vmatprep.mubr.bf16.mxu0 0
      %1779 = vmatmul.mubr.bf16.gmra.mrb[0].mxu0 %v1730
      %v1780 = vpop.f32.mrb[0].mxu0
      %v1781 = vadd.f32 0.0, %v1780
      %v1782 = vpop.f32.mrb[0].mxu0
      %v1783 = vpop.f32.mrb[0].mxu0
      %v1784 = vadd.f32 0.0, %v1783
      %v1785 = vpop.f32.mrb[0].mxu0
      %1786 = vmatprep.mubr.bf16.mxu0 0
      %1787 = vmatmul.mubr.bf16.gmra.mrb[0].mxu0 %v1733
      %v1788 = vpop.f32.mrb[0].mxu0
      %v1789 = vadd.f32 0.0, %v1788
      %v1790 = vpop.f32.mrb[0].mxu0
      %v1791 = vpop.f32.mrb[0].mxu0
      %v1792 = vadd.f32 0.0, %v1791
      %v1793 = vpop.f32.mrb[0].mxu0
      %1794 = vmatprep.mubr.bf16.mxu0 0
      %1795 = vmatmul.mubr.bf16.gmra.mrb[0].mxu0 %v1736
      %v1796 = vpop.f32.mrb[0].mxu0
      %v1797 = vadd.f32 0.0, %v1796
      %v1798 = vpop.f32.mrb[0].mxu0
      %v1799 = vpop.f32.mrb[0].mxu0
      %v1800 = vadd.f32 0.0, %v1799
      %v1801 = vpop.f32.mrb[0].mxu0
      %1802 = vdwg.mxu0
      %v1811 = vunpack.c.l.b16 %v1673
      %v1812 = vunpack.c.l.b16 %v1674
      %v1813 = vunpack.c.l.b16 %v1675
      %v1814 = vunpack.c.l.b16 %v1676
      %v1815 = vunpack.c.l.b16 %v1677
      %v1816 = vunpack.c.l.b16 %v1678
      %v1817 = vunpack.c.l.b16 %v1679
      %v1818 = vunpack.c.l.b16 %v1680
      %v1819 = vpack.c.b16 %v1812, %v1811
      %v1820 = vpack.c.b16 %v1814, %v1813
      %v1821 = vpack.c.b16 %v1816, %v1815
      %v1822 = vpack.c.b16 %v1818, %v1817
      %v1828 = vsel %vm1590, %v1669, 0
      %v1831 = vsel %vm1590, %v1670, 0
      %v1834 = vsel %vm1590, %v1671, 0
      %v1837 = vsel %vm1590, %v1672, 0
      %1839 = vmatprep.subr.bf16.mxu0 0
      %1840 = vmatpush1.bf16.msra.mxu0 %v1819
      %1841 = vmatprep.subr.bf16.mxu0 0
      %1842 = vmatpush1.bf16.msra.mxu0 %v1820
      %1843 = vmatprep.subr.bf16.mxu0 0
      %1844 = vmatpush1.bf16.msra.mxu0 %v1821
      %1845 = vmatprep.subr.bf16.mxu0 0
      %1846 = vmatpush1.bf16.msra.mxu0 %v1822
      %1847 = vmatprep.subr.bf16.mxu0 0
      %1848 = vmatpush1.bf16.msra.mxu0 0
      %1849 = vmatprep.subr.bf16.mxu0 0
      %1850 = vmatpush1.bf16.msra.mxu0 0
      %1851 = vmatprep.subr.bf16.mxu0 0
      %1852 = vmatpush1.bf16.msra.mxu0 0
      %1853 = vmatprep.subr.bf16.mxu0 0
      %1854 = vmatpush1.bf16.msra.mxu0 0
      %1855 = vmatprep.subr.bf16.mxu0 0
      %1856 = vmatpush1.bf16.msra.mxu0 0
      %1857 = vmatprep.subr.bf16.mxu0 0
      %1858 = vmatpush1.bf16.msra.mxu0 0
      %1859 = vmatprep.subr.bf16.mxu0 0
      %1860 = vmatpush1.bf16.msra.mxu0 0
      %1861 = vmatprep.subr.bf16.mxu0 0
      %1862 = vmatpush1.bf16.msra.mxu0 0
      %1863 = vmatprep.subr.bf16.mxu0 0
      %1864 = vmatpush1.bf16.msra.mxu0 0
      %1865 = vmatprep.subr.bf16.mxu0 0
      %1866 = vmatpush1.bf16.msra.mxu0 0
      %1867 = vmatprep.subr.bf16.mxu0 0
      %1868 = vmatpush1.bf16.msra.mxu0 0
      %1869 = vmatprep.subr.bf16.mxu0 0
      %1870 = vmatpush1.bf16.msra.mxu0 0
      %1871 = vmatprep.mubr.bf16.mxu0 0
      %1872 = vmatmul.mubr.bf16.gmra.mrb[0].mxu0 %v1828
      %v1873 = vpop.f32.mrb[0].mxu0
      %v1874 = vadd.f32 %v1773, %v1873
      %v1875 = vpop.f32.mrb[0].mxu0
      %v1876 = vpop.f32.mrb[0].mxu0
      %v1877 = vadd.f32 %v1776, %v1876
      %v1878 = vpop.f32.mrb[0].mxu0
      %1879 = vmatprep.mubr.bf16.mxu0 0
      %1880 = vmatmul.mubr.bf16.gmra.mrb[0].mxu0 %v1831
      %v1881 = vpop.f32.mrb[0].mxu0
      %v1882 = vadd.f32 %v1781, %v1881
      %v1883 = vpop.f32.mrb[0].mxu0
      %v1884 = vpop.f32.mrb[0].mxu0
      %v1885 = vadd.f32 %v1784, %v1884
      %v1886 = vpop.f32.mrb[0].mxu0
      %1887 = vmatprep.mubr.bf16.mxu0 0
      %1888 = vmatmul.mubr.bf16.gmra.mrb[0].mxu0 %v1834
      %v1889 = vpop.f32.mrb[0].mxu0
      %v1890 = vadd.f32 %v1789, %v1889
      %v1891 = vpop.f32.mrb[0].mxu0
      %v1892 = vpop.f32.mrb[0].mxu0
      %v1893 = vadd.f32 %v1792, %v1892
      %v1894 = vpop.f32.mrb[0].mxu0
      %1895 = vmatprep.mubr.bf16.mxu0 0
      %1896 = vmatmul.mubr.bf16.gmra.mrb[0].mxu0 %v1837
      %v1897 = vpop.f32.mrb[0].mxu0
      %v1898 = vadd.f32 %v1797, %v1897
      %v1899 = vpop.f32.mrb[0].mxu0
      %v1900 = vpop.f32.mrb[0].mxu0
      %v1901 = vadd.f32 %v1800, %v1900
      %v1902 = vpop.f32.mrb[0].mxu0
      %1903 = vdwg.mxu0
      %v1904 = vld [vmem:[#allocation2 + $0x9] sm:$0xff]
      %v1905 = vld [vmem:[#allocation2 + $0x11] sm:$0xff]
      %v1906 = vld [vmem:[#allocation2 + $0x19] sm:$0xff]
      %v1907 = vld [vmem:[#allocation2 + $0x21] sm:$0xff]
      %v1908 = vld [vmem:[#allocation2 + $0x29] sm:$0xff]
      %v1909 = vld [vmem:[#allocation2 + $0x31] sm:$0xff]
      %v1910 = vld [vmem:[#allocation2 + $0x39] sm:$0xff]
      %v1911 = vld [vmem:[#allocation2 + $0x41] sm:$0xff]
      %vm1912 = vcmp.le.s32.totalorder %v1621, 6
      %vm1913 = vcmp.le.s32.totalorder %v1622, 6
      %vm1914 = vcmp.le.s32.totalorder %v1623, 6
      %vm1915 = vcmp.le.s32.totalorder %v1624, 6
      %vm1916 = vcmp.le.s32.totalorder %v1625, 6
      %vm1917 = vcmp.le.s32.totalorder %v1626, 6
      %vm1918 = vcmp.le.s32.totalorder %v1627, 6
      %vm1919 = vcmp.le.s32.totalorder %v1628, 6
      %v1920 = vsel %vm1912, 1, 0
      %v1921 = vsel %vm1913, 1, 0
      %v1922 = vsel %vm1914, 1, 0
      %v1923 = vsel %vm1915, 1, 0
      %v1924 = vsel %vm1916, 1, 0
      %v1925 = vsel %vm1917, 1, 0
      %v1926 = vsel %vm1918, 1, 0
      %v1927 = vsel %vm1919, 1, 0
      %vm1928 = vcmp.eq.s32.totalorder %v1920, 1
      %vm1929 = vcmp.eq.s32.totalorder %v1921, 1
      %vm1930 = vcmp.eq.s32.totalorder %v1922, 1
      %vm1931 = vcmp.eq.s32.totalorder %v1923, 1
      %vm1932 = vcmp.eq.s32.totalorder %v1924, 1
      %vm1933 = vcmp.eq.s32.totalorder %v1925, 1
      %vm1934 = vcmp.eq.s32.totalorder %v1926, 1
      %vm1935 = vcmp.eq.s32.totalorder %v1927, 1
      %v1936 = vsel %vm1928, %v1904, 0.0
      %v1937 = vsel %vm1929, %v1905, 0.0
      %v1938 = vsel %vm1930, %v1906, 0.0
      %v1939 = vsel %vm1931, %v1907, 0.0
      %v1940 = vsel %vm1932, %v1908, 0.0
      %v1941 = vsel %vm1933, %v1909, 0.0
      %v1942 = vsel %vm1934, %v1910, 0.0
      %v1943 = vsel %vm1935, %v1911, 0.0
      %v1944 = vpack.c.bf16 %v1937, %v1936
      %v1945 = vpack.c.bf16 %v1939, %v1938
      %v1946 = vpack.c.bf16 %v1941, %v1940
      %v1947 = vpack.c.bf16 %v1943, %v1942
      %s1948 = scalar_lea.vmem %s4, 64
      %v1949 = vld [vmem:[%s1948] sm:$0xf]
      %v1950 = vld [vmem:[%s1948 + $0x4] sm:$0xf]
      %v1951 = vld [vmem:[%s1948 + $0x8] sm:$0xf]
      %v1952 = vld [vmem:[%s1948 + $0xc] sm:$0xf]
      %v1953 = vld [vmem:[%s1948 + $0x10] sm:$0xf]
      %v1954 = vld [vmem:[%s1948 + $0x14] sm:$0xf]
      %v1955 = vld [vmem:[%s1948 + $0x18] sm:$0xf]
      %v1956 = vld [vmem:[%s1948 + $0x1c] sm:$0xf]
      %v1965 = vunpack.c.l.b16 %v1949
      %v1966 = vunpack.c.l.b16 %v1950
      %v1967 = vunpack.c.l.b16 %v1951
      %v1968 = vunpack.c.l.b16 %v1952
      %v1969 = vunpack.c.l.b16 %v1953
      %v1970 = vunpack.c.l.b16 %v1954
      %v1971 = vunpack.c.l.b16 %v1955
      %v1972 = vunpack.c.l.b16 %v1956
      %v1973 = vpack.c.b16 %v1966, %v1965
      %v1974 = vpack.c.b16 %v1968, %v1967
      %v1975 = vpack.c.b16 %v1970, %v1969
      %v1976 = vpack.c.b16 %v1972, %v1971
      %v1982 = vsel %vm1590, %v1944, 0
      %v1985 = vsel %vm1590, %v1945, 0
      %v1988 = vsel %vm1590, %v1946, 0
      %v1991 = vsel %vm1590, %v1947, 0
      %1993 = vmatprep.subr.bf16.mxu0 0
      %1994 = vmatpush1.bf16.msra.mxu0 %v1973
      %1995 = vmatprep.subr.bf16.mxu0 0
      %1996 = vmatpush1.bf16.msra.mxu0 %v1974
      %1997 = vmatprep.subr.bf16.mxu0 0
      %1998 = vmatpush1.bf16.msra.mxu0 %v1975
      %1999 = vmatprep.subr.bf16.mxu0 0
      %2000 = vmatpush1.bf16.msra.mxu0 %v1976
      %2001 = vmatprep.subr.bf16.mxu0 0
      %2002 = vmatpush1.bf16.msra.mxu0 0
      %2003 = vmatprep.subr.bf16.mxu0 0
      %2004 = vmatpush1.bf16.msra.mxu0 0
      %2005 = vmatprep.subr.bf16.mxu0 0
      %2006 = vmatpush1.bf16.msra.mxu0 0
      %2007 = vmatprep.subr.bf16.mxu0 0
      %2008 = vmatpush1.bf16.msra.mxu0 0
      %2009 = vmatprep.subr.bf16.mxu0 0
      %2010 = vmatpush1.bf16.msra.mxu0 0
      %2011 = vmatprep.subr.bf16.mxu0 0
      %2012 = vmatpush1.bf16.msra.mxu0 0
      %2013 = vmatprep.subr.bf16.mxu0 0
      %2014 = vmatpush1.bf16.msra.mxu0 0
      %2015 = vmatprep.subr.bf16.mxu0 0
      %2016 = vmatpush1.bf16.msra.mxu0 0
      %2017 = vmatprep.subr.bf16.mxu0 0
      %2018 = vmatpush1.bf16.msra.mxu0 0
      %2019 = vmatprep.subr.bf16.mxu0 0
      %2020 = vmatpush1.bf16.msra.mxu0 0
      %2021 = vmatprep.subr.bf16.mxu0 0
      %2022 = vmatpush1.bf16.msra.mxu0 0
      %2023 = vmatprep.subr.bf16.mxu0 0
      %2024 = vmatpush1.bf16.msra.mxu0 0
      %2025 = vmatprep.mubr.bf16.mxu0 0
      %2026 = vmatmul.mubr.bf16.gmra.mrb[0].mxu0 %v1982
      %v2027 = vpop.f32.mrb[0].mxu0
      %v2028 = vadd.f32 0.0, %v2027
      %v2029 = vpop.f32.mrb[0].mxu0
      %v2030 = vpop.f32.mrb[0].mxu0
      %v2031 = vadd.f32 0.0, %v2030
      %v2032 = vpop.f32.mrb[0].mxu0
      %2033 = vmatprep.mubr.bf16.mxu0 0
      %2034 = vmatmul.mubr.bf16.gmra.mrb[0].mxu0 %v1985
      %v2035 = vpop.f32.mrb[0].mxu0
      %v2036 = vadd.f32 0.0, %v2035
      %v2037 = vpop.f32.mrb[0].mxu0
      %v2038 = vpop.f32.mrb[0].mxu0
      %v2039 = vadd.f32 0.0, %v2038
      %v2040 = vpop.f32.mrb[0].mxu0
      %2041 = vmatprep.mubr.bf16.mxu0 0
      %2042 = vmatmul.mubr.bf16.gmra.mrb[0].mxu0 %v1988
      %v2043 = vpop.f32.mrb[0].mxu0
      %v2044 = vadd.f32 0.0, %v2043
      %v2045 = vpop.f32.mrb[0].mxu0
      %v2046 = vpop.f32.mrb[0].mxu0
      %v2047 = vadd.f32 0.0, %v2046
      %v2048 = vpop.f32.mrb[0].mxu0
      %2049 = vmatprep.mubr.bf16.mxu0 0
      %2050 = vmatmul.mubr.bf16.gmra.mrb[0].mxu0 %v1991
      %v2051 = vpop.f32.mrb[0].mxu0
      %v2052 = vadd.f32 0.0, %v2051
      %v2053 = vpop.f32.mrb[0].mxu0
      %v2054 = vpop.f32.mrb[0].mxu0
      %v2055 = vadd.f32 0.0, %v2054
      %v2056 = vpop.f32.mrb[0].mxu0
      %2057 = vdwg.mxu0
      %v2058 = vadd.f32 %v1874, %v2028
      %v2059 = vadd.f32 %v1877, %v2031
      %v2060 = vadd.f32 %v1882, %v2036
      %v2061 = vadd.f32 %v1885, %v2039
      %v2062 = vadd.f32 %v1890, %v2044
      %v2063 = vadd.f32 %v1893, %v2047
      %v2064 = vadd.f32 %v1898, %v2052
      %v2065 = vadd.f32 %v1901, %v2055
      %v2066 = vld [vmem:[#allocation2 + $0xf] sm:$0xff]
      %v2067 = vld [vmem:[#allocation2 + $0x17] sm:$0xff]
      %v2068 = vld [vmem:[#allocation2 + $0x1f] sm:$0xff]
      %v2069 = vld [vmem:[#allocation2 + $0x27] sm:$0xff]
      %v2070 = vld [vmem:[#allocation2 + $0x2f] sm:$0xff]
      %v2071 = vld [vmem:[#allocation2 + $0x37] sm:$0xff]
      %v2072 = vld [vmem:[#allocation2 + $0x3f] sm:$0xff]
      %v2073 = vld [vmem:[#allocation2 + $0x47] sm:$0xff]
      %v2074 = vsel %vm1653, %v2066, 0.0
      %v2075 = vsel %vm1654, %v2067, 0.0
      %v2076 = vsel %vm1655, %v2068, 0.0
      %v2077 = vsel %vm1656, %v2069, 0.0
      %v2078 = vsel %vm1657, %v2070, 0.0
      %v2079 = vsel %vm1658, %v2071, 0.0
      %v2080 = vsel %vm1659, %v2072, 0.0
      %v2081 = vsel %vm1660, %v2073, 0.0
      %v2082 = vpack.c.bf16 %v2075, %v2074
      %v2083 = vpack.c.bf16 %v2077, %v2076
      %v2084 = vpack.c.bf16 %v2079, %v2078
      %v2085 = vpack.c.bf16 %v2081, %v2080
      %s2086 = scalar_lea.vmem %s4, 96
      %v2087 = vld [vmem:[%s2086] sm:$0xf]
      %v2088 = vld [vmem:[%s2086 + $0x4] sm:$0xf]
      %v2089 = vld [vmem:[%s2086 + $0x8] sm:$0xf]
      %v2090 = vld [vmem:[%s2086 + $0xc] sm:$0xf]
      %v2091 = vld [vmem:[%s2086 + $0x10] sm:$0xf]
      %v2092 = vld [vmem:[%s2086 + $0x14] sm:$0xf]
      %v2093 = vld [vmem:[%s2086 + $0x18] sm:$0xf]
      %v2094 = vld [vmem:[%s2086 + $0x1c] sm:$0xf]
      %v2103 = vunpack.c.l.b16 %v2087
      %v2104 = vunpack.c.l.b16 %v2088
      %v2105 = vunpack.c.l.b16 %v2089
      %v2106 = vunpack.c.l.b16 %v2090
      %v2107 = vunpack.c.l.b16 %v2091
      %v2108 = vunpack.c.l.b16 %v2092
      %v2109 = vunpack.c.l.b16 %v2093
      %v2110 = vunpack.c.l.b16 %v2094
      %v2111 = vpack.c.b16 %v2104, %v2103
      %v2112 = vpack.c.b16 %v2106, %v2105
      %v2113 = vpack.c.b16 %v2108, %v2107
      %v2114 = vpack.c.b16 %v2110, %v2109
      %v2120 = vsel %vm1590, %v2082, 0
      %v2123 = vsel %vm1590, %v2083, 0
      %v2126 = vsel %vm1590, %v2084, 0
      %v2129 = vsel %vm1590, %v2085, 0
      %2131 = vmatprep.subr.bf16.mxu0 0
      %2132 = vmatpush1.bf16.msra.mxu0 %v2111
      %2133 = vmatprep.subr.bf16.mxu0 0
      %2134 = vmatpush1.bf16.msra.mxu0 %v2112
      %2135 = vmatprep.subr.bf16.mxu0 0
      %2136 = vmatpush1.bf16.msra.mxu0 %v2113
      %2137 = vmatprep.subr.bf16.mxu0 0
      %2138 = vmatpush1.bf16.msra.mxu0 %v2114
      %2139 = vmatprep.subr.bf16.mxu0 0
      %2140 = vmatpush1.bf16.msra.mxu0 0
      %2141 = vmatprep.subr.bf16.mxu0 0
      %2142 = vmatpush1.bf16.msra.mxu0 0
      %2143 = vmatprep.subr.bf16.mxu0 0
      %2144 = vmatpush1.bf16.msra.mxu0 0
      %2145 = vmatprep.subr.bf16.mxu0 0
      %2146 = vmatpush1.bf16.msra.mxu0 0
      %2147 = vmatprep.subr.bf16.mxu0 0
      %2148 = vmatpush1.bf16.msra.mxu0 0
      %2149 = vmatprep.subr.bf16.mxu0 0
      %2150 = vmatpush1.bf16.msra.mxu0 0
      %2151 = vmatprep.subr.bf16.mxu0 0
      %2152 = vmatpush1.bf16.msra.mxu0 0
      %2153 = vmatprep.subr.bf16.mxu0 0
      %2154 = vmatpush1.bf16.msra.mxu0 0
      %2155 = vmatprep.subr.bf16.mxu0 0
      %2156 = vmatpush1.bf16.msra.mxu0 0
      %2157 = vmatprep.subr.bf16.mxu0 0
      %2158 = vmatpush1.bf16.msra.mxu0 0
      %2159 = vmatprep.subr.bf16.mxu0 0
      %2160 = vmatpush1.bf16.msra.mxu0 0
      %2161 = vmatprep.subr.bf16.mxu0 0
      %2162 = vmatpush1.bf16.msra.mxu0 0
      %2163 = vmatprep.mubr.bf16.mxu0 0
      %2164 = vmatmul.mubr.bf16.gmra.mrb[0].mxu0 %v2120
      %v2165 = vpop.f32.mrb[0].mxu0
      %v2166 = vadd.f32 0.0, %v2165
      %v2167 = vpop.f32.mrb[0].mxu0
      %v2168 = vpop.f32.mrb[0].mxu0
      %v2169 = vadd.f32 0.0, %v2168
      %v2170 = vpop.f32.mrb[0].mxu0
      %2171 = vmatprep.mubr.bf16.mxu0 0
      %2172 = vmatmul.mubr.bf16.gmra.mrb[0].mxu0 %v2123
      %v2173 = vpop.f32.mrb[0].mxu0
      %v2174 = vadd.f32 0.0, %v2173
      %v2175 = vpop.f32.mrb[0].mxu0
      %v2176 = vpop.f32.mrb[0].mxu0
      %v2177 = vadd.f32 0.0, %v2176
      %v2178 = vpop.f32.mrb[0].mxu0
      %2179 = vmatprep.mubr.bf16.mxu0 0
      %2180 = vmatmul.mubr.bf16.gmra.mrb[0].mxu0 %v2126
      %v2181 = vpop.f32.mrb[0].mxu0
      %v2182 = vadd.f32 0.0, %v2181
      %v2183 = vpop.f32.mrb[0].mxu0
      %v2184 = vpop.f32.mrb[0].mxu0
      %v2185 = vadd.f32 0.0, %v2184
      %v2186 = vpop.f32.mrb[0].mxu0
      %2187 = vmatprep.mubr.bf16.mxu0 0
      %2188 = vmatmul.mubr.bf16.gmra.mrb[0].mxu0 %v2129
      %v2189 = vpop.f32.mrb[0].mxu0
      %v2190 = vadd.f32 0.0, %v2189
      %v2191 = vpop.f32.mrb[0].mxu0
      %v2192 = vpop.f32.mrb[0].mxu0
      %v2193 = vadd.f32 0.0, %v2192
      %v2194 = vpop.f32.mrb[0].mxu0
      %2195 = vdwg.mxu0
      %v2196 = vadd.f32 %v2058, %v2166
      %v2197 = vadd.f32 %v2059, %v2169
      %v2198 = vadd.f32 %v2060, %v2174
      %v2199 = vadd.f32 %v2061, %v2177
      %v2200 = vadd.f32 %v2062, %v2182
      %v2201 = vadd.f32 %v2063, %v2185
      %v2202 = vadd.f32 %v2064, %v2190
      %v2203 = vadd.f32 %v2065, %v2193
      %v2204 = vld [vmem:[#allocation2 + $0x10] sm:$0xff]
      %v2205 = vld [vmem:[#allocation2 + $0x18] sm:$0xff]
      %v2206 = vld [vmem:[#allocation2 + $0x20] sm:$0xff]
      %v2207 = vld [vmem:[#allocation2 + $0x28] sm:$0xff]
      %v2208 = vld [vmem:[#allocation2 + $0x30] sm:$0xff]
      %v2209 = vld [vmem:[#allocation2 + $0x38] sm:$0xff]
      %v2210 = vld [vmem:[#allocation2 + $0x40] sm:$0xff]
      %v2211 = vld [vmem:[#allocation2 + $0x48] sm:$0xff]
      %v2212 = vpack.c.bf16 %v2205, %v2204
      %v2213 = vpack.c.bf16 %v2207, %v2206
      %v2214 = vpack.c.bf16 %v2209, %v2208
      %v2215 = vpack.c.bf16 %v2211, %v2210
      %s2216 = scalar_lea.vmem %s4, 128
      %v2217 = vld [vmem:[%s2216] sm:$0xf]
      %v2218 = vld [vmem:[%s2216 + $0x4] sm:$0xf]
      %v2219 = vld [vmem:[%s2216 + $0x8] sm:$0xf]
      %v2220 = vld [vmem:[%s2216 + $0xc] sm:$0xf]
      %v2221 = vld [vmem:[%s2216 + $0x10] sm:$0xf]
      %v2222 = vld [vmem:[%s2216 + $0x14] sm:$0xf]
      %v2223 = vld [vmem:[%s2216 + $0x18] sm:$0xf]
      %v2224 = vld [vmem:[%s2216 + $0x1c] sm:$0xf]
      %v2233 = vunpack.c.l.b16 %v2217
      %v2234 = vunpack.c.l.b16 %v2218
      %v2235 = vunpack.c.l.b16 %v2219
      %v2236 = vunpack.c.l.b16 %v2220
      %v2237 = vunpack.c.l.b16 %v2221
      %v2238 = vunpack.c.l.b16 %v2222
      %v2239 = vunpack.c.l.b16 %v2223
      %v2240 = vunpack.c.l.b16 %v2224
      %v2241 = vpack.c.b16 %v2234, %v2233
      %v2242 = vpack.c.b16 %v2236, %v2235
      %v2243 = vpack.c.b16 %v2238, %v2237
      %v2244 = vpack.c.b16 %v2240, %v2239
      %v2250 = vsel %vm1590, %v2212, 0
      %v2253 = vsel %vm1590, %v2213, 0
      %v2256 = vsel %vm1590, %v2214, 0
      %v2259 = vsel %vm1590, %v2215, 0
      %2261 = vmatprep.subr.bf16.mxu0 0
      %2262 = vmatpush1.bf16.msra.mxu0 %v2241
      %2263 = vmatprep.subr.bf16.mxu0 0
      %2264 = vmatpush1.bf16.msra.mxu0 %v2242
      %2265 = vmatprep.subr.bf16.mxu0 0
      %2266 = vmatpush1.bf16.msra.mxu0 %v2243
      %2267 = vmatprep.subr.bf16.mxu0 0
      %2268 = vmatpush1.bf16.msra.mxu0 %v2244
      %2269 = vmatprep.subr.bf16.mxu0 0
      %2270 = vmatpush1.bf16.msra.mxu0 0
      %2271 = vmatprep.subr.bf16.mxu0 0
      %2272 = vmatpush1.bf16.msra.mxu0 0
      %2273 = vmatprep.subr.bf16.mxu0 0
      %2274 = vmatpush1.bf16.msra.mxu0 0
      %2275 = vmatprep.subr.bf16.mxu0 0
      %2276 = vmatpush1.bf16.msra.mxu0 0
      %2277 = vmatprep.subr.bf16.mxu0 0
      %2278 = vmatpush1.bf16.msra.mxu0 0
      %2279 = vmatprep.subr.bf16.mxu0 0
      %2280 = vmatpush1.bf16.msra.mxu0 0
      %2281 = vmatprep.subr.bf16.mxu0 0
      %2282 = vmatpush1.bf16.msra.mxu0 0
      %2283 = vmatprep.subr.bf16.mxu0 0
      %2284 = vmatpush1.bf16.msra.mxu0 0
      %2285 = vmatprep.subr.bf16.mxu0 0
      %2286 = vmatpush1.bf16.msra.mxu0 0
      %2287 = vmatprep.subr.bf16.mxu0 0
      %2288 = vmatpush1.bf16.msra.mxu0 0
      %2289 = vmatprep.subr.bf16.mxu0 0
      %2290 = vmatpush1.bf16.msra.mxu0 0
      %2291 = vmatprep.subr.bf16.mxu0 0
      %2292 = vmatpush1.bf16.msra.mxu0 0
      %2293 = vmatprep.mubr.bf16.mxu0 0
      %2294 = vmatmul.mubr.bf16.gmra.mrb[0].mxu0 %v2250
      %v2295 = vpop.f32.mrb[0].mxu0
      %v2296 = vadd.f32 0.0, %v2295
      %v2297 = vpop.f32.mrb[0].mxu0
      %v2298 = vpop.f32.mrb[0].mxu0
      %v2299 = vadd.f32 0.0, %v2298
      %v2300 = vpop.f32.mrb[0].mxu0
      %2301 = vmatprep.mubr.bf16.mxu0 0
      %2302 = vmatmul.mubr.bf16.gmra.mrb[0].mxu0 %v2253
      %v2303 = vpop.f32.mrb[0].mxu0
      %v2304 = vadd.f32 0.0, %v2303
      %v2305 = vpop.f32.mrb[0].mxu0
      %v2306 = vpop.f32.mrb[0].mxu0
      %v2307 = vadd.f32 0.0, %v2306
      %v2308 = vpop.f32.mrb[0].mxu0
      %2309 = vmatprep.mubr.bf16.mxu0 0
      %2310 = vmatmul.mubr.bf16.gmra.mrb[0].mxu0 %v2256
      %v2311 = vpop.f32.mrb[0].mxu0
      %v2312 = vadd.f32 0.0, %v2311
      %v2313 = vpop.f32.mrb[0].mxu0
      %v2314 = vpop.f32.mrb[0].mxu0
      %v2315 = vadd.f32 0.0, %v2314
      %v2316 = vpop.f32.mrb[0].mxu0
      %2317 = vmatprep.mubr.bf16.mxu0 0
      %2318 = vmatmul.mubr.bf16.gmra.mrb[0].mxu0 %v2259
      %v2319 = vpop.f32.mrb[0].mxu0
      %v2320 = vadd.f32 0.0, %v2319
      %v2321 = vpop.f32.mrb[0].mxu0
      %v2322 = vpop.f32.mrb[0].mxu0
      %v2323 = vadd.f32 0.0, %v2322
      %v2324 = vpop.f32.mrb[0].mxu0
      %2325 = vdwg.mxu0
      %v2326 = vadd.f32 %v2196, %v2296
      %v2327 = vadd.f32 %v2197, %v2299
      %v2328 = vadd.f32 %v2198, %v2304
      %v2329 = vadd.f32 %v2199, %v2307
      %v2330 = vadd.f32 %v2200, %v2312
      %v2331 = vadd.f32 %v2201, %v2315
      %v2332 = vadd.f32 %v2202, %v2320
      %v2333 = vadd.f32 %v2203, %v2323
      %v2334 = vld [vmem:[#allocation2 + $0x11] sm:$0xff]
      %v2335 = vld [vmem:[#allocation2 + $0x19] sm:$0xff]
      %v2336 = vld [vmem:[#allocation2 + $0x21] sm:$0xff]
      %v2337 = vld [vmem:[#allocation2 + $0x29] sm:$0xff]
      %v2338 = vld [vmem:[#allocation2 + $0x31] sm:$0xff]
      %v2339 = vld [vmem:[#allocation2 + $0x39] sm:$0xff]
      %v2340 = vld [vmem:[#allocation2 + $0x41] sm:$0xff]
      %v2341 = vld [vmem:[#allocation2 + $0x49] sm:$0xff]
      %v2342 = vsel %vm1928, %v2334, 0.0
      %v2343 = vsel %vm1929, %v2335, 0.0
      %v2344 = vsel %vm1930, %v2336, 0.0
      %v2345 = vsel %vm1931, %v2337, 0.0
      %v2346 = vsel %vm1932, %v2338, 0.0
      %v2347 = vsel %vm1933, %v2339, 0.0
      %v2348 = vsel %vm1934, %v2340, 0.0
      %v2349 = vsel %vm1935, %v2341, 0.0
      %v2350 = vpack.c.bf16 %v2343, %v2342
      %v2351 = vpack.c.bf16 %v2345, %v2344
      %v2352 = vpack.c.bf16 %v2347, %v2346
      %v2353 = vpack.c.bf16 %v2349, %v2348
      %s2354 = scalar_lea.vmem %s4, 160
      %v2355 = vld [vmem:[%s2354] sm:$0xf]
      %v2356 = vld [vmem:[%s2354 + $0x4] sm:$0xf]
      %v2357 = vld [vmem:[%s2354 + $0x8] sm:$0xf]
      %v2358 = vld [vmem:[%s2354 + $0xc] sm:$0xf]
      %v2359 = vld [vmem:[%s2354 + $0x10] sm:$0xf]
      %v2360 = vld [vmem:[%s2354 + $0x14] sm:$0xf]
      %v2361 = vld [vmem:[%s2354 + $0x18] sm:$0xf]
      %v2362 = vld [vmem:[%s2354 + $0x1c] sm:$0xf]
      %v2371 = vunpack.c.l.b16 %v2355
      %v2372 = vunpack.c.l.b16 %v2356
      %v2373 = vunpack.c.l.b16 %v2357
      %v2374 = vunpack.c.l.b16 %v2358
      %v2375 = vunpack.c.l.b16 %v2359
      %v2376 = vunpack.c.l.b16 %v2360
      %v2377 = vunpack.c.l.b16 %v2361
      %v2378 = vunpack.c.l.b16 %v2362
      %v2379 = vpack.c.b16 %v2372, %v2371
      %v2380 = vpack.c.b16 %v2374, %v2373
      %v2381 = vpack.c.b16 %v2376, %v2375
      %v2382 = vpack.c.b16 %v2378, %v2377
      %v2388 = vsel %vm1590, %v2350, 0
      %v2391 = vsel %vm1590, %v2351, 0
      %v2394 = vsel %vm1590, %v2352, 0
      %v2397 = vsel %vm1590, %v2353, 0
      %2399 = vmatprep.subr.bf16.mxu0 0
      %2400 = vmatpush1.bf16.msra.mxu0 %v2379
      %2401 = vmatprep.subr.bf16.mxu0 0
      %2402 = vmatpush1.bf16.msra.mxu0 %v2380
      %2403 = vmatprep.subr.bf16.mxu0 0
      %2404 = vmatpush1.bf16.msra.mxu0 %v2381
      %2405 = vmatprep.subr.bf16.mxu0 0
      %2406 = vmatpush1.bf16.msra.mxu0 %v2382
      %2407 = vmatprep.subr.bf16.mxu0 0
      %2408 = vmatpush1.bf16.msra.mxu0 0
      %2409 = vmatprep.subr.bf16.mxu0 0
      %2410 = vmatpush1.bf16.msra.mxu0 0
      %2411 = vmatprep.subr.bf16.mxu0 0
      %2412 = vmatpush1.bf16.msra.mxu0 0
      %2413 = vmatprep.subr.bf16.mxu0 0
      %2414 = vmatpush1.bf16.msra.mxu0 0
      %2415 = vmatprep.subr.bf16.mxu0 0
      %2416 = vmatpush1.bf16.msra.mxu0 0
      %2417 = vmatprep.subr.bf16.mxu0 0
      %2418 = vmatpush1.bf16.msra.mxu0 0
      %2419 = vmatprep.subr.bf16.mxu0 0
      %2420 = vmatpush1.bf16.msra.mxu0 0
      %2421 = vmatprep.subr.bf16.mxu0 0
      %2422 = vmatpush1.bf16.msra.mxu0 0
      %2423 = vmatprep.subr.bf16.mxu0 0
      %2424 = vmatpush1.bf16.msra.mxu0 0
      %2425 = vmatprep.subr.bf16.mxu0 0
      %2426 = vmatpush1.bf16.msra.mxu0 0
      %2427 = vmatprep.subr.bf16.mxu0 0
      %2428 = vmatpush1.bf16.msra.mxu0 0
      %2429 = vmatprep.subr.bf16.mxu0 0
      %2430 = vmatpush1.bf16.msra.mxu0 0
      %2431 = vmatprep.mubr.bf16.mxu0 0
      %2432 = vmatmul.mubr.bf16.gmra.mrb[0].mxu0 %v2388
      %v2433 = vpop.f32.mrb[0].mxu0
      %v2434 = vadd.f32 0.0, %v2433
      %v2435 = vpop.f32.mrb[0].mxu0
      %v2436 = vpop.f32.mrb[0].mxu0
      %v2437 = vadd.f32 0.0, %v2436
      %v2438 = vpop.f32.mrb[0].mxu0
      %2439 = vmatprep.mubr.bf16.mxu0 0
      %2440 = vmatmul.mubr.bf16.gmra.mrb[0].mxu0 %v2391
      %v2441 = vpop.f32.mrb[0].mxu0
      %v2442 = vadd.f32 0.0, %v2441
      %v2443 = vpop.f32.mrb[0].mxu0
      %v2444 = vpop.f32.mrb[0].mxu0
      %v2445 = vadd.f32 0.0, %v2444
      %v2446 = vpop.f32.mrb[0].mxu0
      %2447 = vmatprep.mubr.bf16.mxu0 0
      %2448 = vmatmul.mubr.bf16.gmra.mrb[0].mxu0 %v2394
      %v2449 = vpop.f32.mrb[0].mxu0
      %v2450 = vadd.f32 0.0, %v2449
      %v2451 = vpop.f32.mrb[0].mxu0
      %v2452 = vpop.f32.mrb[0].mxu0
      %v2453 = vadd.f32 0.0, %v2452
      %v2454 = vpop.f32.mrb[0].mxu0
      %2455 = vmatprep.mubr.bf16.mxu0 0
      %2456 = vmatmul.mubr.bf16.gmra.mrb[0].mxu0 %v2397
      %v2457 = vpop.f32.mrb[0].mxu0
      %v2458 = vadd.f32 0.0, %v2457
      %v2459 = vpop.f32.mrb[0].mxu0
      %v2460 = vpop.f32.mrb[0].mxu0
      %v2461 = vadd.f32 0.0, %v2460
      %v2462 = vpop.f32.mrb[0].mxu0
      %2463 = vdwg.mxu0
      %v2464 = vadd.f32 %v2326, %v2434
      %v2465 = vadd.f32 %v2327, %v2437
      %v2466 = vadd.f32 %v2328, %v2442
      %v2467 = vadd.f32 %v2329, %v2445
      %v2468 = vadd.f32 %v2330, %v2450
      %v2469 = vadd.f32 %v2331, %v2453
      %v2470 = vadd.f32 %v2332, %v2458
      %v2471 = vadd.f32 %v2333, %v2461
      %v2472 = vld [vmem:[#allocation2 + $0x17] sm:$0xff]
      %v2473 = vld [vmem:[#allocation2 + $0x1f] sm:$0xff]
      %v2474 = vld [vmem:[#allocation2 + $0x27] sm:$0xff]
      %v2475 = vld [vmem:[#allocation2 + $0x2f] sm:$0xff]
      %v2476 = vld [vmem:[#allocation2 + $0x37] sm:$0xff]
      %v2477 = vld [vmem:[#allocation2 + $0x3f] sm:$0xff]
      %v2478 = vld [vmem:[#allocation2 + $0x47] sm:$0xff]
      %v2479 = vld [vmem:[#allocation2 + $0x4f] sm:$0xff]
      %v2480 = vsel %vm1653, %v2472, 0.0
      %v2481 = vsel %vm1654, %v2473, 0.0
      %v2482 = vsel %vm1655, %v2474, 0.0
      %v2483 = vsel %vm1656, %v2475, 0.0
      %v2484 = vsel %vm1657, %v2476, 0.0
      %v2485 = vsel %vm1658, %v2477, 0.0
      %v2486 = vsel %vm1659, %v2478, 0.0
      %v2487 = vsel %vm1660, %v2479, 0.0
      %v2488 = vpack.c.bf16 %v2481, %v2480
      %v2489 = vpack.c.bf16 %v2483, %v2482
      %v2490 = vpack.c.bf16 %v2485, %v2484
      %v2491 = vpack.c.bf16 %v2487, %v2486
      %s2492 = scalar_lea.vmem %s4, 192
      %v2493 = vld [vmem:[%s2492] sm:$0xf]
      %v2494 = vld [vmem:[%s2492 + $0x4] sm:$0xf]
      %v2495 = vld [vmem:[%s2492 + $0x8] sm:$0xf]
      %v2496 = vld [vmem:[%s2492 + $0xc] sm:$0xf]
      %v2497 = vld [vmem:[%s2492 + $0x10] sm:$0xf]
      %v2498 = vld [vmem:[%s2492 + $0x14] sm:$0xf]
      %v2499 = vld [vmem:[%s2492 + $0x18] sm:$0xf]
      %v2500 = vld [vmem:[%s2492 + $0x1c] sm:$0xf]
      %v2509 = vunpack.c.l.b16 %v2493
      %v2510 = vunpack.c.l.b16 %v2494
      %v2511 = vunpack.c.l.b16 %v2495
      %v2512 = vunpack.c.l.b16 %v2496
      %v2513 = vunpack.c.l.b16 %v2497
      %v2514 = vunpack.c.l.b16 %v2498
      %v2515 = vunpack.c.l.b16 %v2499
      %v2516 = vunpack.c.l.b16 %v2500
      %v2517 = vpack.c.b16 %v2510, %v2509
      %v2518 = vpack.c.b16 %v2512, %v2511
      %v2519 = vpack.c.b16 %v2514, %v2513
      %v2520 = vpack.c.b16 %v2516, %v2515
      %v2526 = vsel %vm1590, %v2488, 0
      %v2529 = vsel %vm1590, %v2489, 0
      %v2532 = vsel %vm1590, %v2490, 0
      %v2535 = vsel %vm1590, %v2491, 0
      %2537 = vmatprep.subr.bf16.mxu0 0
      %2538 = vmatpush1.bf16.msra.mxu0 %v2517
      %2539 = vmatprep.subr.bf16.mxu0 0
      %2540 = vmatpush1.bf16.msra.mxu0 %v2518
      %2541 = vmatprep.subr.bf16.mxu0 0
      %2542 = vmatpush1.bf16.msra.mxu0 %v2519
      %2543 = vmatprep.subr.bf16.mxu0 0
      %2544 = vmatpush1.bf16.msra.mxu0 %v2520
      %2545 = vmatprep.subr.bf16.mxu0 0
      %2546 = vmatpush1.bf16.msra.mxu0 0
      %2547 = vmatprep.subr.bf16.mxu0 0
      %2548 = vmatpush1.bf16.msra.mxu0 0
      %2549 = vmatprep.subr.bf16.mxu0 0
      %2550 = vmatpush1.bf16.msra.mxu0 0
      %2551 = vmatprep.subr.bf16.mxu0 0
      %2552 = vmatpush1.bf16.msra.mxu0 0
      %2553 = vmatprep.subr.bf16.mxu0 0
      %2554 = vmatpush1.bf16.msra.mxu0 0
      %2555 = vmatprep.subr.bf16.mxu0 0
      %2556 = vmatpush1.bf16.msra.mxu0 0
      %2557 = vmatprep.subr.bf16.mxu0 0
      %2558 = vmatpush1.bf16.msra.mxu0 0
      %2559 = vmatprep.subr.bf16.mxu0 0
      %2560 = vmatpush1.bf16.msra.mxu0 0
      %2561 = vmatprep.subr.bf16.mxu0 0
      %2562 = vmatpush1.bf16.msra.mxu0 0
      %2563 = vmatprep.subr.bf16.mxu0 0
      %2564 = vmatpush1.bf16.msra.mxu0 0
      %2565 = vmatprep.subr.bf16.mxu0 0
      %2566 = vmatpush1.bf16.msra.mxu0 0
      %2567 = vmatprep.subr.bf16.mxu0 0
      %2568 = vmatpush1.bf16.msra.mxu0 0
      %2569 = vmatprep.mubr.bf16.mxu0 0
      %2570 = vmatmul.mubr.bf16.gmra.mrb[0].mxu0 %v2526
      %v2571 = vpop.f32.mrb[0].mxu0
      %v2572 = vadd.f32 0.0, %v2571
      %v2573 = vpop.f32.mrb[0].mxu0
      %v2574 = vpop.f32.mrb[0].mxu0
      %v2575 = vadd.f32 0.0, %v2574
      %v2576 = vpop.f32.mrb[0].mxu0
      %2577 = vmatprep.mubr.bf16.mxu0 0
      %2578 = vmatmul.mubr.bf16.gmra.mrb[0].mxu0 %v2529
      %v2579 = vpop.f32.mrb[0].mxu0
      %v2580 = vadd.f32 0.0, %v2579
      %v2581 = vpop.f32.mrb[0].mxu0
      %v2582 = vpop.f32.mrb[0].mxu0
      %v2583 = vadd.f32 0.0, %v2582
      %v2584 = vpop.f32.mrb[0].mxu0
      %2585 = vmatprep.mubr.bf16.mxu0 0
      %2586 = vmatmul.mubr.bf16.gmra.mrb[0].mxu0 %v2532
      %v2587 = vpop.f32.mrb[0].mxu0
      %v2588 = vadd.f32 0.0, %v2587
      %v2589 = vpop.f32.mrb[0].mxu0
      %v2590 = vpop.f32.mrb[0].mxu0
      %v2591 = vadd.f32 0.0, %v2590
      %v2592 = vpop.f32.mrb[0].mxu0
      %2593 = vmatprep.mubr.bf16.mxu0 0
      %2594 = vmatmul.mubr.bf16.gmra.mrb[0].mxu0 %v2535
      %v2595 = vpop.f32.mrb[0].mxu0
      %v2596 = vadd.f32 0.0, %v2595
      %v2597 = vpop.f32.mrb[0].mxu0
      %v2598 = vpop.f32.mrb[0].mxu0
      %v2599 = vadd.f32 0.0, %v2598
      %v2600 = vpop.f32.mrb[0].mxu0
      %2601 = vdwg.mxu0
      %v2602 = vadd.f32 %v2464, %v2572
      %v2603 = vadd.f32 %v2465, %v2575
      %v2604 = vadd.f32 %v2466, %v2580
      %v2605 = vadd.f32 %v2467, %v2583
      %v2606 = vadd.f32 %v2468, %v2588
      %v2607 = vadd.f32 %v2469, %v2591
      %v2608 = vadd.f32 %v2470, %v2596
      %v2609 = vadd.f32 %v2471, %v2599
      %v2610 = vld [vmem:[#allocation2 + $0x18] sm:$0xff]
      %v2611 = vld [vmem:[#allocation2 + $0x20] sm:$0xff]
      %v2612 = vld [vmem:[#allocation2 + $0x28] sm:$0xff]
      %v2613 = vld [vmem:[#allocation2 + $0x30] sm:$0xff]
      %v2614 = vld [vmem:[#allocation2 + $0x38] sm:$0xff]
      %v2615 = vld [vmem:[#allocation2 + $0x40] sm:$0xff]
      %v2616 = vld [vmem:[#allocation2 + $0x48] sm:$0xff]
      %v2617 = vld [vmem:[#allocation2 + $0x50] sm:$0xff]
      %v2618 = vpack.c.bf16 %v2611, %v2610
      %v2619 = vpack.c.bf16 %v2613, %v2612
      %v2620 = vpack.c.bf16 %v2615, %v2614
      %v2621 = vpack.c.bf16 %v2617, %v2616
      %s2622 = scalar_lea.vmem %s4, 224
      %v2623 = vld [vmem:[%s2622] sm:$0xf]
      %v2624 = vld [vmem:[%s2622 + $0x4] sm:$0xf]
      %v2625 = vld [vmem:[%s2622 + $0x8] sm:$0xf]
      %v2626 = vld [vmem:[%s2622 + $0xc] sm:$0xf]
      %v2627 = vld [vmem:[%s2622 + $0x10] sm:$0xf]
      %v2628 = vld [vmem:[%s2622 + $0x14] sm:$0xf]
      %v2629 = vld [vmem:[%s2622 + $0x18] sm:$0xf]
      %v2630 = vld [vmem:[%s2622 + $0x1c] sm:$0xf]
      %v2639 = vunpack.c.l.b16 %v2623
      %v2640 = vunpack.c.l.b16 %v2624
      %v2641 = vunpack.c.l.b16 %v2625
      %v2642 = vunpack.c.l.b16 %v2626
      %v2643 = vunpack.c.l.b16 %v2627
      %v2644 = vunpack.c.l.b16 %v2628
      %v2645 = vunpack.c.l.b16 %v2629
      %v2646 = vunpack.c.l.b16 %v2630
      %v2647 = vpack.c.b16 %v2640, %v2639
      %v2648 = vpack.c.b16 %v2642, %v2641
      %v2649 = vpack.c.b16 %v2644, %v2643
      %v2650 = vpack.c.b16 %v2646, %v2645
      %v2656 = vsel %vm1590, %v2618, 0
      %v2659 = vsel %vm1590, %v2619, 0
      %v2662 = vsel %vm1590, %v2620, 0
      %v2665 = vsel %vm1590, %v2621, 0
      %2667 = vmatprep.subr.bf16.mxu0 0
      %2668 = vmatpush1.bf16.msra.mxu0 %v2647
      %2669 = vmatprep.subr.bf16.mxu0 0
      %2670 = vmatpush1.bf16.msra.mxu0 %v2648
      %2671 = vmatprep.subr.bf16.mxu0 0
      %2672 = vmatpush1.bf16.msra.mxu0 %v2649
      %2673 = vmatprep.subr.bf16.mxu0 0
      %2674 = vmatpush1.bf16.msra.mxu0 %v2650
      %2675 = vmatprep.subr.bf16.mxu0 0
      %2676 = vmatpush1.bf16.msra.mxu0 0
      %2677 = vmatprep.subr.bf16.mxu0 0
      %2678 = vmatpush1.bf16.msra.mxu0 0
      %2679 = vmatprep.subr.bf16.mxu0 0
      %2680 = vmatpush1.bf16.msra.mxu0 0
      %2681 = vmatprep.subr.bf16.mxu0 0
      %2682 = vmatpush1.bf16.msra.mxu0 0
      %2683 = vmatprep.subr.bf16.mxu0 0
      %2684 = vmatpush1.bf16.msra.mxu0 0
      %2685 = vmatprep.subr.bf16.mxu0 0
      %2686 = vmatpush1.bf16.msra.mxu0 0
      %2687 = vmatprep.subr.bf16.mxu0 0
      %2688 = vmatpush1.bf16.msra.mxu0 0
      %2689 = vmatprep.subr.bf16.mxu0 0
      %2690 = vmatpush1.bf16.msra.mxu0 0
      %2691 = vmatprep.subr.bf16.mxu0 0
      %2692 = vmatpush1.bf16.msra.mxu0 0
      %2693 = vmatprep.subr.bf16.mxu0 0
      %2694 = vmatpush1.bf16.msra.mxu0 0
      %2695 = vmatprep.subr.bf16.mxu0 0
      %2696 = vmatpush1.bf16.msra.mxu0 0
      %2697 = vmatprep.subr.bf16.mxu0 0
      %2698 = vmatpush1.bf16.msra.mxu0 0
      %2699 = vmatprep.mubr.bf16.mxu0 0
      %2700 = vmatmul.mubr.bf16.gmra.mrb[0].mxu0 %v2656
      %v2701 = vpop.f32.mrb[0].mxu0
      %v2702 = vadd.f32 0.0, %v2701
      %v2703 = vpop.f32.mrb[0].mxu0
      %v2704 = vpop.f32.mrb[0].mxu0
      %v2705 = vadd.f32 0.0, %v2704
      %v2706 = vpop.f32.mrb[0].mxu0
      %2707 = vmatprep.mubr.bf16.mxu0 0
      %2708 = vmatmul.mubr.bf16.gmra.mrb[0].mxu0 %v2659
      %v2709 = vpop.f32.mrb[0].mxu0
      %v2710 = vadd.f32 0.0, %v2709
      %v2711 = vpop.f32.mrb[0].mxu0
      %v2712 = vpop.f32.mrb[0].mxu0
      %v2713 = vadd.f32 0.0, %v2712
      %v2714 = vpop.f32.mrb[0].mxu0
      %2715 = vmatprep.mubr.bf16.mxu0 0
      %2716 = vmatmul.mubr.bf16.gmra.mrb[0].mxu0 %v2662
      %v2717 = vpop.f32.mrb[0].mxu0
      %v2718 = vadd.f32 0.0, %v2717
      %v2719 = vpop.f32.mrb[0].mxu0
      %v2720 = vpop.f32.mrb[0].mxu0
      %v2721 = vadd.f32 0.0, %v2720
      %v2722 = vpop.f32.mrb[0].mxu0
      %2723 = vmatprep.mubr.bf16.mxu0 0
      %2724 = vmatmul.mubr.bf16.gmra.mrb[0].mxu0 %v2665
      %v2725 = vpop.f32.mrb[0].mxu0
      %v2726 = vadd.f32 0.0, %v2725
      %v2727 = vpop.f32.mrb[0].mxu0
      %v2728 = vpop.f32.mrb[0].mxu0
      %v2729 = vadd.f32 0.0, %v2728
      %v2730 = vpop.f32.mrb[0].mxu0
      %2731 = vdwg.mxu0
      %v2732 = vadd.f32 %v2602, %v2702
      %v2733 = vadd.f32 %v2603, %v2705
      %v2734 = vadd.f32 %v2604, %v2710
      %v2735 = vadd.f32 %v2605, %v2713
      %v2736 = vadd.f32 %v2606, %v2718
      %v2737 = vadd.f32 %v2607, %v2721
      %v2738 = vadd.f32 %v2608, %v2726
      %v2739 = vadd.f32 %v2609, %v2729
      %v2740 = vld [vmem:[#allocation2 + $0x19] sm:$0xff]
      %v2741 = vld [vmem:[#allocation2 + $0x21] sm:$0xff]
      %v2742 = vld [vmem:[#allocation2 + $0x29] sm:$0xff]
      %v2743 = vld [vmem:[#allocation2 + $0x31] sm:$0xff]
      %v2744 = vld [vmem:[#allocation2 + $0x39] sm:$0xff]
      %v2745 = vld [vmem:[#allocation2 + $0x41] sm:$0xff]
      %v2746 = vld [vmem:[#allocation2 + $0x49] sm:$0xff]
      %v2747 = vld [vmem:[#allocation2 + $0x51] sm:$0xff]
      %v2748 = vsel %vm1928, %v2740, 0.0
      %v2749 = vsel %vm1929, %v2741, 0.0
      %v2750 = vsel %vm1930, %v2742, 0.0
      %v2751 = vsel %vm1931, %v2743, 0.0
      %v2752 = vsel %vm1932, %v2744, 0.0
      %v2753 = vsel %vm1933, %v2745, 0.0
      %v2754 = vsel %vm1934, %v2746, 0.0
      %v2755 = vsel %vm1935, %v2747, 0.0
      %v2756 = vpack.c.bf16 %v2749, %v2748
      %v2757 = vpack.c.bf16 %v2751, %v2750
      %v2758 = vpack.c.bf16 %v2753, %v2752
      %v2759 = vpack.c.bf16 %v2755, %v2754
      %s2760 = scalar_lea.vmem %s4, 256
      %v2761 = vld [vmem:[%s2760] sm:$0xf]
      %v2762 = vld [vmem:[%s2760 + $0x4] sm:$0xf]
      %v2763 = vld [vmem:[%s2760 + $0x8] sm:$0xf]
      %v2764 = vld [vmem:[%s2760 + $0xc] sm:$0xf]
      %v2765 = vld [vmem:[%s2760 + $0x10] sm:$0xf]
      %v2766 = vld [vmem:[%s2760 + $0x14] sm:$0xf]
      %v2767 = vld [vmem:[%s2760 + $0x18] sm:$0xf]
      %v2768 = vld [vmem:[%s2760 + $0x1c] sm:$0xf]
      %v2777 = vunpack.c.l.b16 %v2761
      %v2778 = vunpack.c.l.b16 %v2762
      %v2779 = vunpack.c.l.b16 %v2763
      %v2780 = vunpack.c.l.b16 %v2764
      %v2781 = vunpack.c.l.b16 %v2765
      %v2782 = vunpack.c.l.b16 %v2766
      %v2783 = vunpack.c.l.b16 %v2767
      %v2784 = vunpack.c.l.b16 %v2768
      %v2785 = vpack.c.b16 %v2778, %v2777
      %v2786 = vpack.c.b16 %v2780, %v2779
      %v2787 = vpack.c.b16 %v2782, %v2781
      %v2788 = vpack.c.b16 %v2784, %v2783
      %v2794 = vsel %vm1590, %v2756, 0
      %v2797 = vsel %vm1590, %v2757, 0
      %v2800 = vsel %vm1590, %v2758, 0
      %v2803 = vsel %vm1590, %v2759, 0
      %2805 = vmatprep.subr.bf16.mxu0 0
      %2806 = vmatpush1.bf16.msra.mxu0 %v2785
      %2807 = vmatprep.subr.bf16.mxu0 0
      %2808 = vmatpush1.bf16.msra.mxu0 %v2786
      %2809 = vmatprep.subr.bf16.mxu0 0
      %2810 = vmatpush1.bf16.msra.mxu0 %v2787
      %2811 = vmatprep.subr.bf16.mxu0 0
      %2812 = vmatpush1.bf16.msra.mxu0 %v2788
      %2813 = vmatprep.subr.bf16.mxu0 0
      %2814 = vmatpush1.bf16.msra.mxu0 0
      %2815 = vmatprep.subr.bf16.mxu0 0
      %2816 = vmatpush1.bf16.msra.mxu0 0
      %2817 = vmatprep.subr.bf16.mxu0 0
      %2818 = vmatpush1.bf16.msra.mxu0 0
      %2819 = vmatprep.subr.bf16.mxu0 0
      %2820 = vmatpush1.bf16.msra.mxu0 0
      %2821 = vmatprep.subr.bf16.mxu0 0
      %2822 = vmatpush1.bf16.msra.mxu0 0
      %2823 = vmatprep.subr.bf16.mxu0 0
      %2824 = vmatpush1.bf16.msra.mxu0 0
      %2825 = vmatprep.subr.bf16.mxu0 0
      %2826 = vmatpush1.bf16.msra.mxu0 0
      %2827 = vmatprep.subr.bf16.mxu0 0
      %2828 = vmatpush1.bf16.msra.mxu0 0
      %2829 = vmatprep.subr.bf16.mxu0 0
      %2830 = vmatpush1.bf16.msra.mxu0 0
      %2831 = vmatprep.subr.bf16.mxu0 0
      %2832 = vmatpush1.bf16.msra.mxu0 0
      %2833 = vmatprep.subr.bf16.mxu0 0
      %2834 = vmatpush1.bf16.msra.mxu0 0
      %2835 = vmatprep.subr.bf16.mxu0 0
      %2836 = vmatpush1.bf16.msra.mxu0 0
      %2837 = vmatprep.mubr.bf16.mxu0 0
      %2838 = vmatmul.mubr.bf16.gmra.mrb[0].mxu0 %v2794
      %v2839 = vpop.f32.mrb[0].mxu0
      %v2840 = vadd.f32 0.0, %v2839
      %v2841 = vpop.f32.mrb[0].mxu0
      %v2842 = vpop.f32.mrb[0].mxu0
      %v2843 = vadd.f32 0.0, %v2842
      %v2844 = vpop.f32.mrb[0].mxu0
      %2845 = vmatprep.mubr.bf16.mxu0 0
      %2846 = vmatmul.mubr.bf16.gmra.mrb[0].mxu0 %v2797
      %v2847 = vpop.f32.mrb[0].mxu0
      %v2848 = vadd.f32 0.0, %v2847
      %v2849 = vpop.f32.mrb[0].mxu0
      %v2850 = vpop.f32.mrb[0].mxu0
      %v2851 = vadd.f32 0.0, %v2850
      %v2852 = vpop.f32.mrb[0].mxu0
      %2853 = vmatprep.mubr.bf16.mxu0 0
      %2854 = vmatmul.mubr.bf16.gmra.mrb[0].mxu0 %v2800
      %v2855 = vpop.f32.mrb[0].mxu0
      %v2856 = vadd.f32 0.0, %v2855
      %v2857 = vpop.f32.mrb[0].mxu0
      %v2858 = vpop.f32.mrb[0].mxu0
      %v2859 = vadd.f32 0.0, %v2858
      %v2860 = vpop.f32.mrb[0].mxu0
      %2861 = vmatprep.mubr.bf16.mxu0 0
      %2862 = vmatmul.mubr.bf16.gmra.mrb[0].mxu0 %v2803
      %v2863 = vpop.f32.mrb[0].mxu0
      %v2864 = vadd.f32 0.0, %v2863
      %v2865 = vpop.f32.mrb[0].mxu0
      %v2866 = vpop.f32.mrb[0].mxu0
      %v2867 = vadd.f32 0.0, %v2866
      %v2868 = vpop.f32.mrb[0].mxu0
      %2869 = vdwg.mxu0
      %v2870 = vadd.f32 %v2732, %v2840
      %v2871 = vadd.f32 %v2733, %v2843
      %v2872 = vadd.f32 %v2734, %v2848
      %v2873 = vadd.f32 %v2735, %v2851
      %v2874 = vadd.f32 %v2736, %v2856
      %v2875 = vadd.f32 %v2737, %v2859
      %v2876 = vadd.f32 %v2738, %v2864
      %v2877 = vadd.f32 %v2739, %v2867
      %v2878 = vld [vmem:[%s5] sm:$0x1]
      %v2880 = vlaneseq
      %v2881 = vshrl.u32 %v2880, 7
      %v2882 = vsub.s32 0, %v2881
      %v2883 = vrot.slane %v2878, %v2882
      %v2885 = vmul.f32 %v2870, %v2883
      %v2886 = vmul.f32 %v2871, %v2883
      %v2887 = vmul.f32 %v2872, %v2883
      %v2888 = vmul.f32 %v2873, %v2883
      %v2889 = vmul.f32 %v2874, %v2883
      %v2890 = vmul.f32 %v2875, %v2883
      %v2891 = vmul.f32 %v2876, %v2883
      %v2892 = vmul.f32 %v2877, %v2883
      %v2893 = vld [vmem:[%s6] sm:$0x1]
      %v2895 = vlaneseq
      %v2896 = vshrl.u32 %v2895, 7
      %v2897 = vsub.s32 0, %v2896
      %v2898 = vrot.slane %v2893, %v2897
      %v2900 = vadd.f32 %v2885, %v2898
      %v2901 = vadd.f32 %v2886, %v2898
      %v2902 = vadd.f32 %v2887, %v2898
      %v2903 = vadd.f32 %v2888, %v2898
      %v2904 = vadd.f32 %v2889, %v2898
      %v2905 = vadd.f32 %v2890, %v2898
      %v2906 = vadd.f32 %v2891, %v2898
      %v2907 = vadd.f32 %v2892, %v2898
      %v2908 = vmax.f32 %v2900, 0.0
      %v2909 = vmax.f32 %v2901, 0.0
      %v2910 = vmax.f32 %v2902, 0.0
      %v2911 = vmax.f32 %v2903, 0.0
      %v2912 = vmax.f32 %v2904, 0.0
      %v2913 = vmax.f32 %v2905, 0.0
      %v2914 = vmax.f32 %v2906, 0.0
      %v2915 = vmax.f32 %v2907, 0.0
      %v2916 = vpack.c.bf16 %v2909, %v2908
      %v2917 = vpack.c.bf16 %v2911, %v2910
      %v2918 = vpack.c.bf16 %v2913, %v2912
      %v2919 = vpack.c.bf16 %v2915, %v2914
      %v2920 = vld [vmem:[%s17] sm:$0xf]
      %v2921 = vld [vmem:[%s17 + $0x4] sm:$0xf]
      %v2924 = vunpack.c.l.b16 %v2920
      %v2925 = vunpack.c.l.b16 %v2921
      %v2926 = vpack.c.b16 %v2925, %v2924
      %v2928 = vsel %vm1590, %v2926, 0
      %2930 = vmatprep.subr.bf16.mxu0 0
      %2931 = vmatpush1.bf16.msra.mxu0 %v2916
      %2932 = vmatprep.subr.bf16.mxu0 0
      %2933 = vmatpush1.bf16.msra.mxu0 %v2917
      %2934 = vmatprep.subr.bf16.mxu0 0
      %2935 = vmatpush1.bf16.msra.mxu0 %v2918
      %2936 = vmatprep.subr.bf16.mxu0 0
      %2937 = vmatpush1.bf16.msra.mxu0 %v2919
      %2938 = vmatprep.subr.bf16.mxu0 0
      %2939 = vmatpush1.bf16.msra.mxu0 0
      %2940 = vmatprep.subr.bf16.mxu0 0
      %2941 = vmatpush1.bf16.msra.mxu0 0
      %2942 = vmatprep.subr.bf16.mxu0 0
      %2943 = vmatpush1.bf16.msra.mxu0 0
      %2944 = vmatprep.subr.bf16.mxu0 0
      %2945 = vmatpush1.bf16.msra.mxu0 0
      %2946 = vmatprep.subr.bf16.mxu0 0
      %2947 = vmatpush1.bf16.msra.mxu0 0
      %2948 = vmatprep.subr.bf16.mxu0 0
      %2949 = vmatpush1.bf16.msra.mxu0 0
      %2950 = vmatprep.subr.bf16.mxu0 0
      %2951 = vmatpush1.bf16.msra.mxu0 0
      %2952 = vmatprep.subr.bf16.mxu0 0
      %2953 = vmatpush1.bf16.msra.mxu0 0
      %2954 = vmatprep.subr.bf16.mxu0 0
      %2955 = vmatpush1.bf16.msra.mxu0 0
      %2956 = vmatprep.subr.bf16.mxu0 0
      %2957 = vmatpush1.bf16.msra.mxu0 0
      %2958 = vmatprep.subr.bf16.mxu0 0
      %2959 = vmatpush1.bf16.msra.mxu0 0
      %2960 = vmatprep.subr.bf16.mxu0 0
      %2961 = vmatpush1.bf16.msra.mxu0 0
      %2962 = vmatprep.mubr.bf16.mxu0 0
      %2963 = vmatmul.mubr.bf16.gmra.mrb[0].mxu0 %v2928
      %v2964 = vpop.f32.mrb[0].mxu0
      %v2965 = vadd.f32 0.0, %v2964
      %v2966 = vpop.f32.mrb[0].mxu0
      %v2967 = vpop.f32.mrb[0].mxu0
      %v2968 = vadd.f32 0.0, %v2967
      %v2969 = vpop.f32.mrb[0].mxu0
      %2970 = vdwg.mxu0
      %s2971 = scalar_lea.vmem %s17, 8
      %v2972 = vld [vmem:[%s2971] sm:$0xf]
      %v2973 = vld [vmem:[%s2971 + $0x4] sm:$0xf]
      %v2976 = vunpack.c.l.b16 %v2972
      %v2977 = vunpack.c.l.b16 %v2973
      %v2978 = vpack.c.b16 %v2977, %v2976
      %v2980 = vsel %vm1590, %v2978, 0
      %2982 = vmatprep.subr.bf16.mxu0 0
      %2983 = vmatpush1.bf16.msra.mxu0 %v2916
      %2984 = vmatprep.subr.bf16.mxu0 0
      %2985 = vmatpush1.bf16.msra.mxu0 %v2917
      %2986 = vmatprep.subr.bf16.mxu0 0
      %2987 = vmatpush1.bf16.msra.mxu0 %v2918
      %2988 = vmatprep.subr.bf16.mxu0 0
      %2989 = vmatpush1.bf16.msra.mxu0 %v2919
      %2990 = vmatprep.subr.bf16.mxu0 0
      %2991 = vmatpush1.bf16.msra.mxu0 0
      %2992 = vmatprep.subr.bf16.mxu0 0
      %2993 = vmatpush1.bf16.msra.mxu0 0
      %2994 = vmatprep.subr.bf16.mxu0 0
      %2995 = vmatpush1.bf16.msra.mxu0 0
      %2996 = vmatprep.subr.bf16.mxu0 0
      %2997 = vmatpush1.bf16.msra.mxu0 0
      %2998 = vmatprep.subr.bf16.mxu0 0
      %2999 = vmatpush1.bf16.msra.mxu0 0
      %3000 = vmatprep.subr.bf16.mxu0 0
      %3001 = vmatpush1.bf16.msra.mxu0 0
      %3002 = vmatprep.subr.bf16.mxu0 0
      %3003 = vmatpush1.bf16.msra.mxu0 0
      %3004 = vmatprep.subr.bf16.mxu0 0
      %3005 = vmatpush1.bf16.msra.mxu0 0
      %3006 = vmatprep.subr.bf16.mxu0 0
      %3007 = vmatpush1.bf16.msra.mxu0 0
      %3008 = vmatprep.subr.bf16.mxu0 0
      %3009 = vmatpush1.bf16.msra.mxu0 0
      %3010 = vmatprep.subr.bf16.mxu0 0
      %3011 = vmatpush1.bf16.msra.mxu0 0
      %3012 = vmatprep.subr.bf16.mxu0 0
      %3013 = vmatpush1.bf16.msra.mxu0 0
      %3014 = vmatprep.mubr.bf16.mxu0 0
      %3015 = vmatmul.mubr.bf16.gmra.mrb[0].mxu0 %v2980
      %v3016 = vpop.f32.mrb[0].mxu0
      %v3017 = vadd.f32 0.0, %v3016
      %v3018 = vpop.f32.mrb[0].mxu0
      %v3019 = vpop.f32.mrb[0].mxu0
      %v3020 = vadd.f32 0.0, %v3019
      %v3021 = vpop.f32.mrb[0].mxu0
      %3022 = vdwg.mxu0
      %v3023 = vmax.f32 %v2965, %v3017
      %v3024 = vmax.f32 %v2968, %v3020
      %s3025 = scalar_lea.vmem %s17, 16
      %v3026 = vld [vmem:[%s3025] sm:$0xf]
      %v3027 = vld [vmem:[%s3025 + $0x4] sm:$0xf]
      %v3030 = vunpack.c.l.b16 %v3026
      %v3031 = vunpack.c.l.b16 %v3027
      %v3032 = vpack.c.b16 %v3031, %v3030
      %v3034 = vsel %vm1590, %v3032, 0
      %3036 = vmatprep.subr.bf16.mxu0 0
      %3037 = vmatpush1.bf16.msra.mxu0 %v2916
      %3038 = vmatprep.subr.bf16.mxu0 0
      %3039 = vmatpush1.bf16.msra.mxu0 %v2917
      %3040 = vmatprep.subr.bf16.mxu0 0
      %3041 = vmatpush1.bf16.msra.mxu0 %v2918
      %3042 = vmatprep.subr.bf16.mxu0 0
      %3043 = vmatpush1.bf16.msra.mxu0 %v2919
      %3044 = vmatprep.subr.bf16.mxu0 0
      %3045 = vmatpush1.bf16.msra.mxu0 0
      %3046 = vmatprep.subr.bf16.mxu0 0
      %3047 = vmatpush1.bf16.msra.mxu0 0
      %3048 = vmatprep.subr.bf16.mxu0 0
      %3049 = vmatpush1.bf16.msra.mxu0 0
      %3050 = vmatprep.subr.bf16.mxu0 0
      %3051 = vmatpush1.bf16.msra.mxu0 0
      %3052 = vmatprep.subr.bf16.mxu0 0
      %3053 = vmatpush1.bf16.msra.mxu0 0
      %3054 = vmatprep.subr.bf16.mxu0 0
      %3055 = vmatpush1.bf16.msra.mxu0 0
      %3056 = vmatprep.subr.bf16.mxu0 0
      %3057 = vmatpush1.bf16.msra.mxu0 0
      %3058 = vmatprep.subr.bf16.mxu0 0
      %3059 = vmatpush1.bf16.msra.mxu0 0
      %3060 = vmatprep.subr.bf16.mxu0 0
      %3061 = vmatpush1.bf16.msra.mxu0 0
      %3062 = vmatprep.subr.bf16.mxu0 0
      %3063 = vmatpush1.bf16.msra.mxu0 0
      %3064 = vmatprep.subr.bf16.mxu0 0
      %3065 = vmatpush1.bf16.msra.mxu0 0
      %3066 = vmatprep.subr.bf16.mxu0 0
      %3067 = vmatpush1.bf16.msra.mxu0 0
      %3068 = vmatprep.mubr.bf16.mxu0 0
      %3069 = vmatmul.mubr.bf16.gmra.mrb[0].mxu0 %v3034
      %v3070 = vpop.f32.mrb[0].mxu0
      %v3071 = vadd.f32 0.0, %v3070
      %v3072 = vpop.f32.mrb[0].mxu0
      %v3073 = vpop.f32.mrb[0].mxu0
      %v3074 = vadd.f32 0.0, %v3073
      %v3075 = vpop.f32.mrb[0].mxu0
      %3076 = vdwg.mxu0
      %v3077 = vmax.f32 %v3023, %v3071
      %v3078 = vmax.f32 %v3024, %v3074
      %s3079 = scalar_lea.vmem %s17, 24
      %v3080 = vld [vmem:[%s3079] sm:$0xf]
      %v3081 = vld [vmem:[%s3079 + $0x4] sm:$0xf]
      %v3084 = vunpack.c.l.b16 %v3080
      %v3085 = vunpack.c.l.b16 %v3081
      %v3086 = vpack.c.b16 %v3085, %v3084
      %v3088 = vsel %vm1590, %v3086, 0
      %3090 = vmatprep.subr.bf16.mxu0 0
      %3091 = vmatpush1.bf16.msra.mxu0 %v2916
      %3092 = vmatprep.subr.bf16.mxu0 0
      %3093 = vmatpush1.bf16.msra.mxu0 %v2917
      %3094 = vmatprep.subr.bf16.mxu0 0
      %3095 = vmatpush1.bf16.msra.mxu0 %v2918
      %3096 = vmatprep.subr.bf16.mxu0 0
      %3097 = vmatpush1.bf16.msra.mxu0 %v2919
      %3098 = vmatprep.subr.bf16.mxu0 0
      %3099 = vmatpush1.bf16.msra.mxu0 0
      %3100 = vmatprep.subr.bf16.mxu0 0
      %3101 = vmatpush1.bf16.msra.mxu0 0
      %3102 = vmatprep.subr.bf16.mxu0 0
      %3103 = vmatpush1.bf16.msra.mxu0 0
      %3104 = vmatprep.subr.bf16.mxu0 0
      %3105 = vmatpush1.bf16.msra.mxu0 0
      %3106 = vmatprep.subr.bf16.mxu0 0
      %3107 = vmatpush1.bf16.msra.mxu0 0
      %3108 = vmatprep.subr.bf16.mxu0 0
      %3109 = vmatpush1.bf16.msra.mxu0 0
      %3110 = vmatprep.subr.bf16.mxu0 0
      %3111 = vmatpush1.bf16.msra.mxu0 0
      %3112 = vmatprep.subr.bf16.mxu0 0
      %3113 = vmatpush1.bf16.msra.mxu0 0
      %3114 = vmatprep.subr.bf16.mxu0 0
      %3115 = vmatpush1.bf16.msra.mxu0 0
      %3116 = vmatprep.subr.bf16.mxu0 0
      %3117 = vmatpush1.bf16.msra.mxu0 0
      %3118 = vmatprep.subr.bf16.mxu0 0
      %3119 = vmatpush1.bf16.msra.mxu0 0
      %3120 = vmatprep.subr.bf16.mxu0 0
      %3121 = vmatpush1.bf16.msra.mxu0 0
      %3122 = vmatprep.mubr.bf16.mxu0 0
      %3123 = vmatmul.mubr.bf16.gmra.mrb[0].mxu0 %v3088
      %v3124 = vpop.f32.mrb[0].mxu0
      %v3125 = vadd.f32 0.0, %v3124
      %v3126 = vpop.f32.mrb[0].mxu0
      %v3127 = vpop.f32.mrb[0].mxu0
      %v3128 = vadd.f32 0.0, %v3127
      %v3129 = vpop.f32.mrb[0].mxu0
      %3130 = vdwg.mxu0
      %v3131 = vmax.f32 %v3077, %v3125
      %v3132 = vmax.f32 %v3078, %v3128
      %3133 = vst [vmem:[#allocation3] sm:$0xff] 0.0
      %3134 = vst [vmem:[#allocation3 + $0x8] sm:$0xff] 0.0
      %3135 = vst [vmem:[#allocation3 + $0x10] sm:$0xff] 0.0
      %3136 = vst [vmem:[#allocation3 + $0x18] sm:$0x1f] 0.0
      %3137 = vst [vmem:[#allocation3 + $0x8] sm:$0xff] %v3131
      %3138 = vst [vmem:[#allocation3 + $0x10] sm:$0xff] %v3132
      %v3139 = vand.u32 %v1613, 3
      %v3140 = vand.u32 %v1614, 3
      %v3141 = vld [vmem:[#allocation3 + $0x3] sm:$0xff]
      %v3142 = vld [vmem:[#allocation3 + $0xb] sm:$0xff]
      %vm3143 = vcmp.ge.s32.totalorder %v3139, 1
      %vm3144 = vcmp.ge.s32.totalorder %v3140, 1
      %v3145 = vsel %vm3143, 1, 0
      %v3146 = vsel %vm3144, 1, 0
      %vm3147 = vcmp.eq.s32.totalorder %v3145, 1
      %vm3148 = vcmp.eq.s32.totalorder %v3146, 1
      %v3149 = vsel %vm3147, %v3141, 0.0
      %v3150 = vsel %vm3148, %v3142, 0.0
      %v3151 = vpack.c.bf16 %v3150, %v3149
      %v3152 = vld [vmem:[%s7] sm:$0xff]
      %v3153 = vld [vmem:[%s7 + $0x8] sm:$0xff]
      %v3154 = vld [vmem:[%s7 + $0x10] sm:$0xff]
      %v3155 = vld [vmem:[%s7 + $0x18] sm:$0xff]
      %v3156 = vld [vmem:[%s7 + $0x20] sm:$0xff]
      %v3157 = vld [vmem:[%s7 + $0x28] sm:$0xff]
      %v3158 = vld [vmem:[%s7 + $0x30] sm:$0xff]
      %v3159 = vld [vmem:[%s7 + $0x38] sm:$0xff]
      %v3160 = vld [vmem:[%s7 + $0x40] sm:$0xff]
      %v3161 = vld [vmem:[%s7 + $0x48] sm:$0xff]
      %v3162 = vld [vmem:[%s7 + $0x50] sm:$0xff]
      %v3163 = vld [vmem:[%s7 + $0x58] sm:$0xff]
      %v3164 = vld [vmem:[%s7 + $0x60] sm:$0xff]
      %v3165 = vld [vmem:[%s7 + $0x68] sm:$0xff]
      %v3166 = vld [vmem:[%s7 + $0x70] sm:$0xff]
      %v3167 = vld [vmem:[%s7 + $0x78] sm:$0xff]
      %v3168 = vld [vmem:[#allocation3 + $0x4] sm:$0xff]
      %v3169 = vld [vmem:[#allocation3 + $0xc] sm:$0xff]
      %v3170 = vpack.c.bf16 %v3169, %v3168
      %s3171 = scalar_lea.vmem %s7, 128
      %v3172 = vld [vmem:[%s3171] sm:$0xff]
      %v3173 = vld [vmem:[%s3171 + $0x8] sm:$0xff]
      %v3174 = vld [vmem:[%s3171 + $0x10] sm:$0xff]
      %v3175 = vld [vmem:[%s3171 + $0x18] sm:$0xff]
      %v3176 = vld [vmem:[%s3171 + $0x20] sm:$0xff]
      %v3177 = vld [vmem:[%s3171 + $0x28] sm:$0xff]
      %v3178 = vld [vmem:[%s3171 + $0x30] sm:$0xff]
      %v3179 = vld [vmem:[%s3171 + $0x38] sm:$0xff]
      %v3180 = vld [vmem:[%s3171 + $0x40] sm:$0xff]
      %v3181 = vld [vmem:[%s3171 + $0x48] sm:$0xff]
      %v3182 = vld [vmem:[%s3171 + $0x50] sm:$0xff]
      %v3183 = vld [vmem:[%s3171 + $0x58] sm:$0xff]
      %v3184 = vld [vmem:[%s3171 + $0x60] sm:$0xff]
      %v3185 = vld [vmem:[%s3171 + $0x68] sm:$0xff]
      %v3186 = vld [vmem:[%s3171 + $0x70] sm:$0xff]
      %v3187 = vld [vmem:[%s3171 + $0x78] sm:$0xff]
      %v3204 = vunpack.c.l.b16 %v3172
      %v3205 = vunpack.c.h.b16 %v3172
      %v3206 = vunpack.c.l.b16 %v3173
      %v3207 = vunpack.c.h.b16 %v3173
      %v3208 = vunpack.c.l.b16 %v3174
      %v3209 = vunpack.c.h.b16 %v3174
      %v3210 = vunpack.c.l.b16 %v3175
      %v3211 = vunpack.c.h.b16 %v3175
      %v3212 = vunpack.c.l.b16 %v3176
      %v3213 = vunpack.c.h.b16 %v3176
      %v3214 = vunpack.c.l.b16 %v3177
      %v3215 = vunpack.c.h.b16 %v3177
      %v3216 = vunpack.c.l.b16 %v3178
      %v3217 = vunpack.c.h.b16 %v3178
      %v3218 = vunpack.c.l.b16 %v3179
      %v3219 = vunpack.c.h.b16 %v3179
      %v3220 = vunpack.c.l.b16 %v3180
      %v3221 = vunpack.c.h.b16 %v3180
      %v3222 = vunpack.c.l.b16 %v3181
      %v3223 = vunpack.c.h.b16 %v3181
      %v3224 = vunpack.c.l.b16 %v3182
      %v3225 = vunpack.c.h.b16 %v3182
      %v3226 = vunpack.c.l.b16 %v3183
      %v3227 = vunpack.c.h.b16 %v3183
      %v3228 = vunpack.c.l.b16 %v3184
      %v3229 = vunpack.c.h.b16 %v3184
      %v3230 = vunpack.c.l.b16 %v3185
      %v3231 = vunpack.c.h.b16 %v3185
      %v3232 = vunpack.c.l.b16 %v3186
      %v3233 = vunpack.c.h.b16 %v3186
      %v3234 = vunpack.c.l.b16 %v3187
      %v3235 = vunpack.c.h.b16 %v3187
      %v3236 = vpack.c.b16 %v3206, %v3204
      %v3237 = vpack.c.b16 %v3207, %v3205
      %v3238 = vpack.c.b16 %v3210, %v3208
      %v3239 = vpack.c.b16 %v3211, %v3209
      %v3240 = vpack.c.b16 %v3214, %v3212
      %v3241 = vpack.c.b16 %v3215, %v3213
      %v3242 = vpack.c.b16 %v3218, %v3216
      %v3243 = vpack.c.b16 %v3219, %v3217
      %v3244 = vpack.c.b16 %v3222, %v3220
      %v3245 = vpack.c.b16 %v3223, %v3221
      %v3246 = vpack.c.b16 %v3226, %v3224
      %v3247 = vpack.c.b16 %v3227, %v3225
      %v3248 = vpack.c.b16 %v3230, %v3228
      %v3249 = vpack.c.b16 %v3231, %v3229
      %v3250 = vpack.c.b16 %v3234, %v3232
      %v3251 = vpack.c.b16 %v3235, %v3233
      %3268 = vmatprep.subr.bf16.mxu0 %v3237
      %3269 = vmatpush1.bf16.msra.mxu0 %v3236
      %3270 = vmatprep.subr.bf16.mxu0 %v3239
      %3271 = vmatpush1.bf16.msra.mxu0 %v3238
      %3272 = vmatprep.subr.bf16.mxu0 %v3241
      %3273 = vmatpush1.bf16.msra.mxu0 %v3240
      %3274 = vmatprep.subr.bf16.mxu0 %v3243
      %3275 = vmatpush1.bf16.msra.mxu0 %v3242
      %3276 = vmatprep.subr.bf16.mxu0 %v3245
      %3277 = vmatpush1.bf16.msra.mxu0 %v3244
      %3278 = vmatprep.subr.bf16.mxu0 %v3247
      %3279 = vmatpush1.bf16.msra.mxu0 %v3246
      %3280 = vmatprep.subr.bf16.mxu0 %v3249
      %3281 = vmatpush1.bf16.msra.mxu0 %v3248
      %3282 = vmatprep.subr.bf16.mxu0 %v3251
      %3283 = vmatpush1.bf16.msra.mxu0 %v3250
      %3284 = vmatprep.subr.bf16.mxu0 0
      %3285 = vmatpush1.bf16.msra.mxu0 0
      %3286 = vmatprep.subr.bf16.mxu0 0
      %3287 = vmatpush1.bf16.msra.mxu0 0
      %3288 = vmatprep.subr.bf16.mxu0 0
      %3289 = vmatpush1.bf16.msra.mxu0 0
      %3290 = vmatprep.subr.bf16.mxu0 0
      %3291 = vmatpush1.bf16.msra.mxu0 0
      %3292 = vmatprep.subr.bf16.mxu0 0
      %3293 = vmatpush1.bf16.msra.mxu0 0
      %3294 = vmatprep.subr.bf16.mxu0 0
      %3295 = vmatpush1.bf16.msra.mxu0 0
      %3296 = vmatprep.subr.bf16.mxu0 0
      %3297 = vmatpush1.bf16.msra.mxu0 0
      %3298 = vmatprep.subr.bf16.mxu0 0
      %3299 = vmatpush1.bf16.msra.mxu0 0
      %3300 = vmatprep.mubr.bf16.mxu0 0
      %3301 = vmatmul.mubr.bf16.gmra.mrb[0].mxu0 %v3170
      %v3302 = vpop.f32.mrb[0].mxu0
      %v3303 = vadd.f32 0.0, %v3302
      %v3304 = vpop.f32.mrb[0].mxu0
      %v3305 = vadd.f32 0.0, %v3304
      %v3306 = vpop.f32.mrb[0].mxu0
      %v3307 = vadd.f32 0.0, %v3306
      %v3308 = vpop.f32.mrb[0].mxu0
      %v3309 = vadd.f32 0.0, %v3308
      %3310 = vdwg.mxu0
      %v3327 = vunpack.c.l.b16 %v3152
      %v3328 = vunpack.c.h.b16 %v3152
      %v3329 = vunpack.c.l.b16 %v3153
      %v3330 = vunpack.c.h.b16 %v3153
      %v3331 = vunpack.c.l.b16 %v3154
      %v3332 = vunpack.c.h.b16 %v3154
      %v3333 = vunpack.c.l.b16 %v3155
      %v3334 = vunpack.c.h.b16 %v3155
      %v3335 = vunpack.c.l.b16 %v3156
      %v3336 = vunpack.c.h.b16 %v3156
      %v3337 = vunpack.c.l.b16 %v3157
      %v3338 = vunpack.c.h.b16 %v3157
      %v3339 = vunpack.c.l.b16 %v3158
      %v3340 = vunpack.c.h.b16 %v3158
      %v3341 = vunpack.c.l.b16 %v3159
      %v3342 = vunpack.c.h.b16 %v3159
      %v3343 = vunpack.c.l.b16 %v3160
      %v3344 = vunpack.c.h.b16 %v3160
      %v3345 = vunpack.c.l.b16 %v3161
      %v3346 = vunpack.c.h.b16 %v3161
      %v3347 = vunpack.c.l.b16 %v3162
      %v3348 = vunpack.c.h.b16 %v3162
      %v3349 = vunpack.c.l.b16 %v3163
      %v3350 = vunpack.c.h.b16 %v3163
      %v3351 = vunpack.c.l.b16 %v3164
      %v3352 = vunpack.c.h.b16 %v3164
      %v3353 = vunpack.c.l.b16 %v3165
      %v3354 = vunpack.c.h.b16 %v3165
      %v3355 = vunpack.c.l.b16 %v3166
      %v3356 = vunpack.c.h.b16 %v3166
      %v3357 = vunpack.c.l.b16 %v3167
      %v3358 = vunpack.c.h.b16 %v3167
      %v3359 = vpack.c.b16 %v3329, %v3327
      %v3360 = vpack.c.b16 %v3330, %v3328
      %v3361 = vpack.c.b16 %v3333, %v3331
      %v3362 = vpack.c.b16 %v3334, %v3332
      %v3363 = vpack.c.b16 %v3337, %v3335
      %v3364 = vpack.c.b16 %v3338, %v3336
      %v3365 = vpack.c.b16 %v3341, %v3339
      %v3366 = vpack.c.b16 %v3342, %v3340
      %v3367 = vpack.c.b16 %v3345, %v3343
      %v3368 = vpack.c.b16 %v3346, %v3344
      %v3369 = vpack.c.b16 %v3349, %v3347
      %v3370 = vpack.c.b16 %v3350, %v3348
      %v3371 = vpack.c.b16 %v3353, %v3351
      %v3372 = vpack.c.b16 %v3354, %v3352
      %v3373 = vpack.c.b16 %v3357, %v3355
      %v3374 = vpack.c.b16 %v3358, %v3356
      %3391 = vmatprep.subr.bf16.mxu0 %v3360
      %3392 = vmatpush1.bf16.msra.mxu0 %v3359
      %3393 = vmatprep.subr.bf16.mxu0 %v3362
      %3394 = vmatpush1.bf16.msra.mxu0 %v3361
      %3395 = vmatprep.subr.bf16.mxu0 %v3364
      %3396 = vmatpush1.bf16.msra.mxu0 %v3363
      %3397 = vmatprep.subr.bf16.mxu0 %v3366
      %3398 = vmatpush1.bf16.msra.mxu0 %v3365
      %3399 = vmatprep.subr.bf16.mxu0 %v3368
      %3400 = vmatpush1.bf16.msra.mxu0 %v3367
      %3401 = vmatprep.subr.bf16.mxu0 %v3370
      %3402 = vmatpush1.bf16.msra.mxu0 %v3369
      %3403 = vmatprep.subr.bf16.mxu0 %v3372
      %3404 = vmatpush1.bf16.msra.mxu0 %v3371
      %3405 = vmatprep.subr.bf16.mxu0 %v3374
      %3406 = vmatpush1.bf16.msra.mxu0 %v3373
      %3407 = vmatprep.subr.bf16.mxu0 0
      %3408 = vmatpush1.bf16.msra.mxu0 0
      %3409 = vmatprep.subr.bf16.mxu0 0
      %3410 = vmatpush1.bf16.msra.mxu0 0
      %3411 = vmatprep.subr.bf16.mxu0 0
      %3412 = vmatpush1.bf16.msra.mxu0 0
      %3413 = vmatprep.subr.bf16.mxu0 0
      %3414 = vmatpush1.bf16.msra.mxu0 0
      %3415 = vmatprep.subr.bf16.mxu0 0
      %3416 = vmatpush1.bf16.msra.mxu0 0
      %3417 = vmatprep.subr.bf16.mxu0 0
      %3418 = vmatpush1.bf16.msra.mxu0 0
      %3419 = vmatprep.subr.bf16.mxu0 0
      %3420 = vmatpush1.bf16.msra.mxu0 0
      %3421 = vmatprep.subr.bf16.mxu0 0
      %3422 = vmatpush1.bf16.msra.mxu0 0
      %3423 = vmatprep.mubr.bf16.mxu0 0
      %3424 = vmatmul.mubr.bf16.gmra.mrb[0].mxu0 %v3151
      %v3425 = vpop.f32.mrb[0].mxu0
      %v3426 = vadd.f32 %v3303, %v3425
      %v3427 = vpop.f32.mrb[0].mxu0
      %v3428 = vadd.f32 %v3305, %v3427
      %v3429 = vpop.f32.mrb[0].mxu0
      %v3430 = vadd.f32 %v3307, %v3429
      %v3431 = vpop.f32.mrb[0].mxu0
      %v3432 = vadd.f32 %v3309, %v3431
      %3433 = vdwg.mxu0
      %v3434 = vld [vmem:[#allocation3 + $0x5] sm:$0xff]
      %v3435 = vld [vmem:[#allocation3 + $0xd] sm:$0xff]
      %vm3436 = vcmp.le.s32.totalorder %v3139, 2
      %vm3437 = vcmp.le.s32.totalorder %v3140, 2
      %v3438 = vsel %vm3436, 1, 0
      %v3439 = vsel %vm3437, 1, 0
      %vm3440 = vcmp.eq.s32.totalorder %v3438, 1
      %vm3441 = vcmp.eq.s32.totalorder %v3439, 1
      %v3442 = vsel %vm3440, %v3434, 0.0
      %v3443 = vsel %vm3441, %v3435, 0.0
      %v3444 = vpack.c.bf16 %v3443, %v3442
      %s3445 = scalar_lea.vmem %s7, 256
      %v3446 = vld [vmem:[%s3445] sm:$0xff]
      %v3447 = vld [vmem:[%s3445 + $0x8] sm:$0xff]
      %v3448 = vld [vmem:[%s3445 + $0x10] sm:$0xff]
      %v3449 = vld [vmem:[%s3445 + $0x18] sm:$0xff]
      %v3450 = vld [vmem:[%s3445 + $0x20] sm:$0xff]
      %v3451 = vld [vmem:[%s3445 + $0x28] sm:$0xff]
      %v3452 = vld [vmem:[%s3445 + $0x30] sm:$0xff]
      %v3453 = vld [vmem:[%s3445 + $0x38] sm:$0xff]
      %v3454 = vld [vmem:[%s3445 + $0x40] sm:$0xff]
      %v3455 = vld [vmem:[%s3445 + $0x48] sm:$0xff]
      %v3456 = vld [vmem:[%s3445 + $0x50] sm:$0xff]
      %v3457 = vld [vmem:[%s3445 + $0x58] sm:$0xff]
      %v3458 = vld [vmem:[%s3445 + $0x60] sm:$0xff]
      %v3459 = vld [vmem:[%s3445 + $0x68] sm:$0xff]
      %v3460 = vld [vmem:[%s3445 + $0x70] sm:$0xff]
      %v3461 = vld [vmem:[%s3445 + $0x78] sm:$0xff]
      %v3478 = vunpack.c.l.b16 %v3446
      %v3479 = vunpack.c.h.b16 %v3446
      %v3480 = vunpack.c.l.b16 %v3447
      %v3481 = vunpack.c.h.b16 %v3447
      %v3482 = vunpack.c.l.b16 %v3448
      %v3483 = vunpack.c.h.b16 %v3448
      %v3484 = vunpack.c.l.b16 %v3449
      %v3485 = vunpack.c.h.b16 %v3449
      %v3486 = vunpack.c.l.b16 %v3450
      %v3487 = vunpack.c.h.b16 %v3450
      %v3488 = vunpack.c.l.b16 %v3451
      %v3489 = vunpack.c.h.b16 %v3451
      %v3490 = vunpack.c.l.b16 %v3452
      %v3491 = vunpack.c.h.b16 %v3452
      %v3492 = vunpack.c.l.b16 %v3453
      %v3493 = vunpack.c.h.b16 %v3453
      %v3494 = vunpack.c.l.b16 %v3454
      %v3495 = vunpack.c.h.b16 %v3454
      %v3496 = vunpack.c.l.b16 %v3455
      %v3497 = vunpack.c.h.b16 %v3455
      %v3498 = vunpack.c.l.b16 %v3456
      %v3499 = vunpack.c.h.b16 %v3456
      %v3500 = vunpack.c.l.b16 %v3457
      %v3501 = vunpack.c.h.b16 %v3457
      %v3502 = vunpack.c.l.b16 %v3458
      %v3503 = vunpack.c.h.b16 %v3458
      %v3504 = vunpack.c.l.b16 %v3459
      %v3505 = vunpack.c.h.b16 %v3459
      %v3506 = vunpack.c.l.b16 %v3460
      %v3507 = vunpack.c.h.b16 %v3460
      %v3508 = vunpack.c.l.b16 %v3461
      %v3509 = vunpack.c.h.b16 %v3461
      %v3510 = vpack.c.b16 %v3480, %v3478
      %v3511 = vpack.c.b16 %v3481, %v3479
      %v3512 = vpack.c.b16 %v3484, %v3482
      %v3513 = vpack.c.b16 %v3485, %v3483
      %v3514 = vpack.c.b16 %v3488, %v3486
      %v3515 = vpack.c.b16 %v3489, %v3487
      %v3516 = vpack.c.b16 %v3492, %v3490
      %v3517 = vpack.c.b16 %v3493, %v3491
      %v3518 = vpack.c.b16 %v3496, %v3494
      %v3519 = vpack.c.b16 %v3497, %v3495
      %v3520 = vpack.c.b16 %v3500, %v3498
      %v3521 = vpack.c.b16 %v3501, %v3499
      %v3522 = vpack.c.b16 %v3504, %v3502
      %v3523 = vpack.c.b16 %v3505, %v3503
      %v3524 = vpack.c.b16 %v3508, %v3506
      %v3525 = vpack.c.b16 %v3509, %v3507
      %3542 = vmatprep.subr.bf16.mxu0 %v3511
      %3543 = vmatpush1.bf16.msra.mxu0 %v3510
      %3544 = vmatprep.subr.bf16.mxu0 %v3513
      %3545 = vmatpush1.bf16.msra.mxu0 %v3512
      %3546 = vmatprep.subr.bf16.mxu0 %v3515
      %3547 = vmatpush1.bf16.msra.mxu0 %v3514
      %3548 = vmatprep.subr.bf16.mxu0 %v3517
      %3549 = vmatpush1.bf16.msra.mxu0 %v3516
      %3550 = vmatprep.subr.bf16.mxu0 %v3519
      %3551 = vmatpush1.bf16.msra.mxu0 %v3518
      %3552 = vmatprep.subr.bf16.mxu0 %v3521
      %3553 = vmatpush1.bf16.msra.mxu0 %v3520
      %3554 = vmatprep.subr.bf16.mxu0 %v3523
      %3555 = vmatpush1.bf16.msra.mxu0 %v3522
      %3556 = vmatprep.subr.bf16.mxu0 %v3525
      %3557 = vmatpush1.bf16.msra.mxu0 %v3524
      %3558 = vmatprep.subr.bf16.mxu0 0
      %3559 = vmatpush1.bf16.msra.mxu0 0
      %3560 = vmatprep.subr.bf16.mxu0 0
      %3561 = vmatpush1.bf16.msra.mxu0 0
      %3562 = vmatprep.subr.bf16.mxu0 0
      %3563 = vmatpush1.bf16.msra.mxu0 0
      %3564 = vmatprep.subr.bf16.mxu0 0
      %3565 = vmatpush1.bf16.msra.mxu0 0
      %3566 = vmatprep.subr.bf16.mxu0 0
      %3567 = vmatpush1.bf16.msra.mxu0 0
      %3568 = vmatprep.subr.bf16.mxu0 0
      %3569 = vmatpush1.bf16.msra.mxu0 0
      %3570 = vmatprep.subr.bf16.mxu0 0
      %3571 = vmatpush1.bf16.msra.mxu0 0
      %3572 = vmatprep.subr.bf16.mxu0 0
      %3573 = vmatpush1.bf16.msra.mxu0 0
      %3574 = vmatprep.mubr.bf16.mxu0 0
      %3575 = vmatmul.mubr.bf16.gmra.mrb[0].mxu0 %v3444
      %v3576 = vpop.f32.mrb[0].mxu0
      %v3577 = vadd.f32 0.0, %v3576
      %v3578 = vpop.f32.mrb[0].mxu0
      %v3579 = vadd.f32 0.0, %v3578
      %v3580 = vpop.f32.mrb[0].mxu0
      %v3581 = vadd.f32 0.0, %v3580
      %v3582 = vpop.f32.mrb[0].mxu0
      %v3583 = vadd.f32 0.0, %v3582
      %3584 = vdwg.mxu0
      %v3585 = vadd.f32 %v3426, %v3577
      %v3586 = vadd.f32 %v3428, %v3579
      %v3587 = vadd.f32 %v3430, %v3581
      %v3588 = vadd.f32 %v3432, %v3583
      %v3589 = vld [vmem:[#allocation3 + $0x7] sm:$0xff]
      %v3590 = vld [vmem:[#allocation3 + $0xf] sm:$0xff]
      %v3591 = vsel %vm3147, %v3589, 0.0
      %v3592 = vsel %vm3148, %v3590, 0.0
      %v3593 = vpack.c.bf16 %v3592, %v3591
      %s3594 = scalar_lea.vmem %s7, 384
      %v3595 = vld [vmem:[%s3594] sm:$0xff]
      %v3596 = vld [vmem:[%s3594 + $0x8] sm:$0xff]
      %v3597 = vld [vmem:[%s3594 + $0x10] sm:$0xff]
      %v3598 = vld [vmem:[%s3594 + $0x18] sm:$0xff]
      %v3599 = vld [vmem:[%s3594 + $0x20] sm:$0xff]
      %v3600 = vld [vmem:[%s3594 + $0x28] sm:$0xff]
      %v3601 = vld [vmem:[%s3594 + $0x30] sm:$0xff]
      %v3602 = vld [vmem:[%s3594 + $0x38] sm:$0xff]
      %v3603 = vld [vmem:[%s3594 + $0x40] sm:$0xff]
      %v3604 = vld [vmem:[%s3594 + $0x48] sm:$0xff]
      %v3605 = vld [vmem:[%s3594 + $0x50] sm:$0xff]
      %v3606 = vld [vmem:[%s3594 + $0x58] sm:$0xff]
      %v3607 = vld [vmem:[%s3594 + $0x60] sm:$0xff]
      %v3608 = vld [vmem:[%s3594 + $0x68] sm:$0xff]
      %v3609 = vld [vmem:[%s3594 + $0x70] sm:$0xff]
      %v3610 = vld [vmem:[%s3594 + $0x78] sm:$0xff]
      %v3627 = vunpack.c.l.b16 %v3595
      %v3628 = vunpack.c.h.b16 %v3595
      %v3629 = vunpack.c.l.b16 %v3596
      %v3630 = vunpack.c.h.b16 %v3596
      %v3631 = vunpack.c.l.b16 %v3597
      %v3632 = vunpack.c.h.b16 %v3597
      %v3633 = vunpack.c.l.b16 %v3598
      %v3634 = vunpack.c.h.b16 %v3598
      %v3635 = vunpack.c.l.b16 %v3599
      %v3636 = vunpack.c.h.b16 %v3599
      %v3637 = vunpack.c.l.b16 %v3600
      %v3638 = vunpack.c.h.b16 %v3600
      %v3639 = vunpack.c.l.b16 %v3601
      %v3640 = vunpack.c.h.b16 %v3601
      %v3641 = vunpack.c.l.b16 %v3602
      %v3642 = vunpack.c.h.b16 %v3602
      %v3643 = vunpack.c.l.b16 %v3603
      %v3644 = vunpack.c.h.b16 %v3603
      %v3645 = vunpack.c.l.b16 %v3604
      %v3646 = vunpack.c.h.b16 %v3604
      %v3647 = vunpack.c.l.b16 %v3605
      %v3648 = vunpack.c.h.b16 %v3605
      %v3649 = vunpack.c.l.b16 %v3606
      %v3650 = vunpack.c.h.b16 %v3606
      %v3651 = vunpack.c.l.b16 %v3607
      %v3652 = vunpack.c.h.b16 %v3607
      %v3653 = vunpack.c.l.b16 %v3608
      %v3654 = vunpack.c.h.b16 %v3608
      %v3655 = vunpack.c.l.b16 %v3609
      %v3656 = vunpack.c.h.b16 %v3609
      %v3657 = vunpack.c.l.b16 %v3610
      %v3658 = vunpack.c.h.b16 %v3610
      %v3659 = vpack.c.b16 %v3629, %v3627
      %v3660 = vpack.c.b16 %v3630, %v3628
      %v3661 = vpack.c.b16 %v3633, %v3631
      %v3662 = vpack.c.b16 %v3634, %v3632
      %v3663 = vpack.c.b16 %v3637, %v3635
      %v3664 = vpack.c.b16 %v3638, %v3636
      %v3665 = vpack.c.b16 %v3641, %v3639
      %v3666 = vpack.c.b16 %v3642, %v3640
      %v3667 = vpack.c.b16 %v3645, %v3643
      %v3668 = vpack.c.b16 %v3646, %v3644
      %v3669 = vpack.c.b16 %v3649, %v3647
      %v3670 = vpack.c.b16 %v3650, %v3648
      %v3671 = vpack.c.b16 %v3653, %v3651
      %v3672 = vpack.c.b16 %v3654, %v3652
      %v3673 = vpack.c.b16 %v3657, %v3655
      %v3674 = vpack.c.b16 %v3658, %v3656
      %3691 = vmatprep.subr.bf16.mxu0 %v3660
      %3692 = vmatpush1.bf16.msra.mxu0 %v3659
      %3693 = vmatprep.subr.bf16.mxu0 %v3662
      %3694 = vmatpush1.bf16.msra.mxu0 %v3661
      %3695 = vmatprep.subr.bf16.mxu0 %v3664
      %3696 = vmatpush1.bf16.msra.mxu0 %v3663
      %3697 = vmatprep.subr.bf16.mxu0 %v3666
      %3698 = vmatpush1.bf16.msra.mxu0 %v3665
      %3699 = vmatprep.subr.bf16.mxu0 %v3668
      %3700 = vmatpush1.bf16.msra.mxu0 %v3667
      %3701 = vmatprep.subr.bf16.mxu0 %v3670
      %3702 = vmatpush1.bf16.msra.mxu0 %v3669
      %3703 = vmatprep.subr.bf16.mxu0 %v3672
      %3704 = vmatpush1.bf16.msra.mxu0 %v3671
      %3705 = vmatprep.subr.bf16.mxu0 %v3674
      %3706 = vmatpush1.bf16.msra.mxu0 %v3673
      %3707 = vmatprep.subr.bf16.mxu0 0
      %3708 = vmatpush1.bf16.msra.mxu0 0
      %3709 = vmatprep.subr.bf16.mxu0 0
      %3710 = vmatpush1.bf16.msra.mxu0 0
      %3711 = vmatprep.subr.bf16.mxu0 0
      %3712 = vmatpush1.bf16.msra.mxu0 0
      %3713 = vmatprep.subr.bf16.mxu0 0
      %3714 = vmatpush1.bf16.msra.mxu0 0
      %3715 = vmatprep.subr.bf16.mxu0 0
      %3716 = vmatpush1.bf16.msra.mxu0 0
      %3717 = vmatprep.subr.bf16.mxu0 0
      %3718 = vmatpush1.bf16.msra.mxu0 0
      %3719 = vmatprep.subr.bf16.mxu0 0
      %3720 = vmatpush1.bf16.msra.mxu0 0
      %3721 = vmatprep.subr.bf16.mxu0 0
      %3722 = vmatpush1.bf16.msra.mxu0 0
      %3723 = vmatprep.mubr.bf16.mxu0 0
      %3724 = vmatmul.mubr.bf16.gmra.mrb[0].mxu0 %v3593
      %v3725 = vpop.f32.mrb[0].mxu0
      %v3726 = vadd.f32 0.0, %v3725
      %v3727 = vpop.f32.mrb[0].mxu0
      %v3728 = vadd.f32 0.0, %v3727
      %v3729 = vpop.f32.mrb[0].mxu0
      %v3730 = vadd.f32 0.0, %v3729
      %v3731 = vpop.f32.mrb[0].mxu0
      %v3732 = vadd.f32 0.0, %v3731
      %3733 = vdwg.mxu0
      %v3734 = vadd.f32 %v3585, %v3726
      %v3735 = vadd.f32 %v3586, %v3728
      %v3736 = vadd.f32 %v3587, %v3730
      %v3737 = vadd.f32 %v3588, %v3732
      %v3738 = vld [vmem:[#allocation3 + $0x8] sm:$0xff]
      %v3739 = vld [vmem:[#allocation3 + $0x10] sm:$0xff]
      %v3740 = vpack.c.bf16 %v3739, %v3738
      %s3741 = scalar_lea.vmem %s7, 512
      %v3742 = vld [vmem:[%s3741] sm:$0xff]
      %v3743 = vld [vmem:[%s3741 + $0x8] sm:$0xff]
      %v3744 = vld [vmem:[%s3741 + $0x10] sm:$0xff]
      %v3745 = vld [vmem:[%s3741 + $0x18] sm:$0xff]
      %v3746 = vld [vmem:[%s3741 + $0x20] sm:$0xff]
      %v3747 = vld [vmem:[%s3741 + $0x28] sm:$0xff]
      %v3748 = vld [vmem:[%s3741 + $0x30] sm:$0xff]
      %v3749 = vld [vmem:[%s3741 + $0x38] sm:$0xff]
      %v3750 = vld [vmem:[%s3741 + $0x40] sm:$0xff]
      %v3751 = vld [vmem:[%s3741 + $0x48] sm:$0xff]
      %v3752 = vld [vmem:[%s3741 + $0x50] sm:$0xff]
      %v3753 = vld [vmem:[%s3741 + $0x58] sm:$0xff]
      %v3754 = vld [vmem:[%s3741 + $0x60] sm:$0xff]
      %v3755 = vld [vmem:[%s3741 + $0x68] sm:$0xff]
      %v3756 = vld [vmem:[%s3741 + $0x70] sm:$0xff]
      %v3757 = vld [vmem:[%s3741 + $0x78] sm:$0xff]
      %v3774 = vunpack.c.l.b16 %v3742
      %v3775 = vunpack.c.h.b16 %v3742
      %v3776 = vunpack.c.l.b16 %v3743
      %v3777 = vunpack.c.h.b16 %v3743
      %v3778 = vunpack.c.l.b16 %v3744
      %v3779 = vunpack.c.h.b16 %v3744
      %v3780 = vunpack.c.l.b16 %v3745
      %v3781 = vunpack.c.h.b16 %v3745
      %v3782 = vunpack.c.l.b16 %v3746
      %v3783 = vunpack.c.h.b16 %v3746
      %v3784 = vunpack.c.l.b16 %v3747
      %v3785 = vunpack.c.h.b16 %v3747
      %v3786 = vunpack.c.l.b16 %v3748
      %v3787 = vunpack.c.h.b16 %v3748
      %v3788 = vunpack.c.l.b16 %v3749
      %v3789 = vunpack.c.h.b16 %v3749
      %v3790 = vunpack.c.l.b16 %v3750
      %v3791 = vunpack.c.h.b16 %v3750
      %v3792 = vunpack.c.l.b16 %v3751
      %v3793 = vunpack.c.h.b16 %v3751
      %v3794 = vunpack.c.l.b16 %v3752
      %v3795 = vunpack.c.h.b16 %v3752
      %v3796 = vunpack.c.l.b16 %v3753
      %v3797 = vunpack.c.h.b16 %v3753
      %v3798 = vunpack.c.l.b16 %v3754
      %v3799 = vunpack.c.h.b16 %v3754
      %v3800 = vunpack.c.l.b16 %v3755
      %v3801 = vunpack.c.h.b16 %v3755
      %v3802 = vunpack.c.l.b16 %v3756
      %v3803 = vunpack.c.h.b16 %v3756
      %v3804 = vunpack.c.l.b16 %v3757
      %v3805 = vunpack.c.h.b16 %v3757
      %v3806 = vpack.c.b16 %v3776, %v3774
      %v3807 = vpack.c.b16 %v3777, %v3775
      %v3808 = vpack.c.b16 %v3780, %v3778
      %v3809 = vpack.c.b16 %v3781, %v3779
      %v3810 = vpack.c.b16 %v3784, %v3782
      %v3811 = vpack.c.b16 %v3785, %v3783
      %v3812 = vpack.c.b16 %v3788, %v3786
      %v3813 = vpack.c.b16 %v3789, %v3787
      %v3814 = vpack.c.b16 %v3792, %v3790
      %v3815 = vpack.c.b16 %v3793, %v3791
      %v3816 = vpack.c.b16 %v3796, %v3794
      %v3817 = vpack.c.b16 %v3797, %v3795
      %v3818 = vpack.c.b16 %v3800, %v3798
      %v3819 = vpack.c.b16 %v3801, %v3799
      %v3820 = vpack.c.b16 %v3804, %v3802
      %v3821 = vpack.c.b16 %v3805, %v3803
      %3838 = vmatprep.subr.bf16.mxu0 %v3807
      %3839 = vmatpush1.bf16.msra.mxu0 %v3806
      %3840 = vmatprep.subr.bf16.mxu0 %v3809
      %3841 = vmatpush1.bf16.msra.mxu0 %v3808
      %3842 = vmatprep.subr.bf16.mxu0 %v3811
      %3843 = vmatpush1.bf16.msra.mxu0 %v3810
      %3844 = vmatprep.subr.bf16.mxu0 %v3813
      %3845 = vmatpush1.bf16.msra.mxu0 %v3812
      %3846 = vmatprep.subr.bf16.mxu0 %v3815
      %3847 = vmatpush1.bf16.msra.mxu0 %v3814
      %3848 = vmatprep.subr.bf16.mxu0 %v3817
      %3849 = vmatpush1.bf16.msra.mxu0 %v3816
      %3850 = vmatprep.subr.bf16.mxu0 %v3819
      %3851 = vmatpush1.bf16.msra.mxu0 %v3818
      %3852 = vmatprep.subr.bf16.mxu0 %v3821
      %3853 = vmatpush1.bf16.msra.mxu0 %v3820
      %3854 = vmatprep.subr.bf16.mxu0 0
      %3855 = vmatpush1.bf16.msra.mxu0 0
      %3856 = vmatprep.subr.bf16.mxu0 0
      %3857 = vmatpush1.bf16.msra.mxu0 0
      %3858 = vmatprep.subr.bf16.mxu0 0
      %3859 = vmatpush1.bf16.msra.mxu0 0
      %3860 = vmatprep.subr.bf16.mxu0 0
      %3861 = vmatpush1.bf16.msra.mxu0 0
      %3862 = vmatprep.subr.bf16.mxu0 0
      %3863 = vmatpush1.bf16.msra.mxu0 0
      %3864 = vmatprep.subr.bf16.mxu0 0
      %3865 = vmatpush1.bf16.msra.mxu0 0
      %3866 = vmatprep.subr.bf16.mxu0 0
      %3867 = vmatpush1.bf16.msra.mxu0 0
      %3868 = vmatprep.subr.bf16.mxu0 0
      %3869 = vmatpush1.bf16.msra.mxu0 0
      %3870 = vmatprep.mubr.bf16.mxu0 0
      %3871 = vmatmul.mubr.bf16.gmra.mrb[0].mxu0 %v3740
      %v3872 = vpop.f32.mrb[0].mxu0
      %v3873 = vadd.f32 0.0, %v3872
      %v3874 = vpop.f32.mrb[0].mxu0
      %v3875 = vadd.f32 0.0, %v3874
      %v3876 = vpop.f32.mrb[0].mxu0
      %v3877 = vadd.f32 0.0, %v3876
      %v3878 = vpop.f32.mrb[0].mxu0
      %v3879 = vadd.f32 0.0, %v3878
      %3880 = vdwg.mxu0
      %v3881 = vadd.f32 %v3734, %v3873
      %v3882 = vadd.f32 %v3735, %v3875
      %v3883 = vadd.f32 %v3736, %v3877
      %v3884 = vadd.f32 %v3737, %v3879
      %v3885 = vld [vmem:[#allocation3 + $0x9] sm:$0xff]
      %v3886 = vld [vmem:[#allocation3 + $0x11] sm:$0xff]
      %v3887 = vsel %vm3440, %v3885, 0.0
      %v3888 = vsel %vm3441, %v3886, 0.0
      %v3889 = vpack.c.bf16 %v3888, %v3887
      %s3890 = scalar_lea.vmem %s7, 640
      %v3891 = vld [vmem:[%s3890] sm:$0xff]
      %v3892 = vld [vmem:[%s3890 + $0x8] sm:$0xff]
      %v3893 = vld [vmem:[%s3890 + $0x10] sm:$0xff]
      %v3894 = vld [vmem:[%s3890 + $0x18] sm:$0xff]
      %v3895 = vld [vmem:[%s3890 + $0x20] sm:$0xff]
      %v3896 = vld [vmem:[%s3890 + $0x28] sm:$0xff]
      %v3897 = vld [vmem:[%s3890 + $0x30] sm:$0xff]
      %v3898 = vld [vmem:[%s3890 + $0x38] sm:$0xff]
      %v3899 = vld [vmem:[%s3890 + $0x40] sm:$0xff]
      %v3900 = vld [vmem:[%s3890 + $0x48] sm:$0xff]
      %v3901 = vld [vmem:[%s3890 + $0x50] sm:$0xff]
      %v3902 = vld [vmem:[%s3890 + $0x58] sm:$0xff]
      %v3903 = vld [vmem:[%s3890 + $0x60] sm:$0xff]
      %v3904 = vld [vmem:[%s3890 + $0x68] sm:$0xff]
      %v3905 = vld [vmem:[%s3890 + $0x70] sm:$0xff]
      %v3906 = vld [vmem:[%s3890 + $0x78] sm:$0xff]
      %v3923 = vunpack.c.l.b16 %v3891
      %v3924 = vunpack.c.h.b16 %v3891
      %v3925 = vunpack.c.l.b16 %v3892
      %v3926 = vunpack.c.h.b16 %v3892
      %v3927 = vunpack.c.l.b16 %v3893
      %v3928 = vunpack.c.h.b16 %v3893
      %v3929 = vunpack.c.l.b16 %v3894
      %v3930 = vunpack.c.h.b16 %v3894
      %v3931 = vunpack.c.l.b16 %v3895
      %v3932 = vunpack.c.h.b16 %v3895
      %v3933 = vunpack.c.l.b16 %v3896
      %v3934 = vunpack.c.h.b16 %v3896
      %v3935 = vunpack.c.l.b16 %v3897
      %v3936 = vunpack.c.h.b16 %v3897
      %v3937 = vunpack.c.l.b16 %v3898
      %v3938 = vunpack.c.h.b16 %v3898
      %v3939 = vunpack.c.l.b16 %v3899
      %v3940 = vunpack.c.h.b16 %v3899
      %v3941 = vunpack.c.l.b16 %v3900
      %v3942 = vunpack.c.h.b16 %v3900
      %v3943 = vunpack.c.l.b16 %v3901
      %v3944 = vunpack.c.h.b16 %v3901
      %v3945 = vunpack.c.l.b16 %v3902
      %v3946 = vunpack.c.h.b16 %v3902
      %v3947 = vunpack.c.l.b16 %v3903
      %v3948 = vunpack.c.h.b16 %v3903
      %v3949 = vunpack.c.l.b16 %v3904
      %v3950 = vunpack.c.h.b16 %v3904
      %v3951 = vunpack.c.l.b16 %v3905
      %v3952 = vunpack.c.h.b16 %v3905
      %v3953 = vunpack.c.l.b16 %v3906
      %v3954 = vunpack.c.h.b16 %v3906
      %v3955 = vpack.c.b16 %v3925, %v3923
      %v3956 = vpack.c.b16 %v3926, %v3924
      %v3957 = vpack.c.b16 %v3929, %v3927
      %v3958 = vpack.c.b16 %v3930, %v3928
      %v3959 = vpack.c.b16 %v3933, %v3931
      %v3960 = vpack.c.b16 %v3934, %v3932
      %v3961 = vpack.c.b16 %v3937, %v3935
      %v3962 = vpack.c.b16 %v3938, %v3936
      %v3963 = vpack.c.b16 %v3941, %v3939
      %v3964 = vpack.c.b16 %v3942, %v3940
      %v3965 = vpack.c.b16 %v3945, %v3943
      %v3966 = vpack.c.b16 %v3946, %v3944
      %v3967 = vpack.c.b16 %v3949, %v3947
      %v3968 = vpack.c.b16 %v3950, %v3948
      %v3969 = vpack.c.b16 %v3953, %v3951
      %v3970 = vpack.c.b16 %v3954, %v3952
      %3987 = vmatprep.subr.bf16.mxu0 %v3956
      %3988 = vmatpush1.bf16.msra.mxu0 %v3955
      %3989 = vmatprep.subr.bf16.mxu0 %v3958
      %3990 = vmatpush1.bf16.msra.mxu0 %v3957
      %3991 = vmatprep.subr.bf16.mxu0 %v3960
      %3992 = vmatpush1.bf16.msra.mxu0 %v3959
      %3993 = vmatprep.subr.bf16.mxu0 %v3962
      %3994 = vmatpush1.bf16.msra.mxu0 %v3961
      %3995 = vmatprep.subr.bf16.mxu0 %v3964
      %3996 = vmatpush1.bf16.msra.mxu0 %v3963
      %3997 = vmatprep.subr.bf16.mxu0 %v3966
      %3998 = vmatpush1.bf16.msra.mxu0 %v3965
      %3999 = vmatprep.subr.bf16.mxu0 %v3968
      %4000 = vmatpush1.bf16.msra.mxu0 %v3967
      %4001 = vmatprep.subr.bf16.mxu0 %v3970
      %4002 = vmatpush1.bf16.msra.mxu0 %v3969
      %4003 = vmatprep.subr.bf16.mxu0 0
      %4004 = vmatpush1.bf16.msra.mxu0 0
      %4005 = vmatprep.subr.bf16.mxu0 0
      %4006 = vmatpush1.bf16.msra.mxu0 0
      %4007 = vmatprep.subr.bf16.mxu0 0
      %4008 = vmatpush1.bf16.msra.mxu0 0
      %4009 = vmatprep.subr.bf16.mxu0 0
      %4010 = vmatpush1.bf16.msra.mxu0 0
      %4011 = vmatprep.subr.bf16.mxu0 0
      %4012 = vmatpush1.bf16.msra.mxu0 0
      %4013 = vmatprep.subr.bf16.mxu0 0
      %4014 = vmatpush1.bf16.msra.mxu0 0
      %4015 = vmatprep.subr.bf16.mxu0 0
      %4016 = vmatpush1.bf16.msra.mxu0 0
      %4017 = vmatprep.subr.bf16.mxu0 0
      %4018 = vmatpush1.bf16.msra.mxu0 0
      %4019 = vmatprep.mubr.bf16.mxu0 0
      %4020 = vmatmul.mubr.bf16.gmra.mrb[0].mxu0 %v3889
      %v4021 = vpop.f32.mrb[0].mxu0
      %v4022 = vadd.f32 0.0, %v4021
      %v4023 = vpop.f32.mrb[0].mxu0
      %v4024 = vadd.f32 0.0, %v4023
      %v4025 = vpop.f32.mrb[0].mxu0
      %v4026 = vadd.f32 0.0, %v4025
      %v4027 = vpop.f32.mrb[0].mxu0
      %v4028 = vadd.f32 0.0, %v4027
      %4029 = vdwg.mxu0
      %v4030 = vadd.f32 %v3881, %v4022
      %v4031 = vadd.f32 %v3882, %v4024
      %v4032 = vadd.f32 %v3883, %v4026
      %v4033 = vadd.f32 %v3884, %v4028
      %v4034 = vld [vmem:[#allocation3 + $0xb] sm:$0xff]
      %v4035 = vld [vmem:[#allocation3 + $0x13] sm:$0xff]
      %v4036 = vsel %vm3147, %v4034, 0.0
      %v4037 = vsel %vm3148, %v4035, 0.0
      %v4038 = vpack.c.bf16 %v4037, %v4036
      %s4039 = scalar_lea.vmem %s7, 768
      %v4040 = vld [vmem:[%s4039] sm:$0xff]
      %v4041 = vld [vmem:[%s4039 + $0x8] sm:$0xff]
      %v4042 = vld [vmem:[%s4039 + $0x10] sm:$0xff]
      %v4043 = vld [vmem:[%s4039 + $0x18] sm:$0xff]
      %v4044 = vld [vmem:[%s4039 + $0x20] sm:$0xff]
      %v4045 = vld [vmem:[%s4039 + $0x28] sm:$0xff]
      %v4046 = vld [vmem:[%s4039 + $0x30] sm:$0xff]
      %v4047 = vld [vmem:[%s4039 + $0x38] sm:$0xff]
      %v4048 = vld [vmem:[%s4039 + $0x40] sm:$0xff]
      %v4049 = vld [vmem:[%s4039 + $0x48] sm:$0xff]
      %v4050 = vld [vmem:[%s4039 + $0x50] sm:$0xff]
      %v4051 = vld [vmem:[%s4039 + $0x58] sm:$0xff]
      %v4052 = vld [vmem:[%s4039 + $0x60] sm:$0xff]
      %v4053 = vld [vmem:[%s4039 + $0x68] sm:$0xff]
      %v4054 = vld [vmem:[%s4039 + $0x70] sm:$0xff]
      %v4055 = vld [vmem:[%s4039 + $0x78] sm:$0xff]
      %v4072 = vunpack.c.l.b16 %v4040
      %v4073 = vunpack.c.h.b16 %v4040
      %v4074 = vunpack.c.l.b16 %v4041
      %v4075 = vunpack.c.h.b16 %v4041
      %v4076 = vunpack.c.l.b16 %v4042
      %v4077 = vunpack.c.h.b16 %v4042
      %v4078 = vunpack.c.l.b16 %v4043
      %v4079 = vunpack.c.h.b16 %v4043
      %v4080 = vunpack.c.l.b16 %v4044
      %v4081 = vunpack.c.h.b16 %v4044
      %v4082 = vunpack.c.l.b16 %v4045
      %v4083 = vunpack.c.h.b16 %v4045
      %v4084 = vunpack.c.l.b16 %v4046
      %v4085 = vunpack.c.h.b16 %v4046
      %v4086 = vunpack.c.l.b16 %v4047
      %v4087 = vunpack.c.h.b16 %v4047
      %v4088 = vunpack.c.l.b16 %v4048
      %v4089 = vunpack.c.h.b16 %v4048
      %v4090 = vunpack.c.l.b16 %v4049
      %v4091 = vunpack.c.h.b16 %v4049
      %v4092 = vunpack.c.l.b16 %v4050
      %v4093 = vunpack.c.h.b16 %v4050
      %v4094 = vunpack.c.l.b16 %v4051
      %v4095 = vunpack.c.h.b16 %v4051
      %v4096 = vunpack.c.l.b16 %v4052
      %v4097 = vunpack.c.h.b16 %v4052
      %v4098 = vunpack.c.l.b16 %v4053
      %v4099 = vunpack.c.h.b16 %v4053
      %v4100 = vunpack.c.l.b16 %v4054
      %v4101 = vunpack.c.h.b16 %v4054
      %v4102 = vunpack.c.l.b16 %v4055
      %v4103 = vunpack.c.h.b16 %v4055
      %v4104 = vpack.c.b16 %v4074, %v4072
      %v4105 = vpack.c.b16 %v4075, %v4073
      %v4106 = vpack.c.b16 %v4078, %v4076
      %v4107 = vpack.c.b16 %v4079, %v4077
      %v4108 = vpack.c.b16 %v4082, %v4080
      %v4109 = vpack.c.b16 %v4083, %v4081
      %v4110 = vpack.c.b16 %v4086, %v4084
      %v4111 = vpack.c.b16 %v4087, %v4085
      %v4112 = vpack.c.b16 %v4090, %v4088
      %v4113 = vpack.c.b16 %v4091, %v4089
      %v4114 = vpack.c.b16 %v4094, %v4092
      %v4115 = vpack.c.b16 %v4095, %v4093
      %v4116 = vpack.c.b16 %v4098, %v4096
      %v4117 = vpack.c.b16 %v4099, %v4097
      %v4118 = vpack.c.b16 %v4102, %v4100
      %v4119 = vpack.c.b16 %v4103, %v4101
      %4136 = vmatprep.subr.bf16.mxu0 %v4105
      %4137 = vmatpush1.bf16.msra.mxu0 %v4104
      %4138 = vmatprep.subr.bf16.mxu0 %v4107
      %4139 = vmatpush1.bf16.msra.mxu0 %v4106
      %4140 = vmatprep.subr.bf16.mxu0 %v4109
      %4141 = vmatpush1.bf16.msra.mxu0 %v4108
      %4142 = vmatprep.subr.bf16.mxu0 %v4111
      %4143 = vmatpush1.bf16.msra.mxu0 %v4110
      %4144 = vmatprep.subr.bf16.mxu0 %v4113
      %4145 = vmatpush1.bf16.msra.mxu0 %v4112
      %4146 = vmatprep.subr.bf16.mxu0 %v4115
      %4147 = vmatpush1.bf16.msra.mxu0 %v4114
      %4148 = vmatprep.subr.bf16.mxu0 %v4117
      %4149 = vmatpush1.bf16.msra.mxu0 %v4116
      %4150 = vmatprep.subr.bf16.mxu0 %v4119
      %4151 = vmatpush1.bf16.msra.mxu0 %v4118
      %4152 = vmatprep.subr.bf16.mxu0 0
      %4153 = vmatpush1.bf16.msra.mxu0 0
      %4154 = vmatprep.subr.bf16.mxu0 0
      %4155 = vmatpush1.bf16.msra.mxu0 0
      %4156 = vmatprep.subr.bf16.mxu0 0
      %4157 = vmatpush1.bf16.msra.mxu0 0
      %4158 = vmatprep.subr.bf16.mxu0 0
      %4159 = vmatpush1.bf16.msra.mxu0 0
      %4160 = vmatprep.subr.bf16.mxu0 0
      %4161 = vmatpush1.bf16.msra.mxu0 0
      %4162 = vmatprep.subr.bf16.mxu0 0
      %4163 = vmatpush1.bf16.msra.mxu0 0
      %4164 = vmatprep.subr.bf16.mxu0 0
      %4165 = vmatpush1.bf16.msra.mxu0 0
      %4166 = vmatprep.subr.bf16.mxu0 0
      %4167 = vmatpush1.bf16.msra.mxu0 0
      %4168 = vmatprep.mubr.bf16.mxu0 0
      %4169 = vmatmul.mubr.bf16.gmra.mrb[0].mxu0 %v4038
      %v4170 = vpop.f32.mrb[0].mxu0
      %v4171 = vadd.f32 0.0, %v4170
      %v4172 = vpop.f32.mrb[0].mxu0
      %v4173 = vadd.f32 0.0, %v4172
      %v4174 = vpop.f32.mrb[0].mxu0
      %v4175 = vadd.f32 0.0, %v4174
      %v4176 = vpop.f32.mrb[0].mxu0
      %v4177 = vadd.f32 0.0, %v4176
      %4178 = vdwg.mxu0
      %v4179 = vadd.f32 %v4030, %v4171
      %v4180 = vadd.f32 %v4031, %v4173
      %v4181 = vadd.f32 %v4032, %v4175
      %v4182 = vadd.f32 %v4033, %v4177
      %v4183 = vld [vmem:[#allocation3 + $0xc] sm:$0xff]
      %v4184 = vld [vmem:[#allocation3 + $0x14] sm:$0xff]
      %v4185 = vpack.c.bf16 %v4184, %v4183
      %s4186 = scalar_lea.vmem %s7, 896
      %v4187 = vld [vmem:[%s4186] sm:$0xff]
      %v4188 = vld [vmem:[%s4186 + $0x8] sm:$0xff]
      %v4189 = vld [vmem:[%s4186 + $0x10] sm:$0xff]
      %v4190 = vld [vmem:[%s4186 + $0x18] sm:$0xff]
      %v4191 = vld [vmem:[%s4186 + $0x20] sm:$0xff]
      %v4192 = vld [vmem:[%s4186 + $0x28] sm:$0xff]
      %v4193 = vld [vmem:[%s4186 + $0x30] sm:$0xff]
      %v4194 = vld [vmem:[%s4186 + $0x38] sm:$0xff]
      %v4195 = vld [vmem:[%s4186 + $0x40] sm:$0xff]
      %v4196 = vld [vmem:[%s4186 + $0x48] sm:$0xff]
      %v4197 = vld [vmem:[%s4186 + $0x50] sm:$0xff]
      %v4198 = vld [vmem:[%s4186 + $0x58] sm:$0xff]
      %v4199 = vld [vmem:[%s4186 + $0x60] sm:$0xff]
      %v4200 = vld [vmem:[%s4186 + $0x68] sm:$0xff]
      %v4201 = vld [vmem:[%s4186 + $0x70] sm:$0xff]
      %v4202 = vld [vmem:[%s4186 + $0x78] sm:$0xff]
      %v4219 = vunpack.c.l.b16 %v4187
      %v4220 = vunpack.c.h.b16 %v4187
      %v4221 = vunpack.c.l.b16 %v4188
      %v4222 = vunpack.c.h.b16 %v4188
      %v4223 = vunpack.c.l.b16 %v4189
      %v4224 = vunpack.c.h.b16 %v4189
      %v4225 = vunpack.c.l.b16 %v4190
      %v4226 = vunpack.c.h.b16 %v4190
      %v4227 = vunpack.c.l.b16 %v4191
      %v4228 = vunpack.c.h.b16 %v4191
      %v4229 = vunpack.c.l.b16 %v4192
      %v4230 = vunpack.c.h.b16 %v4192
      %v4231 = vunpack.c.l.b16 %v4193
      %v4232 = vunpack.c.h.b16 %v4193
      %v4233 = vunpack.c.l.b16 %v4194
      %v4234 = vunpack.c.h.b16 %v4194
      %v4235 = vunpack.c.l.b16 %v4195
      %v4236 = vunpack.c.h.b16 %v4195
      %v4237 = vunpack.c.l.b16 %v4196
      %v4238 = vunpack.c.h.b16 %v4196
      %v4239 = vunpack.c.l.b16 %v4197
      %v4240 = vunpack.c.h.b16 %v4197
      %v4241 = vunpack.c.l.b16 %v4198
      %v4242 = vunpack.c.h.b16 %v4198
      %v4243 = vunpack.c.l.b16 %v4199
      %v4244 = vunpack.c.h.b16 %v4199
      %v4245 = vunpack.c.l.b16 %v4200
      %v4246 = vunpack.c.h.b16 %v4200
      %v4247 = vunpack.c.l.b16 %v4201
      %v4248 = vunpack.c.h.b16 %v4201
      %v4249 = vunpack.c.l.b16 %v4202
      %v4250 = vunpack.c.h.b16 %v4202
      %v4251 = vpack.c.b16 %v4221, %v4219
      %v4252 = vpack.c.b16 %v4222, %v4220
      %v4253 = vpack.c.b16 %v4225, %v4223
      %v4254 = vpack.c.b16 %v4226, %v4224
      %v4255 = vpack.c.b16 %v4229, %v4227
      %v4256 = vpack.c.b16 %v4230, %v4228
      %v4257 = vpack.c.b16 %v4233, %v4231
      %v4258 = vpack.c.b16 %v4234, %v4232
      %v4259 = vpack.c.b16 %v4237, %v4235
      %v4260 = vpack.c.b16 %v4238, %v4236
      %v4261 = vpack.c.b16 %v4241, %v4239
      %v4262 = vpack.c.b16 %v4242, %v4240
      %v4263 = vpack.c.b16 %v4245, %v4243
      %v4264 = vpack.c.b16 %v4246, %v4244
      %v4265 = vpack.c.b16 %v4249, %v4247
      %v4266 = vpack.c.b16 %v4250, %v4248
      %4283 = vmatprep.subr.bf16.mxu0 %v4252
      %4284 = vmatpush1.bf16.msra.mxu0 %v4251
      %4285 = vmatprep.subr.bf16.mxu0 %v4254
      %4286 = vmatpush1.bf16.msra.mxu0 %v4253
      %4287 = vmatprep.subr.bf16.mxu0 %v4256
      %4288 = vmatpush1.bf16.msra.mxu0 %v4255
      %4289 = vmatprep.subr.bf16.mxu0 %v4258
      %4290 = vmatpush1.bf16.msra.mxu0 %v4257
      %4291 = vmatprep.subr.bf16.mxu0 %v4260
      %4292 = vmatpush1.bf16.msra.mxu0 %v4259
      %4293 = vmatprep.subr.bf16.mxu0 %v4262
      %4294 = vmatpush1.bf16.msra.mxu0 %v4261
      %4295 = vmatprep.subr.bf16.mxu0 %v4264
      %4296 = vmatpush1.bf16.msra.mxu0 %v4263
      %4297 = vmatprep.subr.bf16.mxu0 %v4266
      %4298 = vmatpush1.bf16.msra.mxu0 %v4265
      %4299 = vmatprep.subr.bf16.mxu0 0
      %4300 = vmatpush1.bf16.msra.mxu0 0
      %4301 = vmatprep.subr.bf16.mxu0 0
      %4302 = vmatpush1.bf16.msra.mxu0 0
      %4303 = vmatprep.subr.bf16.mxu0 0
      %4304 = vmatpush1.bf16.msra.mxu0 0
      %4305 = vmatprep.subr.bf16.mxu0 0
      %4306 = vmatpush1.bf16.msra.mxu0 0
      %4307 = vmatprep.subr.bf16.mxu0 0
      %4308 = vmatpush1.bf16.msra.mxu0 0
      %4309 = vmatprep.subr.bf16.mxu0 0
      %4310 = vmatpush1.bf16.msra.mxu0 0
      %4311 = vmatprep.subr.bf16.mxu0 0
      %4312 = vmatpush1.bf16.msra.mxu0 0
      %4313 = vmatprep.subr.bf16.mxu0 0
      %4314 = vmatpush1.bf16.msra.mxu0 0
      %4315 = vmatprep.mubr.bf16.mxu0 0
      %4316 = vmatmul.mubr.bf16.gmra.mrb[0].mxu0 %v4185
      %v4317 = vpop.f32.mrb[0].mxu0
      %v4318 = vadd.f32 0.0, %v4317
      %v4319 = vpop.f32.mrb[0].mxu0
      %v4320 = vadd.f32 0.0, %v4319
      %v4321 = vpop.f32.mrb[0].mxu0
      %v4322 = vadd.f32 0.0, %v4321
      %v4323 = vpop.f32.mrb[0].mxu0
      %v4324 = vadd.f32 0.0, %v4323
      %4325 = vdwg.mxu0
      %v4326 = vadd.f32 %v4179, %v4318
      %v4327 = vadd.f32 %v4180, %v4320
      %v4328 = vadd.f32 %v4181, %v4322
      %v4329 = vadd.f32 %v4182, %v4324
      %v4330 = vld [vmem:[#allocation3 + $0xd] sm:$0xff]
      %v4331 = vld [vmem:[#allocation3 + $0x15] sm:$0xff]
      %v4332 = vsel %vm3440, %v4330, 0.0
      %v4333 = vsel %vm3441, %v4331, 0.0
      %v4334 = vpack.c.bf16 %v4333, %v4332
      %s4335 = scalar_lea.vmem %s7, 1024
      %v4336 = vld [vmem:[%s4335] sm:$0xff]
      %v4337 = vld [vmem:[%s4335 + $0x8] sm:$0xff]
      %v4338 = vld [vmem:[%s4335 + $0x10] sm:$0xff]
      %v4339 = vld [vmem:[%s4335 + $0x18] sm:$0xff]
      %v4340 = vld [vmem:[%s4335 + $0x20] sm:$0xff]
      %v4341 = vld [vmem:[%s4335 + $0x28] sm:$0xff]
      %v4342 = vld [vmem:[%s4335 + $0x30] sm:$0xff]
      %v4343 = vld [vmem:[%s4335 + $0x38] sm:$0xff]
      %v4344 = vld [vmem:[%s4335 + $0x40] sm:$0xff]
      %v4345 = vld [vmem:[%s4335 + $0x48] sm:$0xff]
      %v4346 = vld [vmem:[%s4335 + $0x50] sm:$0xff]
      %v4347 = vld [vmem:[%s4335 + $0x58] sm:$0xff]
      %v4348 = vld [vmem:[%s4335 + $0x60] sm:$0xff]
      %v4349 = vld [vmem:[%s4335 + $0x68] sm:$0xff]
      %v4350 = vld [vmem:[%s4335 + $0x70] sm:$0xff]
      %v4351 = vld [vmem:[%s4335 + $0x78] sm:$0xff]
      %v4368 = vunpack.c.l.b16 %v4336
      %v4369 = vunpack.c.h.b16 %v4336
      %v4370 = vunpack.c.l.b16 %v4337
      %v4371 = vunpack.c.h.b16 %v4337
      %v4372 = vunpack.c.l.b16 %v4338
      %v4373 = vunpack.c.h.b16 %v4338
      %v4374 = vunpack.c.l.b16 %v4339
      %v4375 = vunpack.c.h.b16 %v4339
      %v4376 = vunpack.c.l.b16 %v4340
      %v4377 = vunpack.c.h.b16 %v4340
      %v4378 = vunpack.c.l.b16 %v4341
      %v4379 = vunpack.c.h.b16 %v4341
      %v4380 = vunpack.c.l.b16 %v4342
      %v4381 = vunpack.c.h.b16 %v4342
      %v4382 = vunpack.c.l.b16 %v4343
      %v4383 = vunpack.c.h.b16 %v4343
      %v4384 = vunpack.c.l.b16 %v4344
      %v4385 = vunpack.c.h.b16 %v4344
      %v4386 = vunpack.c.l.b16 %v4345
      %v4387 = vunpack.c.h.b16 %v4345
      %v4388 = vunpack.c.l.b16 %v4346
      %v4389 = vunpack.c.h.b16 %v4346
      %v4390 = vunpack.c.l.b16 %v4347
      %v4391 = vunpack.c.h.b16 %v4347
      %v4392 = vunpack.c.l.b16 %v4348
      %v4393 = vunpack.c.h.b16 %v4348
      %v4394 = vunpack.c.l.b16 %v4349
      %v4395 = vunpack.c.h.b16 %v4349
      %v4396 = vunpack.c.l.b16 %v4350
      %v4397 = vunpack.c.h.b16 %v4350
      %v4398 = vunpack.c.l.b16 %v4351
      %v4399 = vunpack.c.h.b16 %v4351
      %v4400 = vpack.c.b16 %v4370, %v4368
      %v4401 = vpack.c.b16 %v4371, %v4369
      %v4402 = vpack.c.b16 %v4374, %v4372
      %v4403 = vpack.c.b16 %v4375, %v4373
      %v4404 = vpack.c.b16 %v4378, %v4376
      %v4405 = vpack.c.b16 %v4379, %v4377
      %v4406 = vpack.c.b16 %v4382, %v4380
      %v4407 = vpack.c.b16 %v4383, %v4381
      %v4408 = vpack.c.b16 %v4386, %v4384
      %v4409 = vpack.c.b16 %v4387, %v4385
      %v4410 = vpack.c.b16 %v4390, %v4388
      %v4411 = vpack.c.b16 %v4391, %v4389
      %v4412 = vpack.c.b16 %v4394, %v4392
      %v4413 = vpack.c.b16 %v4395, %v4393
      %v4414 = vpack.c.b16 %v4398, %v4396
      %v4415 = vpack.c.b16 %v4399, %v4397
      %4432 = vmatprep.subr.bf16.mxu0 %v4401
      %4433 = vmatpush1.bf16.msra.mxu0 %v4400
      %4434 = vmatprep.subr.bf16.mxu0 %v4403
      %4435 = vmatpush1.bf16.msra.mxu0 %v4402
      %4436 = vmatprep.subr.bf16.mxu0 %v4405
      %4437 = vmatpush1.bf16.msra.mxu0 %v4404
      %4438 = vmatprep.subr.bf16.mxu0 %v4407
      %4439 = vmatpush1.bf16.msra.mxu0 %v4406
      %4440 = vmatprep.subr.bf16.mxu0 %v4409
      %4441 = vmatpush1.bf16.msra.mxu0 %v4408
      %4442 = vmatprep.subr.bf16.mxu0 %v4411
      %4443 = vmatpush1.bf16.msra.mxu0 %v4410
      %4444 = vmatprep.subr.bf16.mxu0 %v4413
      %4445 = vmatpush1.bf16.msra.mxu0 %v4412
      %4446 = vmatprep.subr.bf16.mxu0 %v4415
      %4447 = vmatpush1.bf16.msra.mxu0 %v4414
      %4448 = vmatprep.subr.bf16.mxu0 0
      %4449 = vmatpush1.bf16.msra.mxu0 0
      %4450 = vmatprep.subr.bf16.mxu0 0
      %4451 = vmatpush1.bf16.msra.mxu0 0
      %4452 = vmatprep.subr.bf16.mxu0 0
      %4453 = vmatpush1.bf16.msra.mxu0 0
      %4454 = vmatprep.subr.bf16.mxu0 0
      %4455 = vmatpush1.bf16.msra.mxu0 0
      %4456 = vmatprep.subr.bf16.mxu0 0
      %4457 = vmatpush1.bf16.msra.mxu0 0
      %4458 = vmatprep.subr.bf16.mxu0 0
      %4459 = vmatpush1.bf16.msra.mxu0 0
      %4460 = vmatprep.subr.bf16.mxu0 0
      %4461 = vmatpush1.bf16.msra.mxu0 0
      %4462 = vmatprep.subr.bf16.mxu0 0
      %4463 = vmatpush1.bf16.msra.mxu0 0
      %4464 = vmatprep.mubr.bf16.mxu0 0
      %4465 = vmatmul.mubr.bf16.gmra.mrb[0].mxu0 %v4334
      %v4466 = vpop.f32.mrb[0].mxu0
      %v4467 = vadd.f32 0.0, %v4466
      %v4468 = vpop.f32.mrb[0].mxu0
      %v4469 = vadd.f32 0.0, %v4468
      %v4470 = vpop.f32.mrb[0].mxu0
      %v4471 = vadd.f32 0.0, %v4470
      %v4472 = vpop.f32.mrb[0].mxu0
      %v4473 = vadd.f32 0.0, %v4472
      %4474 = vdwg.mxu0
      %v4475 = vadd.f32 %v4326, %v4467
      %v4476 = vadd.f32 %v4327, %v4469
      %v4477 = vadd.f32 %v4328, %v4471
      %v4478 = vadd.f32 %v4329, %v4473
      %v4479 = vld [vmem:[%s8] sm:$0x3]
      %v4481 = vlaneseq
      %v4482 = vshrl.u32 %v4481, 7
      %v4483 = vsub.s32 0, %v4482
      %v4484 = vrot.slane %v4479, %v4483
      %v4485 = vlaneseq
      %v4486 = vshrl.u32 %v4485, 7
      %v4487 = vsub.s32 1, %v4486
      %v4488 = vrot.slane %v4479, %v4487
      %v4491 = vmul.f32 %v4475, %v4484
      %v4492 = vmul.f32 %v4476, %v4488
      %v4493 = vmul.f32 %v4477, %v4484
      %v4494 = vmul.f32 %v4478, %v4488
      %v4495 = vld [vmem:[%s9] sm:$0x3]
      %v4497 = vlaneseq
      %v4498 = vshrl.u32 %v4497, 7
      %v4499 = vsub.s32 0, %v4498
      %v4500 = vrot.slane %v4495, %v4499
      %v4501 = vlaneseq
      %v4502 = vshrl.u32 %v4501, 7
      %v4503 = vsub.s32 1, %v4502
      %v4504 = vrot.slane %v4495, %v4503
      %v4507 = vadd.f32 %v4491, %v4500
      %v4508 = vadd.f32 %v4492, %v4504
      %v4509 = vadd.f32 %v4493, %v4500
      %v4510 = vadd.f32 %v4494, %v4504
      %v4511 = vmax.f32 %v4507, 0.0
      %v4512 = vmax.f32 %v4508, 0.0
      %v4513 = vmax.f32 %v4509, 0.0
      %v4514 = vmax.f32 %v4510, 0.0
      %v4515 = vpack.c.bf16 %v4513, %v4511
      %v4516 = vpack.c.bf16 %v4514, %v4512
      %v4517 = vld [vmem:[%s10] sm:$0xf]
      %v4518 = vld [vmem:[%s10 + $0x4] sm:$0xf]
      %v4519 = vld [vmem:[%s10 + $0x8] sm:$0xf]
      %v4520 = vld [vmem:[%s10 + $0xc] sm:$0xf]
      %v4521 = vld [vmem:[%s10 + $0x10] sm:$0xf]
      %v4522 = vld [vmem:[%s10 + $0x14] sm:$0xf]
      %v4523 = vld [vmem:[%s10 + $0x18] sm:$0xf]
      %v4524 = vld [vmem:[%s10 + $0x1c] sm:$0xf]
      %v4525 = vld [vmem:[%s10 + $0x20] sm:$0xf]
      %v4526 = vld [vmem:[%s10 + $0x24] sm:$0xf]
      %v4527 = vld [vmem:[%s10 + $0x28] sm:$0xf]
      %v4528 = vld [vmem:[%s10 + $0x2c] sm:$0xf]
      %v4529 = vld [vmem:[%s10 + $0x30] sm:$0xf]
      %v4530 = vld [vmem:[%s10 + $0x34] sm:$0xf]
      %v4531 = vld [vmem:[%s10 + $0x38] sm:$0xf]
      %v4532 = vld [vmem:[%s10 + $0x3c] sm:$0xf]
      %v4533 = vld [vmem:[%s10 + $0x40] sm:$0xf]
      %v4534 = vld [vmem:[%s10 + $0x44] sm:$0xf]
      %v4535 = vld [vmem:[%s10 + $0x48] sm:$0xf]
      %v4536 = vld [vmem:[%s10 + $0x4c] sm:$0xf]
      %v4537 = vld [vmem:[%s10 + $0x50] sm:$0xf]
      %v4538 = vld [vmem:[%s10 + $0x54] sm:$0xf]
      %v4539 = vld [vmem:[%s10 + $0x58] sm:$0xf]
      %v4540 = vld [vmem:[%s10 + $0x5c] sm:$0xf]
      %v4541 = vld [vmem:[%s10 + $0x60] sm:$0xf]
      %v4542 = vld [vmem:[%s10 + $0x64] sm:$0xf]
      %v4543 = vld [vmem:[%s10 + $0x68] sm:$0xf]
      %v4544 = vld [vmem:[%s10 + $0x6c] sm:$0xf]
      %v4545 = vld [vmem:[%s10 + $0x70] sm:$0xf]
      %v4546 = vld [vmem:[%s10 + $0x74] sm:$0xf]
      %v4547 = vld [vmem:[%s10 + $0x78] sm:$0xf]
      %v4548 = vld [vmem:[%s10 + $0x7c] sm:$0xf]
      %v4581 = vunpack.c.l.b16 %v4517
      %v4582 = vunpack.c.l.b16 %v4518
      %v4583 = vunpack.c.l.b16 %v4519
      %v4584 = vunpack.c.l.b16 %v4520
      %v4585 = vunpack.c.l.b16 %v4521
      %v4586 = vunpack.c.l.b16 %v4522
      %v4587 = vunpack.c.l.b16 %v4523
      %v4588 = vunpack.c.l.b16 %v4524
      %v4589 = vunpack.c.l.b16 %v4525
      %v4590 = vunpack.c.l.b16 %v4526
      %v4591 = vunpack.c.l.b16 %v4527
      %v4592 = vunpack.c.l.b16 %v4528
      %v4593 = vunpack.c.l.b16 %v4529
      %v4594 = vunpack.c.l.b16 %v4530
      %v4595 = vunpack.c.l.b16 %v4531
      %v4596 = vunpack.c.l.b16 %v4532
      %v4597 = vunpack.c.l.b16 %v4533
      %v4598 = vunpack.c.l.b16 %v4534
      %v4599 = vunpack.c.l.b16 %v4535
      %v4600 = vunpack.c.l.b16 %v4536
      %v4601 = vunpack.c.l.b16 %v4537
      %v4602 = vunpack.c.l.b16 %v4538
      %v4603 = vunpack.c.l.b16 %v4539
      %v4604 = vunpack.c.l.b16 %v4540
      %v4605 = vunpack.c.l.b16 %v4541
      %v4606 = vunpack.c.l.b16 %v4542
      %v4607 = vunpack.c.l.b16 %v4543
      %v4608 = vunpack.c.l.b16 %v4544
      %v4609 = vunpack.c.l.b16 %v4545
      %v4610 = vunpack.c.l.b16 %v4546
      %v4611 = vunpack.c.l.b16 %v4547
      %v4612 = vunpack.c.l.b16 %v4548
      %v4613 = vpack.c.b16 %v4582, %v4581
      %v4614 = vpack.c.b16 %v4584, %v4583
      %v4615 = vpack.c.b16 %v4586, %v4585
      %v4616 = vpack.c.b16 %v4588, %v4587
      %v4617 = vpack.c.b16 %v4590, %v4589
      %v4618 = vpack.c.b16 %v4592, %v4591
      %v4619 = vpack.c.b16 %v4594, %v4593
      %v4620 = vpack.c.b16 %v4596, %v4595
      %v4621 = vpack.c.b16 %v4598, %v4597
      %v4622 = vpack.c.b16 %v4600, %v4599
      %v4623 = vpack.c.b16 %v4602, %v4601
      %v4624 = vpack.c.b16 %v4604, %v4603
      %v4625 = vpack.c.b16 %v4606, %v4605
      %v4626 = vpack.c.b16 %v4608, %v4607
      %v4627 = vpack.c.b16 %v4610, %v4609
      %v4628 = vpack.c.b16 %v4612, %v4611
      %4645 = vmatprep.subr.bf16.mxu0 0
      %4646 = vmatpush1.bf16.msra.mxu0 %v4613
      %4647 = vmatprep.subr.bf16.mxu0 0
      %4648 = vmatpush1.bf16.msra.mxu0 %v4614
      %4649 = vmatprep.subr.bf16.mxu0 0
      %4650 = vmatpush1.bf16.msra.mxu0 %v4615
      %4651 = vmatprep.subr.bf16.mxu0 0
      %4652 = vmatpush1.bf16.msra.mxu0 %v4616
      %4653 = vmatprep.subr.bf16.mxu0 0
      %4654 = vmatpush1.bf16.msra.mxu0 %v4617
      %4655 = vmatprep.subr.bf16.mxu0 0
      %4656 = vmatpush1.bf16.msra.mxu0 %v4618
      %4657 = vmatprep.subr.bf16.mxu0 0
      %4658 = vmatpush1.bf16.msra.mxu0 %v4619
      %4659 = vmatprep.subr.bf16.mxu0 0
      %4660 = vmatpush1.bf16.msra.mxu0 %v4620
      %4661 = vmatprep.subr.bf16.mxu0 0
      %4662 = vmatpush1.bf16.msra.mxu0 %v4621
      %4663 = vmatprep.subr.bf16.mxu0 0
      %4664 = vmatpush1.bf16.msra.mxu0 %v4622
      %4665 = vmatprep.subr.bf16.mxu0 0
      %4666 = vmatpush1.bf16.msra.mxu0 %v4623
      %4667 = vmatprep.subr.bf16.mxu0 0
      %4668 = vmatpush1.bf16.msra.mxu0 %v4624
      %4669 = vmatprep.subr.bf16.mxu0 0
      %4670 = vmatpush1.bf16.msra.mxu0 %v4625
      %4671 = vmatprep.subr.bf16.mxu0 0
      %4672 = vmatpush1.bf16.msra.mxu0 %v4626
      %4673 = vmatprep.subr.bf16.mxu0 0
      %4674 = vmatpush1.bf16.msra.mxu0 %v4627
      %4675 = vmatprep.subr.bf16.mxu0 0
      %4676 = vmatpush1.bf16.msra.mxu0 %v4628
      %4677 = vmatprep.mubr.bf16.mxu0 %v4516
      %4678 = vmatmul.mubr.bf16.gmra.mrb[0].mxu0 %v4515
      %v4679 = vpop.f32.mrb[0].mxu0
      %v4680 = vadd.f32 0.0, %v4679
      %v4681 = vpop.f32.mrb[0].mxu0
      %v4682 = vpop.f32.mrb[0].mxu0
      %v4683 = vadd.f32 0.0, %v4682
      %v4684 = vpop.f32.mrb[0].mxu0
      %4685 = vdwg.mxu0
      %v4686 = vld [vmem:[%s18] sm:$0xff]
      %v4687 = vld [vmem:[%s18 + $0x8] sm:$0xff]
      %v4688 = vld [vmem:[%s18 + $0x10] sm:$0xff]
      %v4689 = vld [vmem:[%s18 + $0x18] sm:$0xff]
      %v4690 = vld [vmem:[%s18 + $0x20] sm:$0xff]
      %v4691 = vld [vmem:[%s18 + $0x28] sm:$0xff]
      %v4692 = vld [vmem:[%s18 + $0x30] sm:$0xff]
      %v4693 = vld [vmem:[%s18 + $0x38] sm:$0xff]
      %s4694 = scalar_lea.vmem %s10, 128
      %v4695 = vld [vmem:[%s4694] sm:$0xf]
      %v4696 = vld [vmem:[%s4694 + $0x4] sm:$0xf]
      %v4697 = vld [vmem:[%s4694 + $0x8] sm:$0xf]
      %v4698 = vld [vmem:[%s4694 + $0xc] sm:$0xf]
      %v4699 = vld [vmem:[%s4694 + $0x10] sm:$0xf]
      %v4700 = vld [vmem:[%s4694 + $0x14] sm:$0xf]
      %v4701 = vld [vmem:[%s4694 + $0x18] sm:$0xf]
      %v4702 = vld [vmem:[%s4694 + $0x1c] sm:$0xf]
      %v4703 = vld [vmem:[%s4694 + $0x20] sm:$0xf]
      %v4704 = vld [vmem:[%s4694 + $0x24] sm:$0xf]
      %v4705 = vld [vmem:[%s4694 + $0x28] sm:$0xf]
      %v4706 = vld [vmem:[%s4694 + $0x2c] sm:$0xf]
      %v4707 = vld [vmem:[%s4694 + $0x30] sm:$0xf]
      %v4708 = vld [vmem:[%s4694 + $0x34] sm:$0xf]
      %v4709 = vld [vmem:[%s4694 + $0x38] sm:$0xf]
      %v4710 = vld [vmem:[%s4694 + $0x3c] sm:$0xf]
      %v4711 = vld [vmem:[%s4694 + $0x40] sm:$0xf]
      %v4712 = vld [vmem:[%s4694 + $0x44] sm:$0xf]
      %v4713 = vld [vmem:[%s4694 + $0x48] sm:$0xf]
      %v4714 = vld [vmem:[%s4694 + $0x4c] sm:$0xf]
      %v4715 = vld [vmem:[%s4694 + $0x50] sm:$0xf]
      %v4716 = vld [vmem:[%s4694 + $0x54] sm:$0xf]
      %v4717 = vld [vmem:[%s4694 + $0x58] sm:$0xf]
      %v4718 = vld [vmem:[%s4694 + $0x5c] sm:$0xf]
      %v4719 = vld [vmem:[%s4694 + $0x60] sm:$0xf]
      %v4720 = vld [vmem:[%s4694 + $0x64] sm:$0xf]
      %v4721 = vld [vmem:[%s4694 + $0x68] sm:$0xf]
      %v4722 = vld [vmem:[%s4694 + $0x6c] sm:$0xf]
      %v4723 = vld [vmem:[%s4694 + $0x70] sm:$0xf]
      %v4724 = vld [vmem:[%s4694 + $0x74] sm:$0xf]
      %v4725 = vld [vmem:[%s4694 + $0x78] sm:$0xf]
      %v4726 = vld [vmem:[%s4694 + $0x7c] sm:$0xf]
      %v4759 = vunpack.c.l.b16 %v4695
      %v4760 = vunpack.c.l.b16 %v4696
      %v4761 = vunpack.c.l.b16 %v4697
      %v4762 = vunpack.c.l.b16 %v4698
      %v4763 = vunpack.c.l.b16 %v4699
      %v4764 = vunpack.c.l.b16 %v4700
      %v4765 = vunpack.c.l.b16 %v4701
      %v4766 = vunpack.c.l.b16 %v4702
      %v4767 = vunpack.c.l.b16 %v4703
      %v4768 = vunpack.c.l.b16 %v4704
      %v4769 = vunpack.c.l.b16 %v4705
      %v4770 = vunpack.c.l.b16 %v4706
      %v4771 = vunpack.c.l.b16 %v4707
      %v4772 = vunpack.c.l.b16 %v4708
      %v4773 = vunpack.c.l.b16 %v4709
      %v4774 = vunpack.c.l.b16 %v4710
      %v4775 = vunpack.c.l.b16 %v4711
      %v4776 = vunpack.c.l.b16 %v4712
      %v4777 = vunpack.c.l.b16 %v4713
      %v4778 = vunpack.c.l.b16 %v4714
      %v4779 = vunpack.c.l.b16 %v4715
      %v4780 = vunpack.c.l.b16 %v4716
      %v4781 = vunpack.c.l.b16 %v4717
      %v4782 = vunpack.c.l.b16 %v4718
      %v4783 = vunpack.c.l.b16 %v4719
      %v4784 = vunpack.c.l.b16 %v4720
      %v4785 = vunpack.c.l.b16 %v4721
      %v4786 = vunpack.c.l.b16 %v4722
      %v4787 = vunpack.c.l.b16 %v4723
      %v4788 = vunpack.c.l.b16 %v4724
      %v4789 = vunpack.c.l.b16 %v4725
      %v4790 = vunpack.c.l.b16 %v4726
      %v4791 = vpack.c.b16 %v4760, %v4759
      %v4792 = vpack.c.b16 %v4762, %v4761
      %v4793 = vpack.c.b16 %v4764, %v4763
      %v4794 = vpack.c.b16 %v4766, %v4765
      %v4795 = vpack.c.b16 %v4768, %v4767
      %v4796 = vpack.c.b16 %v4770, %v4769
      %v4797 = vpack.c.b16 %v4772, %v4771
      %v4798 = vpack.c.b16 %v4774, %v4773
      %v4799 = vpack.c.b16 %v4776, %v4775
      %v4800 = vpack.c.b16 %v4778, %v4777
      %v4801 = vpack.c.b16 %v4780, %v4779
      %v4802 = vpack.c.b16 %v4782, %v4781
      %v4803 = vpack.c.b16 %v4784, %v4783
      %v4804 = vpack.c.b16 %v4786, %v4785
      %v4805 = vpack.c.b16 %v4788, %v4787
      %v4806 = vpack.c.b16 %v4790, %v4789
      %4823 = vmatprep.subr.bf16.mxu0 0
      %4824 = vmatpush1.bf16.msra.mxu0 %v4791
      %4825 = vmatprep.subr.bf16.mxu0 0
      %4826 = vmatpush1.bf16.msra.mxu0 %v4792
      %4827 = vmatprep.subr.bf16.mxu0 0
      %4828 = vmatpush1.bf16.msra.mxu0 %v4793
      %4829 = vmatprep.subr.bf16.mxu0 0
      %4830 = vmatpush1.bf16.msra.mxu0 %v4794
      %4831 = vmatprep.subr.bf16.mxu0 0
      %4832 = vmatpush1.bf16.msra.mxu0 %v4795
      %4833 = vmatprep.subr.bf16.mxu0 0
      %4834 = vmatpush1.bf16.msra.mxu0 %v4796
      %4835 = vmatprep.subr.bf16.mxu0 0
      %4836 = vmatpush1.bf16.msra.mxu0 %v4797
      %4837 = vmatprep.subr.bf16.mxu0 0
      %4838 = vmatpush1.bf16.msra.mxu0 %v4798
      %4839 = vmatprep.subr.bf16.mxu0 0
      %4840 = vmatpush1.bf16.msra.mxu0 %v4799
      %4841 = vmatprep.subr.bf16.mxu0 0
      %4842 = vmatpush1.bf16.msra.mxu0 %v4800
      %4843 = vmatprep.subr.bf16.mxu0 0
      %4844 = vmatpush1.bf16.msra.mxu0 %v4801
      %4845 = vmatprep.subr.bf16.mxu0 0
      %4846 = vmatpush1.bf16.msra.mxu0 %v4802
      %4847 = vmatprep.subr.bf16.mxu0 0
      %4848 = vmatpush1.bf16.msra.mxu0 %v4803
      %4849 = vmatprep.subr.bf16.mxu0 0
      %4850 = vmatpush1.bf16.msra.mxu0 %v4804
      %4851 = vmatprep.subr.bf16.mxu0 0
      %4852 = vmatpush1.bf16.msra.mxu0 %v4805
      %4853 = vmatprep.subr.bf16.mxu0 0
      %4854 = vmatpush1.bf16.msra.mxu0 %v4806
      %4855 = vmatprep.mubr.bf16.mxu0 %v4516
      %4856 = vmatmul.mubr.bf16.gmra.mrb[0].mxu0 %v4515
      %v4857 = vpop.f32.mrb[0].mxu0
      %v4858 = vadd.f32 0.0, %v4857
      %v4859 = vpop.f32.mrb[0].mxu0
      %v4860 = vpop.f32.mrb[0].mxu0
      %v4861 = vadd.f32 0.0, %v4860
      %v4862 = vpop.f32.mrb[0].mxu0
      %4863 = vdwg.mxu0
      %s4864 = scalar_lea.vmem %s18, 64
      %v4865 = vld [vmem:[%s4864] sm:$0xff]
      %v4866 = vld [vmem:[%s4864 + $0x8] sm:$0xff]
      %v4867 = vld [vmem:[%s4864 + $0x10] sm:$0xff]
      %v4868 = vld [vmem:[%s4864 + $0x18] sm:$0xff]
      %v4869 = vld [vmem:[%s4864 + $0x20] sm:$0xff]
      %v4870 = vld [vmem:[%s4864 + $0x28] sm:$0xff]
      %v4871 = vld [vmem:[%s4864 + $0x30] sm:$0xff]
      %v4872 = vld [vmem:[%s4864 + $0x38] sm:$0xff]
      %vm4873 = vcmask 130048
      %v4875 = vsel %vm4873, %v4865, 0
      %v4878 = vsel %vm4873, %v4866, 0
      %v4881 = vsel %vm4873, %v4867, 0
      %v4884 = vsel %vm4873, %v4868, 0
      %v4887 = vsel %vm4873, %v4869, 0
      %v4890 = vsel %vm4873, %v4870, 0
      %v4893 = vsel %vm4873, %v4871, 0
      %v4896 = vsel %vm4873, %v4872, 0
      %4898 = vmatprep.subr.mxu0 0.0
      %4899 = vmatpush1.msra.mxu0 %v4858
      %4900 = vmatprep.subr.mxu0 0.0
      %4901 = vmatpush1.msra.mxu0 %v4861
      %4902 = vmatprep.subr.mxu0 0.0
      %4903 = vmatpush1.msra.mxu0 0.0
      %4904 = vmatprep.subr.mxu0 0.0
      %4905 = vmatpush1.msra.mxu0 0.0
      %4906 = vmatprep.subr.mxu0 0.0
      %4907 = vmatpush1.msra.mxu0 0.0
      %4908 = vmatprep.subr.mxu0 0.0
      %4909 = vmatpush1.msra.mxu0 0.0
      %4910 = vmatprep.subr.mxu0 0.0
      %4911 = vmatpush1.msra.mxu0 0.0
      %4912 = vmatprep.subr.mxu0 0.0
      %4913 = vmatpush1.msra.mxu0 0.0
      %4914 = vmatprep.subr.mxu0 0.0
      %4915 = vmatpush1.msra.mxu0 0.0
      %4916 = vmatprep.subr.mxu0 0.0
      %4917 = vmatpush1.msra.mxu0 0.0
      %4918 = vmatprep.subr.mxu0 0.0
      %4919 = vmatpush1.msra.mxu0 0.0
      %4920 = vmatprep.subr.mxu0 0.0
      %4921 = vmatpush1.msra.mxu0 0.0
      %4922 = vmatprep.subr.mxu0 0.0
      %4923 = vmatpush1.msra.mxu0 0.0
      %4924 = vmatprep.subr.mxu0 0.0
      %4925 = vmatpush1.msra.mxu0 0.0
      %4926 = vmatprep.subr.mxu0 0.0
      %4927 = vmatpush1.msra.mxu0 0.0
      %4928 = vmatprep.subr.mxu0 0.0
      %4929 = vmatpush1.msra.mxu0 0.0
      %4930 = vmatprep.subr.mxu0 0.0
      %4931 = vmatpush1.msra.mxu0 0.0
      %4932 = vmatprep.subr.mxu0 0.0
      %4933 = vmatpush1.msra.mxu0 0.0
      %4934 = vmatprep.subr.mxu0 0.0
      %4935 = vmatpush1.msra.mxu0 0.0
      %4936 = vmatprep.subr.mxu0 0.0
      %4937 = vmatpush1.msra.mxu0 0.0
      %4938 = vmatprep.subr.mxu0 0.0
      %4939 = vmatpush1.msra.mxu0 0.0
      %4940 = vmatprep.subr.mxu0 0.0
      %4941 = vmatpush1.msra.mxu0 0.0
      %4942 = vmatprep.subr.mxu0 0.0
      %4943 = vmatpush1.msra.mxu0 0.0
      %4944 = vmatprep.subr.mxu0 0.0
      %4945 = vmatpush1.msra.mxu0 0.0
      %4946 = vmatprep.subr.mxu0 0.0
      %4947 = vmatpush1.msra.mxu0 0.0
      %4948 = vmatprep.subr.mxu0 0.0
      %4949 = vmatpush1.msra.mxu0 0.0
      %4950 = vmatprep.subr.mxu0 0.0
      %4951 = vmatpush1.msra.mxu0 0.0
      %4952 = vmatprep.subr.mxu0 0.0
      %4953 = vmatpush1.msra.mxu0 0.0
      %4954 = vmatprep.subr.mxu0 0.0
      %4955 = vmatpush1.msra.mxu0 0.0
      %4956 = vmatprep.subr.mxu0 0.0
      %4957 = vmatpush1.msra.mxu0 0.0
      %4958 = vmatprep.subr.mxu0 0.0
      %4959 = vmatpush1.msra.mxu0 0.0
      %4960 = vmatprep.subr.mxu0 0.0
      %4961 = vmatpush1.msra.mxu0 0.0
      %4962 = vmatprep.mubr.f32.mxu0 0.0
      %4963 = vmatmul.mubr.f32.gmra.mrb[0].mxu0 %v4875
      %v4964 = vpop.f32.mrb[0].mxu0
      %v4965 = vadd.f32 0.0, %v4964
      %v4966 = vpop.f32.mrb[0].mxu0
      %4967 = vmatprep.mubr.f32.mxu0 0.0
      %4968 = vmatmul.mubr.f32.gmra.mrb[0].mxu0 %v4878
      %v4969 = vpop.f32.mrb[0].mxu0
      %v4970 = vadd.f32 0.0, %v4969
      %v4971 = vpop.f32.mrb[0].mxu0
      %4972 = vmatprep.mubr.f32.mxu0 0.0
      %4973 = vmatmul.mubr.f32.gmra.mrb[0].mxu0 %v4881
      %v4974 = vpop.f32.mrb[0].mxu0
      %v4975 = vadd.f32 0.0, %v4974
      %v4976 = vpop.f32.mrb[0].mxu0
      %4977 = vmatprep.mubr.f32.mxu0 0.0
      %4978 = vmatmul.mubr.f32.gmra.mrb[0].mxu0 %v4884
      %v4979 = vpop.f32.mrb[0].mxu0
      %v4980 = vadd.f32 0.0, %v4979
      %v4981 = vpop.f32.mrb[0].mxu0
      %4982 = vmatprep.mubr.f32.mxu0 0.0
      %4983 = vmatmul.mubr.f32.gmra.mrb[0].mxu0 %v4887
      %v4984 = vpop.f32.mrb[0].mxu0
      %v4985 = vadd.f32 0.0, %v4984
      %v4986 = vpop.f32.mrb[0].mxu0
      %4987 = vmatprep.mubr.f32.mxu0 0.0
      %4988 = vmatmul.mubr.f32.gmra.mrb[0].mxu0 %v4890
      %v4989 = vpop.f32.mrb[0].mxu0
      %v4990 = vadd.f32 0.0, %v4989
      %v4991 = vpop.f32.mrb[0].mxu0
      %4992 = vmatprep.mubr.f32.mxu0 0.0
      %4993 = vmatmul.mubr.f32.gmra.mrb[0].mxu0 %v4893
      %v4994 = vpop.f32.mrb[0].mxu0
      %v4995 = vadd.f32 0.0, %v4994
      %v4996 = vpop.f32.mrb[0].mxu0
      %4997 = vmatprep.mubr.f32.mxu0 0.0
      %4998 = vmatmul.mubr.f32.gmra.mrb[0].mxu0 %v4896
      %v4999 = vpop.f32.mrb[0].mxu0
      %v5000 = vadd.f32 0.0, %v4999
      %v5001 = vpop.f32.mrb[0].mxu0
      %5002 = vdwg.mxu0
      %v5004 = vsel %vm4873, %v4686, 0
      %v5007 = vsel %vm4873, %v4687, 0
      %v5010 = vsel %vm4873, %v4688, 0
      %v5013 = vsel %vm4873, %v4689, 0
      %v5016 = vsel %vm4873, %v4690, 0
      %v5019 = vsel %vm4873, %v4691, 0
      %v5022 = vsel %vm4873, %v4692, 0
      %v5025 = vsel %vm4873, %v4693, 0
      %5027 = vmatprep.subr.mxu0 0.0
      %5028 = vmatpush1.msra.mxu0 %v4680
      %5029 = vmatprep.subr.mxu0 0.0
      %5030 = vmatpush1.msra.mxu0 %v4683
      %5031 = vmatprep.subr.mxu0 0.0
      %5032 = vmatpush1.msra.mxu0 0.0
      %5033 = vmatprep.subr.mxu0 0.0
      %5034 = vmatpush1.msra.mxu0 0.0
      %5035 = vmatprep.subr.mxu0 0.0
      %5036 = vmatpush1.msra.mxu0 0.0
      %5037 = vmatprep.subr.mxu0 0.0
      %5038 = vmatpush1.msra.mxu0 0.0
      %5039 = vmatprep.subr.mxu0 0.0
      %5040 = vmatpush1.msra.mxu0 0.0
      %5041 = vmatprep.subr.mxu0 0.0
      %5042 = vmatpush1.msra.mxu0 0.0
      %5043 = vmatprep.subr.mxu0 0.0
      %5044 = vmatpush1.msra.mxu0 0.0
      %5045 = vmatprep.subr.mxu0 0.0
      %5046 = vmatpush1.msra.mxu0 0.0
      %5047 = vmatprep.subr.mxu0 0.0
      %5048 = vmatpush1.msra.mxu0 0.0
      %5049 = vmatprep.subr.mxu0 0.0
      %5050 = vmatpush1.msra.mxu0 0.0
      %5051 = vmatprep.subr.mxu0 0.0
      %5052 = vmatpush1.msra.mxu0 0.0
      %5053 = vmatprep.subr.mxu0 0.0
      %5054 = vmatpush1.msra.mxu0 0.0
      %5055 = vmatprep.subr.mxu0 0.0
      %5056 = vmatpush1.msra.mxu0 0.0
      %5057 = vmatprep.subr.mxu0 0.0
      %5058 = vmatpush1.msra.mxu0 0.0
      %5059 = vmatprep.subr.mxu0 0.0
      %5060 = vmatpush1.msra.mxu0 0.0
      %5061 = vmatprep.subr.mxu0 0.0
      %5062 = vmatpush1.msra.mxu0 0.0
      %5063 = vmatprep.subr.mxu0 0.0
      %5064 = vmatpush1.msra.mxu0 0.0
      %5065 = vmatprep.subr.mxu0 0.0
      %5066 = vmatpush1.msra.mxu0 0.0
      %5067 = vmatprep.subr.mxu0 0.0
      %5068 = vmatpush1.msra.mxu0 0.0
      %5069 = vmatprep.subr.mxu0 0.0
      %5070 = vmatpush1.msra.mxu0 0.0
      %5071 = vmatprep.subr.mxu0 0.0
      %5072 = vmatpush1.msra.mxu0 0.0
      %5073 = vmatprep.subr.mxu0 0.0
      %5074 = vmatpush1.msra.mxu0 0.0
      %5075 = vmatprep.subr.mxu0 0.0
      %5076 = vmatpush1.msra.mxu0 0.0
      %5077 = vmatprep.subr.mxu0 0.0
      %5078 = vmatpush1.msra.mxu0 0.0
      %5079 = vmatprep.subr.mxu0 0.0
      %5080 = vmatpush1.msra.mxu0 0.0
      %5081 = vmatprep.subr.mxu0 0.0
      %5082 = vmatpush1.msra.mxu0 0.0
      %5083 = vmatprep.subr.mxu0 0.0
      %5084 = vmatpush1.msra.mxu0 0.0
      %5085 = vmatprep.subr.mxu0 0.0
      %5086 = vmatpush1.msra.mxu0 0.0
      %5087 = vmatprep.subr.mxu0 0.0
      %5088 = vmatpush1.msra.mxu0 0.0
      %5089 = vmatprep.subr.mxu0 0.0
      %5090 = vmatpush1.msra.mxu0 0.0
      %5091 = vmatprep.mubr.f32.mxu0 0.0
      %5092 = vmatmul.mubr.f32.gmra.mrb[0].mxu0 %v5004
      %v5093 = vpop.f32.mrb[0].mxu0
      %v5094 = vadd.f32 %v4965, %v5093
      %v5095 = vpop.f32.mrb[0].mxu0
      %5096 = vmatprep.mubr.f32.mxu0 0.0
      %5097 = vmatmul.mubr.f32.gmra.mrb[0].mxu0 %v5007
      %v5098 = vpop.f32.mrb[0].mxu0
      %v5099 = vadd.f32 %v4970, %v5098
      %v5100 = vpop.f32.mrb[0].mxu0
      %5101 = vmatprep.mubr.f32.mxu0 0.0
      %5102 = vmatmul.mubr.f32.gmra.mrb[0].mxu0 %v5010
      %v5103 = vpop.f32.mrb[0].mxu0
      %v5104 = vadd.f32 %v4975, %v5103
      %v5105 = vpop.f32.mrb[0].mxu0
      %5106 = vmatprep.mubr.f32.mxu0 0.0
      %5107 = vmatmul.mubr.f32.gmra.mrb[0].mxu0 %v5013
      %v5108 = vpop.f32.mrb[0].mxu0
      %v5109 = vadd.f32 %v4980, %v5108
      %v5110 = vpop.f32.mrb[0].mxu0
      %5111 = vmatprep.mubr.f32.mxu0 0.0
      %5112 = vmatmul.mubr.f32.gmra.mrb[0].mxu0 %v5016
      %v5113 = vpop.f32.mrb[0].mxu0
      %v5114 = vadd.f32 %v4985, %v5113
      %v5115 = vpop.f32.mrb[0].mxu0
      %5116 = vmatprep.mubr.f32.mxu0 0.0
      %5117 = vmatmul.mubr.f32.gmra.mrb[0].mxu0 %v5019
      %v5118 = vpop.f32.mrb[0].mxu0
      %v5119 = vadd.f32 %v4990, %v5118
      %v5120 = vpop.f32.mrb[0].mxu0
      %5121 = vmatprep.mubr.f32.mxu0 0.0
      %5122 = vmatmul.mubr.f32.gmra.mrb[0].mxu0 %v5022
      %v5123 = vpop.f32.mrb[0].mxu0
      %v5124 = vadd.f32 %v4995, %v5123
      %v5125 = vpop.f32.mrb[0].mxu0
      %5126 = vmatprep.mubr.f32.mxu0 0.0
      %5127 = vmatmul.mubr.f32.gmra.mrb[0].mxu0 %v5025
      %v5128 = vpop.f32.mrb[0].mxu0
      %v5129 = vadd.f32 %v5000, %v5128
      %v5130 = vpop.f32.mrb[0].mxu0
      %5131 = vdwg.mxu0
      %s5132 = scalar_lea.vmem %s10, 256
      %v5133 = vld [vmem:[%s5132] sm:$0xf]
      %v5134 = vld [vmem:[%s5132 + $0x4] sm:$0xf]
      %v5135 = vld [vmem:[%s5132 + $0x8] sm:$0xf]
      %v5136 = vld [vmem:[%s5132 + $0xc] sm:$0xf]
      %v5137 = vld [vmem:[%s5132 + $0x10] sm:$0xf]
      %v5138 = vld [vmem:[%s5132 + $0x14] sm:$0xf]
      %v5139 = vld [vmem:[%s5132 + $0x18] sm:$0xf]
      %v5140 = vld [vmem:[%s5132 + $0x1c] sm:$0xf]
      %v5141 = vld [vmem:[%s5132 + $0x20] sm:$0xf]
      %v5142 = vld [vmem:[%s5132 + $0x24] sm:$0xf]
      %v5143 = vld [vmem:[%s5132 + $0x28] sm:$0xf]
      %v5144 = vld [vmem:[%s5132 + $0x2c] sm:$0xf]
      %v5145 = vld [vmem:[%s5132 + $0x30] sm:$0xf]
      %v5146 = vld [vmem:[%s5132 + $0x34] sm:$0xf]
      %v5147 = vld [vmem:[%s5132 + $0x38] sm:$0xf]
      %v5148 = vld [vmem:[%s5132 + $0x3c] sm:$0xf]
      %v5149 = vld [vmem:[%s5132 + $0x40] sm:$0xf]
      %v5150 = vld [vmem:[%s5132 + $0x44] sm:$0xf]
      %v5151 = vld [vmem:[%s5132 + $0x48] sm:$0xf]
      %v5152 = vld [vmem:[%s5132 + $0x4c] sm:$0xf]
      %v5153 = vld [vmem:[%s5132 + $0x50] sm:$0xf]
      %v5154 = vld [vmem:[%s5132 + $0x54] sm:$0xf]
      %v5155 = vld [vmem:[%s5132 + $0x58] sm:$0xf]
      %v5156 = vld [vmem:[%s5132 + $0x5c] sm:$0xf]
      %v5157 = vld [vmem:[%s5132 + $0x60] sm:$0xf]
      %v5158 = vld [vmem:[%s5132 + $0x64] sm:$0xf]
      %v5159 = vld [vmem:[%s5132 + $0x68] sm:$0xf]
      %v5160 = vld [vmem:[%s5132 + $0x6c] sm:$0xf]
      %v5161 = vld [vmem:[%s5132 + $0x70] sm:$0xf]
      %v5162 = vld [vmem:[%s5132 + $0x74] sm:$0xf]
      %v5163 = vld [vmem:[%s5132 + $0x78] sm:$0xf]
      %v5164 = vld [vmem:[%s5132 + $0x7c] sm:$0xf]
      %v5197 = vunpack.c.l.b16 %v5133
      %v5198 = vunpack.c.l.b16 %v5134
      %v5199 = vunpack.c.l.b16 %v5135
      %v5200 = vunpack.c.l.b16 %v5136
      %v5201 = vunpack.c.l.b16 %v5137
      %v5202 = vunpack.c.l.b16 %v5138
      %v5203 = vunpack.c.l.b16 %v5139
      %v5204 = vunpack.c.l.b16 %v5140
      %v5205 = vunpack.c.l.b16 %v5141
      %v5206 = vunpack.c.l.b16 %v5142
      %v5207 = vunpack.c.l.b16 %v5143
      %v5208 = vunpack.c.l.b16 %v5144
      %v5209 = vunpack.c.l.b16 %v5145
      %v5210 = vunpack.c.l.b16 %v5146
      %v5211 = vunpack.c.l.b16 %v5147
      %v5212 = vunpack.c.l.b16 %v5148
      %v5213 = vunpack.c.l.b16 %v5149
      %v5214 = vunpack.c.l.b16 %v5150
      %v5215 = vunpack.c.l.b16 %v5151
      %v5216 = vunpack.c.l.b16 %v5152
      %v5217 = vunpack.c.l.b16 %v5153
      %v5218 = vunpack.c.l.b16 %v5154
      %v5219 = vunpack.c.l.b16 %v5155
      %v5220 = vunpack.c.l.b16 %v5156
      %v5221 = vunpack.c.l.b16 %v5157
      %v5222 = vunpack.c.l.b16 %v5158
      %v5223 = vunpack.c.l.b16 %v5159
      %v5224 = vunpack.c.l.b16 %v5160
      %v5225 = vunpack.c.l.b16 %v5161
      %v5226 = vunpack.c.l.b16 %v5162
      %v5227 = vunpack.c.l.b16 %v5163
      %v5228 = vunpack.c.l.b16 %v5164
      %v5229 = vpack.c.b16 %v5198, %v5197
      %v5230 = vpack.c.b16 %v5200, %v5199
      %v5231 = vpack.c.b16 %v5202, %v5201
      %v5232 = vpack.c.b16 %v5204, %v5203
      %v5233 = vpack.c.b16 %v5206, %v5205
      %v5234 = vpack.c.b16 %v5208, %v5207
      %v5235 = vpack.c.b16 %v5210, %v5209
      %v5236 = vpack.c.b16 %v5212, %v5211
      %v5237 = vpack.c.b16 %v5214, %v5213
      %v5238 = vpack.c.b16 %v5216, %v5215
      %v5239 = vpack.c.b16 %v5218, %v5217
      %v5240 = vpack.c.b16 %v5220, %v5219
      %v5241 = vpack.c.b16 %v5222, %v5221
      %v5242 = vpack.c.b16 %v5224, %v5223
      %v5243 = vpack.c.b16 %v5226, %v5225
      %v5244 = vpack.c.b16 %v5228, %v5227
      %5261 = vmatprep.subr.bf16.mxu0 0
      %5262 = vmatpush1.bf16.msra.mxu0 %v5229
      %5263 = vmatprep.subr.bf16.mxu0 0
      %5264 = vmatpush1.bf16.msra.mxu0 %v5230
      %5265 = vmatprep.subr.bf16.mxu0 0
      %5266 = vmatpush1.bf16.msra.mxu0 %v5231
      %5267 = vmatprep.subr.bf16.mxu0 0
      %5268 = vmatpush1.bf16.msra.mxu0 %v5232
      %5269 = vmatprep.subr.bf16.mxu0 0
      %5270 = vmatpush1.bf16.msra.mxu0 %v5233
      %5271 = vmatprep.subr.bf16.mxu0 0
      %5272 = vmatpush1.bf16.msra.mxu0 %v5234
      %5273 = vmatprep.subr.bf16.mxu0 0
      %5274 = vmatpush1.bf16.msra.mxu0 %v5235
      %5275 = vmatprep.subr.bf16.mxu0 0
      %5276 = vmatpush1.bf16.msra.mxu0 %v5236
      %5277 = vmatprep.subr.bf16.mxu0 0
      %5278 = vmatpush1.bf16.msra.mxu0 %v5237
      %5279 = vmatprep.subr.bf16.mxu0 0
      %5280 = vmatpush1.bf16.msra.mxu0 %v5238
      %5281 = vmatprep.subr.bf16.mxu0 0
      %5282 = vmatpush1.bf16.msra.mxu0 %v5239
      %5283 = vmatprep.subr.bf16.mxu0 0
      %5284 = vmatpush1.bf16.msra.mxu0 %v5240
      %5285 = vmatprep.subr.bf16.mxu0 0
      %5286 = vmatpush1.bf16.msra.mxu0 %v5241
      %5287 = vmatprep.subr.bf16.mxu0 0
      %5288 = vmatpush1.bf16.msra.mxu0 %v5242
      %5289 = vmatprep.subr.bf16.mxu0 0
      %5290 = vmatpush1.bf16.msra.mxu0 %v5243
      %5291 = vmatprep.subr.bf16.mxu0 0
      %5292 = vmatpush1.bf16.msra.mxu0 %v5244
      %5293 = vmatprep.mubr.bf16.mxu0 %v4516
      %5294 = vmatmul.mubr.bf16.gmra.mrb[0].mxu0 %v4515
      %v5295 = vpop.f32.mrb[0].mxu0
      %v5296 = vadd.f32 0.0, %v5295
      %v5297 = vpop.f32.mrb[0].mxu0
      %v5298 = vpop.f32.mrb[0].mxu0
      %v5299 = vadd.f32 0.0, %v5298
      %v5300 = vpop.f32.mrb[0].mxu0
      %5301 = vdwg.mxu0
      %s5302 = scalar_lea.vmem %s18, 128
      %v5303 = vld [vmem:[%s5302] sm:$0xff]
      %v5304 = vld [vmem:[%s5302 + $0x8] sm:$0xff]
      %v5305 = vld [vmem:[%s5302 + $0x10] sm:$0xff]
      %v5306 = vld [vmem:[%s5302 + $0x18] sm:$0xff]
      %v5307 = vld [vmem:[%s5302 + $0x20] sm:$0xff]
      %v5308 = vld [vmem:[%s5302 + $0x28] sm:$0xff]
      %v5309 = vld [vmem:[%s5302 + $0x30] sm:$0xff]
      %v5310 = vld [vmem:[%s5302 + $0x38] sm:$0xff]
      %v5312 = vsel %vm4873, %v5303, 0
      %v5315 = vsel %vm4873, %v5304, 0
      %v5318 = vsel %vm4873, %v5305, 0
      %v5321 = vsel %vm4873, %v5306, 0
      %v5324 = vsel %vm4873, %v5307, 0
      %v5327 = vsel %vm4873, %v5308, 0
      %v5330 = vsel %vm4873, %v5309, 0
      %v5333 = vsel %vm4873, %v5310, 0
      %5335 = vmatprep.subr.mxu0 0.0
      %5336 = vmatpush1.msra.mxu0 %v5296
      %5337 = vmatprep.subr.mxu0 0.0
      %5338 = vmatpush1.msra.mxu0 %v5299
      %5339 = vmatprep.subr.mxu0 0.0
      %5340 = vmatpush1.msra.mxu0 0.0
      %5341 = vmatprep.subr.mxu0 0.0
      %5342 = vmatpush1.msra.mxu0 0.0
      %5343 = vmatprep.subr.mxu0 0.0
      %5344 = vmatpush1.msra.mxu0 0.0
      %5345 = vmatprep.subr.mxu0 0.0
      %5346 = vmatpush1.msra.mxu0 0.0
      %5347 = vmatprep.subr.mxu0 0.0
      %5348 = vmatpush1.msra.mxu0 0.0
      %5349 = vmatprep.subr.mxu0 0.0
      %5350 = vmatpush1.msra.mxu0 0.0
      %5351 = vmatprep.subr.mxu0 0.0
      %5352 = vmatpush1.msra.mxu0 0.0
      %5353 = vmatprep.subr.mxu0 0.0
      %5354 = vmatpush1.msra.mxu0 0.0
      %5355 = vmatprep.subr.mxu0 0.0
      %5356 = vmatpush1.msra.mxu0 0.0
      %5357 = vmatprep.subr.mxu0 0.0
      %5358 = vmatpush1.msra.mxu0 0.0
      %5359 = vmatprep.subr.mxu0 0.0
      %5360 = vmatpush1.msra.mxu0 0.0
      %5361 = vmatprep.subr.mxu0 0.0
      %5362 = vmatpush1.msra.mxu0 0.0
      %5363 = vmatprep.subr.mxu0 0.0
      %5364 = vmatpush1.msra.mxu0 0.0
      %5365 = vmatprep.subr.mxu0 0.0
      %5366 = vmatpush1.msra.mxu0 0.0
      %5367 = vmatprep.subr.mxu0 0.0
      %5368 = vmatpush1.msra.mxu0 0.0
      %5369 = vmatprep.subr.mxu0 0.0
      %5370 = vmatpush1.msra.mxu0 0.0
      %5371 = vmatprep.subr.mxu0 0.0
      %5372 = vmatpush1.msra.mxu0 0.0
      %5373 = vmatprep.subr.mxu0 0.0
      %5374 = vmatpush1.msra.mxu0 0.0
      %5375 = vmatprep.subr.mxu0 0.0
      %5376 = vmatpush1.msra.mxu0 0.0
      %5377 = vmatprep.subr.mxu0 0.0
      %5378 = vmatpush1.msra.mxu0 0.0
      %5379 = vmatprep.subr.mxu0 0.0
      %5380 = vmatpush1.msra.mxu0 0.0
      %5381 = vmatprep.subr.mxu0 0.0
      %5382 = vmatpush1.msra.mxu0 0.0
      %5383 = vmatprep.subr.mxu0 0.0
      %5384 = vmatpush1.msra.mxu0 0.0
      %5385 = vmatprep.subr.mxu0 0.0
      %5386 = vmatpush1.msra.mxu0 0.0
      %5387 = vmatprep.subr.mxu0 0.0
      %5388 = vmatpush1.msra.mxu0 0.0
      %5389 = vmatprep.subr.mxu0 0.0
      %5390 = vmatpush1.msra.mxu0 0.0
      %5391 = vmatprep.subr.mxu0 0.0
      %5392 = vmatpush1.msra.mxu0 0.0
      %5393 = vmatprep.subr.mxu0 0.0
      %5394 = vmatpush1.msra.mxu0 0.0
      %5395 = vmatprep.subr.mxu0 0.0
      %5396 = vmatpush1.msra.mxu0 0.0
      %5397 = vmatprep.subr.mxu0 0.0
      %5398 = vmatpush1.msra.mxu0 0.0
      %5399 = vmatprep.mubr.f32.mxu0 0.0
      %5400 = vmatmul.mubr.f32.gmra.mrb[0].mxu0 %v5312
      %v5401 = vpop.f32.mrb[0].mxu0
      %v5402 = vadd.f32 0.0, %v5401
      %v5403 = vpop.f32.mrb[0].mxu0
      %5404 = vmatprep.mubr.f32.mxu0 0.0
      %5405 = vmatmul.mubr.f32.gmra.mrb[0].mxu0 %v5315
      %v5406 = vpop.f32.mrb[0].mxu0
      %v5407 = vadd.f32 0.0, %v5406
      %v5408 = vpop.f32.mrb[0].mxu0
      %5409 = vmatprep.mubr.f32.mxu0 0.0
      %5410 = vmatmul.mubr.f32.gmra.mrb[0].mxu0 %v5318
      %v5411 = vpop.f32.mrb[0].mxu0
      %v5412 = vadd.f32 0.0, %v5411
      %v5413 = vpop.f32.mrb[0].mxu0
      %5414 = vmatprep.mubr.f32.mxu0 0.0
      %5415 = vmatmul.mubr.f32.gmra.mrb[0].mxu0 %v5321
      %v5416 = vpop.f32.mrb[0].mxu0
      %v5417 = vadd.f32 0.0, %v5416
      %v5418 = vpop.f32.mrb[0].mxu0
      %5419 = vmatprep.mubr.f32.mxu0 0.0
      %5420 = vmatmul.mubr.f32.gmra.mrb[0].mxu0 %v5324
      %v5421 = vpop.f32.mrb[0].mxu0
      %v5422 = vadd.f32 0.0, %v5421
      %v5423 = vpop.f32.mrb[0].mxu0
      %5424 = vmatprep.mubr.f32.mxu0 0.0
      %5425 = vmatmul.mubr.f32.gmra.mrb[0].mxu0 %v5327
      %v5426 = vpop.f32.mrb[0].mxu0
      %v5427 = vadd.f32 0.0, %v5426
      %v5428 = vpop.f32.mrb[0].mxu0
      %5429 = vmatprep.mubr.f32.mxu0 0.0
      %5430 = vmatmul.mubr.f32.gmra.mrb[0].mxu0 %v5330
      %v5431 = vpop.f32.mrb[0].mxu0
      %v5432 = vadd.f32 0.0, %v5431
      %v5433 = vpop.f32.mrb[0].mxu0
      %5434 = vmatprep.mubr.f32.mxu0 0.0
      %5435 = vmatmul.mubr.f32.gmra.mrb[0].mxu0 %v5333
      %v5436 = vpop.f32.mrb[0].mxu0
      %v5437 = vadd.f32 0.0, %v5436
      %v5438 = vpop.f32.mrb[0].mxu0
      %5439 = vdwg.mxu0
      %v5440 = vadd.f32 %v5094, %v5402
      %v5441 = vadd.f32 %v5099, %v5407
      %v5442 = vadd.f32 %v5104, %v5412
      %v5443 = vadd.f32 %v5109, %v5417
      %v5444 = vadd.f32 %v5114, %v5422
      %v5445 = vadd.f32 %v5119, %v5427
      %v5446 = vadd.f32 %v5124, %v5432
      %v5447 = vadd.f32 %v5129, %v5437
      %s5448 = scalar_lea.vmem %s10, 384
      %v5449 = vld [vmem:[%s5448] sm:$0xf]
      %v5450 = vld [vmem:[%s5448 + $0x4] sm:$0xf]
      %v5451 = vld [vmem:[%s5448 + $0x8] sm:$0xf]
      %v5452 = vld [vmem:[%s5448 + $0xc] sm:$0xf]
      %v5453 = vld [vmem:[%s5448 + $0x10] sm:$0xf]
      %v5454 = vld [vmem:[%s5448 + $0x14] sm:$0xf]
      %v5455 = vld [vmem:[%s5448 + $0x18] sm:$0xf]
      %v5456 = vld [vmem:[%s5448 + $0x1c] sm:$0xf]
      %v5457 = vld [vmem:[%s5448 + $0x20] sm:$0xf]
      %v5458 = vld [vmem:[%s5448 + $0x24] sm:$0xf]
      %v5459 = vld [vmem:[%s5448 + $0x28] sm:$0xf]
      %v5460 = vld [vmem:[%s5448 + $0x2c] sm:$0xf]
      %v5461 = vld [vmem:[%s5448 + $0x30] sm:$0xf]
      %v5462 = vld [vmem:[%s5448 + $0x34] sm:$0xf]
      %v5463 = vld [vmem:[%s5448 + $0x38] sm:$0xf]
      %v5464 = vld [vmem:[%s5448 + $0x3c] sm:$0xf]
      %v5465 = vld [vmem:[%s5448 + $0x40] sm:$0xf]
      %v5466 = vld [vmem:[%s5448 + $0x44] sm:$0xf]
      %v5467 = vld [vmem:[%s5448 + $0x48] sm:$0xf]
      %v5468 = vld [vmem:[%s5448 + $0x4c] sm:$0xf]
      %v5469 = vld [vmem:[%s5448 + $0x50] sm:$0xf]
      %v5470 = vld [vmem:[%s5448 + $0x54] sm:$0xf]
      %v5471 = vld [vmem:[%s5448 + $0x58] sm:$0xf]
      %v5472 = vld [vmem:[%s5448 + $0x5c] sm:$0xf]
      %v5473 = vld [vmem:[%s5448 + $0x60] sm:$0xf]
      %v5474 = vld [vmem:[%s5448 + $0x64] sm:$0xf]
      %v5475 = vld [vmem:[%s5448 + $0x68] sm:$0xf]
      %v5476 = vld [vmem:[%s5448 + $0x6c] sm:$0xf]
      %v5477 = vld [vmem:[%s5448 + $0x70] sm:$0xf]
      %v5478 = vld [vmem:[%s5448 + $0x74] sm:$0xf]
      %v5479 = vld [vmem:[%s5448 + $0x78] sm:$0xf]
      %v5480 = vld [vmem:[%s5448 + $0x7c] sm:$0xf]
      %v5513 = vunpack.c.l.b16 %v5449
      %v5514 = vunpack.c.l.b16 %v5450
      %v5515 = vunpack.c.l.b16 %v5451
      %v5516 = vunpack.c.l.b16 %v5452
      %v5517 = vunpack.c.l.b16 %v5453
      %v5518 = vunpack.c.l.b16 %v5454
      %v5519 = vunpack.c.l.b16 %v5455
      %v5520 = vunpack.c.l.b16 %v5456
      %v5521 = vunpack.c.l.b16 %v5457
      %v5522 = vunpack.c.l.b16 %v5458
      %v5523 = vunpack.c.l.b16 %v5459
      %v5524 = vunpack.c.l.b16 %v5460
      %v5525 = vunpack.c.l.b16 %v5461
      %v5526 = vunpack.c.l.b16 %v5462
      %v5527 = vunpack.c.l.b16 %v5463
      %v5528 = vunpack.c.l.b16 %v5464
      %v5529 = vunpack.c.l.b16 %v5465
      %v5530 = vunpack.c.l.b16 %v5466
      %v5531 = vunpack.c.l.b16 %v5467
      %v5532 = vunpack.c.l.b16 %v5468
      %v5533 = vunpack.c.l.b16 %v5469
      %v5534 = vunpack.c.l.b16 %v5470
      %v5535 = vunpack.c.l.b16 %v5471
      %v5536 = vunpack.c.l.b16 %v5472
      %v5537 = vunpack.c.l.b16 %v5473
      %v5538 = vunpack.c.l.b16 %v5474
      %v5539 = vunpack.c.l.b16 %v5475
      %v5540 = vunpack.c.l.b16 %v5476
      %v5541 = vunpack.c.l.b16 %v5477
      %v5542 = vunpack.c.l.b16 %v5478
      %v5543 = vunpack.c.l.b16 %v5479
      %v5544 = vunpack.c.l.b16 %v5480
      %v5545 = vpack.c.b16 %v5514, %v5513
      %v5546 = vpack.c.b16 %v5516, %v5515
      %v5547 = vpack.c.b16 %v5518, %v5517
      %v5548 = vpack.c.b16 %v5520, %v5519
      %v5549 = vpack.c.b16 %v5522, %v5521
      %v5550 = vpack.c.b16 %v5524, %v5523
      %v5551 = vpack.c.b16 %v5526, %v5525
      %v5552 = vpack.c.b16 %v5528, %v5527
      %v5553 = vpack.c.b16 %v5530, %v5529
      %v5554 = vpack.c.b16 %v5532, %v5531
      %v5555 = vpack.c.b16 %v5534, %v5533
      %v5556 = vpack.c.b16 %v5536, %v5535
      %v5557 = vpack.c.b16 %v5538, %v5537
      %v5558 = vpack.c.b16 %v5540, %v5539
      %v5559 = vpack.c.b16 %v5542, %v5541
      %v5560 = vpack.c.b16 %v5544, %v5543
      %5577 = vmatprep.subr.bf16.mxu0 0
      %5578 = vmatpush1.bf16.msra.mxu0 %v5545
      %5579 = vmatprep.subr.bf16.mxu0 0
      %5580 = vmatpush1.bf16.msra.mxu0 %v5546
      %5581 = vmatprep.subr.bf16.mxu0 0
      %5582 = vmatpush1.bf16.msra.mxu0 %v5547
      %5583 = vmatprep.subr.bf16.mxu0 0
      %5584 = vmatpush1.bf16.msra.mxu0 %v5548
      %5585 = vmatprep.subr.bf16.mxu0 0
      %5586 = vmatpush1.bf16.msra.mxu0 %v5549
      %5587 = vmatprep.subr.bf16.mxu0 0
      %5588 = vmatpush1.bf16.msra.mxu0 %v5550
      %5589 = vmatprep.subr.bf16.mxu0 0
      %5590 = vmatpush1.bf16.msra.mxu0 %v5551
      %5591 = vmatprep.subr.bf16.mxu0 0
      %5592 = vmatpush1.bf16.msra.mxu0 %v5552
      %5593 = vmatprep.subr.bf16.mxu0 0
      %5594 = vmatpush1.bf16.msra.mxu0 %v5553
      %5595 = vmatprep.subr.bf16.mxu0 0
      %5596 = vmatpush1.bf16.msra.mxu0 %v5554
      %5597 = vmatprep.subr.bf16.mxu0 0
      %5598 = vmatpush1.bf16.msra.mxu0 %v5555
      %5599 = vmatprep.subr.bf16.mxu0 0
      %5600 = vmatpush1.bf16.msra.mxu0 %v5556
      %5601 = vmatprep.subr.bf16.mxu0 0
      %5602 = vmatpush1.bf16.msra.mxu0 %v5557
      %5603 = vmatprep.subr.bf16.mxu0 0
      %5604 = vmatpush1.bf16.msra.mxu0 %v5558
      %5605 = vmatprep.subr.bf16.mxu0 0
      %5606 = vmatpush1.bf16.msra.mxu0 %v5559
      %5607 = vmatprep.subr.bf16.mxu0 0
      %5608 = vmatpush1.bf16.msra.mxu0 %v5560
      %5609 = vmatprep.mubr.bf16.mxu0 %v4516
      %5610 = vmatmul.mubr.bf16.gmra.mrb[0].mxu0 %v4515
      %v5611 = vpop.f32.mrb[0].mxu0
      %v5612 = vadd.f32 0.0, %v5611
      %v5613 = vpop.f32.mrb[0].mxu0
      %v5614 = vpop.f32.mrb[0].mxu0
      %v5615 = vadd.f32 0.0, %v5614
      %v5616 = vpop.f32.mrb[0].mxu0
      %5617 = vdwg.mxu0
      %s5618 = scalar_lea.vmem %s18, 192
      %v5619 = vld [vmem:[%s5618] sm:$0xff]
      %v5620 = vld [vmem:[%s5618 + $0x8] sm:$0xff]
      %v5621 = vld [vmem:[%s5618 + $0x10] sm:$0xff]
      %v5622 = vld [vmem:[%s5618 + $0x18] sm:$0xff]
      %v5623 = vld [vmem:[%s5618 + $0x20] sm:$0xff]
      %v5624 = vld [vmem:[%s5618 + $0x28] sm:$0xff]
      %v5625 = vld [vmem:[%s5618 + $0x30] sm:$0xff]
      %v5626 = vld [vmem:[%s5618 + $0x38] sm:$0xff]
      %v5628 = vsel %vm4873, %v5619, 0
      %v5631 = vsel %vm4873, %v5620, 0
      %v5634 = vsel %vm4873, %v5621, 0
      %v5637 = vsel %vm4873, %v5622, 0
      %v5640 = vsel %vm4873, %v5623, 0
      %v5643 = vsel %vm4873, %v5624, 0
      %v5646 = vsel %vm4873, %v5625, 0
      %v5649 = vsel %vm4873, %v5626, 0
      %5651 = vmatprep.subr.mxu0 0.0
      %5652 = vmatpush1.msra.mxu0 %v5612
      %5653 = vmatprep.subr.mxu0 0.0
      %5654 = vmatpush1.msra.mxu0 %v5615
      %5655 = vmatprep.subr.mxu0 0.0
      %5656 = vmatpush1.msra.mxu0 0.0
      %5657 = vmatprep.subr.mxu0 0.0
      %5658 = vmatpush1.msra.mxu0 0.0
      %5659 = vmatprep.subr.mxu0 0.0
      %5660 = vmatpush1.msra.mxu0 0.0
      %5661 = vmatprep.subr.mxu0 0.0
      %5662 = vmatpush1.msra.mxu0 0.0
      %5663 = vmatprep.subr.mxu0 0.0
      %5664 = vmatpush1.msra.mxu0 0.0
      %5665 = vmatprep.subr.mxu0 0.0
      %5666 = vmatpush1.msra.mxu0 0.0
      %5667 = vmatprep.subr.mxu0 0.0
      %5668 = vmatpush1.msra.mxu0 0.0
      %5669 = vmatprep.subr.mxu0 0.0
      %5670 = vmatpush1.msra.mxu0 0.0
      %5671 = vmatprep.subr.mxu0 0.0
      %5672 = vmatpush1.msra.mxu0 0.0
      %5673 = vmatprep.subr.mxu0 0.0
      %5674 = vmatpush1.msra.mxu0 0.0
      %5675 = vmatprep.subr.mxu0 0.0
      %5676 = vmatpush1.msra.mxu0 0.0
      %5677 = vmatprep.subr.mxu0 0.0
      %5678 = vmatpush1.msra.mxu0 0.0
      %5679 = vmatprep.subr.mxu0 0.0
      %5680 = vmatpush1.msra.mxu0 0.0
      %5681 = vmatprep.subr.mxu0 0.0
      %5682 = vmatpush1.msra.mxu0 0.0
      %5683 = vmatprep.subr.mxu0 0.0
      %5684 = vmatpush1.msra.mxu0 0.0
      %5685 = vmatprep.subr.mxu0 0.0
      %5686 = vmatpush1.msra.mxu0 0.0
      %5687 = vmatprep.subr.mxu0 0.0
      %5688 = vmatpush1.msra.mxu0 0.0
      %5689 = vmatprep.subr.mxu0 0.0
      %5690 = vmatpush1.msra.mxu0 0.0
      %5691 = vmatprep.subr.mxu0 0.0
      %5692 = vmatpush1.msra.mxu0 0.0
      %5693 = vmatprep.subr.mxu0 0.0
      %5694 = vmatpush1.msra.mxu0 0.0
      %5695 = vmatprep.subr.mxu0 0.0
      %5696 = vmatpush1.msra.mxu0 0.0
      %5697 = vmatprep.subr.mxu0 0.0
      %5698 = vmatpush1.msra.mxu0 0.0
      %5699 = vmatprep.subr.mxu0 0.0
      %5700 = vmatpush1.msra.mxu0 0.0
      %5701 = vmatprep.subr.mxu0 0.0
      %5702 = vmatpush1.msra.mxu0 0.0
      %5703 = vmatprep.subr.mxu0 0.0
      %5704 = vmatpush1.msra.mxu0 0.0
      %5705 = vmatprep.subr.mxu0 0.0
      %5706 = vmatpush1.msra.mxu0 0.0
      %5707 = vmatprep.subr.mxu0 0.0
      %5708 = vmatpush1.msra.mxu0 0.0
      %5709 = vmatprep.subr.mxu0 0.0
      %5710 = vmatpush1.msra.mxu0 0.0
      %5711 = vmatprep.subr.mxu0 0.0
      %5712 = vmatpush1.msra.mxu0 0.0
      %5713 = vmatprep.subr.mxu0 0.0
      %5714 = vmatpush1.msra.mxu0 0.0
      %5715 = vmatprep.mubr.f32.mxu0 0.0
      %5716 = vmatmul.mubr.f32.gmra.mrb[0].mxu0 %v5628
      %v5717 = vpop.f32.mrb[0].mxu0
      %v5718 = vadd.f32 0.0, %v5717
      %v5719 = vpop.f32.mrb[0].mxu0
      %5720 = vmatprep.mubr.f32.mxu0 0.0
      %5721 = vmatmul.mubr.f32.gmra.mrb[0].mxu0 %v5631
      %v5722 = vpop.f32.mrb[0].mxu0
      %v5723 = vadd.f32 0.0, %v5722
      %v5724 = vpop.f32.mrb[0].mxu0
      %5725 = vmatprep.mubr.f32.mxu0 0.0
      %5726 = vmatmul.mubr.f32.gmra.mrb[0].mxu0 %v5634
      %v5727 = vpop.f32.mrb[0].mxu0
      %v5728 = vadd.f32 0.0, %v5727
      %v5729 = vpop.f32.mrb[0].mxu0
      %5730 = vmatprep.mubr.f32.mxu0 0.0
      %5731 = vmatmul.mubr.f32.gmra.mrb[0].mxu0 %v5637
      %v5732 = vpop.f32.mrb[0].mxu0
      %v5733 = vadd.f32 0.0, %v5732
      %v5734 = vpop.f32.mrb[0].mxu0
      %5735 = vmatprep.mubr.f32.mxu0 0.0
      %5736 = vmatmul.mubr.f32.gmra.mrb[0].mxu0 %v5640
      %v5737 = vpop.f32.mrb[0].mxu0
      %v5738 = vadd.f32 0.0, %v5737
      %v5739 = vpop.f32.mrb[0].mxu0
      %5740 = vmatprep.mubr.f32.mxu0 0.0
      %5741 = vmatmul.mubr.f32.gmra.mrb[0].mxu0 %v5643
      %v5742 = vpop.f32.mrb[0].mxu0
      %v5743 = vadd.f32 0.0, %v5742
      %v5744 = vpop.f32.mrb[0].mxu0
      %5745 = vmatprep.mubr.f32.mxu0 0.0
      %5746 = vmatmul.mubr.f32.gmra.mrb[0].mxu0 %v5646
      %v5747 = vpop.f32.mrb[0].mxu0
      %v5748 = vadd.f32 0.0, %v5747
      %v5749 = vpop.f32.mrb[0].mxu0
      %5750 = vmatprep.mubr.f32.mxu0 0.0
      %5751 = vmatmul.mubr.f32.gmra.mrb[0].mxu0 %v5649
      %v5752 = vpop.f32.mrb[0].mxu0
      %v5753 = vadd.f32 0.0, %v5752
      %v5754 = vpop.f32.mrb[0].mxu0
      %5755 = vdwg.mxu0
      %v5756 = vadd.f32 %v5440, %v5718
      %v5757 = vadd.f32 %v5441, %v5723
      %v5758 = vadd.f32 %v5442, %v5728
      %v5759 = vadd.f32 %v5443, %v5733
      %v5760 = vadd.f32 %v5444, %v5738
      %v5761 = vadd.f32 %v5445, %v5743
      %v5762 = vadd.f32 %v5446, %v5748
      %v5763 = vadd.f32 %v5447, %v5753
      %v5764 = vld [vmem:[%s11] sm:$0x1]
      %v5766 = vlaneseq
      %v5767 = vshrl.u32 %v5766, 7
      %v5768 = vsub.s32 0, %v5767
      %v5769 = vrot.slane %v5764, %v5768
      %v5771 = vadd.f32 %v5756, %v5769
      %v5772 = vadd.f32 %v5757, %v5769
      %v5773 = vadd.f32 %v5758, %v5769
      %v5774 = vadd.f32 %v5759, %v5769
      %v5775 = vadd.f32 %v5760, %v5769
      %v5776 = vadd.f32 %v5761, %v5769
      %v5777 = vadd.f32 %v5762, %v5769
      %v5778 = vadd.f32 %v5763, %v5769
      %v5779 = vmax.f32 %v5771, 0.0
      %v5780 = vmax.f32 %v5772, 0.0
      %v5781 = vmax.f32 %v5773, 0.0
      %v5782 = vmax.f32 %v5774, 0.0
      %v5783 = vmax.f32 %v5775, 0.0
      %v5784 = vmax.f32 %v5776, 0.0
      %v5785 = vmax.f32 %v5777, 0.0
      %v5786 = vmax.f32 %v5778, 0.0
      %v5787 = vpack.c.bf16 %v5780, %v5779
      %v5788 = vpack.c.bf16 %v5782, %v5781
      %v5789 = vpack.c.bf16 %v5784, %v5783
      %v5790 = vpack.c.bf16 %v5786, %v5785
      %v5791 = vld [vmem:[%s12] sm:$0xf]
      %v5792 = vld [vmem:[%s12 + $0x4] sm:$0xf]
      %v5793 = vld [vmem:[%s12 + $0x8] sm:$0xf]
      %v5794 = vld [vmem:[%s12 + $0xc] sm:$0xf]
      %v5795 = vld [vmem:[%s12 + $0x10] sm:$0xf]
      %v5796 = vld [vmem:[%s12 + $0x14] sm:$0xf]
      %v5797 = vld [vmem:[%s12 + $0x18] sm:$0xf]
      %v5798 = vld [vmem:[%s12 + $0x1c] sm:$0xf]
      %v5799 = vld [vmem:[%s12 + $0x20] sm:$0xf]
      %v5800 = vld [vmem:[%s12 + $0x24] sm:$0xf]
      %v5801 = vld [vmem:[%s12 + $0x28] sm:$0xf]
      %v5802 = vld [vmem:[%s12 + $0x2c] sm:$0xf]
      %v5803 = vld [vmem:[%s12 + $0x30] sm:$0xf]
      %v5804 = vld [vmem:[%s12 + $0x34] sm:$0xf]
      %v5805 = vld [vmem:[%s12 + $0x38] sm:$0xf]
      %v5806 = vld [vmem:[%s12 + $0x3c] sm:$0xf]
      %v5823 = vunpack.c.l.b16 %v5791
      %v5824 = vunpack.c.l.b16 %v5792
      %v5825 = vunpack.c.l.b16 %v5793
      %v5826 = vunpack.c.l.b16 %v5794
      %v5827 = vunpack.c.l.b16 %v5795
      %v5828 = vunpack.c.l.b16 %v5796
      %v5829 = vunpack.c.l.b16 %v5797
      %v5830 = vunpack.c.l.b16 %v5798
      %v5831 = vunpack.c.l.b16 %v5799
      %v5832 = vunpack.c.l.b16 %v5800
      %v5833 = vunpack.c.l.b16 %v5801
      %v5834 = vunpack.c.l.b16 %v5802
      %v5835 = vunpack.c.l.b16 %v5803
      %v5836 = vunpack.c.l.b16 %v5804
      %v5837 = vunpack.c.l.b16 %v5805
      %v5838 = vunpack.c.l.b16 %v5806
      %v5839 = vpack.c.b16 %v5824, %v5823
      %v5840 = vpack.c.b16 %v5826, %v5825
      %v5841 = vpack.c.b16 %v5828, %v5827
      %v5842 = vpack.c.b16 %v5830, %v5829
      %v5843 = vpack.c.b16 %v5832, %v5831
      %v5844 = vpack.c.b16 %v5834, %v5833
      %v5845 = vpack.c.b16 %v5836, %v5835
      %v5846 = vpack.c.b16 %v5838, %v5837
      %5855 = vmatprep.subr.bf16.mxu0 0
      %5856 = vmatpush1.bf16.msra.mxu0 %v5839
      %5857 = vmatprep.subr.bf16.mxu0 0
      %5858 = vmatpush1.bf16.msra.mxu0 %v5840
      %5859 = vmatprep.subr.bf16.mxu0 0
      %5860 = vmatpush1.bf16.msra.mxu0 %v5841
      %5861 = vmatprep.subr.bf16.mxu0 0
      %5862 = vmatpush1.bf16.msra.mxu0 %v5842
      %5863 = vmatprep.subr.bf16.mxu0 0
      %5864 = vmatpush1.bf16.msra.mxu0 %v5843
      %5865 = vmatprep.subr.bf16.mxu0 0
      %5866 = vmatpush1.bf16.msra.mxu0 %v5844
      %5867 = vmatprep.subr.bf16.mxu0 0
      %5868 = vmatpush1.bf16.msra.mxu0 %v5845
      %5869 = vmatprep.subr.bf16.mxu0 0
      %5870 = vmatpush1.bf16.msra.mxu0 %v5846
      %5871 = vmatprep.subr.bf16.mxu0 0
      %5872 = vmatpush1.bf16.msra.mxu0 0
      %5873 = vmatprep.subr.bf16.mxu0 0
      %5874 = vmatpush1.bf16.msra.mxu0 0
      %5875 = vmatprep.subr.bf16.mxu0 0
      %5876 = vmatpush1.bf16.msra.mxu0 0
      %5877 = vmatprep.subr.bf16.mxu0 0
      %5878 = vmatpush1.bf16.msra.mxu0 0
      %5879 = vmatprep.subr.bf16.mxu0 0
      %5880 = vmatpush1.bf16.msra.mxu0 0
      %5881 = vmatprep.subr.bf16.mxu0 0
      %5882 = vmatpush1.bf16.msra.mxu0 0
      %5883 = vmatprep.subr.bf16.mxu0 0
      %5884 = vmatpush1.bf16.msra.mxu0 0
      %5885 = vmatprep.subr.bf16.mxu0 0
      %5886 = vmatpush1.bf16.msra.mxu0 0
      %5887 = vmatprep.mubr.bf16.mxu0 0
      %5888 = vmatmul.mubr.bf16.gmra.mrb[0].mxu0 %v5787
      %v5889 = vpop.f32.mrb[0].mxu0
      %v5890 = vadd.f32 0.0, %v5889
      %v5891 = vpop.f32.mrb[0].mxu0
      %v5892 = vpop.f32.mrb[0].mxu0
      %v5893 = vadd.f32 0.0, %v5892
      %v5894 = vpop.f32.mrb[0].mxu0
      %5895 = vmatprep.mubr.bf16.mxu0 0
      %5896 = vmatmul.mubr.bf16.gmra.mrb[0].mxu0 %v5788
      %v5897 = vpop.f32.mrb[0].mxu0
      %v5898 = vadd.f32 0.0, %v5897
      %v5899 = vpop.f32.mrb[0].mxu0
      %v5900 = vpop.f32.mrb[0].mxu0
      %v5901 = vadd.f32 0.0, %v5900
      %v5902 = vpop.f32.mrb[0].mxu0
      %5903 = vmatprep.mubr.bf16.mxu0 0
      %5904 = vmatmul.mubr.bf16.gmra.mrb[0].mxu0 %v5789
      %v5905 = vpop.f32.mrb[0].mxu0
      %v5906 = vadd.f32 0.0, %v5905
      %v5907 = vpop.f32.mrb[0].mxu0
      %v5908 = vpop.f32.mrb[0].mxu0
      %v5909 = vadd.f32 0.0, %v5908
      %v5910 = vpop.f32.mrb[0].mxu0
      %5911 = vmatprep.mubr.bf16.mxu0 0
      %5912 = vmatmul.mubr.bf16.gmra.mrb[0].mxu0 %v5790
      %v5913 = vpop.f32.mrb[0].mxu0
      %v5914 = vadd.f32 0.0, %v5913
      %v5915 = vpop.f32.mrb[0].mxu0
      %v5916 = vpop.f32.mrb[0].mxu0
      %v5917 = vadd.f32 0.0, %v5916
      %v5918 = vpop.f32.mrb[0].mxu0
      %5919 = vdwg.mxu0
      %v5920 = vld [vmem:[%s19] sm:$0xff]
      %v5921 = vld [vmem:[%s19 + $0x8] sm:$0xff]
      %v5922 = vld [vmem:[%s19 + $0x10] sm:$0xff]
      %v5923 = vld [vmem:[%s19 + $0x18] sm:$0xff]
      %v5924 = vld [vmem:[%s19 + $0x20] sm:$0xff]
      %v5925 = vld [vmem:[%s19 + $0x28] sm:$0xff]
      %v5926 = vld [vmem:[%s19 + $0x30] sm:$0xff]
      %v5927 = vld [vmem:[%s19 + $0x38] sm:$0xff]
      %v5928 = vld [vmem:[%s19 + $0x40] sm:$0xff]
      %v5929 = vld [vmem:[%s19 + $0x48] sm:$0xff]
      %v5930 = vld [vmem:[%s19 + $0x50] sm:$0xff]
      %v5931 = vld [vmem:[%s19 + $0x58] sm:$0xff]
      %v5932 = vld [vmem:[%s19 + $0x60] sm:$0xff]
      %v5933 = vld [vmem:[%s19 + $0x68] sm:$0xff]
      %v5934 = vld [vmem:[%s19 + $0x70] sm:$0xff]
      %v5935 = vld [vmem:[%s19 + $0x78] sm:$0xff]
      %v5936 = vld [vmem:[%s19 + $0x80] sm:$0xff]
      %v5937 = vld [vmem:[%s19 + $0x88] sm:$0xff]
      %v5938 = vld [vmem:[%s19 + $0x90] sm:$0xff]
      %v5939 = vld [vmem:[%s19 + $0x98] sm:$0xff]
      %v5940 = vld [vmem:[%s19 + $0xa0] sm:$0xff]
      %v5941 = vld [vmem:[%s19 + $0xa8] sm:$0xff]
      %v5942 = vld [vmem:[%s19 + $0xb0] sm:$0xff]
      %v5943 = vld [vmem:[%s19 + $0xb8] sm:$0xff]
      %v5944 = vld [vmem:[%s19 + $0xc0] sm:$0xff]
      %v5945 = vld [vmem:[%s19 + $0xc8] sm:$0xff]
      %v5946 = vld [vmem:[%s19 + $0xd0] sm:$0xff]
      %v5947 = vld [vmem:[%s19 + $0xd8] sm:$0xff]
      %v5948 = vld [vmem:[%s19 + $0xe0] sm:$0xff]
      %v5949 = vld [vmem:[%s19 + $0xe8] sm:$0xff]
      %v5950 = vld [vmem:[%s19 + $0xf0] sm:$0xff]
      %v5951 = vld [vmem:[%s19 + $0xf8] sm:$0xff]
      %s5952 = scalar_lea.vmem %s12, 64
      %v5953 = vld [vmem:[%s5952] sm:$0xf]
      %v5954 = vld [vmem:[%s5952 + $0x4] sm:$0xf]
      %v5955 = vld [vmem:[%s5952 + $0x8] sm:$0xf]
      %v5956 = vld [vmem:[%s5952 + $0xc] sm:$0xf]
      %v5957 = vld [vmem:[%s5952 + $0x10] sm:$0xf]
      %v5958 = vld [vmem:[%s5952 + $0x14] sm:$0xf]
      %v5959 = vld [vmem:[%s5952 + $0x18] sm:$0xf]
      %v5960 = vld [vmem:[%s5952 + $0x1c] sm:$0xf]
      %v5961 = vld [vmem:[%s5952 + $0x20] sm:$0xf]
      %v5962 = vld [vmem:[%s5952 + $0x24] sm:$0xf]
      %v5963 = vld [vmem:[%s5952 + $0x28] sm:$0xf]
      %v5964 = vld [vmem:[%s5952 + $0x2c] sm:$0xf]
      %v5965 = vld [vmem:[%s5952 + $0x30] sm:$0xf]
      %v5966 = vld [vmem:[%s5952 + $0x34] sm:$0xf]
      %v5967 = vld [vmem:[%s5952 + $0x38] sm:$0xf]
      %v5968 = vld [vmem:[%s5952 + $0x3c] sm:$0xf]
      %v5985 = vunpack.c.l.b16 %v5953
      %v5986 = vunpack.c.l.b16 %v5954
      %v5987 = vunpack.c.l.b16 %v5955
      %v5988 = vunpack.c.l.b16 %v5956
      %v5989 = vunpack.c.l.b16 %v5957
      %v5990 = vunpack.c.l.b16 %v5958
      %v5991 = vunpack.c.l.b16 %v5959
      %v5992 = vunpack.c.l.b16 %v5960
      %v5993 = vunpack.c.l.b16 %v5961
      %v5994 = vunpack.c.l.b16 %v5962
      %v5995 = vunpack.c.l.b16 %v5963
      %v5996 = vunpack.c.l.b16 %v5964
      %v5997 = vunpack.c.l.b16 %v5965
      %v5998 = vunpack.c.l.b16 %v5966
      %v5999 = vunpack.c.l.b16 %v5967
      %v6000 = vunpack.c.l.b16 %v5968
      %v6001 = vpack.c.b16 %v5986, %v5985
      %v6002 = vpack.c.b16 %v5988, %v5987
      %v6003 = vpack.c.b16 %v5990, %v5989
      %v6004 = vpack.c.b16 %v5992, %v5991
      %v6005 = vpack.c.b16 %v5994, %v5993
      %v6006 = vpack.c.b16 %v5996, %v5995
      %v6007 = vpack.c.b16 %v5998, %v5997
      %v6008 = vpack.c.b16 %v6000, %v5999
      %6017 = vmatprep.subr.bf16.mxu0 0
      %6018 = vmatpush1.bf16.msra.mxu0 %v6001
      %6019 = vmatprep.subr.bf16.mxu0 0
      %6020 = vmatpush1.bf16.msra.mxu0 %v6002
      %6021 = vmatprep.subr.bf16.mxu0 0
      %6022 = vmatpush1.bf16.msra.mxu0 %v6003
      %6023 = vmatprep.subr.bf16.mxu0 0
      %6024 = vmatpush1.bf16.msra.mxu0 %v6004
      %6025 = vmatprep.subr.bf16.mxu0 0
      %6026 = vmatpush1.bf16.msra.mxu0 %v6005
      %6027 = vmatprep.subr.bf16.mxu0 0
      %6028 = vmatpush1.bf16.msra.mxu0 %v6006
      %6029 = vmatprep.subr.bf16.mxu0 0
      %6030 = vmatpush1.bf16.msra.mxu0 %v6007
      %6031 = vmatprep.subr.bf16.mxu0 0
      %6032 = vmatpush1.bf16.msra.mxu0 %v6008
      %6033 = vmatprep.subr.bf16.mxu0 0
      %6034 = vmatpush1.bf16.msra.mxu0 0
      %6035 = vmatprep.subr.bf16.mxu0 0
      %6036 = vmatpush1.bf16.msra.mxu0 0
      %6037 = vmatprep.subr.bf16.mxu0 0
      %6038 = vmatpush1.bf16.msra.mxu0 0
      %6039 = vmatprep.subr.bf16.mxu0 0
      %6040 = vmatpush1.bf16.msra.mxu0 0
      %6041 = vmatprep.subr.bf16.mxu0 0
      %6042 = vmatpush1.bf16.msra.mxu0 0
      %6043 = vmatprep.subr.bf16.mxu0 0
      %6044 = vmatpush1.bf16.msra.mxu0 0
      %6045 = vmatprep.subr.bf16.mxu0 0
      %6046 = vmatpush1.bf16.msra.mxu0 0
      %6047 = vmatprep.subr.bf16.mxu0 0
      %6048 = vmatpush1.bf16.msra.mxu0 0
      %6049 = vmatprep.mubr.bf16.mxu0 0
      %6050 = vmatmul.mubr.bf16.gmra.mrb[0].mxu0 %v5787
      %v6051 = vpop.f32.mrb[0].mxu0
      %v6052 = vadd.f32 0.0, %v6051
      %v6053 = vpop.f32.mrb[0].mxu0
      %v6054 = vpop.f32.mrb[0].mxu0
      %v6055 = vadd.f32 0.0, %v6054
      %v6056 = vpop.f32.mrb[0].mxu0
      %6057 = vmatprep.mubr.bf16.mxu0 0
      %6058 = vmatmul.mubr.bf16.gmra.mrb[0].mxu0 %v5788
      %v6059 = vpop.f32.mrb[0].mxu0
      %v6060 = vadd.f32 0.0, %v6059
      %v6061 = vpop.f32.mrb[0].mxu0
      %v6062 = vpop.f32.mrb[0].mxu0
      %v6063 = vadd.f32 0.0, %v6062
      %v6064 = vpop.f32.mrb[0].mxu0
      %6065 = vmatprep.mubr.bf16.mxu0 0
      %6066 = vmatmul.mubr.bf16.gmra.mrb[0].mxu0 %v5789
      %v6067 = vpop.f32.mrb[0].mxu0
      %v6068 = vadd.f32 0.0, %v6067
      %v6069 = vpop.f32.mrb[0].mxu0
      %v6070 = vpop.f32.mrb[0].mxu0
      %v6071 = vadd.f32 0.0, %v6070
      %v6072 = vpop.f32.mrb[0].mxu0
      %6073 = vmatprep.mubr.bf16.mxu0 0
      %6074 = vmatmul.mubr.bf16.gmra.mrb[0].mxu0 %v5790
      %v6075 = vpop.f32.mrb[0].mxu0
      %v6076 = vadd.f32 0.0, %v6075
      %v6077 = vpop.f32.mrb[0].mxu0
      %v6078 = vpop.f32.mrb[0].mxu0
      %v6079 = vadd.f32 0.0, %v6078
      %v6080 = vpop.f32.mrb[0].mxu0
      %6081 = vdwg.mxu0
      %s6082 = scalar_lea.vmem %s19, 256
      %v6083 = vld [vmem:[%s6082] sm:$0xff]
      %v6084 = vld [vmem:[%s6082 + $0x8] sm:$0xff]
      %v6085 = vld [vmem:[%s6082 + $0x10] sm:$0xff]
      %v6086 = vld [vmem:[%s6082 + $0x18] sm:$0xff]
      %v6087 = vld [vmem:[%s6082 + $0x20] sm:$0xff]
      %v6088 = vld [vmem:[%s6082 + $0x28] sm:$0xff]
      %v6089 = vld [vmem:[%s6082 + $0x30] sm:$0xff]
      %v6090 = vld [vmem:[%s6082 + $0x38] sm:$0xff]
      %v6091 = vld [vmem:[%s6082 + $0x40] sm:$0xff]
      %v6092 = vld [vmem:[%s6082 + $0x48] sm:$0xff]
      %v6093 = vld [vmem:[%s6082 + $0x50] sm:$0xff]
      %v6094 = vld [vmem:[%s6082 + $0x58] sm:$0xff]
      %v6095 = vld [vmem:[%s6082 + $0x60] sm:$0xff]
      %v6096 = vld [vmem:[%s6082 + $0x68] sm:$0xff]
      %v6097 = vld [vmem:[%s6082 + $0x70] sm:$0xff]
      %v6098 = vld [vmem:[%s6082 + $0x78] sm:$0xff]
      %v6099 = vld [vmem:[%s6082 + $0x80] sm:$0xff]
      %v6100 = vld [vmem:[%s6082 + $0x88] sm:$0xff]
      %v6101 = vld [vmem:[%s6082 + $0x90] sm:$0xff]
      %v6102 = vld [vmem:[%s6082 + $0x98] sm:$0xff]
      %v6103 = vld [vmem:[%s6082 + $0xa0] sm:$0xff]
      %v6104 = vld [vmem:[%s6082 + $0xa8] sm:$0xff]
      %v6105 = vld [vmem:[%s6082 + $0xb0] sm:$0xff]
      %v6106 = vld [vmem:[%s6082 + $0xb8] sm:$0xff]
      %v6107 = vld [vmem:[%s6082 + $0xc0] sm:$0xff]
      %v6108 = vld [vmem:[%s6082 + $0xc8] sm:$0xff]
      %v6109 = vld [vmem:[%s6082 + $0xd0] sm:$0xff]
      %v6110 = vld [vmem:[%s6082 + $0xd8] sm:$0xff]
      %v6111 = vld [vmem:[%s6082 + $0xe0] sm:$0xff]
      %v6112 = vld [vmem:[%s6082 + $0xe8] sm:$0xff]
      %v6113 = vld [vmem:[%s6082 + $0xf0] sm:$0xff]
      %v6114 = vld [vmem:[%s6082 + $0xf8] sm:$0xff]
      %v6116 = vsel %vm1590, %v6083, 0
      %v6119 = vsel %vm1590, %v6084, 0
      %v6122 = vsel %vm1590, %v6085, 0
      %v6125 = vsel %vm1590, %v6086, 0
      %v6128 = vsel %vm1590, %v6087, 0
      %v6131 = vsel %vm1590, %v6088, 0
      %v6134 = vsel %vm1590, %v6089, 0
      %v6137 = vsel %vm1590, %v6090, 0
      %v6140 = vsel %vm1590, %v6091, 0
      %v6143 = vsel %vm1590, %v6092, 0
      %v6146 = vsel %vm1590, %v6093, 0
      %v6149 = vsel %vm1590, %v6094, 0
      %v6152 = vsel %vm1590, %v6095, 0
      %v6155 = vsel %vm1590, %v6096, 0
      %v6158 = vsel %vm1590, %v6097, 0
      %v6161 = vsel %vm1590, %v6098, 0
      %v6164 = vsel %vm1590, %v6099, 0
      %v6167 = vsel %vm1590, %v6100, 0
      %v6170 = vsel %vm1590, %v6101, 0
      %v6173 = vsel %vm1590, %v6102, 0
      %v6176 = vsel %vm1590, %v6103, 0
      %v6179 = vsel %vm1590, %v6104, 0
      %v6182 = vsel %vm1590, %v6105, 0
      %v6185 = vsel %vm1590, %v6106, 0
      %v6188 = vsel %vm1590, %v6107, 0
      %v6191 = vsel %vm1590, %v6108, 0
      %v6194 = vsel %vm1590, %v6109, 0
      %v6197 = vsel %vm1590, %v6110, 0
      %v6200 = vsel %vm1590, %v6111, 0
      %v6203 = vsel %vm1590, %v6112, 0
      %v6206 = vsel %vm1590, %v6113, 0
      %v6209 = vsel %vm1590, %v6114, 0
      %6211 = vmatprep.subr.mxu0 0.0
      %6212 = vmatpush1.msra.mxu0 %v6052
      %6213 = vmatprep.subr.mxu0 0.0
      %6214 = vmatpush1.msra.mxu0 %v6055
      %6215 = vmatprep.subr.mxu0 0.0
      %6216 = vmatpush1.msra.mxu0 %v6060
      %6217 = vmatprep.subr.mxu0 0.0
      %6218 = vmatpush1.msra.mxu0 %v6063
      %6219 = vmatprep.subr.mxu0 0.0
      %6220 = vmatpush1.msra.mxu0 %v6068
      %6221 = vmatprep.subr.mxu0 0.0
      %6222 = vmatpush1.msra.mxu0 %v6071
      %6223 = vmatprep.subr.mxu0 0.0
      %6224 = vmatpush1.msra.mxu0 %v6076
      %6225 = vmatprep.subr.mxu0 0.0
      %6226 = vmatpush1.msra.mxu0 %v6079
      %6227 = vmatprep.subr.mxu0 0.0
      %6228 = vmatpush1.msra.mxu0 0.0
      %6229 = vmatprep.subr.mxu0 0.0
      %6230 = vmatpush1.msra.mxu0 0.0
      %6231 = vmatprep.subr.mxu0 0.0
      %6232 = vmatpush1.msra.mxu0 0.0
      %6233 = vmatprep.subr.mxu0 0.0
      %6234 = vmatpush1.msra.mxu0 0.0
      %6235 = vmatprep.subr.mxu0 0.0
      %6236 = vmatpush1.msra.mxu0 0.0
      %6237 = vmatprep.subr.mxu0 0.0
      %6238 = vmatpush1.msra.mxu0 0.0
      %6239 = vmatprep.subr.mxu0 0.0
      %6240 = vmatpush1.msra.mxu0 0.0
      %6241 = vmatprep.subr.mxu0 0.0
      %6242 = vmatpush1.msra.mxu0 0.0
      %6243 = vmatprep.subr.mxu0 0.0
      %6244 = vmatpush1.msra.mxu0 0.0
      %6245 = vmatprep.subr.mxu0 0.0
      %6246 = vmatpush1.msra.mxu0 0.0
      %6247 = vmatprep.subr.mxu0 0.0
      %6248 = vmatpush1.msra.mxu0 0.0
      %6249 = vmatprep.subr.mxu0 0.0
      %6250 = vmatpush1.msra.mxu0 0.0
      %6251 = vmatprep.subr.mxu0 0.0
      %6252 = vmatpush1.msra.mxu0 0.0
      %6253 = vmatprep.subr.mxu0 0.0
      %6254 = vmatpush1.msra.mxu0 0.0
      %6255 = vmatprep.subr.mxu0 0.0
      %6256 = vmatpush1.msra.mxu0 0.0
      %6257 = vmatprep.subr.mxu0 0.0
      %6258 = vmatpush1.msra.mxu0 0.0
      %6259 = vmatprep.subr.mxu0 0.0
      %6260 = vmatpush1.msra.mxu0 0.0
      %6261 = vmatprep.subr.mxu0 0.0
      %6262 = vmatpush1.msra.mxu0 0.0
      %6263 = vmatprep.subr.mxu0 0.0
      %6264 = vmatpush1.msra.mxu0 0.0
      %6265 = vmatprep.subr.mxu0 0.0
      %6266 = vmatpush1.msra.mxu0 0.0
      %6267 = vmatprep.subr.mxu0 0.0
      %6268 = vmatpush1.msra.mxu0 0.0
      %6269 = vmatprep.subr.mxu0 0.0
      %6270 = vmatpush1.msra.mxu0 0.0
      %6271 = vmatprep.subr.mxu0 0.0
      %6272 = vmatpush1.msra.mxu0 0.0
      %6273 = vmatprep.subr.mxu0 0.0
      %6274 = vmatpush1.msra.mxu0 0.0
      %6275 = vmatprep.mubr.f32.mxu0 0.0
      %6276 = vmatmul.mubr.f32.gmra.mrb[0].mxu0 %v6116
      %v6277 = vpop.f32.mrb[0].mxu0
      %v6278 = vadd.f32 0.0, %v6277
      %v6279 = vpop.f32.mrb[0].mxu0
      %6280 = vmatprep.mubr.f32.mxu0 0.0
      %6281 = vmatmul.mubr.f32.gmra.mrb[0].mxu0 %v6119
      %v6282 = vpop.f32.mrb[0].mxu0
      %v6283 = vadd.f32 0.0, %v6282
      %v6284 = vpop.f32.mrb[0].mxu0
      %6285 = vmatprep.mubr.f32.mxu0 0.0
      %6286 = vmatmul.mubr.f32.gmra.mrb[0].mxu0 %v6122
      %v6287 = vpop.f32.mrb[0].mxu0
      %v6288 = vadd.f32 0.0, %v6287
      %v6289 = vpop.f32.mrb[0].mxu0
      %6290 = vmatprep.mubr.f32.mxu0 0.0
      %6291 = vmatmul.mubr.f32.gmra.mrb[0].mxu0 %v6125
      %v6292 = vpop.f32.mrb[0].mxu0
      %v6293 = vadd.f32 0.0, %v6292
      %v6294 = vpop.f32.mrb[0].mxu0
      %6295 = vmatprep.mubr.f32.mxu0 0.0
      %6296 = vmatmul.mubr.f32.gmra.mrb[0].mxu0 %v6128
      %v6297 = vpop.f32.mrb[0].mxu0
      %v6298 = vadd.f32 0.0, %v6297
      %v6299 = vpop.f32.mrb[0].mxu0
      %6300 = vmatprep.mubr.f32.mxu0 0.0
      %6301 = vmatmul.mubr.f32.gmra.mrb[0].mxu0 %v6131
      %v6302 = vpop.f32.mrb[0].mxu0
      %v6303 = vadd.f32 0.0, %v6302
      %v6304 = vpop.f32.mrb[0].mxu0
      %6305 = vmatprep.mubr.f32.mxu0 0.0
      %6306 = vmatmul.mubr.f32.gmra.mrb[0].mxu0 %v6134
      %v6307 = vpop.f32.mrb[0].mxu0
      %v6308 = vadd.f32 0.0, %v6307
      %v6309 = vpop.f32.mrb[0].mxu0
      %6310 = vmatprep.mubr.f32.mxu0 0.0
      %6311 = vmatmul.mubr.f32.gmra.mrb[0].mxu0 %v6137
      %v6312 = vpop.f32.mrb[0].mxu0
      %v6313 = vadd.f32 0.0, %v6312
      %v6314 = vpop.f32.mrb[0].mxu0
      %6315 = vmatprep.mubr.f32.mxu0 0.0
      %6316 = vmatmul.mubr.f32.gmra.mrb[0].mxu0 %v6140
      %v6317 = vpop.f32.mrb[0].mxu0
      %v6318 = vadd.f32 0.0, %v6317
      %v6319 = vpop.f32.mrb[0].mxu0
      %6320 = vmatprep.mubr.f32.mxu0 0.0
      %6321 = vmatmul.mubr.f32.gmra.mrb[0].mxu0 %v6143
      %v6322 = vpop.f32.mrb[0].mxu0
      %v6323 = vadd.f32 0.0, %v6322
      %v6324 = vpop.f32.mrb[0].mxu0
      %6325 = vmatprep.mubr.f32.mxu0 0.0
      %6326 = vmatmul.mubr.f32.gmra.mrb[0].mxu0 %v6146
      %v6327 = vpop.f32.mrb[0].mxu0
      %v6328 = vadd.f32 0.0, %v6327
      %v6329 = vpop.f32.mrb[0].mxu0
      %6330 = vmatprep.mubr.f32.mxu0 0.0
      %6331 = vmatmul.mubr.f32.gmra.mrb[0].mxu0 %v6149
      %v6332 = vpop.f32.mrb[0].mxu0
      %v6333 = vadd.f32 0.0, %v6332
      %v6334 = vpop.f32.mrb[0].mxu0
      %6335 = vmatprep.mubr.f32.mxu0 0.0
      %6336 = vmatmul.mubr.f32.gmra.mrb[0].mxu0 %v6152
      %v6337 = vpop.f32.mrb[0].mxu0
      %v6338 = vadd.f32 0.0, %v6337
      %v6339 = vpop.f32.mrb[0].mxu0
      %6340 = vmatprep.mubr.f32.mxu0 0.0
      %6341 = vmatmul.mubr.f32.gmra.mrb[0].mxu0 %v6155
      %v6342 = vpop.f32.mrb[0].mxu0
      %v6343 = vadd.f32 0.0, %v6342
      %v6344 = vpop.f32.mrb[0].mxu0
      %6345 = vmatprep.mubr.f32.mxu0 0.0
      %6346 = vmatmul.mubr.f32.gmra.mrb[0].mxu0 %v6158
      %v6347 = vpop.f32.mrb[0].mxu0
      %v6348 = vadd.f32 0.0, %v6347
      %v6349 = vpop.f32.mrb[0].mxu0
      %6350 = vmatprep.mubr.f32.mxu0 0.0
      %6351 = vmatmul.mubr.f32.gmra.mrb[0].mxu0 %v6161
      %v6352 = vpop.f32.mrb[0].mxu0
      %v6353 = vadd.f32 0.0, %v6352
      %v6354 = vpop.f32.mrb[0].mxu0
      %6355 = vmatprep.mubr.f32.mxu0 0.0
      %6356 = vmatmul.mubr.f32.gmra.mrb[0].mxu0 %v6164
      %v6357 = vpop.f32.mrb[0].mxu0
      %v6358 = vadd.f32 0.0, %v6357
      %v6359 = vpop.f32.mrb[0].mxu0
      %6360 = vmatprep.mubr.f32.mxu0 0.0
      %6361 = vmatmul.mubr.f32.gmra.mrb[0].mxu0 %v6167
      %v6362 = vpop.f32.mrb[0].mxu0
      %v6363 = vadd.f32 0.0, %v6362
      %v6364 = vpop.f32.mrb[0].mxu0
      %6365 = vmatprep.mubr.f32.mxu0 0.0
      %6366 = vmatmul.mubr.f32.gmra.mrb[0].mxu0 %v6170
      %v6367 = vpop.f32.mrb[0].mxu0
      %v6368 = vadd.f32 0.0, %v6367
      %v6369 = vpop.f32.mrb[0].mxu0
      %6370 = vmatprep.mubr.f32.mxu0 0.0
      %6371 = vmatmul.mubr.f32.gmra.mrb[0].mxu0 %v6173
      %v6372 = vpop.f32.mrb[0].mxu0
      %v6373 = vadd.f32 0.0, %v6372
      %v6374 = vpop.f32.mrb[0].mxu0
      %6375 = vmatprep.mubr.f32.mxu0 0.0
      %6376 = vmatmul.mubr.f32.gmra.mrb[0].mxu0 %v6176
      %v6377 = vpop.f32.mrb[0].mxu0
      %v6378 = vadd.f32 0.0, %v6377
      %v6379 = vpop.f32.mrb[0].mxu0
      %6380 = vmatprep.mubr.f32.mxu0 0.0
      %6381 = vmatmul.mubr.f32.gmra.mrb[0].mxu0 %v6179
      %v6382 = vpop.f32.mrb[0].mxu0
      %v6383 = vadd.f32 0.0, %v6382
      %v6384 = vpop.f32.mrb[0].mxu0
      %6385 = vmatprep.mubr.f32.mxu0 0.0
      %6386 = vmatmul.mubr.f32.gmra.mrb[0].mxu0 %v6182
      %v6387 = vpop.f32.mrb[0].mxu0
      %v6388 = vadd.f32 0.0, %v6387
      %v6389 = vpop.f32.mrb[0].mxu0
      %6390 = vmatprep.mubr.f32.mxu0 0.0
      %6391 = vmatmul.mubr.f32.gmra.mrb[0].mxu0 %v6185
      %v6392 = vpop.f32.mrb[0].mxu0
      %v6393 = vadd.f32 0.0, %v6392
      %v6394 = vpop.f32.mrb[0].mxu0
      %6395 = vmatprep.mubr.f32.mxu0 0.0
      %6396 = vmatmul.mubr.f32.gmra.mrb[0].mxu0 %v6188
      %v6397 = vpop.f32.mrb[0].mxu0
      %v6398 = vadd.f32 0.0, %v6397
      %v6399 = vpop.f32.mrb[0].mxu0
      %6400 = vmatprep.mubr.f32.mxu0 0.0
      %6401 = vmatmul.mubr.f32.gmra.mrb[0].mxu0 %v6191
      %v6402 = vpop.f32.mrb[0].mxu0
      %v6403 = vadd.f32 0.0, %v6402
      %v6404 = vpop.f32.mrb[0].mxu0
      %6405 = vmatprep.mubr.f32.mxu0 0.0
      %6406 = vmatmul.mubr.f32.gmra.mrb[0].mxu0 %v6194
      %v6407 = vpop.f32.mrb[0].mxu0
      %v6408 = vadd.f32 0.0, %v6407
      %v6409 = vpop.f32.mrb[0].mxu0
      %6410 = vmatprep.mubr.f32.mxu0 0.0
      %6411 = vmatmul.mubr.f32.gmra.mrb[0].mxu0 %v6197
      %v6412 = vpop.f32.mrb[0].mxu0
      %v6413 = vadd.f32 0.0, %v6412
      %v6414 = vpop.f32.mrb[0].mxu0
      %6415 = vmatprep.mubr.f32.mxu0 0.0
      %6416 = vmatmul.mubr.f32.gmra.mrb[0].mxu0 %v6200
      %v6417 = vpop.f32.mrb[0].mxu0
      %v6418 = vadd.f32 0.0, %v6417
      %v6419 = vpop.f32.mrb[0].mxu0
      %6420 = vmatprep.mubr.f32.mxu0 0.0
      %6421 = vmatmul.mubr.f32.gmra.mrb[0].mxu0 %v6203
      %v6422 = vpop.f32.mrb[0].mxu0
      %v6423 = vadd.f32 0.0, %v6422
      %v6424 = vpop.f32.mrb[0].mxu0
      %6425 = vmatprep.mubr.f32.mxu0 0.0
      %6426 = vmatmul.mubr.f32.gmra.mrb[0].mxu0 %v6206
      %v6427 = vpop.f32.mrb[0].mxu0
      %v6428 = vadd.f32 0.0, %v6427
      %v6429 = vpop.f32.mrb[0].mxu0
      %6430 = vmatprep.mubr.f32.mxu0 0.0
      %6431 = vmatmul.mubr.f32.gmra.mrb[0].mxu0 %v6209
      %v6432 = vpop.f32.mrb[0].mxu0
      %v6433 = vadd.f32 0.0, %v6432
      %v6434 = vpop.f32.mrb[0].mxu0
      %6435 = vdwg.mxu0
      %v6437 = vsel %vm1590, %v5920, 0
      %v6440 = vsel %vm1590, %v5921, 0
      %v6443 = vsel %vm1590, %v5922, 0
      %v6446 = vsel %vm1590, %v5923, 0
      %v6449 = vsel %vm1590, %v5924, 0
      %v6452 = vsel %vm1590, %v5925, 0
      %v6455 = vsel %vm1590, %v5926, 0
      %v6458 = vsel %vm1590, %v5927, 0
      %v6461 = vsel %vm1590, %v5928, 0
      %v6464 = vsel %vm1590, %v5929, 0
      %v6467 = vsel %vm1590, %v5930, 0
      %v6470 = vsel %vm1590, %v5931, 0
      %v6473 = vsel %vm1590, %v5932, 0
      %v6476 = vsel %vm1590, %v5933, 0
      %v6479 = vsel %vm1590, %v5934, 0
      %v6482 = vsel %vm1590, %v5935, 0
      %v6485 = vsel %vm1590, %v5936, 0
      %v6488 = vsel %vm1590, %v5937, 0
      %v6491 = vsel %vm1590, %v5938, 0
      %v6494 = vsel %vm1590, %v5939, 0
      %v6497 = vsel %vm1590, %v5940, 0
      %v6500 = vsel %vm1590, %v5941, 0
      %v6503 = vsel %vm1590, %v5942, 0
      %v6506 = vsel %vm1590, %v5943, 0
      %v6509 = vsel %vm1590, %v5944, 0
      %v6512 = vsel %vm1590, %v5945, 0
      %v6515 = vsel %vm1590, %v5946, 0
      %v6518 = vsel %vm1590, %v5947, 0
      %v6521 = vsel %vm1590, %v5948, 0
      %v6524 = vsel %vm1590, %v5949, 0
      %v6527 = vsel %vm1590, %v5950, 0
      %v6530 = vsel %vm1590, %v5951, 0
      %6532 = vmatprep.subr.mxu0 0.0
      %6533 = vmatpush1.msra.mxu0 %v5890
      %6534 = vmatprep.subr.mxu0 0.0
      %6535 = vmatpush1.msra.mxu0 %v5893
      %6536 = vmatprep.subr.mxu0 0.0
      %6537 = vmatpush1.msra.mxu0 %v5898
      %6538 = vmatprep.subr.mxu0 0.0
      %6539 = vmatpush1.msra.mxu0 %v5901
      %6540 = vmatprep.subr.mxu0 0.0
      %6541 = vmatpush1.msra.mxu0 %v5906
      %6542 = vmatprep.subr.mxu0 0.0
      %6543 = vmatpush1.msra.mxu0 %v5909
      %6544 = vmatprep.subr.mxu0 0.0
      %6545 = vmatpush1.msra.mxu0 %v5914
      %6546 = vmatprep.subr.mxu0 0.0
      %6547 = vmatpush1.msra.mxu0 %v5917
      %6548 = vmatprep.subr.mxu0 0.0
      %6549 = vmatpush1.msra.mxu0 0.0
      %6550 = vmatprep.subr.mxu0 0.0
      %6551 = vmatpush1.msra.mxu0 0.0
      %6552 = vmatprep.subr.mxu0 0.0
      %6553 = vmatpush1.msra.mxu0 0.0
      %6554 = vmatprep.subr.mxu0 0.0
      %6555 = vmatpush1.msra.mxu0 0.0
      %6556 = vmatprep.subr.mxu0 0.0
      %6557 = vmatpush1.msra.mxu0 0.0
      %6558 = vmatprep.subr.mxu0 0.0
      %6559 = vmatpush1.msra.mxu0 0.0
      %6560 = vmatprep.subr.mxu0 0.0
      %6561 = vmatpush1.msra.mxu0 0.0
      %6562 = vmatprep.subr.mxu0 0.0
      %6563 = vmatpush1.msra.mxu0 0.0
      %6564 = vmatprep.subr.mxu0 0.0
      %6565 = vmatpush1.msra.mxu0 0.0
      %6566 = vmatprep.subr.mxu0 0.0
      %6567 = vmatpush1.msra.mxu0 0.0
      %6568 = vmatprep.subr.mxu0 0.0
      %6569 = vmatpush1.msra.mxu0 0.0
      %6570 = vmatprep.subr.mxu0 0.0
      %6571 = vmatpush1.msra.mxu0 0.0
      %6572 = vmatprep.subr.mxu0 0.0
      %6573 = vmatpush1.msra.mxu0 0.0
      %6574 = vmatprep.subr.mxu0 0.0
      %6575 = vmatpush1.msra.mxu0 0.0
      %6576 = vmatprep.subr.mxu0 0.0
      %6577 = vmatpush1.msra.mxu0 0.0
      %6578 = vmatprep.subr.mxu0 0.0
      %6579 = vmatpush1.msra.mxu0 0.0
      %6580 = vmatprep.subr.mxu0 0.0
      %6581 = vmatpush1.msra.mxu0 0.0
      %6582 = vmatprep.subr.mxu0 0.0
      %6583 = vmatpush1.msra.mxu0 0.0
      %6584 = vmatprep.subr.mxu0 0.0
      %6585 = vmatpush1.msra.mxu0 0.0
      %6586 = vmatprep.subr.mxu0 0.0
      %6587 = vmatpush1.msra.mxu0 0.0
      %6588 = vmatprep.subr.mxu0 0.0
      %6589 = vmatpush1.msra.mxu0 0.0
      %6590 = vmatprep.subr.mxu0 0.0
      %6591 = vmatpush1.msra.mxu0 0.0
      %6592 = vmatprep.subr.mxu0 0.0
      %6593 = vmatpush1.msra.mxu0 0.0
      %6594 = vmatprep.subr.mxu0 0.0
      %6595 = vmatpush1.msra.mxu0 0.0
      %6596 = vmatprep.mubr.f32.mxu0 0.0
      %6597 = vmatmul.mubr.f32.gmra.mrb[0].mxu0 %v6437
      %v6598 = vpop.f32.mrb[0].mxu0
      %v6599 = vadd.f32 %v6278, %v6598
      %v6600 = vpop.f32.mrb[0].mxu0
      %6601 = vmatprep.mubr.f32.mxu0 0.0
      %6602 = vmatmul.mubr.f32.gmra.mrb[0].mxu0 %v6440
      %v6603 = vpop.f32.mrb[0].mxu0
      %v6604 = vadd.f32 %v6283, %v6603
      %v6605 = vpop.f32.mrb[0].mxu0
      %6606 = vmatprep.mubr.f32.mxu0 0.0
      %6607 = vmatmul.mubr.f32.gmra.mrb[0].mxu0 %v6443
      %v6608 = vpop.f32.mrb[0].mxu0
      %v6609 = vadd.f32 %v6288, %v6608
      %v6610 = vpop.f32.mrb[0].mxu0
      %6611 = vmatprep.mubr.f32.mxu0 0.0
      %6612 = vmatmul.mubr.f32.gmra.mrb[0].mxu0 %v6446
      %v6613 = vpop.f32.mrb[0].mxu0
      %v6614 = vadd.f32 %v6293, %v6613
      %v6615 = vpop.f32.mrb[0].mxu0
      %6616 = vmatprep.mubr.f32.mxu0 0.0
      %6617 = vmatmul.mubr.f32.gmra.mrb[0].mxu0 %v6449
      %v6618 = vpop.f32.mrb[0].mxu0
      %v6619 = vadd.f32 %v6298, %v6618
      %v6620 = vpop.f32.mrb[0].mxu0
      %6621 = vmatprep.mubr.f32.mxu0 0.0
      %6622 = vmatmul.mubr.f32.gmra.mrb[0].mxu0 %v6452
      %v6623 = vpop.f32.mrb[0].mxu0
      %v6624 = vadd.f32 %v6303, %v6623
      %v6625 = vpop.f32.mrb[0].mxu0
      %6626 = vmatprep.mubr.f32.mxu0 0.0
      %6627 = vmatmul.mubr.f32.gmra.mrb[0].mxu0 %v6455
      %v6628 = vpop.f32.mrb[0].mxu0
      %v6629 = vadd.f32 %v6308, %v6628
      %v6630 = vpop.f32.mrb[0].mxu0
      %6631 = vmatprep.mubr.f32.mxu0 0.0
      %6632 = vmatmul.mubr.f32.gmra.mrb[0].mxu0 %v6458
      %v6633 = vpop.f32.mrb[0].mxu0
      %v6634 = vadd.f32 %v6313, %v6633
      %v6635 = vpop.f32.mrb[0].mxu0
      %6636 = vmatprep.mubr.f32.mxu0 0.0
      %6637 = vmatmul.mubr.f32.gmra.mrb[0].mxu0 %v6461
      %v6638 = vpop.f32.mrb[0].mxu0
      %v6639 = vadd.f32 %v6318, %v6638
      %v6640 = vpop.f32.mrb[0].mxu0
      %6641 = vmatprep.mubr.f32.mxu0 0.0
      %6642 = vmatmul.mubr.f32.gmra.mrb[0].mxu0 %v6464
      %v6643 = vpop.f32.mrb[0].mxu0
      %v6644 = vadd.f32 %v6323, %v6643
      %v6645 = vpop.f32.mrb[0].mxu0
      %6646 = vmatprep.mubr.f32.mxu0 0.0
      %6647 = vmatmul.mubr.f32.gmra.mrb[0].mxu0 %v6467
      %v6648 = vpop.f32.mrb[0].mxu0
      %v6649 = vadd.f32 %v6328, %v6648
      %v6650 = vpop.f32.mrb[0].mxu0
      %6651 = vmatprep.mubr.f32.mxu0 0.0
      %6652 = vmatmul.mubr.f32.gmra.mrb[0].mxu0 %v6470
      %v6653 = vpop.f32.mrb[0].mxu0
      %v6654 = vadd.f32 %v6333, %v6653
      %v6655 = vpop.f32.mrb[0].mxu0
      %6656 = vmatprep.mubr.f32.mxu0 0.0
      %6657 = vmatmul.mubr.f32.gmra.mrb[0].mxu0 %v6473
      %v6658 = vpop.f32.mrb[0].mxu0
      %v6659 = vadd.f32 %v6338, %v6658
      %v6660 = vpop.f32.mrb[0].mxu0
      %6661 = vmatprep.mubr.f32.mxu0 0.0
      %6662 = vmatmul.mubr.f32.gmra.mrb[0].mxu0 %v6476
      %v6663 = vpop.f32.mrb[0].mxu0
      %v6664 = vadd.f32 %v6343, %v6663
      %v6665 = vpop.f32.mrb[0].mxu0
      %6666 = vmatprep.mubr.f32.mxu0 0.0
      %6667 = vmatmul.mubr.f32.gmra.mrb[0].mxu0 %v6479
      %v6668 = vpop.f32.mrb[0].mxu0
      %v6669 = vadd.f32 %v6348, %v6668
      %v6670 = vpop.f32.mrb[0].mxu0
      %6671 = vmatprep.mubr.f32.mxu0 0.0
      %6672 = vmatmul.mubr.f32.gmra.mrb[0].mxu0 %v6482
      %v6673 = vpop.f32.mrb[0].mxu0
      %v6674 = vadd.f32 %v6353, %v6673
      %v6675 = vpop.f32.mrb[0].mxu0
      %6676 = vmatprep.mubr.f32.mxu0 0.0
      %6677 = vmatmul.mubr.f32.gmra.mrb[0].mxu0 %v6485
      %v6678 = vpop.f32.mrb[0].mxu0
      %v6679 = vadd.f32 %v6358, %v6678
      %v6680 = vpop.f32.mrb[0].mxu0
      %6681 = vmatprep.mubr.f32.mxu0 0.0
      %6682 = vmatmul.mubr.f32.gmra.mrb[0].mxu0 %v6488
      %v6683 = vpop.f32.mrb[0].mxu0
      %v6684 = vadd.f32 %v6363, %v6683
      %v6685 = vpop.f32.mrb[0].mxu0
      %6686 = vmatprep.mubr.f32.mxu0 0.0
      %6687 = vmatmul.mubr.f32.gmra.mrb[0].mxu0 %v6491
      %v6688 = vpop.f32.mrb[0].mxu0
      %v6689 = vadd.f32 %v6368, %v6688
      %v6690 = vpop.f32.mrb[0].mxu0
      %6691 = vmatprep.mubr.f32.mxu0 0.0
      %6692 = vmatmul.mubr.f32.gmra.mrb[0].mxu0 %v6494
      %v6693 = vpop.f32.mrb[0].mxu0
      %v6694 = vadd.f32 %v6373, %v6693
      %v6695 = vpop.f32.mrb[0].mxu0
      %6696 = vmatprep.mubr.f32.mxu0 0.0
      %6697 = vmatmul.mubr.f32.gmra.mrb[0].mxu0 %v6497
      %v6698 = vpop.f32.mrb[0].mxu0
      %v6699 = vadd.f32 %v6378, %v6698
      %v6700 = vpop.f32.mrb[0].mxu0
      %6701 = vmatprep.mubr.f32.mxu0 0.0
      %6702 = vmatmul.mubr.f32.gmra.mrb[0].mxu0 %v6500
      %v6703 = vpop.f32.mrb[0].mxu0
      %v6704 = vadd.f32 %v6383, %v6703
      %v6705 = vpop.f32.mrb[0].mxu0
      %6706 = vmatprep.mubr.f32.mxu0 0.0
      %6707 = vmatmul.mubr.f32.gmra.mrb[0].mxu0 %v6503
      %v6708 = vpop.f32.mrb[0].mxu0
      %v6709 = vadd.f32 %v6388, %v6708
      %v6710 = vpop.f32.mrb[0].mxu0
      %6711 = vmatprep.mubr.f32.mxu0 0.0
      %6712 = vmatmul.mubr.f32.gmra.mrb[0].mxu0 %v6506
      %v6713 = vpop.f32.mrb[0].mxu0
      %v6714 = vadd.f32 %v6393, %v6713
      %v6715 = vpop.f32.mrb[0].mxu0
      %6716 = vmatprep.mubr.f32.mxu0 0.0
      %6717 = vmatmul.mubr.f32.gmra.mrb[0].mxu0 %v6509
      %v6718 = vpop.f32.mrb[0].mxu0
      %v6719 = vadd.f32 %v6398, %v6718
      %v6720 = vpop.f32.mrb[0].mxu0
      %6721 = vmatprep.mubr.f32.mxu0 0.0
      %6722 = vmatmul.mubr.f32.gmra.mrb[0].mxu0 %v6512
      %v6723 = vpop.f32.mrb[0].mxu0
      %v6724 = vadd.f32 %v6403, %v6723
      %v6725 = vpop.f32.mrb[0].mxu0
      %6726 = vmatprep.mubr.f32.mxu0 0.0
      %6727 = vmatmul.mubr.f32.gmra.mrb[0].mxu0 %v6515
      %v6728 = vpop.f32.mrb[0].mxu0
      %v6729 = vadd.f32 %v6408, %v6728
      %v6730 = vpop.f32.mrb[0].mxu0
      %6731 = vmatprep.mubr.f32.mxu0 0.0
      %6732 = vmatmul.mubr.f32.gmra.mrb[0].mxu0 %v6518
      %v6733 = vpop.f32.mrb[0].mxu0
      %v6734 = vadd.f32 %v6413, %v6733
      %v6735 = vpop.f32.mrb[0].mxu0
      %6736 = vmatprep.mubr.f32.mxu0 0.0
      %6737 = vmatmul.mubr.f32.gmra.mrb[0].mxu0 %v6521
      %v6738 = vpop.f32.mrb[0].mxu0
      %v6739 = vadd.f32 %v6418, %v6738
      %v6740 = vpop.f32.mrb[0].mxu0
      %6741 = vmatprep.mubr.f32.mxu0 0.0
      %6742 = vmatmul.mubr.f32.gmra.mrb[0].mxu0 %v6524
      %v6743 = vpop.f32.mrb[0].mxu0
      %v6744 = vadd.f32 %v6423, %v6743
      %v6745 = vpop.f32.mrb[0].mxu0
      %6746 = vmatprep.mubr.f32.mxu0 0.0
      %6747 = vmatmul.mubr.f32.gmra.mrb[0].mxu0 %v6527
      %v6748 = vpop.f32.mrb[0].mxu0
      %v6749 = vadd.f32 %v6428, %v6748
      %v6750 = vpop.f32.mrb[0].mxu0
      %6751 = vmatprep.mubr.f32.mxu0 0.0
      %6752 = vmatmul.mubr.f32.gmra.mrb[0].mxu0 %v6530
      %v6753 = vpop.f32.mrb[0].mxu0
      %v6754 = vadd.f32 %v6433, %v6753
      %v6755 = vpop.f32.mrb[0].mxu0
      %6756 = vdwg.mxu0
      %s6757 = scalar_lea.vmem %s12, 128
      %v6758 = vld [vmem:[%s6757] sm:$0xf]
      %v6759 = vld [vmem:[%s6757 + $0x4] sm:$0xf]
      %v6760 = vld [vmem:[%s6757 + $0x8] sm:$0xf]
      %v6761 = vld [vmem:[%s6757 + $0xc] sm:$0xf]
      %v6762 = vld [vmem:[%s6757 + $0x10] sm:$0xf]
      %v6763 = vld [vmem:[%s6757 + $0x14] sm:$0xf]
      %v6764 = vld [vmem:[%s6757 + $0x18] sm:$0xf]
      %v6765 = vld [vmem:[%s6757 + $0x1c] sm:$0xf]
      %v6766 = vld [vmem:[%s6757 + $0x20] sm:$0xf]
      %v6767 = vld [vmem:[%s6757 + $0x24] sm:$0xf]
      %v6768 = vld [vmem:[%s6757 + $0x28] sm:$0xf]
      %v6769 = vld [vmem:[%s6757 + $0x2c] sm:$0xf]
      %v6770 = vld [vmem:[%s6757 + $0x30] sm:$0xf]
      %v6771 = vld [vmem:[%s6757 + $0x34] sm:$0xf]
      %v6772 = vld [vmem:[%s6757 + $0x38] sm:$0xf]
      %v6773 = vld [vmem:[%s6757 + $0x3c] sm:$0xf]
      %v6790 = vunpack.c.l.b16 %v6758
      %v6791 = vunpack.c.l.b16 %v6759
      %v6792 = vunpack.c.l.b16 %v6760
      %v6793 = vunpack.c.l.b16 %v6761
      %v6794 = vunpack.c.l.b16 %v6762
      %v6795 = vunpack.c.l.b16 %v6763
      %v6796 = vunpack.c.l.b16 %v6764
      %v6797 = vunpack.c.l.b16 %v6765
      %v6798 = vunpack.c.l.b16 %v6766
      %v6799 = vunpack.c.l.b16 %v6767
      %v6800 = vunpack.c.l.b16 %v6768
      %v6801 = vunpack.c.l.b16 %v6769
      %v6802 = vunpack.c.l.b16 %v6770
      %v6803 = vunpack.c.l.b16 %v6771
      %v6804 = vunpack.c.l.b16 %v6772
      %v6805 = vunpack.c.l.b16 %v6773
      %v6806 = vpack.c.b16 %v6791, %v6790
      %v6807 = vpack.c.b16 %v6793, %v6792
      %v6808 = vpack.c.b16 %v6795, %v6794
      %v6809 = vpack.c.b16 %v6797, %v6796
      %v6810 = vpack.c.b16 %v6799, %v6798
      %v6811 = vpack.c.b16 %v6801, %v6800
      %v6812 = vpack.c.b16 %v6803, %v6802
      %v6813 = vpack.c.b16 %v6805, %v6804
      %6822 = vmatprep.subr.bf16.mxu0 0
      %6823 = vmatpush1.bf16.msra.mxu0 %v6806
      %6824 = vmatprep.subr.bf16.mxu0 0
      %6825 = vmatpush1.bf16.msra.mxu0 %v6807
      %6826 = vmatprep.subr.bf16.mxu0 0
      %6827 = vmatpush1.bf16.msra.mxu0 %v6808
      %6828 = vmatprep.subr.bf16.mxu0 0
      %6829 = vmatpush1.bf16.msra.mxu0 %v6809
      %6830 = vmatprep.subr.bf16.mxu0 0
      %6831 = vmatpush1.bf16.msra.mxu0 %v6810
      %6832 = vmatprep.subr.bf16.mxu0 0
      %6833 = vmatpush1.bf16.msra.mxu0 %v6811
      %6834 = vmatprep.subr.bf16.mxu0 0
      %6835 = vmatpush1.bf16.msra.mxu0 %v6812
      %6836 = vmatprep.subr.bf16.mxu0 0
      %6837 = vmatpush1.bf16.msra.mxu0 %v6813
      %6838 = vmatprep.subr.bf16.mxu0 0
      %6839 = vmatpush1.bf16.msra.mxu0 0
      %6840 = vmatprep.subr.bf16.mxu0 0
      %6841 = vmatpush1.bf16.msra.mxu0 0
      %6842 = vmatprep.subr.bf16.mxu0 0
      %6843 = vmatpush1.bf16.msra.mxu0 0
      %6844 = vmatprep.subr.bf16.mxu0 0
      %6845 = vmatpush1.bf16.msra.mxu0 0
      %6846 = vmatprep.subr.bf16.mxu0 0
      %6847 = vmatpush1.bf16.msra.mxu0 0
      %6848 = vmatprep.subr.bf16.mxu0 0
      %6849 = vmatpush1.bf16.msra.mxu0 0
      %6850 = vmatprep.subr.bf16.mxu0 0
      %6851 = vmatpush1.bf16.msra.mxu0 0
      %6852 = vmatprep.subr.bf16.mxu0 0
      %6853 = vmatpush1.bf16.msra.mxu0 0
      %6854 = vmatprep.mubr.bf16.mxu0 0
      %6855 = vmatmul.mubr.bf16.gmra.mrb[0].mxu0 %v5787
      %v6856 = vpop.f32.mrb[0].mxu0
      %v6857 = vadd.f32 0.0, %v6856
      %v6858 = vpop.f32.mrb[0].mxu0
      %v6859 = vpop.f32.mrb[0].mxu0
      %v6860 = vadd.f32 0.0, %v6859
      %v6861 = vpop.f32.mrb[0].mxu0
      %6862 = vmatprep.mubr.bf16.mxu0 0
      %6863 = vmatmul.mubr.bf16.gmra.mrb[0].mxu0 %v5788
      %v6864 = vpop.f32.mrb[0].mxu0
      %v6865 = vadd.f32 0.0, %v6864
      %v6866 = vpop.f32.mrb[0].mxu0
      %v6867 = vpop.f32.mrb[0].mxu0
      %v6868 = vadd.f32 0.0, %v6867
      %v6869 = vpop.f32.mrb[0].mxu0
      %6870 = vmatprep.mubr.bf16.mxu0 0
      %6871 = vmatmul.mubr.bf16.gmra.mrb[0].mxu0 %v5789
      %v6872 = vpop.f32.mrb[0].mxu0
      %v6873 = vadd.f32 0.0, %v6872
      %v6874 = vpop.f32.mrb[0].mxu0
      %v6875 = vpop.f32.mrb[0].mxu0
      %v6876 = vadd.f32 0.0, %v6875
      %v6877 = vpop.f32.mrb[0].mxu0
      %6878 = vmatprep.mubr.bf16.mxu0 0
      %6879 = vmatmul.mubr.bf16.gmra.mrb[0].mxu0 %v5790
      %v6880 = vpop.f32.mrb[0].mxu0
      %v6881 = vadd.f32 0.0, %v6880
      %v6882 = vpop.f32.mrb[0].mxu0
      %v6883 = vpop.f32.mrb[0].mxu0
      %v6884 = vadd.f32 0.0, %v6883
      %v6885 = vpop.f32.mrb[0].mxu0
      %6886 = vdwg.mxu0
      %s6887 = scalar_lea.vmem %s19, 512
      %v6888 = vld [vmem:[%s6887] sm:$0xff]
      %v6889 = vld [vmem:[%s6887 + $0x8] sm:$0xff]
      %v6890 = vld [vmem:[%s6887 + $0x10] sm:$0xff]
      %v6891 = vld [vmem:[%s6887 + $0x18] sm:$0xff]
      %v6892 = vld [vmem:[%s6887 + $0x20] sm:$0xff]
      %v6893 = vld [vmem:[%s6887 + $0x28] sm:$0xff]
      %v6894 = vld [vmem:[%s6887 + $0x30] sm:$0xff]
      %v6895 = vld [vmem:[%s6887 + $0x38] sm:$0xff]
      %v6896 = vld [vmem:[%s6887 + $0x40] sm:$0xff]
      %v6897 = vld [vmem:[%s6887 + $0x48] sm:$0xff]
      %v6898 = vld [vmem:[%s6887 + $0x50] sm:$0xff]
      %v6899 = vld [vmem:[%s6887 + $0x58] sm:$0xff]
      %v6900 = vld [vmem:[%s6887 + $0x60] sm:$0xff]
      %v6901 = vld [vmem:[%s6887 + $0x68] sm:$0xff]
      %v6902 = vld [vmem:[%s6887 + $0x70] sm:$0xff]
      %v6903 = vld [vmem:[%s6887 + $0x78] sm:$0xff]
      %v6904 = vld [vmem:[%s6887 + $0x80] sm:$0xff]
      %v6905 = vld [vmem:[%s6887 + $0x88] sm:$0xff]
      %v6906 = vld [vmem:[%s6887 + $0x90] sm:$0xff]
      %v6907 = vld [vmem:[%s6887 + $0x98] sm:$0xff]
      %v6908 = vld [vmem:[%s6887 + $0xa0] sm:$0xff]
      %v6909 = vld [vmem:[%s6887 + $0xa8] sm:$0xff]
      %v6910 = vld [vmem:[%s6887 + $0xb0] sm:$0xff]
      %v6911 = vld [vmem:[%s6887 + $0xb8] sm:$0xff]
      %v6912 = vld [vmem:[%s6887 + $0xc0] sm:$0xff]
      %v6913 = vld [vmem:[%s6887 + $0xc8] sm:$0xff]
      %v6914 = vld [vmem:[%s6887 + $0xd0] sm:$0xff]
      %v6915 = vld [vmem:[%s6887 + $0xd8] sm:$0xff]
      %v6916 = vld [vmem:[%s6887 + $0xe0] sm:$0xff]
      %v6917 = vld [vmem:[%s6887 + $0xe8] sm:$0xff]
      %v6918 = vld [vmem:[%s6887 + $0xf0] sm:$0xff]
      %v6919 = vld [vmem:[%s6887 + $0xf8] sm:$0xff]
      %v6921 = vsel %vm1590, %v6888, 0
      %v6924 = vsel %vm1590, %v6889, 0
      %v6927 = vsel %vm1590, %v6890, 0
      %v6930 = vsel %vm1590, %v6891, 0
      %v6933 = vsel %vm1590, %v6892, 0
      %v6936 = vsel %vm1590, %v6893, 0
      %v6939 = vsel %vm1590, %v6894, 0
      %v6942 = vsel %vm1590, %v6895, 0
      %v6945 = vsel %vm1590, %v6896, 0
      %v6948 = vsel %vm1590, %v6897, 0
      %v6951 = vsel %vm1590, %v6898, 0
      %v6954 = vsel %vm1590, %v6899, 0
      %v6957 = vsel %vm1590, %v6900, 0
      %v6960 = vsel %vm1590, %v6901, 0
      %v6963 = vsel %vm1590, %v6902, 0
      %v6966 = vsel %vm1590, %v6903, 0
      %v6969 = vsel %vm1590, %v6904, 0
      %v6972 = vsel %vm1590, %v6905, 0
      %v6975 = vsel %vm1590, %v6906, 0
      %v6978 = vsel %vm1590, %v6907, 0
      %v6981 = vsel %vm1590, %v6908, 0
      %v6984 = vsel %vm1590, %v6909, 0
      %v6987 = vsel %vm1590, %v6910, 0
      %v6990 = vsel %vm1590, %v6911, 0
      %v6993 = vsel %vm1590, %v6912, 0
      %v6996 = vsel %vm1590, %v6913, 0
      %v6999 = vsel %vm1590, %v6914, 0
      %v7002 = vsel %vm1590, %v6915, 0
      %v7005 = vsel %vm1590, %v6916, 0
      %v7008 = vsel %vm1590, %v6917, 0
      %v7011 = vsel %vm1590, %v6918, 0
      %v7014 = vsel %vm1590, %v6919, 0
      %7016 = vmatprep.subr.mxu0 0.0
      %7017 = vmatpush1.msra.mxu0 %v6857
      %7018 = vmatprep.subr.mxu0 0.0
      %7019 = vmatpush1.msra.mxu0 %v6860
      %7020 = vmatprep.subr.mxu0 0.0
      %7021 = vmatpush1.msra.mxu0 %v6865
      %7022 = vmatprep.subr.mxu0 0.0
      %7023 = vmatpush1.msra.mxu0 %v6868
      %7024 = vmatprep.subr.mxu0 0.0
      %7025 = vmatpush1.msra.mxu0 %v6873
      %7026 = vmatprep.subr.mxu0 0.0
      %7027 = vmatpush1.msra.mxu0 %v6876
      %7028 = vmatprep.subr.mxu0 0.0
      %7029 = vmatpush1.msra.mxu0 %v6881
      %7030 = vmatprep.subr.mxu0 0.0
      %7031 = vmatpush1.msra.mxu0 %v6884
      %7032 = vmatprep.subr.mxu0 0.0
      %7033 = vmatpush1.msra.mxu0 0.0
      %7034 = vmatprep.subr.mxu0 0.0
      %7035 = vmatpush1.msra.mxu0 0.0
      %7036 = vmatprep.subr.mxu0 0.0
      %7037 = vmatpush1.msra.mxu0 0.0
      %7038 = vmatprep.subr.mxu0 0.0
      %7039 = vmatpush1.msra.mxu0 0.0
      %7040 = vmatprep.subr.mxu0 0.0
      %7041 = vmatpush1.msra.mxu0 0.0
      %7042 = vmatprep.subr.mxu0 0.0
      %7043 = vmatpush1.msra.mxu0 0.0
      %7044 = vmatprep.subr.mxu0 0.0
      %7045 = vmatpush1.msra.mxu0 0.0
      %7046 = vmatprep.subr.mxu0 0.0
      %7047 = vmatpush1.msra.mxu0 0.0
      %7048 = vmatprep.subr.mxu0 0.0
      %7049 = vmatpush1.msra.mxu0 0.0
      %7050 = vmatprep.subr.mxu0 0.0
      %7051 = vmatpush1.msra.mxu0 0.0
      %7052 = vmatprep.subr.mxu0 0.0
      %7053 = vmatpush1.msra.mxu0 0.0
      %7054 = vmatprep.subr.mxu0 0.0
      %7055 = vmatpush1.msra.mxu0 0.0
      %7056 = vmatprep.subr.mxu0 0.0
      %7057 = vmatpush1.msra.mxu0 0.0
      %7058 = vmatprep.subr.mxu0 0.0
      %7059 = vmatpush1.msra.mxu0 0.0
      %7060 = vmatprep.subr.mxu0 0.0
      %7061 = vmatpush1.msra.mxu0 0.0
      %7062 = vmatprep.subr.mxu0 0.0
      %7063 = vmatpush1.msra.mxu0 0.0
      %7064 = vmatprep.subr.mxu0 0.0
      %7065 = vmatpush1.msra.mxu0 0.0
      %7066 = vmatprep.subr.mxu0 0.0
      %7067 = vmatpush1.msra.mxu0 0.0
      %7068 = vmatprep.subr.mxu0 0.0
      %7069 = vmatpush1.msra.mxu0 0.0
      %7070 = vmatprep.subr.mxu0 0.0
      %7071 = vmatpush1.msra.mxu0 0.0
      %7072 = vmatprep.subr.mxu0 0.0
      %7073 = vmatpush1.msra.mxu0 0.0
      %7074 = vmatprep.subr.mxu0 0.0
      %7075 = vmatpush1.msra.mxu0 0.0
      %7076 = vmatprep.subr.mxu0 0.0
      %7077 = vmatpush1.msra.mxu0 0.0
      %7078 = vmatprep.subr.mxu0 0.0
      %7079 = vmatpush1.msra.mxu0 0.0
      %7080 = vmatprep.mubr.f32.mxu0 0.0
      %7081 = vmatmul.mubr.f32.gmra.mrb[0].mxu0 %v6921
      %v7082 = vpop.f32.mrb[0].mxu0
      %v7083 = vadd.f32 0.0, %v7082
      %v7084 = vpop.f32.mrb[0].mxu0
      %7085 = vmatprep.mubr.f32.mxu0 0.0
      %7086 = vmatmul.mubr.f32.gmra.mrb[0].mxu0 %v6924
      %v7087 = vpop.f32.mrb[0].mxu0
      %v7088 = vadd.f32 0.0, %v7087
      %v7089 = vpop.f32.mrb[0].mxu0
      %7090 = vmatprep.mubr.f32.mxu0 0.0
      %7091 = vmatmul.mubr.f32.gmra.mrb[0].mxu0 %v6927
      %v7092 = vpop.f32.mrb[0].mxu0
      %v7093 = vadd.f32 0.0, %v7092
      %v7094 = vpop.f32.mrb[0].mxu0
      %7095 = vmatprep.mubr.f32.mxu0 0.0
      %7096 = vmatmul.mubr.f32.gmra.mrb[0].mxu0 %v6930
      %v7097 = vpop.f32.mrb[0].mxu0
      %v7098 = vadd.f32 0.0, %v7097
      %v7099 = vpop.f32.mrb[0].mxu0
      %7100 = vmatprep.mubr.f32.mxu0 0.0
      %7101 = vmatmul.mubr.f32.gmra.mrb[0].mxu0 %v6933
      %v7102 = vpop.f32.mrb[0].mxu0
      %v7103 = vadd.f32 0.0, %v7102
      %v7104 = vpop.f32.mrb[0].mxu0
      %7105 = vmatprep.mubr.f32.mxu0 0.0
      %7106 = vmatmul.mubr.f32.gmra.mrb[0].mxu0 %v6936
      %v7107 = vpop.f32.mrb[0].mxu0
      %v7108 = vadd.f32 0.0, %v7107
      %v7109 = vpop.f32.mrb[0].mxu0
      %7110 = vmatprep.mubr.f32.mxu0 0.0
      %7111 = vmatmul.mubr.f32.gmra.mrb[0].mxu0 %v6939
      %v7112 = vpop.f32.mrb[0].mxu0
      %v7113 = vadd.f32 0.0, %v7112
      %v7114 = vpop.f32.mrb[0].mxu0
      %7115 = vmatprep.mubr.f32.mxu0 0.0
      %7116 = vmatmul.mubr.f32.gmra.mrb[0].mxu0 %v6942
      %v7117 = vpop.f32.mrb[0].mxu0
      %v7118 = vadd.f32 0.0, %v7117
      %v7119 = vpop.f32.mrb[0].mxu0
      %7120 = vmatprep.mubr.f32.mxu0 0.0
      %7121 = vmatmul.mubr.f32.gmra.mrb[0].mxu0 %v6945
      %v7122 = vpop.f32.mrb[0].mxu0
      %v7123 = vadd.f32 0.0, %v7122
      %v7124 = vpop.f32.mrb[0].mxu0
      %7125 = vmatprep.mubr.f32.mxu0 0.0
      %7126 = vmatmul.mubr.f32.gmra.mrb[0].mxu0 %v6948
      %v7127 = vpop.f32.mrb[0].mxu0
      %v7128 = vadd.f32 0.0, %v7127
      %v7129 = vpop.f32.mrb[0].mxu0
      %7130 = vmatprep.mubr.f32.mxu0 0.0
      %7131 = vmatmul.mubr.f32.gmra.mrb[0].mxu0 %v6951
      %v7132 = vpop.f32.mrb[0].mxu0
      %v7133 = vadd.f32 0.0, %v7132
      %v7134 = vpop.f32.mrb[0].mxu0
      %7135 = vmatprep.mubr.f32.mxu0 0.0
      %7136 = vmatmul.mubr.f32.gmra.mrb[0].mxu0 %v6954
      %v7137 = vpop.f32.mrb[0].mxu0
      %v7138 = vadd.f32 0.0, %v7137
      %v7139 = vpop.f32.mrb[0].mxu0
      %7140 = vmatprep.mubr.f32.mxu0 0.0
      %7141 = vmatmul.mubr.f32.gmra.mrb[0].mxu0 %v6957
      %v7142 = vpop.f32.mrb[0].mxu0
      %v7143 = vadd.f32 0.0, %v7142
      %v7144 = vpop.f32.mrb[0].mxu0
      %7145 = vmatprep.mubr.f32.mxu0 0.0
      %7146 = vmatmul.mubr.f32.gmra.mrb[0].mxu0 %v6960
      %v7147 = vpop.f32.mrb[0].mxu0
      %v7148 = vadd.f32 0.0, %v7147
      %v7149 = vpop.f32.mrb[0].mxu0
      %7150 = vmatprep.mubr.f32.mxu0 0.0
      %7151 = vmatmul.mubr.f32.gmra.mrb[0].mxu0 %v6963
      %v7152 = vpop.f32.mrb[0].mxu0
      %v7153 = vadd.f32 0.0, %v7152
      %v7154 = vpop.f32.mrb[0].mxu0
      %7155 = vmatprep.mubr.f32.mxu0 0.0
      %7156 = vmatmul.mubr.f32.gmra.mrb[0].mxu0 %v6966
      %v7157 = vpop.f32.mrb[0].mxu0
      %v7158 = vadd.f32 0.0, %v7157
      %v7159 = vpop.f32.mrb[0].mxu0
      %7160 = vmatprep.mubr.f32.mxu0 0.0
      %7161 = vmatmul.mubr.f32.gmra.mrb[0].mxu0 %v6969
      %v7162 = vpop.f32.mrb[0].mxu0
      %v7163 = vadd.f32 0.0, %v7162
      %v7164 = vpop.f32.mrb[0].mxu0
      %7165 = vmatprep.mubr.f32.mxu0 0.0
      %7166 = vmatmul.mubr.f32.gmra.mrb[0].mxu0 %v6972
      %v7167 = vpop.f32.mrb[0].mxu0
      %v7168 = vadd.f32 0.0, %v7167
      %v7169 = vpop.f32.mrb[0].mxu0
      %7170 = vmatprep.mubr.f32.mxu0 0.0
      %7171 = vmatmul.mubr.f32.gmra.mrb[0].mxu0 %v6975
      %v7172 = vpop.f32.mrb[0].mxu0
      %v7173 = vadd.f32 0.0, %v7172
      %v7174 = vpop.f32.mrb[0].mxu0
      %7175 = vmatprep.mubr.f32.mxu0 0.0
      %7176 = vmatmul.mubr.f32.gmra.mrb[0].mxu0 %v6978
      %v7177 = vpop.f32.mrb[0].mxu0
      %v7178 = vadd.f32 0.0, %v7177
      %v7179 = vpop.f32.mrb[0].mxu0
      %7180 = vmatprep.mubr.f32.mxu0 0.0
      %7181 = vmatmul.mubr.f32.gmra.mrb[0].mxu0 %v6981
      %v7182 = vpop.f32.mrb[0].mxu0
      %v7183 = vadd.f32 0.0, %v7182
      %v7184 = vpop.f32.mrb[0].mxu0
      %7185 = vmatprep.mubr.f32.mxu0 0.0
      %7186 = vmatmul.mubr.f32.gmra.mrb[0].mxu0 %v6984
      %v7187 = vpop.f32.mrb[0].mxu0
      %v7188 = vadd.f32 0.0, %v7187
      %v7189 = vpop.f32.mrb[0].mxu0
      %7190 = vmatprep.mubr.f32.mxu0 0.0
      %7191 = vmatmul.mubr.f32.gmra.mrb[0].mxu0 %v6987
      %v7192 = vpop.f32.mrb[0].mxu0
      %v7193 = vadd.f32 0.0, %v7192
      %v7194 = vpop.f32.mrb[0].mxu0
      %7195 = vmatprep.mubr.f32.mxu0 0.0
      %7196 = vmatmul.mubr.f32.gmra.mrb[0].mxu0 %v6990
      %v7197 = vpop.f32.mrb[0].mxu0
      %v7198 = vadd.f32 0.0, %v7197
      %v7199 = vpop.f32.mrb[0].mxu0
      %7200 = vmatprep.mubr.f32.mxu0 0.0
      %7201 = vmatmul.mubr.f32.gmra.mrb[0].mxu0 %v6993
      %v7202 = vpop.f32.mrb[0].mxu0
      %v7203 = vadd.f32 0.0, %v7202
      %v7204 = vpop.f32.mrb[0].mxu0
      %7205 = vmatprep.mubr.f32.mxu0 0.0
      %7206 = vmatmul.mubr.f32.gmra.mrb[0].mxu0 %v6996
      %v7207 = vpop.f32.mrb[0].mxu0
      %v7208 = vadd.f32 0.0, %v7207
      %v7209 = vpop.f32.mrb[0].mxu0
      %7210 = vmatprep.mubr.f32.mxu0 0.0
      %7211 = vmatmul.mubr.f32.gmra.mrb[0].mxu0 %v6999
      %v7212 = vpop.f32.mrb[0].mxu0
      %v7213 = vadd.f32 0.0, %v7212
      %v7214 = vpop.f32.mrb[0].mxu0
      %7215 = vmatprep.mubr.f32.mxu0 0.0
      %7216 = vmatmul.mubr.f32.gmra.mrb[0].mxu0 %v7002
      %v7217 = vpop.f32.mrb[0].mxu0
      %v7218 = vadd.f32 0.0, %v7217
      %v7219 = vpop.f32.mrb[0].mxu0
      %7220 = vmatprep.mubr.f32.mxu0 0.0
      %7221 = vmatmul.mubr.f32.gmra.mrb[0].mxu0 %v7005
      %v7222 = vpop.f32.mrb[0].mxu0
      %v7223 = vadd.f32 0.0, %v7222
      %v7224 = vpop.f32.mrb[0].mxu0
      %7225 = vmatprep.mubr.f32.mxu0 0.0
      %7226 = vmatmul.mubr.f32.gmra.mrb[0].mxu0 %v7008
      %v7227 = vpop.f32.mrb[0].mxu0
      %v7228 = vadd.f32 0.0, %v7227
      %v7229 = vpop.f32.mrb[0].mxu0
      %7230 = vmatprep.mubr.f32.mxu0 0.0
      %7231 = vmatmul.mubr.f32.gmra.mrb[0].mxu0 %v7011
      %v7232 = vpop.f32.mrb[0].mxu0
      %v7233 = vadd.f32 0.0, %v7232
      %v7234 = vpop.f32.mrb[0].mxu0
      %7235 = vmatprep.mubr.f32.mxu0 0.0
      %7236 = vmatmul.mubr.f32.gmra.mrb[0].mxu0 %v7014
      %v7237 = vpop.f32.mrb[0].mxu0
      %v7238 = vadd.f32 0.0, %v7237
      %v7239 = vpop.f32.mrb[0].mxu0
      %7240 = vdwg.mxu0
      %v7241 = vadd.f32 %v6599, %v7083
      %v7242 = vadd.f32 %v6604, %v7088
      %v7243 = vadd.f32 %v6609, %v7093
      %v7244 = vadd.f32 %v6614, %v7098
      %v7245 = vadd.f32 %v6619, %v7103
      %v7246 = vadd.f32 %v6624, %v7108
      %v7247 = vadd.f32 %v6629, %v7113
      %v7248 = vadd.f32 %v6634, %v7118
      %v7249 = vadd.f32 %v6639, %v7123
      %v7250 = vadd.f32 %v6644, %v7128
      %v7251 = vadd.f32 %v6649, %v7133
      %v7252 = vadd.f32 %v6654, %v7138
      %v7253 = vadd.f32 %v6659, %v7143
      %v7254 = vadd.f32 %v6664, %v7148
      %v7255 = vadd.f32 %v6669, %v7153
      %v7256 = vadd.f32 %v6674, %v7158
      %v7257 = vadd.f32 %v6679, %v7163
      %v7258 = vadd.f32 %v6684, %v7168
      %v7259 = vadd.f32 %v6689, %v7173
      %v7260 = vadd.f32 %v6694, %v7178
      %v7261 = vadd.f32 %v6699, %v7183
      %v7262 = vadd.f32 %v6704, %v7188
      %v7263 = vadd.f32 %v6709, %v7193
      %v7264 = vadd.f32 %v6714, %v7198
      %v7265 = vadd.f32 %v6719, %v7203
      %v7266 = vadd.f32 %v6724, %v7208
      %v7267 = vadd.f32 %v6729, %v7213
      %v7268 = vadd.f32 %v6734, %v7218
      %v7269 = vadd.f32 %v6739, %v7223
      %v7270 = vadd.f32 %v6744, %v7228
      %v7271 = vadd.f32 %v6749, %v7233
      %v7272 = vadd.f32 %v6754, %v7238
      %s7273 = scalar_lea.vmem %s12, 192
      %v7274 = vld [vmem:[%s7273] sm:$0xf]
      %v7275 = vld [vmem:[%s7273 + $0x4] sm:$0xf]
      %v7276 = vld [vmem:[%s7273 + $0x8] sm:$0xf]
      %v7277 = vld [vmem:[%s7273 + $0xc] sm:$0xf]
      %v7278 = vld [vmem:[%s7273 + $0x10] sm:$0xf]
      %v7279 = vld [vmem:[%s7273 + $0x14] sm:$0xf]
      %v7280 = vld [vmem:[%s7273 + $0x18] sm:$0xf]
      %v7281 = vld [vmem:[%s7273 + $0x1c] sm:$0xf]
      %v7282 = vld [vmem:[%s7273 + $0x20] sm:$0xf]
      %v7283 = vld [vmem:[%s7273 + $0x24] sm:$0xf]
      %v7284 = vld [vmem:[%s7273 + $0x28] sm:$0xf]
      %v7285 = vld [vmem:[%s7273 + $0x2c] sm:$0xf]
      %v7286 = vld [vmem:[%s7273 + $0x30] sm:$0xf]
      %v7287 = vld [vmem:[%s7273 + $0x34] sm:$0xf]
      %v7288 = vld [vmem:[%s7273 + $0x38] sm:$0xf]
      %v7289 = vld [vmem:[%s7273 + $0x3c] sm:$0xf]
      %v7306 = vunpack.c.l.b16 %v7274
      %v7307 = vunpack.c.l.b16 %v7275
      %v7308 = vunpack.c.l.b16 %v7276
      %v7309 = vunpack.c.l.b16 %v7277
      %v7310 = vunpack.c.l.b16 %v7278
      %v7311 = vunpack.c.l.b16 %v7279
      %v7312 = vunpack.c.l.b16 %v7280
      %v7313 = vunpack.c.l.b16 %v7281
      %v7314 = vunpack.c.l.b16 %v7282
      %v7315 = vunpack.c.l.b16 %v7283
      %v7316 = vunpack.c.l.b16 %v7284
      %v7317 = vunpack.c.l.b16 %v7285
      %v7318 = vunpack.c.l.b16 %v7286
      %v7319 = vunpack.c.l.b16 %v7287
      %v7320 = vunpack.c.l.b16 %v7288
      %v7321 = vunpack.c.l.b16 %v7289
      %v7322 = vpack.c.b16 %v7307, %v7306
      %v7323 = vpack.c.b16 %v7309, %v7308
      %v7324 = vpack.c.b16 %v7311, %v7310
      %v7325 = vpack.c.b16 %v7313, %v7312
      %v7326 = vpack.c.b16 %v7315, %v7314
      %v7327 = vpack.c.b16 %v7317, %v7316
      %v7328 = vpack.c.b16 %v7319, %v7318
      %v7329 = vpack.c.b16 %v7321, %v7320
      %7338 = vmatprep.subr.bf16.mxu0 0
      %7339 = vmatpush1.bf16.msra.mxu0 %v7322
      %7340 = vmatprep.subr.bf16.mxu0 0
      %7341 = vmatpush1.bf16.msra.mxu0 %v7323
      %7342 = vmatprep.subr.bf16.mxu0 0
      %7343 = vmatpush1.bf16.msra.mxu0 %v7324
      %7344 = vmatprep.subr.bf16.mxu0 0
      %7345 = vmatpush1.bf16.msra.mxu0 %v7325
      %7346 = vmatprep.subr.bf16.mxu0 0
      %7347 = vmatpush1.bf16.msra.mxu0 %v7326
      %7348 = vmatprep.subr.bf16.mxu0 0
      %7349 = vmatpush1.bf16.msra.mxu0 %v7327
      %7350 = vmatprep.subr.bf16.mxu0 0
      %7351 = vmatpush1.bf16.msra.mxu0 %v7328
      %7352 = vmatprep.subr.bf16.mxu0 0
      %7353 = vmatpush1.bf16.msra.mxu0 %v7329
      %7354 = vmatprep.subr.bf16.mxu0 0
      %7355 = vmatpush1.bf16.msra.mxu0 0
      %7356 = vmatprep.subr.bf16.mxu0 0
      %7357 = vmatpush1.bf16.msra.mxu0 0
      %7358 = vmatprep.subr.bf16.mxu0 0
      %7359 = vmatpush1.bf16.msra.mxu0 0
      %7360 = vmatprep.subr.bf16.mxu0 0
      %7361 = vmatpush1.bf16.msra.mxu0 0
      %7362 = vmatprep.subr.bf16.mxu0 0
      %7363 = vmatpush1.bf16.msra.mxu0 0
      %7364 = vmatprep.subr.bf16.mxu0 0
      %7365 = vmatpush1.bf16.msra.mxu0 0
      %7366 = vmatprep.subr.bf16.mxu0 0
      %7367 = vmatpush1.bf16.msra.mxu0 0
      %7368 = vmatprep.subr.bf16.mxu0 0
      %7369 = vmatpush1.bf16.msra.mxu0 0
      %7370 = vmatprep.mubr.bf16.mxu0 0
      %7371 = vmatmul.mubr.bf16.gmra.mrb[0].mxu0 %v5787
      %v7372 = vpop.f32.mrb[0].mxu0
      %v7373 = vadd.f32 0.0, %v7372
      %v7374 = vpop.f32.mrb[0].mxu0
      %v7375 = vpop.f32.mrb[0].mxu0
      %v7376 = vadd.f32 0.0, %v7375
      %v7377 = vpop.f32.mrb[0].mxu0
      %7378 = vmatprep.mubr.bf16.mxu0 0
      %7379 = vmatmul.mubr.bf16.gmra.mrb[0].mxu0 %v5788
      %v7380 = vpop.f32.mrb[0].mxu0
      %v7381 = vadd.f32 0.0, %v7380
      %v7382 = vpop.f32.mrb[0].mxu0
      %v7383 = vpop.f32.mrb[0].mxu0
      %v7384 = vadd.f32 0.0, %v7383
      %v7385 = vpop.f32.mrb[0].mxu0
      %7386 = vmatprep.mubr.bf16.mxu0 0
      %7387 = vmatmul.mubr.bf16.gmra.mrb[0].mxu0 %v5789
      %v7388 = vpop.f32.mrb[0].mxu0
      %v7389 = vadd.f32 0.0, %v7388
      %v7390 = vpop.f32.mrb[0].mxu0
      %v7391 = vpop.f32.mrb[0].mxu0
      %v7392 = vadd.f32 0.0, %v7391
      %v7393 = vpop.f32.mrb[0].mxu0
      %7394 = vmatprep.mubr.bf16.mxu0 0
      %7395 = vmatmul.mubr.bf16.gmra.mrb[0].mxu0 %v5790
      %v7396 = vpop.f32.mrb[0].mxu0
      %v7397 = vadd.f32 0.0, %v7396
      %v7398 = vpop.f32.mrb[0].mxu0
      %v7399 = vpop.f32.mrb[0].mxu0
      %v7400 = vadd.f32 0.0, %v7399
      %v7401 = vpop.f32.mrb[0].mxu0
      %7402 = vdwg.mxu0
      %s7403 = scalar_lea.vmem %s19, 768
      %v7404 = vld [vmem:[%s7403] sm:$0xff]
      %v7405 = vld [vmem:[%s7403 + $0x8] sm:$0xff]
      %v7406 = vld [vmem:[%s7403 + $0x10] sm:$0xff]
      %v7407 = vld [vmem:[%s7403 + $0x18] sm:$0xff]
      %v7408 = vld [vmem:[%s7403 + $0x20] sm:$0xff]
      %v7409 = vld [vmem:[%s7403 + $0x28] sm:$0xff]
      %v7410 = vld [vmem:[%s7403 + $0x30] sm:$0xff]
      %v7411 = vld [vmem:[%s7403 + $0x38] sm:$0xff]
      %v7412 = vld [vmem:[%s7403 + $0x40] sm:$0xff]
      %v7413 = vld [vmem:[%s7403 + $0x48] sm:$0xff]
      %v7414 = vld [vmem:[%s7403 + $0x50] sm:$0xff]
      %v7415 = vld [vmem:[%s7403 + $0x58] sm:$0xff]
      %v7416 = vld [vmem:[%s7403 + $0x60] sm:$0xff]
      %v7417 = vld [vmem:[%s7403 + $0x68] sm:$0xff]
      %v7418 = vld [vmem:[%s7403 + $0x70] sm:$0xff]
      %v7419 = vld [vmem:[%s7403 + $0x78] sm:$0xff]
      %v7420 = vld [vmem:[%s7403 + $0x80] sm:$0xff]
      %v7421 = vld [vmem:[%s7403 + $0x88] sm:$0xff]
      %v7422 = vld [vmem:[%s7403 + $0x90] sm:$0xff]
      %v7423 = vld [vmem:[%s7403 + $0x98] sm:$0xff]
      %v7424 = vld [vmem:[%s7403 + $0xa0] sm:$0xff]
      %v7425 = vld [vmem:[%s7403 + $0xa8] sm:$0xff]
      %v7426 = vld [vmem:[%s7403 + $0xb0] sm:$0xff]
      %v7427 = vld [vmem:[%s7403 + $0xb8] sm:$0xff]
      %v7428 = vld [vmem:[%s7403 + $0xc0] sm:$0xff]
      %v7429 = vld [vmem:[%s7403 + $0xc8] sm:$0xff]
      %v7430 = vld [vmem:[%s7403 + $0xd0] sm:$0xff]
      %v7431 = vld [vmem:[%s7403 + $0xd8] sm:$0xff]
      %v7432 = vld [vmem:[%s7403 + $0xe0] sm:$0xff]
      %v7433 = vld [vmem:[%s7403 + $0xe8] sm:$0xff]
      %v7434 = vld [vmem:[%s7403 + $0xf0] sm:$0xff]
      %v7435 = vld [vmem:[%s7403 + $0xf8] sm:$0xff]
      %v7437 = vsel %vm1590, %v7404, 0
      %v7440 = vsel %vm1590, %v7405, 0
      %v7443 = vsel %vm1590, %v7406, 0
      %v7446 = vsel %vm1590, %v7407, 0
      %v7449 = vsel %vm1590, %v7408, 0
      %v7452 = vsel %vm1590, %v7409, 0
      %v7455 = vsel %vm1590, %v7410, 0
      %v7458 = vsel %vm1590, %v7411, 0
      %v7461 = vsel %vm1590, %v7412, 0
      %v7464 = vsel %vm1590, %v7413, 0
      %v7467 = vsel %vm1590, %v7414, 0
      %v7470 = vsel %vm1590, %v7415, 0
      %v7473 = vsel %vm1590, %v7416, 0
      %v7476 = vsel %vm1590, %v7417, 0
      %v7479 = vsel %vm1590, %v7418, 0
      %v7482 = vsel %vm1590, %v7419, 0
      %v7485 = vsel %vm1590, %v7420, 0
      %v7488 = vsel %vm1590, %v7421, 0
      %v7491 = vsel %vm1590, %v7422, 0
      %v7494 = vsel %vm1590, %v7423, 0
      %v7497 = vsel %vm1590, %v7424, 0
      %v7500 = vsel %vm1590, %v7425, 0
      %v7503 = vsel %vm1590, %v7426, 0
      %v7506 = vsel %vm1590, %v7427, 0
      %v7509 = vsel %vm1590, %v7428, 0
      %v7512 = vsel %vm1590, %v7429, 0
      %v7515 = vsel %vm1590, %v7430, 0
      %v7518 = vsel %vm1590, %v7431, 0
      %v7521 = vsel %vm1590, %v7432, 0
      %v7524 = vsel %vm1590, %v7433, 0
      %v7527 = vsel %vm1590, %v7434, 0
      %v7530 = vsel %vm1590, %v7435, 0
      %7532 = vmatprep.subr.mxu0 0.0
      %7533 = vmatpush1.msra.mxu0 %v7373
      %7534 = vmatprep.subr.mxu0 0.0
      %7535 = vmatpush1.msra.mxu0 %v7376
      %7536 = vmatprep.subr.mxu0 0.0
      %7537 = vmatpush1.msra.mxu0 %v7381
      %7538 = vmatprep.subr.mxu0 0.0
      %7539 = vmatpush1.msra.mxu0 %v7384
      %7540 = vmatprep.subr.mxu0 0.0
      %7541 = vmatpush1.msra.mxu0 %v7389
      %7542 = vmatprep.subr.mxu0 0.0
      %7543 = vmatpush1.msra.mxu0 %v7392
      %7544 = vmatprep.subr.mxu0 0.0
      %7545 = vmatpush1.msra.mxu0 %v7397
      %7546 = vmatprep.subr.mxu0 0.0
      %7547 = vmatpush1.msra.mxu0 %v7400
      %7548 = vmatprep.subr.mxu0 0.0
      %7549 = vmatpush1.msra.mxu0 0.0
      %7550 = vmatprep.subr.mxu0 0.0
      %7551 = vmatpush1.msra.mxu0 0.0
      %7552 = vmatprep.subr.mxu0 0.0
      %7553 = vmatpush1.msra.mxu0 0.0
      %7554 = vmatprep.subr.mxu0 0.0
      %7555 = vmatpush1.msra.mxu0 0.0
      %7556 = vmatprep.subr.mxu0 0.0
      %7557 = vmatpush1.msra.mxu0 0.0
      %7558 = vmatprep.subr.mxu0 0.0
      %7559 = vmatpush1.msra.mxu0 0.0
      %7560 = vmatprep.subr.mxu0 0.0
      %7561 = vmatpush1.msra.mxu0 0.0
      %7562 = vmatprep.subr.mxu0 0.0
      %7563 = vmatpush1.msra.mxu0 0.0
      %7564 = vmatprep.subr.mxu0 0.0
      %7565 = vmatpush1.msra.mxu0 0.0
      %7566 = vmatprep.subr.mxu0 0.0
      %7567 = vmatpush1.msra.mxu0 0.0
      %7568 = vmatprep.subr.mxu0 0.0
      %7569 = vmatpush1.msra.mxu0 0.0
      %7570 = vmatprep.subr.mxu0 0.0
      %7571 = vmatpush1.msra.mxu0 0.0
      %7572 = vmatprep.subr.mxu0 0.0
      %7573 = vmatpush1.msra.mxu0 0.0
      %7574 = vmatprep.subr.mxu0 0.0
      %7575 = vmatpush1.msra.mxu0 0.0
      %7576 = vmatprep.subr.mxu0 0.0
      %7577 = vmatpush1.msra.mxu0 0.0
      %7578 = vmatprep.subr.mxu0 0.0
      %7579 = vmatpush1.msra.mxu0 0.0
      %7580 = vmatprep.subr.mxu0 0.0
      %7581 = vmatpush1.msra.mxu0 0.0
      %7582 = vmatprep.subr.mxu0 0.0
      %7583 = vmatpush1.msra.mxu0 0.0
      %7584 = vmatprep.subr.mxu0 0.0
      %7585 = vmatpush1.msra.mxu0 0.0
      %7586 = vmatprep.subr.mxu0 0.0
      %7587 = vmatpush1.msra.mxu0 0.0
      %7588 = vmatprep.subr.mxu0 0.0
      %7589 = vmatpush1.msra.mxu0 0.0
      %7590 = vmatprep.subr.mxu0 0.0
      %7591 = vmatpush1.msra.mxu0 0.0
      %7592 = vmatprep.subr.mxu0 0.0
      %7593 = vmatpush1.msra.mxu0 0.0
      %7594 = vmatprep.subr.mxu0 0.0
      %7595 = vmatpush1.msra.mxu0 0.0
      %7596 = vmatprep.mubr.f32.mxu0 0.0
      %7597 = vmatmul.mubr.f32.gmra.mrb[0].mxu0 %v7437
      %v7598 = vpop.f32.mrb[0].mxu0
      %v7599 = vadd.f32 0.0, %v7598
      %v7600 = vpop.f32.mrb[0].mxu0
      %7601 = vmatprep.mubr.f32.mxu0 0.0
      %7602 = vmatmul.mubr.f32.gmra.mrb[0].mxu0 %v7440
      %v7603 = vpop.f32.mrb[0].mxu0
      %v7604 = vadd.f32 0.0, %v7603
      %v7605 = vpop.f32.mrb[0].mxu0
      %7606 = vmatprep.mubr.f32.mxu0 0.0
      %7607 = vmatmul.mubr.f32.gmra.mrb[0].mxu0 %v7443
      %v7608 = vpop.f32.mrb[0].mxu0
      %v7609 = vadd.f32 0.0, %v7608
      %v7610 = vpop.f32.mrb[0].mxu0
      %7611 = vmatprep.mubr.f32.mxu0 0.0
      %7612 = vmatmul.mubr.f32.gmra.mrb[0].mxu0 %v7446
      %v7613 = vpop.f32.mrb[0].mxu0
      %v7614 = vadd.f32 0.0, %v7613
      %v7615 = vpop.f32.mrb[0].mxu0
      %7616 = vmatprep.mubr.f32.mxu0 0.0
      %7617 = vmatmul.mubr.f32.gmra.mrb[0].mxu0 %v7449
      %v7618 = vpop.f32.mrb[0].mxu0
      %v7619 = vadd.f32 0.0, %v7618
      %v7620 = vpop.f32.mrb[0].mxu0
      %7621 = vmatprep.mubr.f32.mxu0 0.0
      %7622 = vmatmul.mubr.f32.gmra.mrb[0].mxu0 %v7452
      %v7623 = vpop.f32.mrb[0].mxu0
      %v7624 = vadd.f32 0.0, %v7623
      %v7625 = vpop.f32.mrb[0].mxu0
      %7626 = vmatprep.mubr.f32.mxu0 0.0
      %7627 = vmatmul.mubr.f32.gmra.mrb[0].mxu0 %v7455
      %v7628 = vpop.f32.mrb[0].mxu0
      %v7629 = vadd.f32 0.0, %v7628
      %v7630 = vpop.f32.mrb[0].mxu0
      %7631 = vmatprep.mubr.f32.mxu0 0.0
      %7632 = vmatmul.mubr.f32.gmra.mrb[0].mxu0 %v7458
      %v7633 = vpop.f32.mrb[0].mxu0
      %v7634 = vadd.f32 0.0, %v7633
      %v7635 = vpop.f32.mrb[0].mxu0
      %7636 = vmatprep.mubr.f32.mxu0 0.0
      %7637 = vmatmul.mubr.f32.gmra.mrb[0].mxu0 %v7461
      %v7638 = vpop.f32.mrb[0].mxu0
      %v7639 = vadd.f32 0.0, %v7638
      %v7640 = vpop.f32.mrb[0].mxu0
      %7641 = vmatprep.mubr.f32.mxu0 0.0
      %7642 = vmatmul.mubr.f32.gmra.mrb[0].mxu0 %v7464
      %v7643 = vpop.f32.mrb[0].mxu0
      %v7644 = vadd.f32 0.0, %v7643
      %v7645 = vpop.f32.mrb[0].mxu0
      %7646 = vmatprep.mubr.f32.mxu0 0.0
      %7647 = vmatmul.mubr.f32.gmra.mrb[0].mxu0 %v7467
      %v7648 = vpop.f32.mrb[0].mxu0
      %v7649 = vadd.f32 0.0, %v7648
      %v7650 = vpop.f32.mrb[0].mxu0
      %7651 = vmatprep.mubr.f32.mxu0 0.0
      %7652 = vmatmul.mubr.f32.gmra.mrb[0].mxu0 %v7470
      %v7653 = vpop.f32.mrb[0].mxu0
      %v7654 = vadd.f32 0.0, %v7653
      %v7655 = vpop.f32.mrb[0].mxu0
      %7656 = vmatprep.mubr.f32.mxu0 0.0
      %7657 = vmatmul.mubr.f32.gmra.mrb[0].mxu0 %v7473
      %v7658 = vpop.f32.mrb[0].mxu0
      %v7659 = vadd.f32 0.0, %v7658
      %v7660 = vpop.f32.mrb[0].mxu0
      %7661 = vmatprep.mubr.f32.mxu0 0.0
      %7662 = vmatmul.mubr.f32.gmra.mrb[0].mxu0 %v7476
      %v7663 = vpop.f32.mrb[0].mxu0
      %v7664 = vadd.f32 0.0, %v7663
      %v7665 = vpop.f32.mrb[0].mxu0
      %7666 = vmatprep.mubr.f32.mxu0 0.0
      %7667 = vmatmul.mubr.f32.gmra.mrb[0].mxu0 %v7479
      %v7668 = vpop.f32.mrb[0].mxu0
      %v7669 = vadd.f32 0.0, %v7668
      %v7670 = vpop.f32.mrb[0].mxu0
      %7671 = vmatprep.mubr.f32.mxu0 0.0
      %7672 = vmatmul.mubr.f32.gmra.mrb[0].mxu0 %v7482
      %v7673 = vpop.f32.mrb[0].mxu0
      %v7674 = vadd.f32 0.0, %v7673
      %v7675 = vpop.f32.mrb[0].mxu0
      %7676 = vmatprep.mubr.f32.mxu0 0.0
      %7677 = vmatmul.mubr.f32.gmra.mrb[0].mxu0 %v7485
      %v7678 = vpop.f32.mrb[0].mxu0
      %v7679 = vadd.f32 0.0, %v7678
      %v7680 = vpop.f32.mrb[0].mxu0
      %7681 = vmatprep.mubr.f32.mxu0 0.0
      %7682 = vmatmul.mubr.f32.gmra.mrb[0].mxu0 %v7488
      %v7683 = vpop.f32.mrb[0].mxu0
      %v7684 = vadd.f32 0.0, %v7683
      %v7685 = vpop.f32.mrb[0].mxu0
      %7686 = vmatprep.mubr.f32.mxu0 0.0
      %7687 = vmatmul.mubr.f32.gmra.mrb[0].mxu0 %v7491
      %v7688 = vpop.f32.mrb[0].mxu0
      %v7689 = vadd.f32 0.0, %v7688
      %v7690 = vpop.f32.mrb[0].mxu0
      %7691 = vmatprep.mubr.f32.mxu0 0.0
      %7692 = vmatmul.mubr.f32.gmra.mrb[0].mxu0 %v7494
      %v7693 = vpop.f32.mrb[0].mxu0
      %v7694 = vadd.f32 0.0, %v7693
      %v7695 = vpop.f32.mrb[0].mxu0
      %7696 = vmatprep.mubr.f32.mxu0 0.0
      %7697 = vmatmul.mubr.f32.gmra.mrb[0].mxu0 %v7497
      %v7698 = vpop.f32.mrb[0].mxu0
      %v7699 = vadd.f32 0.0, %v7698
      %v7700 = vpop.f32.mrb[0].mxu0
      %7701 = vmatprep.mubr.f32.mxu0 0.0
      %7702 = vmatmul.mubr.f32.gmra.mrb[0].mxu0 %v7500
      %v7703 = vpop.f32.mrb[0].mxu0
      %v7704 = vadd.f32 0.0, %v7703
      %v7705 = vpop.f32.mrb[0].mxu0
      %7706 = vmatprep.mubr.f32.mxu0 0.0
      %7707 = vmatmul.mubr.f32.gmra.mrb[0].mxu0 %v7503
      %v7708 = vpop.f32.mrb[0].mxu0
      %v7709 = vadd.f32 0.0, %v7708
      %v7710 = vpop.f32.mrb[0].mxu0
      %7711 = vmatprep.mubr.f32.mxu0 0.0
      %7712 = vmatmul.mubr.f32.gmra.mrb[0].mxu0 %v7506
      %v7713 = vpop.f32.mrb[0].mxu0
      %v7714 = vadd.f32 0.0, %v7713
      %v7715 = vpop.f32.mrb[0].mxu0
      %7716 = vmatprep.mubr.f32.mxu0 0.0
      %7717 = vmatmul.mubr.f32.gmra.mrb[0].mxu0 %v7509
      %v7718 = vpop.f32.mrb[0].mxu0
      %v7719 = vadd.f32 0.0, %v7718
      %v7720 = vpop.f32.mrb[0].mxu0
      %7721 = vmatprep.mubr.f32.mxu0 0.0
      %7722 = vmatmul.mubr.f32.gmra.mrb[0].mxu0 %v7512
      %v7723 = vpop.f32.mrb[0].mxu0
      %v7724 = vadd.f32 0.0, %v7723
      %v7725 = vpop.f32.mrb[0].mxu0
      %7726 = vmatprep.mubr.f32.mxu0 0.0
      %7727 = vmatmul.mubr.f32.gmra.mrb[0].mxu0 %v7515
      %v7728 = vpop.f32.mrb[0].mxu0
      %v7729 = vadd.f32 0.0, %v7728
      %v7730 = vpop.f32.mrb[0].mxu0
      %7731 = vmatprep.mubr.f32.mxu0 0.0
      %7732 = vmatmul.mubr.f32.gmra.mrb[0].mxu0 %v7518
      %v7733 = vpop.f32.mrb[0].mxu0
      %v7734 = vadd.f32 0.0, %v7733
      %v7735 = vpop.f32.mrb[0].mxu0
      %7736 = vmatprep.mubr.f32.mxu0 0.0
      %7737 = vmatmul.mubr.f32.gmra.mrb[0].mxu0 %v7521
      %v7738 = vpop.f32.mrb[0].mxu0
      %v7739 = vadd.f32 0.0, %v7738
      %v7740 = vpop.f32.mrb[0].mxu0
      %7741 = vmatprep.mubr.f32.mxu0 0.0
      %7742 = vmatmul.mubr.f32.gmra.mrb[0].mxu0 %v7524
      %v7743 = vpop.f32.mrb[0].mxu0
      %v7744 = vadd.f32 0.0, %v7743
      %v7745 = vpop.f32.mrb[0].mxu0
      %7746 = vmatprep.mubr.f32.mxu0 0.0
      %7747 = vmatmul.mubr.f32.gmra.mrb[0].mxu0 %v7527
      %v7748 = vpop.f32.mrb[0].mxu0
      %v7749 = vadd.f32 0.0, %v7748
      %v7750 = vpop.f32.mrb[0].mxu0
      %7751 = vmatprep.mubr.f32.mxu0 0.0
      %7752 = vmatmul.mubr.f32.gmra.mrb[0].mxu0 %v7530
      %v7753 = vpop.f32.mrb[0].mxu0
      %v7754 = vadd.f32 0.0, %v7753
      %v7755 = vpop.f32.mrb[0].mxu0
      %7756 = vdwg.mxu0
      %v7757 = vadd.f32 %v7241, %v7599
      %v7758 = vadd.f32 %v7242, %v7604
      %v7759 = vadd.f32 %v7243, %v7609
      %v7760 = vadd.f32 %v7244, %v7614
      %v7761 = vadd.f32 %v7245, %v7619
      %v7762 = vadd.f32 %v7246, %v7624
      %v7763 = vadd.f32 %v7247, %v7629
      %v7764 = vadd.f32 %v7248, %v7634
      %v7765 = vadd.f32 %v7249, %v7639
      %v7766 = vadd.f32 %v7250, %v7644
      %v7767 = vadd.f32 %v7251, %v7649
      %v7768 = vadd.f32 %v7252, %v7654
      %v7769 = vadd.f32 %v7253, %v7659
      %v7770 = vadd.f32 %v7254, %v7664
      %v7771 = vadd.f32 %v7255, %v7669
      %v7772 = vadd.f32 %v7256, %v7674
      %v7773 = vadd.f32 %v7257, %v7679
      %v7774 = vadd.f32 %v7258, %v7684
      %v7775 = vadd.f32 %v7259, %v7689
      %v7776 = vadd.f32 %v7260, %v7694
      %v7777 = vadd.f32 %v7261, %v7699
      %v7778 = vadd.f32 %v7262, %v7704
      %v7779 = vadd.f32 %v7263, %v7709
      %v7780 = vadd.f32 %v7264, %v7714
      %v7781 = vadd.f32 %v7265, %v7719
      %v7782 = vadd.f32 %v7266, %v7724
      %v7783 = vadd.f32 %v7267, %v7729
      %v7784 = vadd.f32 %v7268, %v7734
      %v7785 = vadd.f32 %v7269, %v7739
      %v7786 = vadd.f32 %v7270, %v7744
      %v7787 = vadd.f32 %v7271, %v7749
      %v7788 = vadd.f32 %v7272, %v7754
      %v7789 = vld [vmem:[%s13] sm:$0x1]
      %v7791 = vlaneseq
      %v7792 = vshrl.u32 %v7791, 7
      %v7793 = vsub.s32 0, %v7792
      %v7794 = vrot.slane %v7789, %v7793
      %v7796 = vadd.f32 %v7757, %v7794
      %v7797 = vadd.f32 %v7758, %v7794
      %v7798 = vadd.f32 %v7759, %v7794
      %v7799 = vadd.f32 %v7760, %v7794
      %v7800 = vadd.f32 %v7761, %v7794
      %v7801 = vadd.f32 %v7762, %v7794
      %v7802 = vadd.f32 %v7763, %v7794
      %v7803 = vadd.f32 %v7764, %v7794
      %v7804 = vadd.f32 %v7765, %v7794
      %v7805 = vadd.f32 %v7766, %v7794
      %v7806 = vadd.f32 %v7767, %v7794
      %v7807 = vadd.f32 %v7768, %v7794
      %v7808 = vadd.f32 %v7769, %v7794
      %v7809 = vadd.f32 %v7770, %v7794
      %v7810 = vadd.f32 %v7771, %v7794
      %v7811 = vadd.f32 %v7772, %v7794
      %v7812 = vadd.f32 %v7773, %v7794
      %v7813 = vadd.f32 %v7774, %v7794
      %v7814 = vadd.f32 %v7775, %v7794
      %v7815 = vadd.f32 %v7776, %v7794
      %v7816 = vadd.f32 %v7777, %v7794
      %v7817 = vadd.f32 %v7778, %v7794
      %v7818 = vadd.f32 %v7779, %v7794
      %v7819 = vadd.f32 %v7780, %v7794
      %v7820 = vadd.f32 %v7781, %v7794
      %v7821 = vadd.f32 %v7782, %v7794
      %v7822 = vadd.f32 %v7783, %v7794
      %v7823 = vadd.f32 %v7784, %v7794
      %v7824 = vadd.f32 %v7785, %v7794
      %v7825 = vadd.f32 %v7786, %v7794
      %v7826 = vadd.f32 %v7787, %v7794
      %v7827 = vadd.f32 %v7788, %v7794
      %v7828 = vmax.f32 %v7796, 0.0
      %v7829 = vmax.f32 %v7797, 0.0
      %v7830 = vmax.f32 %v7798, 0.0
      %v7831 = vmax.f32 %v7799, 0.0
      %v7832 = vmax.f32 %v7800, 0.0
      %v7833 = vmax.f32 %v7801, 0.0
      %v7834 = vmax.f32 %v7802, 0.0
      %v7835 = vmax.f32 %v7803, 0.0
      %v7836 = vmax.f32 %v7804, 0.0
      %v7837 = vmax.f32 %v7805, 0.0
      %v7838 = vmax.f32 %v7806, 0.0
      %v7839 = vmax.f32 %v7807, 0.0
      %v7840 = vmax.f32 %v7808, 0.0
      %v7841 = vmax.f32 %v7809, 0.0
      %v7842 = vmax.f32 %v7810, 0.0
      %v7843 = vmax.f32 %v7811, 0.0
      %v7844 = vmax.f32 %v7812, 0.0
      %v7845 = vmax.f32 %v7813, 0.0
      %v7846 = vmax.f32 %v7814, 0.0
      %v7847 = vmax.f32 %v7815, 0.0
      %v7848 = vmax.f32 %v7816, 0.0
      %v7849 = vmax.f32 %v7817, 0.0
      %v7850 = vmax.f32 %v7818, 0.0
      %v7851 = vmax.f32 %v7819, 0.0
      %v7852 = vmax.f32 %v7820, 0.0
      %v7853 = vmax.f32 %v7821, 0.0
      %v7854 = vmax.f32 %v7822, 0.0
      %v7855 = vmax.f32 %v7823, 0.0
      %v7856 = vmax.f32 %v7824, 0.0
      %v7857 = vmax.f32 %v7825, 0.0
      %v7858 = vmax.f32 %v7826, 0.0
      %v7859 = vmax.f32 %v7827, 0.0
      %7860 = vst.msk [vmem:[#allocation4] sm:$0xff] %vm1590, 0.0
      %7861 = vst.msk [vmem:[#allocation4 + $0x8] sm:$0xff] %vm1590, 0.0
      %7862 = vst.msk [vmem:[#allocation4 + $0x10] sm:$0xff] %vm1590, 0.0
      %7863 = vst.msk [vmem:[#allocation4 + $0x18] sm:$0xff] %vm1590, 0.0
      %7864 = vst.msk [vmem:[#allocation4 + $0x20] sm:$0xff] %vm1590, 0.0
      %7865 = vst.msk [vmem:[#allocation4 + $0x28] sm:$0xff] %vm1590, 0.0
      %7866 = vst.msk [vmem:[#allocation4 + $0x30] sm:$0xff] %vm1590, 0.0
      %7867 = vst.msk [vmem:[#allocation4 + $0x38] sm:$0xff] %vm1590, 0.0
      %7868 = vst.msk [vmem:[#allocation4 + $0x40] sm:$0xff] %vm1590, 0.0
      %7869 = vst.msk [vmem:[#allocation4 + $0x48] sm:$0xff] %vm1590, 0.0
      %7870 = vst.msk [vmem:[#allocation4 + $0x50] sm:$0xff] %vm1590, 0.0
      %7871 = vst.msk [vmem:[#allocation4 + $0x58] sm:$0xff] %vm1590, 0.0
      %7872 = vst.msk [vmem:[#allocation4 + $0x60] sm:$0xff] %vm1590, 0.0
      %7873 = vst.msk [vmem:[#allocation4 + $0x68] sm:$0xff] %vm1590, 0.0
      %7874 = vst.msk [vmem:[#allocation4 + $0x70] sm:$0xff] %vm1590, 0.0
      %7875 = vst.msk [vmem:[#allocation4 + $0x78] sm:$0xff] %vm1590, 0.0
      %7876 = vst.msk [vmem:[#allocation4 + $0x80] sm:$0xff] %vm1590, 0.0
      %7877 = vst.msk [vmem:[#allocation4 + $0x88] sm:$0xff] %vm1590, 0.0
      %7878 = vst.msk [vmem:[#allocation4 + $0x90] sm:$0xff] %vm1590, 0.0
      %7879 = vst.msk [vmem:[#allocation4 + $0x98] sm:$0xff] %vm1590, 0.0
      %7880 = vst.msk [vmem:[#allocation4 + $0xa0] sm:$0xff] %vm1590, 0.0
      %7881 = vst.msk [vmem:[#allocation4 + $0xa8] sm:$0xff] %vm1590, 0.0
      %7882 = vst.msk [vmem:[#allocation4 + $0xb0] sm:$0xff] %vm1590, 0.0
      %7883 = vst.msk [vmem:[#allocation4 + $0xb8] sm:$0xff] %vm1590, 0.0
      %7884 = vst.msk [vmem:[#allocation4 + $0xc0] sm:$0xff] %vm1590, 0.0
      %7885 = vst.msk [vmem:[#allocation4 + $0xc8] sm:$0xff] %vm1590, 0.0
      %7886 = vst.msk [vmem:[#allocation4 + $0xd0] sm:$0xff] %vm1590, 0.0
      %7887 = vst.msk [vmem:[#allocation4 + $0xd8] sm:$0xff] %vm1590, 0.0
      %7888 = vst.msk [vmem:[#allocation4 + $0xe0] sm:$0xff] %vm1590, 0.0
      %7889 = vst.msk [vmem:[#allocation4 + $0xe8] sm:$0xff] %vm1590, 0.0
      %7890 = vst.msk [vmem:[#allocation4 + $0xf0] sm:$0xff] %vm1590, 0.0
      %7891 = vst.msk [vmem:[#allocation4 + $0xf8] sm:$0xff] %vm1590, 0.0
      %7892 = vst.msk [vmem:[#allocation4 + $0x100] sm:$0xff] %vm1590, 0.0
      %7893 = vst.msk [vmem:[#allocation4 + $0x108] sm:$0xff] %vm1590, 0.0
      %7894 = vst.msk [vmem:[#allocation4 + $0x110] sm:$0xff] %vm1590, 0.0
      %7895 = vst.msk [vmem:[#allocation4 + $0x118] sm:$0xff] %vm1590, 0.0
      %7896 = vst.msk [vmem:[#allocation4 + $0x120] sm:$0xff] %vm1590, 0.0
      %7897 = vst.msk [vmem:[#allocation4 + $0x128] sm:$0x1] %vm1602, 0.0
      %7898 = vst.msk [vmem:[#allocation4 + $0x18] sm:$0xff] %vm1590, %v7828
      %7899 = vst.msk [vmem:[#allocation4 + $0x20] sm:$0xff] %vm1590, %v7829
      %7900 = vst.msk [vmem:[#allocation4 + $0x28] sm:$0xff] %vm1590, %v7830
      %7901 = vst.msk [vmem:[#allocation4 + $0x30] sm:$0xff] %vm1590, %v7831
      %7902 = vst.msk [vmem:[#allocation4 + $0x38] sm:$0xff] %vm1590, %v7832
      %7903 = vst.msk [vmem:[#allocation4 + $0x40] sm:$0xff] %vm1590, %v7833
      %7904 = vst.msk [vmem:[#allocation4 + $0x48] sm:$0xff] %vm1590, %v7834
      %7905 = vst.msk [vmem:[#allocation4 + $0x50] sm:$0xff] %vm1590, %v7835
      %7906 = vst.msk [vmem:[#allocation4 + $0x58] sm:$0xff] %vm1590, %v7836
      %7907 = vst.msk [vmem:[#allocation4 + $0x60] sm:$0xff] %vm1590, %v7837
      %7908 = vst.msk [vmem:[#allocation4 + $0x68] sm:$0xff] %vm1590, %v7838
      %7909 = vst.msk [vmem:[#allocation4 + $0x70] sm:$0xff] %vm1590, %v7839
      %7910 = vst.msk [vmem:[#allocation4 + $0x78] sm:$0xff] %vm1590, %v7840
      %7911 = vst.msk [vmem:[#allocation4 + $0x80] sm:$0xff] %vm1590, %v7841
      %7912 = vst.msk [vmem:[#allocation4 + $0x88] sm:$0xff] %vm1590, %v7842
      %7913 = vst.msk [vmem:[#allocation4 + $0x90] sm:$0xff] %vm1590, %v7843
      %7914 = vst.msk [vmem:[#allocation4 + $0x98] sm:$0xff] %vm1590, %v7844
      %7915 = vst.msk [vmem:[#allocation4 + $0xa0] sm:$0xff] %vm1590, %v7845
      %7916 = vst.msk [vmem:[#allocation4 + $0xa8] sm:$0xff] %vm1590, %v7846
      %7917 = vst.msk [vmem:[#allocation4 + $0xb0] sm:$0xff] %vm1590, %v7847
      %7918 = vst.msk [vmem:[#allocation4 + $0xb8] sm:$0xff] %vm1590, %v7848
      %7919 = vst.msk [vmem:[#allocation4 + $0xc0] sm:$0xff] %vm1590, %v7849
      %7920 = vst.msk [vmem:[#allocation4 + $0xc8] sm:$0xff] %vm1590, %v7850
      %7921 = vst.msk [vmem:[#allocation4 + $0xd0] sm:$0xff] %vm1590, %v7851
      %7922 = vst.msk [vmem:[#allocation4 + $0xd8] sm:$0xff] %vm1590, %v7852
      %7923 = vst.msk [vmem:[#allocation4 + $0xe0] sm:$0xff] %vm1590, %v7853
      %7924 = vst.msk [vmem:[#allocation4 + $0xe8] sm:$0xff] %vm1590, %v7854
      %7925 = vst.msk [vmem:[#allocation4 + $0xf0] sm:$0xff] %vm1590, %v7855
      %7926 = vst.msk [vmem:[#allocation4 + $0xf8] sm:$0xff] %vm1590, %v7856
      %7927 = vst.msk [vmem:[#allocation4 + $0x100] sm:$0xff] %vm1590, %v7857
      %7928 = vst.msk [vmem:[#allocation4 + $0x108] sm:$0xff] %vm1590, %v7858
      %7929 = vst.msk [vmem:[#allocation4 + $0x110] sm:$0xff] %vm1590, %v7859
      %v7930 = vadd.s32 %v1613, 64
      %v7931 = vadd.s32 %v1613, 72
      %v7932 = vadd.s32 %v1613, 80
      %v7933 = vadd.s32 %v1613, 88
      %v7934 = vadd.s32 %v1613, 96
      %v7935 = vadd.s32 %v1613, 104
      %v7936 = vadd.s32 %v1613, 112
      %v7937 = vadd.s32 %v1613, 120
      %v7938 = vadd.s32 %v1613, 128
      %v7939 = vadd.s32 %v1613, 136
      %v7940 = vadd.s32 %v1613, 144
      %v7941 = vadd.s32 %v1613, 152
      %v7942 = vadd.s32 %v1613, 160
      %v7943 = vadd.s32 %v1613, 168
      %v7944 = vadd.s32 %v1613, 176
      %v7945 = vadd.s32 %v1613, 184
      %v7946 = vadd.s32 %v1613, 192
      %v7947 = vadd.s32 %v1613, 200
      %v7948 = vadd.s32 %v1613, 208
      %v7949 = vadd.s32 %v1613, 216
      %v7950 = vadd.s32 %v1613, 224
      %v7951 = vadd.s32 %v1613, 232
      %v7952 = vadd.s32 %v1613, 240
      %v7953 = vadd.s32 %v1613, 248
      %v7954 = vand.u32 %v1613, 15
      %v7955 = vand.u32 %v1614, 15
      %v7956 = vand.u32 %v1615, 15
      %v7957 = vand.u32 %v1616, 15
      %v7958 = vand.u32 %v1617, 15
      %v7959 = vand.u32 %v1618, 15
      %v7960 = vand.u32 %v1619, 15
      %v7961 = vand.u32 %v1620, 15
      %v7962 = vand.u32 %v7930, 15
      %v7963 = vand.u32 %v7931, 15
      %v7964 = vand.u32 %v7932, 15
      %v7965 = vand.u32 %v7933, 15
      %v7966 = vand.u32 %v7934, 15
      %v7967 = vand.u32 %v7935, 15
      %v7968 = vand.u32 %v7936, 15
      %v7969 = vand.u32 %v7937, 15
      %v7970 = vand.u32 %v7938, 15
      %v7971 = vand.u32 %v7939, 15
      %v7972 = vand.u32 %v7940, 15
      %v7973 = vand.u32 %v7941, 15
      %v7974 = vand.u32 %v7942, 15
      %v7975 = vand.u32 %v7943, 15
      %v7976 = vand.u32 %v7944, 15
      %v7977 = vand.u32 %v7945, 15
      %v7978 = vand.u32 %v7946, 15
      %v7979 = vand.u32 %v7947, 15
      %v7980 = vand.u32 %v7948, 15
      %v7981 = vand.u32 %v7949, 15
      %v7982 = vand.u32 %v7950, 15
      %v7983 = vand.u32 %v7951, 15
      %v7984 = vand.u32 %v7952, 15
      %v7985 = vand.u32 %v7953, 15
      %v7986 = vld [vmem:[%s14] sm:$0xff]
      %v7987 = vld [vmem:[%s14 + $0x8] sm:$0x1]
      %v7988 = vld [vmem:[#allocation4 + $0x7] sm:$0xff]
      %v7989 = vld [vmem:[#allocation4 + $0xf] sm:$0xff]
      %v7990 = vld [vmem:[#allocation4 + $0x17] sm:$0xff]
      %v7991 = vld [vmem:[#allocation4 + $0x1f] sm:$0xff]
      %v7992 = vld [vmem:[#allocation4 + $0x27] sm:$0xff]
      %v7993 = vld [vmem:[#allocation4 + $0x2f] sm:$0xff]
      %v7994 = vld [vmem:[#allocation4 + $0x37] sm:$0xff]
      %v7995 = vld [vmem:[#allocation4 + $0x3f] sm:$0xff]
      %v7996 = vld [vmem:[#allocation4 + $0x47] sm:$0xff]
      %v7997 = vld [vmem:[#allocation4 + $0x4f] sm:$0xff]
      %v7998 = vld [vmem:[#allocation4 + $0x57] sm:$0xff]
      %v7999 = vld [vmem:[#allocation4 + $0x5f] sm:$0xff]
      %v8000 = vld [vmem:[#allocation4 + $0x67] sm:$0xff]
      %v8001 = vld [vmem:[#allocation4 + $0x6f] sm:$0xff]
      %v8002 = vld [vmem:[#allocation4 + $0x77] sm:$0xff]
      %v8003 = vld [vmem:[#allocation4 + $0x7f] sm:$0xff]
      %v8004 = vld [vmem:[#allocation4 + $0x87] sm:$0xff]
      %v8005 = vld [vmem:[#allocation4 + $0x8f] sm:$0xff]
      %v8006 = vld [vmem:[#allocation4 + $0x97] sm:$0xff]
      %v8007 = vld [vmem:[#allocation4 + $0x9f] sm:$0xff]
      %v8008 = vld [vmem:[#allocation4 + $0xa7] sm:$0xff]
      %v8009 = vld [vmem:[#allocation4 + $0xaf] sm:$0xff]
      %v8010 = vld [vmem:[#allocation4 + $0xb7] sm:$0xff]
      %v8011 = vld [vmem:[#allocation4 + $0xbf] sm:$0xff]
      %v8012 = vld [vmem:[#allocation4 + $0xc7] sm:$0xff]
      %v8013 = vld [vmem:[#allocation4 + $0xcf] sm:$0xff]
      %v8014 = vld [vmem:[#allocation4 + $0xd7] sm:$0xff]
      %v8015 = vld [vmem:[#allocation4 + $0xdf] sm:$0xff]
      %v8016 = vld [vmem:[#allocation4 + $0xe7] sm:$0xff]
      %v8017 = vld [vmem:[#allocation4 + $0xef] sm:$0xff]
      %v8018 = vld [vmem:[#allocation4 + $0xf7] sm:$0xff]
      %v8019 = vld [vmem:[#allocation4 + $0xff] sm:$0xff]
      %vm8020 = vcmp.ge.s32.totalorder %v7954, 1
      %vm8021 = vcmp.ge.s32.totalorder %v7955, 1
      %vm8022 = vcmp.ge.s32.totalorder %v7956, 1
      %vm8023 = vcmp.ge.s32.totalorder %v7957, 1
      %vm8024 = vcmp.ge.s32.totalorder %v7958, 1
      %vm8025 = vcmp.ge.s32.totalorder %v7959, 1
      %vm8026 = vcmp.ge.s32.totalorder %v7960, 1
      %vm8027 = vcmp.ge.s32.totalorder %v7961, 1
      %vm8028 = vcmp.ge.s32.totalorder %v7962, 1
      %vm8029 = vcmp.ge.s32.totalorder %v7963, 1
      %vm8030 = vcmp.ge.s32.totalorder %v7964, 1
      %vm8031 = vcmp.ge.s32.totalorder %v7965, 1
      %vm8032 = vcmp.ge.s32.totalorder %v7966, 1
      %vm8033 = vcmp.ge.s32.totalorder %v7967, 1
      %vm8034 = vcmp.ge.s32.totalorder %v7968, 1
      %vm8035 = vcmp.ge.s32.totalorder %v7969, 1
      %vm8036 = vcmp.ge.s32.totalorder %v7970, 1
      %vm8037 = vcmp.ge.s32.totalorder %v7971, 1
      %vm8038 = vcmp.ge.s32.totalorder %v7972, 1
      %vm8039 = vcmp.ge.s32.totalorder %v7973, 1
      %vm8040 = vcmp.ge.s32.totalorder %v7974, 1
      %vm8041 = vcmp.ge.s32.totalorder %v7975, 1
      %vm8042 = vcmp.ge.s32.totalorder %v7976, 1
      %vm8043 = vcmp.ge.s32.totalorder %v7977, 1
      %vm8044 = vcmp.ge.s32.totalorder %v7978, 1
      %vm8045 = vcmp.ge.s32.totalorder %v7979, 1
      %vm8046 = vcmp.ge.s32.totalorder %v7980, 1
      %vm8047 = vcmp.ge.s32.totalorder %v7981, 1
      %vm8048 = vcmp.ge.s32.totalorder %v7982, 1
      %vm8049 = vcmp.ge.s32.totalorder %v7983, 1
      %vm8050 = vcmp.ge.s32.totalorder %v7984, 1
      %vm8051 = vcmp.ge.s32.totalorder %v7985, 1
      %v8052 = vsel %vm8020, 1, 0
      %v8053 = vsel %vm8021, 1, 0
      %v8054 = vsel %vm8022, 1, 0
      %v8055 = vsel %vm8023, 1, 0
      %v8056 = vsel %vm8024, 1, 0
      %v8057 = vsel %vm8025, 1, 0
      %v8058 = vsel %vm8026, 1, 0
      %v8059 = vsel %vm8027, 1, 0
      %v8060 = vsel %vm8028, 1, 0
      %v8061 = vsel %vm8029, 1, 0
      %v8062 = vsel %vm8030, 1, 0
      %v8063 = vsel %vm8031, 1, 0
      %v8064 = vsel %vm8032, 1, 0
      %v8065 = vsel %vm8033, 1, 0
      %v8066 = vsel %vm8034, 1, 0
      %v8067 = vsel %vm8035, 1, 0
      %v8068 = vsel %vm8036, 1, 0
      %v8069 = vsel %vm8037, 1, 0
      %v8070 = vsel %vm8038, 1, 0
      %v8071 = vsel %vm8039, 1, 0
      %v8072 = vsel %vm8040, 1, 0
      %v8073 = vsel %vm8041, 1, 0
      %v8074 = vsel %vm8042, 1, 0
      %v8075 = vsel %vm8043, 1, 0
      %v8076 = vsel %vm8044, 1, 0
      %v8077 = vsel %vm8045, 1, 0
      %v8078 = vsel %vm8046, 1, 0
      %v8079 = vsel %vm8047, 1, 0
      %v8080 = vsel %vm8048, 1, 0
      %v8081 = vsel %vm8049, 1, 0
      %v8082 = vsel %vm8050, 1, 0
      %v8083 = vsel %vm8051, 1, 0
      %vm8084 = vcmp.eq.s32.totalorder %v8052, 1
      %vm8085 = vcmp.eq.s32.totalorder %v8053, 1
      %vm8086 = vcmp.eq.s32.totalorder %v8054, 1
      %vm8087 = vcmp.eq.s32.totalorder %v8055, 1
      %vm8088 = vcmp.eq.s32.totalorder %v8056, 1
      %vm8089 = vcmp.eq.s32.totalorder %v8057, 1
      %vm8090 = vcmp.eq.s32.totalorder %v8058, 1
      %vm8091 = vcmp.eq.s32.totalorder %v8059, 1
      %vm8092 = vcmp.eq.s32.totalorder %v8060, 1
      %vm8093 = vcmp.eq.s32.totalorder %v8061, 1
      %vm8094 = vcmp.eq.s32.totalorder %v8062, 1
      %vm8095 = vcmp.eq.s32.totalorder %v8063, 1
      %vm8096 = vcmp.eq.s32.totalorder %v8064, 1
      %vm8097 = vcmp.eq.s32.totalorder %v8065, 1
      %vm8098 = vcmp.eq.s32.totalorder %v8066, 1
      %vm8099 = vcmp.eq.s32.totalorder %v8067, 1
      %vm8100 = vcmp.eq.s32.totalorder %v8068, 1
      %vm8101 = vcmp.eq.s32.totalorder %v8069, 1
      %vm8102 = vcmp.eq.s32.totalorder %v8070, 1
      %vm8103 = vcmp.eq.s32.totalorder %v8071, 1
      %vm8104 = vcmp.eq.s32.totalorder %v8072, 1
      %vm8105 = vcmp.eq.s32.totalorder %v8073, 1
      %vm8106 = vcmp.eq.s32.totalorder %v8074, 1
      %vm8107 = vcmp.eq.s32.totalorder %v8075, 1
      %vm8108 = vcmp.eq.s32.totalorder %v8076, 1
      %vm8109 = vcmp.eq.s32.totalorder %v8077, 1
      %vm8110 = vcmp.eq.s32.totalorder %v8078, 1
      %vm8111 = vcmp.eq.s32.totalorder %v8079, 1
      %vm8112 = vcmp.eq.s32.totalorder %v8080, 1
      %vm8113 = vcmp.eq.s32.totalorder %v8081, 1
      %vm8114 = vcmp.eq.s32.totalorder %v8082, 1
      %vm8115 = vcmp.eq.s32.totalorder %v8083, 1
      %v8116 = vsel %vm8084, %v7988, 0.0
      %v8117 = vsel %vm8085, %v7989, 0.0
      %v8118 = vsel %vm8086, %v7990, 0.0
      %v8119 = vsel %vm8087, %v7991, 0.0
      %v8120 = vsel %vm8088, %v7992, 0.0
      %v8121 = vsel %vm8089, %v7993, 0.0
      %v8122 = vsel %vm8090, %v7994, 0.0
      %v8123 = vsel %vm8091, %v7995, 0.0
      %v8124 = vsel %vm8092, %v7996, 0.0
      %v8125 = vsel %vm8093, %v7997, 0.0
      %v8126 = vsel %vm8094, %v7998, 0.0
      %v8127 = vsel %vm8095, %v7999, 0.0
      %v8128 = vsel %vm8096, %v8000, 0.0
      %v8129 = vsel %vm8097, %v8001, 0.0
      %v8130 = vsel %vm8098, %v8002, 0.0
      %v8131 = vsel %vm8099, %v8003, 0.0
      %v8132 = vsel %vm8100, %v8004, 0.0
      %v8133 = vsel %vm8101, %v8005, 0.0
      %v8134 = vsel %vm8102, %v8006, 0.0
      %v8135 = vsel %vm8103, %v8007, 0.0
      %v8136 = vsel %vm8104, %v8008, 0.0
      %v8137 = vsel %vm8105, %v8009, 0.0
      %v8138 = vsel %vm8106, %v8010, 0.0
      %v8139 = vsel %vm8107, %v8011, 0.0
      %v8140 = vsel %vm8108, %v8012, 0.0
      %v8141 = vsel %vm8109, %v8013, 0.0
      %v8142 = vsel %vm8110, %v8014, 0.0
      %v8143 = vsel %vm8111, %v8015, 0.0
      %v8144 = vsel %vm8112, %v8016, 0.0
      %v8145 = vsel %vm8113, %v8017, 0.0
      %v8146 = vsel %vm8114, %v8018, 0.0
      %v8147 = vsel %vm8115, %v8019, 0.0
      %v8148 = vlaneseq
      %v8149 = vshrl.u32 %v8148, 7
      %v8150 = vsub.s32 0, %v8149
      %v8151 = vrot.slane %v7986, %v8150
      %v8152 = vmul.f32 %v8116, %v8151
      %v8153 = vmul.f32 %v8117, %v8151
      %v8154 = vmul.f32 %v8118, %v8151
      %v8155 = vmul.f32 %v8119, %v8151
      %v8156 = vmul.f32 %v8120, %v8151
      %v8157 = vmul.f32 %v8121, %v8151
      %v8158 = vmul.f32 %v8122, %v8151
      %v8159 = vmul.f32 %v8123, %v8151
      %v8160 = vmul.f32 %v8124, %v8151
      %v8161 = vmul.f32 %v8125, %v8151
      %v8162 = vmul.f32 %v8126, %v8151
      %v8163 = vmul.f32 %v8127, %v8151
      %v8164 = vmul.f32 %v8128, %v8151
      %v8165 = vmul.f32 %v8129, %v8151
      %v8166 = vmul.f32 %v8130, %v8151
      %v8167 = vmul.f32 %v8131, %v8151
      %v8168 = vmul.f32 %v8132, %v8151
      %v8169 = vmul.f32 %v8133, %v8151
      %v8170 = vmul.f32 %v8134, %v8151
      %v8171 = vmul.f32 %v8135, %v8151
      %v8172 = vmul.f32 %v8136, %v8151
      %v8173 = vmul.f32 %v8137, %v8151
      %v8174 = vmul.f32 %v8138, %v8151
      %v8175 = vmul.f32 %v8139, %v8151
      %v8176 = vmul.f32 %v8140, %v8151
      %v8177 = vmul.f32 %v8141, %v8151
      %v8178 = vmul.f32 %v8142, %v8151
      %v8179 = vmul.f32 %v8143, %v8151
      %v8180 = vmul.f32 %v8144, %v8151
      %v8181 = vmul.f32 %v8145, %v8151
      %v8182 = vmul.f32 %v8146, %v8151
      %v8183 = vmul.f32 %v8147, %v8151
      %v8184 = vadd.f32 %v8152, 0.0
      %v8185 = vadd.f32 %v8153, 0.0
      %v8186 = vadd.f32 %v8154, 0.0
      %v8187 = vadd.f32 %v8155, 0.0
      %v8188 = vadd.f32 %v8156, 0.0
      %v8189 = vadd.f32 %v8157, 0.0
      %v8190 = vadd.f32 %v8158, 0.0
      %v8191 = vadd.f32 %v8159, 0.0
      %v8192 = vadd.f32 %v8160, 0.0
      %v8193 = vadd.f32 %v8161, 0.0
      %v8194 = vadd.f32 %v8162, 0.0
      %v8195 = vadd.f32 %v8163, 0.0
      %v8196 = vadd.f32 %v8164, 0.0
      %v8197 = vadd.f32 %v8165, 0.0
      %v8198 = vadd.f32 %v8166, 0.0
      %v8199 = vadd.f32 %v8167, 0.0
      %v8200 = vadd.f32 %v8168, 0.0
      %v8201 = vadd.f32 %v8169, 0.0
      %v8202 = vadd.f32 %v8170, 0.0
      %v8203 = vadd.f32 %v8171, 0.0
      %v8204 = vadd.f32 %v8172, 0.0
      %v8205 = vadd.f32 %v8173, 0.0
      %v8206 = vadd.f32 %v8174, 0.0
      %v8207 = vadd.f32 %v8175, 0.0
      %v8208 = vadd.f32 %v8176, 0.0
      %v8209 = vadd.f32 %v8177, 0.0
      %v8210 = vadd.f32 %v8178, 0.0
      %v8211 = vadd.f32 %v8179, 0.0
      %v8212 = vadd.f32 %v8180, 0.0
      %v8213 = vadd.f32 %v8181, 0.0
      %v8214 = vadd.f32 %v8182, 0.0
      %v8215 = vadd.f32 %v8183, 0.0
      %v8216 = vld [vmem:[#allocation4 + $0x8] sm:$0xff]
      %v8217 = vld [vmem:[#allocation4 + $0x10] sm:$0xff]
      %v8218 = vld [vmem:[#allocation4 + $0x18] sm:$0xff]
      %v8219 = vld [vmem:[#allocation4 + $0x20] sm:$0xff]
      %v8220 = vld [vmem:[#allocation4 + $0x28] sm:$0xff]
      %v8221 = vld [vmem:[#allocation4 + $0x30] sm:$0xff]
      %v8222 = vld [vmem:[#allocation4 + $0x38] sm:$0xff]
      %v8223 = vld [vmem:[#allocation4 + $0x40] sm:$0xff]
      %v8224 = vld [vmem:[#allocation4 + $0x48] sm:$0xff]
      %v8225 = vld [vmem:[#allocation4 + $0x50] sm:$0xff]
      %v8226 = vld [vmem:[#allocation4 + $0x58] sm:$0xff]
      %v8227 = vld [vmem:[#allocation4 + $0x60] sm:$0xff]
      %v8228 = vld [vmem:[#allocation4 + $0x68] sm:$0xff]
      %v8229 = vld [vmem:[#allocation4 + $0x70] sm:$0xff]
      %v8230 = vld [vmem:[#allocation4 + $0x78] sm:$0xff]
      %v8231 = vld [vmem:[#allocation4 + $0x80] sm:$0xff]
      %v8232 = vld [vmem:[#allocation4 + $0x88] sm:$0xff]
      %v8233 = vld [vmem:[#allocation4 + $0x90] sm:$0xff]
      %v8234 = vld [vmem:[#allocation4 + $0x98] sm:$0xff]
      %v8235 = vld [vmem:[#allocation4 + $0xa0] sm:$0xff]
      %v8236 = vld [vmem:[#allocation4 + $0xa8] sm:$0xff]
      %v8237 = vld [vmem:[#allocation4 + $0xb0] sm:$0xff]
      %v8238 = vld [vmem:[#allocation4 + $0xb8] sm:$0xff]
      %v8239 = vld [vmem:[#allocation4 + $0xc0] sm:$0xff]
      %v8240 = vld [vmem:[#allocation4 + $0xc8] sm:$0xff]
      %v8241 = vld [vmem:[#allocation4 + $0xd0] sm:$0xff]
      %v8242 = vld [vmem:[#allocation4 + $0xd8] sm:$0xff]
      %v8243 = vld [vmem:[#allocation4 + $0xe0] sm:$0xff]
      %v8244 = vld [vmem:[#allocation4 + $0xe8] sm:$0xff]
      %v8245 = vld [vmem:[#allocation4 + $0xf0] sm:$0xff]
      %v8246 = vld [vmem:[#allocation4 + $0xf8] sm:$0xff]
      %v8247 = vld [vmem:[#allocation4 + $0x100] sm:$0xff]
      %v8248 = vlaneseq
      %v8249 = vshrl.u32 %v8248, 7
      %v8250 = vsub.s32 1, %v8249
      %v8251 = vrot.slane %v7986, %v8250
      %v8252 = vmul.f32 %v8216, %v8251
      %v8253 = vmul.f32 %v8217, %v8251
      %v8254 = vmul.f32 %v8218, %v8251
      %v8255 = vmul.f32 %v8219, %v8251
      %v8256 = vmul.f32 %v8220, %v8251
      %v8257 = vmul.f32 %v8221, %v8251
      %v8258 = vmul.f32 %v8222, %v8251
      %v8259 = vmul.f32 %v8223, %v8251
      %v8260 = vmul.f32 %v8224, %v8251
      %v8261 = vmul.f32 %v8225, %v8251
      %v8262 = vmul.f32 %v8226, %v8251
      %v8263 = vmul.f32 %v8227, %v8251
      %v8264 = vmul.f32 %v8228, %v8251
      %v8265 = vmul.f32 %v8229, %v8251
      %v8266 = vmul.f32 %v8230, %v8251
      %v8267 = vmul.f32 %v8231, %v8251
      %v8268 = vmul.f32 %v8232, %v8251
      %v8269 = vmul.f32 %v8233, %v8251
      %v8270 = vmul.f32 %v8234, %v8251
      %v8271 = vmul.f32 %v8235, %v8251
      %v8272 = vmul.f32 %v8236, %v8251
      %v8273 = vmul.f32 %v8237, %v8251
      %v8274 = vmul.f32 %v8238, %v8251
      %v8275 = vmul.f32 %v8239, %v8251
      %v8276 = vmul.f32 %v8240, %v8251
      %v8277 = vmul.f32 %v8241, %v8251
      %v8278 = vmul.f32 %v8242, %v8251
      %v8279 = vmul.f32 %v8243, %v8251
      %v8280 = vmul.f32 %v8244, %v8251
      %v8281 = vmul.f32 %v8245, %v8251
      %v8282 = vmul.f32 %v8246, %v8251
      %v8283 = vmul.f32 %v8247, %v8251
      %v8284 = vadd.f32 %v8184, %v8252
      %v8285 = vadd.f32 %v8185, %v8253
      %v8286 = vadd.f32 %v8186, %v8254
      %v8287 = vadd.f32 %v8187, %v8255
      %v8288 = vadd.f32 %v8188, %v8256
      %v8289 = vadd.f32 %v8189, %v8257
      %v8290 = vadd.f32 %v8190, %v8258
      %v8291 = vadd.f32 %v8191, %v8259
      %v8292 = vadd.f32 %v8192, %v8260
      %v8293 = vadd.f32 %v8193, %v8261
      %v8294 = vadd.f32 %v8194, %v8262
      %v8295 = vadd.f32 %v8195, %v8263
      %v8296 = vadd.f32 %v8196, %v8264
      %v8297 = vadd.f32 %v8197, %v8265
      %v8298 = vadd.f32 %v8198, %v8266
      %v8299 = vadd.f32 %v8199, %v8267
      %v8300 = vadd.f32 %v8200, %v8268
      %v8301 = vadd.f32 %v8201, %v8269
      %v8302 = vadd.f32 %v8202, %v8270
      %v8303 = vadd.f32 %v8203, %v8271
      %v8304 = vadd.f32 %v8204, %v8272
      %v8305 = vadd.f32 %v8205, %v8273
      %v8306 = vadd.f32 %v8206, %v8274
      %v8307 = vadd.f32 %v8207, %v8275
      %v8308 = vadd.f32 %v8208, %v8276
      %v8309 = vadd.f32 %v8209, %v8277
      %v8310 = vadd.f32 %v8210, %v8278
      %v8311 = vadd.f32 %v8211, %v8279
      %v8312 = vadd.f32 %v8212, %v8280
      %v8313 = vadd.f32 %v8213, %v8281
      %v8314 = vadd.f32 %v8214, %v8282
      %v8315 = vadd.f32 %v8215, %v8283
      %v8316 = vld [vmem:[#allocation4 + $0x9] sm:$0xff]
      %v8317 = vld [vmem:[#allocation4 + $0x11] sm:$0xff]
      %v8318 = vld [vmem:[#allocation4 + $0x19] sm:$0xff]
      %v8319 = vld [vmem:[#allocation4 + $0x21] sm:$0xff]
      %v8320 = vld [vmem:[#allocation4 + $0x29] sm:$0xff]
      %v8321 = vld [vmem:[#allocation4 + $0x31] sm:$0xff]
      %v8322 = vld [vmem:[#allocation4 + $0x39] sm:$0xff]
      %v8323 = vld [vmem:[#allocation4 + $0x41] sm:$0xff]
      %v8324 = vld [vmem:[#allocation4 + $0x49] sm:$0xff]
      %v8325 = vld [vmem:[#allocation4 + $0x51] sm:$0xff]
      %v8326 = vld [vmem:[#allocation4 + $0x59] sm:$0xff]
      %v8327 = vld [vmem:[#allocation4 + $0x61] sm:$0xff]
      %v8328 = vld [vmem:[#allocation4 + $0x69] sm:$0xff]
      %v8329 = vld [vmem:[#allocation4 + $0x71] sm:$0xff]
      %v8330 = vld [vmem:[#allocation4 + $0x79] sm:$0xff]
      %v8331 = vld [vmem:[#allocation4 + $0x81] sm:$0xff]
      %v8332 = vld [vmem:[#allocation4 + $0x89] sm:$0xff]
      %v8333 = vld [vmem:[#allocation4 + $0x91] sm:$0xff]
      %v8334 = vld [vmem:[#allocation4 + $0x99] sm:$0xff]
      %v8335 = vld [vmem:[#allocation4 + $0xa1] sm:$0xff]
      %v8336 = vld [vmem:[#allocation4 + $0xa9] sm:$0xff]
      %v8337 = vld [vmem:[#allocation4 + $0xb1] sm:$0xff]
      %v8338 = vld [vmem:[#allocation4 + $0xb9] sm:$0xff]
      %v8339 = vld [vmem:[#allocation4 + $0xc1] sm:$0xff]
      %v8340 = vld [vmem:[#allocation4 + $0xc9] sm:$0xff]
      %v8341 = vld [vmem:[#allocation4 + $0xd1] sm:$0xff]
      %v8342 = vld [vmem:[#allocation4 + $0xd9] sm:$0xff]
      %v8343 = vld [vmem:[#allocation4 + $0xe1] sm:$0xff]
      %v8344 = vld [vmem:[#allocation4 + $0xe9] sm:$0xff]
      %v8345 = vld [vmem:[#allocation4 + $0xf1] sm:$0xff]
      %v8346 = vld [vmem:[#allocation4 + $0xf9] sm:$0xff]
      %v8347 = vld [vmem:[#allocation4 + $0x101] sm:$0xff]
      %vm8348 = vcmp.le.s32.totalorder %v7954, 14
      %vm8349 = vcmp.le.s32.totalorder %v7955, 14
      %vm8350 = vcmp.le.s32.totalorder %v7956, 14
      %vm8351 = vcmp.le.s32.totalorder %v7957, 14
      %vm8352 = vcmp.le.s32.totalorder %v7958, 14
      %vm8353 = vcmp.le.s32.totalorder %v7959, 14
      %vm8354 = vcmp.le.s32.totalorder %v7960, 14
      %vm8355 = vcmp.le.s32.totalorder %v7961, 14
      %vm8356 = vcmp.le.s32.totalorder %v7962, 14
      %vm8357 = vcmp.le.s32.totalorder %v7963, 14
      %vm8358 = vcmp.le.s32.totalorder %v7964, 14
      %vm8359 = vcmp.le.s32.totalorder %v7965, 14
      %vm8360 = vcmp.le.s32.totalorder %v7966, 14
      %vm8361 = vcmp.le.s32.totalorder %v7967, 14
      %vm8362 = vcmp.le.s32.totalorder %v7968, 14
      %vm8363 = vcmp.le.s32.totalorder %v7969, 14
      %vm8364 = vcmp.le.s32.totalorder %v7970, 14
      %vm8365 = vcmp.le.s32.totalorder %v7971, 14
      %vm8366 = vcmp.le.s32.totalorder %v7972, 14
      %vm8367 = vcmp.le.s32.totalorder %v7973, 14
      %vm8368 = vcmp.le.s32.totalorder %v7974, 14
      %vm8369 = vcmp.le.s32.totalorder %v7975, 14
      %vm8370 = vcmp.le.s32.totalorder %v7976, 14
      %vm8371 = vcmp.le.s32.totalorder %v7977, 14
      %vm8372 = vcmp.le.s32.totalorder %v7978, 14
      %vm8373 = vcmp.le.s32.totalorder %v7979, 14
      %vm8374 = vcmp.le.s32.totalorder %v7980, 14
      %vm8375 = vcmp.le.s32.totalorder %v7981, 14
      %vm8376 = vcmp.le.s32.totalorder %v7982, 14
      %vm8377 = vcmp.le.s32.totalorder %v7983, 14
      %vm8378 = vcmp.le.s32.totalorder %v7984, 14
      %vm8379 = vcmp.le.s32.totalorder %v7985, 14
      %v8380 = vsel %vm8348, 1, 0
      %v8381 = vsel %vm8349, 1, 0
      %v8382 = vsel %vm8350, 1, 0
      %v8383 = vsel %vm8351, 1, 0
      %v8384 = vsel %vm8352, 1, 0
      %v8385 = vsel %vm8353, 1, 0
      %v8386 = vsel %vm8354, 1, 0
      %v8387 = vsel %vm8355, 1, 0
      %v8388 = vsel %vm8356, 1, 0
      %v8389 = vsel %vm8357, 1, 0
      %v8390 = vsel %vm8358, 1, 0
      %v8391 = vsel %vm8359, 1, 0
      %v8392 = vsel %vm8360, 1, 0
      %v8393 = vsel %vm8361, 1, 0
      %v8394 = vsel %vm8362, 1, 0
      %v8395 = vsel %vm8363, 1, 0
      %v8396 = vsel %vm8364, 1, 0
      %v8397 = vsel %vm8365, 1, 0
      %v8398 = vsel %vm8366, 1, 0
      %v8399 = vsel %vm8367, 1, 0
      %v8400 = vsel %vm8368, 1, 0
      %v8401 = vsel %vm8369, 1, 0
      %v8402 = vsel %vm8370, 1, 0
      %v8403 = vsel %vm8371, 1, 0
      %v8404 = vsel %vm8372, 1, 0
      %v8405 = vsel %vm8373, 1, 0
      %v8406 = vsel %vm8374, 1, 0
      %v8407 = vsel %vm8375, 1, 0
      %v8408 = vsel %vm8376, 1, 0
      %v8409 = vsel %vm8377, 1, 0
      %v8410 = vsel %vm8378, 1, 0
      %v8411 = vsel %vm8379, 1, 0
      %vm8412 = vcmp.eq.s32.totalorder %v8380, 1
      %vm8413 = vcmp.eq.s32.totalorder %v8381, 1
      %vm8414 = vcmp.eq.s32.totalorder %v8382, 1
      %vm8415 = vcmp.eq.s32.totalorder %v8383, 1
      %vm8416 = vcmp.eq.s32.totalorder %v8384, 1
      %vm8417 = vcmp.eq.s32.totalorder %v8385, 1
      %vm8418 = vcmp.eq.s32.totalorder %v8386, 1
      %vm8419 = vcmp.eq.s32.totalorder %v8387, 1
      %vm8420 = vcmp.eq.s32.totalorder %v8388, 1
      %vm8421 = vcmp.eq.s32.totalorder %v8389, 1
      %vm8422 = vcmp.eq.s32.totalorder %v8390, 1
      %vm8423 = vcmp.eq.s32.totalorder %v8391, 1
      %vm8424 = vcmp.eq.s32.totalorder %v8392, 1
      %vm8425 = vcmp.eq.s32.totalorder %v8393, 1
      %vm8426 = vcmp.eq.s32.totalorder %v8394, 1
      %vm8427 = vcmp.eq.s32.totalorder %v8395, 1
      %vm8428 = vcmp.eq.s32.totalorder %v8396, 1
      %vm8429 = vcmp.eq.s32.totalorder %v8397, 1
      %vm8430 = vcmp.eq.s32.totalorder %v8398, 1
      %vm8431 = vcmp.eq.s32.totalorder %v8399, 1
      %vm8432 = vcmp.eq.s32.totalorder %v8400, 1
      %vm8433 = vcmp.eq.s32.totalorder %v8401, 1
      %vm8434 = vcmp.eq.s32.totalorder %v8402, 1
      %vm8435 = vcmp.eq.s32.totalorder %v8403, 1
      %vm8436 = vcmp.eq.s32.totalorder %v8404, 1
      %vm8437 = vcmp.eq.s32.totalorder %v8405, 1
      %vm8438 = vcmp.eq.s32.totalorder %v8406, 1
      %vm8439 = vcmp.eq.s32.totalorder %v8407, 1
      %vm8440 = vcmp.eq.s32.totalorder %v8408, 1
      %vm8441 = vcmp.eq.s32.totalorder %v8409, 1
      %vm8442 = vcmp.eq.s32.totalorder %v8410, 1
      %vm8443 = vcmp.eq.s32.totalorder %v8411, 1
      %v8444 = vsel %vm8412, %v8316, 0.0
      %v8445 = vsel %vm8413, %v8317, 0.0
      %v8446 = vsel %vm8414, %v8318, 0.0
      %v8447 = vsel %vm8415, %v8319, 0.0
      %v8448 = vsel %vm8416, %v8320, 0.0
      %v8449 = vsel %vm8417, %v8321, 0.0
      %v8450 = vsel %vm8418, %v8322, 0.0
      %v8451 = vsel %vm8419, %v8323, 0.0
      %v8452 = vsel %vm8420, %v8324, 0.0
      %v8453 = vsel %vm8421, %v8325, 0.0
      %v8454 = vsel %vm8422, %v8326, 0.0
      %v8455 = vsel %vm8423, %v8327, 0.0
      %v8456 = vsel %vm8424, %v8328, 0.0
      %v8457 = vsel %vm8425, %v8329, 0.0
      %v8458 = vsel %vm8426, %v8330, 0.0
      %v8459 = vsel %vm8427, %v8331, 0.0
      %v8460 = vsel %vm8428, %v8332, 0.0
      %v8461 = vsel %vm8429, %v8333, 0.0
      %v8462 = vsel %vm8430, %v8334, 0.0
      %v8463 = vsel %vm8431, %v8335, 0.0
      %v8464 = vsel %vm8432, %v8336, 0.0
      %v8465 = vsel %vm8433, %v8337, 0.0
      %v8466 = vsel %vm8434, %v8338, 0.0
      %v8467 = vsel %vm8435, %v8339, 0.0
      %v8468 = vsel %vm8436, %v8340, 0.0
      %v8469 = vsel %vm8437, %v8341, 0.0
      %v8470 = vsel %vm8438, %v8342, 0.0
      %v8471 = vsel %vm8439, %v8343, 0.0
      %v8472 = vsel %vm8440, %v8344, 0.0
      %v8473 = vsel %vm8441, %v8345, 0.0
      %v8474 = vsel %vm8442, %v8346, 0.0
      %v8475 = vsel %vm8443, %v8347, 0.0
      %v8476 = vlaneseq
      %v8477 = vshrl.u32 %v8476, 7
      %v8478 = vsub.s32 2, %v8477
      %v8479 = vrot.slane %v7986, %v8478
      %v8480 = vmul.f32 %v8444, %v8479
      %v8481 = vmul.f32 %v8445, %v8479
      %v8482 = vmul.f32 %v8446, %v8479
      %v8483 = vmul.f32 %v8447, %v8479
      %v8484 = vmul.f32 %v8448, %v8479
      %v8485 = vmul.f32 %v8449, %v8479
      %v8486 = vmul.f32 %v8450, %v8479
      %v8487 = vmul.f32 %v8451, %v8479
      %v8488 = vmul.f32 %v8452, %v8479
      %v8489 = vmul.f32 %v8453, %v8479
      %v8490 = vmul.f32 %v8454, %v8479
      %v8491 = vmul.f32 %v8455, %v8479
      %v8492 = vmul.f32 %v8456, %v8479
      %v8493 = vmul.f32 %v8457, %v8479
      %v8494 = vmul.f32 %v8458, %v8479
      %v8495 = vmul.f32 %v8459, %v8479
      %v8496 = vmul.f32 %v8460, %v8479
      %v8497 = vmul.f32 %v8461, %v8479
      %v8498 = vmul.f32 %v8462, %v8479
      %v8499 = vmul.f32 %v8463, %v8479
      %v8500 = vmul.f32 %v8464, %v8479
      %v8501 = vmul.f32 %v8465, %v8479
      %v8502 = vmul.f32 %v8466, %v8479
      %v8503 = vmul.f32 %v8467, %v8479
      %v8504 = vmul.f32 %v8468, %v8479
      %v8505 = vmul.f32 %v8469, %v8479
      %v8506 = vmul.f32 %v8470, %v8479
      %v8507 = vmul.f32 %v8471, %v8479
      %v8508 = vmul.f32 %v8472, %v8479
      %v8509 = vmul.f32 %v8473, %v8479
      %v8510 = vmul.f32 %v8474, %v8479
      %v8511 = vmul.f32 %v8475, %v8479
      %v8512 = vadd.f32 %v8284, %v8480
      %v8513 = vadd.f32 %v8285, %v8481
      %v8514 = vadd.f32 %v8286, %v8482
      %v8515 = vadd.f32 %v8287, %v8483
      %v8516 = vadd.f32 %v8288, %v8484
      %v8517 = vadd.f32 %v8289, %v8485
      %v8518 = vadd.f32 %v8290, %v8486
      %v8519 = vadd.f32 %v8291, %v8487
      %v8520 = vadd.f32 %v8292, %v8488
      %v8521 = vadd.f32 %v8293, %v8489
      %v8522 = vadd.f32 %v8294, %v8490
      %v8523 = vadd.f32 %v8295, %v8491
      %v8524 = vadd.f32 %v8296, %v8492
      %v8525 = vadd.f32 %v8297, %v8493
      %v8526 = vadd.f32 %v8298, %v8494
      %v8527 = vadd.f32 %v8299, %v8495
      %v8528 = vadd.f32 %v8300, %v8496
      %v8529 = vadd.f32 %v8301, %v8497
      %v8530 = vadd.f32 %v8302, %v8498
      %v8531 = vadd.f32 %v8303, %v8499
      %v8532 = vadd.f32 %v8304, %v8500
      %v8533 = vadd.f32 %v8305, %v8501
      %v8534 = vadd.f32 %v8306, %v8502
      %v8535 = vadd.f32 %v8307, %v8503
      %v8536 = vadd.f32 %v8308, %v8504
      %v8537 = vadd.f32 %v8309, %v8505
      %v8538 = vadd.f32 %v8310, %v8506
      %v8539 = vadd.f32 %v8311, %v8507
      %v8540 = vadd.f32 %v8312, %v8508
      %v8541 = vadd.f32 %v8313, %v8509
      %v8542 = vadd.f32 %v8314, %v8510
      %v8543 = vadd.f32 %v8315, %v8511
      %v8544 = vld [vmem:[#allocation4 + $0x107] sm:$0xff]
      %v8545 = vld [vmem:[#allocation4 + $0x10f] sm:$0xff]
      %v8546 = vsel %vm8084, %v7990, 0.0
      %v8547 = vsel %vm8085, %v7991, 0.0
      %v8548 = vsel %vm8086, %v7992, 0.0
      %v8549 = vsel %vm8087, %v7993, 0.0
      %v8550 = vsel %vm8088, %v7994, 0.0
      %v8551 = vsel %vm8089, %v7995, 0.0
      %v8552 = vsel %vm8090, %v7996, 0.0
      %v8553 = vsel %vm8091, %v7997, 0.0
      %v8554 = vsel %vm8092, %v7998, 0.0
      %v8555 = vsel %vm8093, %v7999, 0.0
      %v8556 = vsel %vm8094, %v8000, 0.0
      %v8557 = vsel %vm8095, %v8001, 0.0
      %v8558 = vsel %vm8096, %v8002, 0.0
      %v8559 = vsel %vm8097, %v8003, 0.0
      %v8560 = vsel %vm8098, %v8004, 0.0
      %v8561 = vsel %vm8099, %v8005, 0.0
      %v8562 = vsel %vm8100, %v8006, 0.0
      %v8563 = vsel %vm8101, %v8007, 0.0
      %v8564 = vsel %vm8102, %v8008, 0.0
      %v8565 = vsel %vm8103, %v8009, 0.0
      %v8566 = vsel %vm8104, %v8010, 0.0
      %v8567 = vsel %vm8105, %v8011, 0.0
      %v8568 = vsel %vm8106, %v8012, 0.0
      %v8569 = vsel %vm8107, %v8013, 0.0
      %v8570 = vsel %vm8108, %v8014, 0.0
      %v8571 = vsel %vm8109, %v8015, 0.0
      %v8572 = vsel %vm8110, %v8016, 0.0
      %v8573 = vsel %vm8111, %v8017, 0.0
      %v8574 = vsel %vm8112, %v8018, 0.0
      %v8575 = vsel %vm8113, %v8019, 0.0
      %v8576 = vsel %vm8114, %v8544, 0.0
      %v8577 = vsel %vm8115, %v8545, 0.0
      %v8578 = vlaneseq
      %v8579 = vshrl.u32 %v8578, 7
      %v8580 = vsub.s32 3, %v8579
      %v8581 = vrot.slane %v7986, %v8580
      %v8582 = vmul.f32 %v8546, %v8581
      %v8583 = vmul.f32 %v8547, %v8581
      %v8584 = vmul.f32 %v8548, %v8581
      %v8585 = vmul.f32 %v8549, %v8581
      %v8586 = vmul.f32 %v8550, %v8581
      %v8587 = vmul.f32 %v8551, %v8581
      %v8588 = vmul.f32 %v8552, %v8581
      %v8589 = vmul.f32 %v8553, %v8581
      %v8590 = vmul.f32 %v8554, %v8581
      %v8591 = vmul.f32 %v8555, %v8581
      %v8592 = vmul.f32 %v8556, %v8581
      %v8593 = vmul.f32 %v8557, %v8581
      %v8594 = vmul.f32 %v8558, %v8581
      %v8595 = vmul.f32 %v8559, %v8581
      %v8596 = vmul.f32 %v8560, %v8581
      %v8597 = vmul.f32 %v8561, %v8581
      %v8598 = vmul.f32 %v8562, %v8581
      %v8599 = vmul.f32 %v8563, %v8581
      %v8600 = vmul.f32 %v8564, %v8581
      %v8601 = vmul.f32 %v8565, %v8581
      %v8602 = vmul.f32 %v8566, %v8581
      %v8603 = vmul.f32 %v8567, %v8581
      %v8604 = vmul.f32 %v8568, %v8581
      %v8605 = vmul.f32 %v8569, %v8581
      %v8606 = vmul.f32 %v8570, %v8581
      %v8607 = vmul.f32 %v8571, %v8581
      %v8608 = vmul.f32 %v8572, %v8581
      %v8609 = vmul.f32 %v8573, %v8581
      %v8610 = vmul.f32 %v8574, %v8581
      %v8611 = vmul.f32 %v8575, %v8581
      %v8612 = vmul.f32 %v8576, %v8581
      %v8613 = vmul.f32 %v8577, %v8581
      %v8614 = vadd.f32 %v8512, %v8582
      %v8615 = vadd.f32 %v8513, %v8583
      %v8616 = vadd.f32 %v8514, %v8584
      %v8617 = vadd.f32 %v8515, %v8585
      %v8618 = vadd.f32 %v8516, %v8586
      %v8619 = vadd.f32 %v8517, %v8587
      %v8620 = vadd.f32 %v8518, %v8588
      %v8621 = vadd.f32 %v8519, %v8589
      %v8622 = vadd.f32 %v8520, %v8590
      %v8623 = vadd.f32 %v8521, %v8591
      %v8624 = vadd.f32 %v8522, %v8592
      %v8625 = vadd.f32 %v8523, %v8593
      %v8626 = vadd.f32 %v8524, %v8594
      %v8627 = vadd.f32 %v8525, %v8595
      %v8628 = vadd.f32 %v8526, %v8596
      %v8629 = vadd.f32 %v8527, %v8597
      %v8630 = vadd.f32 %v8528, %v8598
      %v8631 = vadd.f32 %v8529, %v8599
      %v8632 = vadd.f32 %v8530, %v8600
      %v8633 = vadd.f32 %v8531, %v8601
      %v8634 = vadd.f32 %v8532, %v8602
      %v8635 = vadd.f32 %v8533, %v8603
      %v8636 = vadd.f32 %v8534, %v8604
      %v8637 = vadd.f32 %v8535, %v8605
      %v8638 = vadd.f32 %v8536, %v8606
      %v8639 = vadd.f32 %v8537, %v8607
      %v8640 = vadd.f32 %v8538, %v8608
      %v8641 = vadd.f32 %v8539, %v8609
      %v8642 = vadd.f32 %v8540, %v8610
      %v8643 = vadd.f32 %v8541, %v8611
      %v8644 = vadd.f32 %v8542, %v8612
      %v8645 = vadd.f32 %v8543, %v8613
      %v8646 = vld [vmem:[#allocation4 + $0x108] sm:$0xff]
      %v8647 = vld [vmem:[#allocation4 + $0x110] sm:$0xff]
      %v8648 = vlaneseq
      %v8649 = vshrl.u32 %v8648, 7
      %v8650 = vsub.s32 4, %v8649
      %v8651 = vrot.slane %v7986, %v8650
      %v8652 = vmul.f32 %v8218, %v8651
      %v8653 = vmul.f32 %v8219, %v8651
      %v8654 = vmul.f32 %v8220, %v8651
      %v8655 = vmul.f32 %v8221, %v8651
      %v8656 = vmul.f32 %v8222, %v8651
      %v8657 = vmul.f32 %v8223, %v8651
      %v8658 = vmul.f32 %v8224, %v8651
      %v8659 = vmul.f32 %v8225, %v8651
      %v8660 = vmul.f32 %v8226, %v8651
      %v8661 = vmul.f32 %v8227, %v8651
      %v8662 = vmul.f32 %v8228, %v8651
      %v8663 = vmul.f32 %v8229, %v8651
      %v8664 = vmul.f32 %v8230, %v8651
      %v8665 = vmul.f32 %v8231, %v8651
      %v8666 = vmul.f32 %v8232, %v8651
      %v8667 = vmul.f32 %v8233, %v8651
      %v8668 = vmul.f32 %v8234, %v8651
      %v8669 = vmul.f32 %v8235, %v8651
      %v8670 = vmul.f32 %v8236, %v8651
      %v8671 = vmul.f32 %v8237, %v8651
      %v8672 = vmul.f32 %v8238, %v8651
      %v8673 = vmul.f32 %v8239, %v8651
      %v8674 = vmul.f32 %v8240, %v8651
      %v8675 = vmul.f32 %v8241, %v8651
      %v8676 = vmul.f32 %v8242, %v8651
      %v8677 = vmul.f32 %v8243, %v8651
      %v8678 = vmul.f32 %v8244, %v8651
      %v8679 = vmul.f32 %v8245, %v8651
      %v8680 = vmul.f32 %v8246, %v8651
      %v8681 = vmul.f32 %v8247, %v8651
      %v8682 = vmul.f32 %v8646, %v8651
      %v8683 = vmul.f32 %v8647, %v8651
      %v8684 = vadd.f32 %v8614, %v8652
      %v8685 = vadd.f32 %v8615, %v8653
      %v8686 = vadd.f32 %v8616, %v8654
      %v8687 = vadd.f32 %v8617, %v8655
      %v8688 = vadd.f32 %v8618, %v8656
      %v8689 = vadd.f32 %v8619, %v8657
      %v8690 = vadd.f32 %v8620, %v8658
      %v8691 = vadd.f32 %v8621, %v8659
      %v8692 = vadd.f32 %v8622, %v8660
      %v8693 = vadd.f32 %v8623, %v8661
      %v8694 = vadd.f32 %v8624, %v8662
      %v8695 = vadd.f32 %v8625, %v8663
      %v8696 = vadd.f32 %v8626, %v8664
      %v8697 = vadd.f32 %v8627, %v8665
      %v8698 = vadd.f32 %v8628, %v8666
      %v8699 = vadd.f32 %v8629, %v8667
      %v8700 = vadd.f32 %v8630, %v8668
      %v8701 = vadd.f32 %v8631, %v8669
      %v8702 = vadd.f32 %v8632, %v8670
      %v8703 = vadd.f32 %v8633, %v8671
      %v8704 = vadd.f32 %v8634, %v8672
      %v8705 = vadd.f32 %v8635, %v8673
      %v8706 = vadd.f32 %v8636, %v8674
      %v8707 = vadd.f32 %v8637, %v8675
      %v8708 = vadd.f32 %v8638, %v8676
      %v8709 = vadd.f32 %v8639, %v8677
      %v8710 = vadd.f32 %v8640, %v8678
      %v8711 = vadd.f32 %v8641, %v8679
      %v8712 = vadd.f32 %v8642, %v8680
      %v8713 = vadd.f32 %v8643, %v8681
      %v8714 = vadd.f32 %v8644, %v8682
      %v8715 = vadd.f32 %v8645, %v8683
      %v8716 = vld [vmem:[#allocation4 + $0x109] sm:$0xff]
      %v8717 = vld [vmem:[#allocation4 + $0x111] sm:$0xff]
      %v8718 = vsel %vm8412, %v8318, 0.0
      %v8719 = vsel %vm8413, %v8319, 0.0
      %v8720 = vsel %vm8414, %v8320, 0.0
      %v8721 = vsel %vm8415, %v8321, 0.0
      %v8722 = vsel %vm8416, %v8322, 0.0
      %v8723 = vsel %vm8417, %v8323, 0.0
      %v8724 = vsel %vm8418, %v8324, 0.0
      %v8725 = vsel %vm8419, %v8325, 0.0
      %v8726 = vsel %vm8420, %v8326, 0.0
      %v8727 = vsel %vm8421, %v8327, 0.0
      %v8728 = vsel %vm8422, %v8328, 0.0
      %v8729 = vsel %vm8423, %v8329, 0.0
      %v8730 = vsel %vm8424, %v8330, 0.0
      %v8731 = vsel %vm8425, %v8331, 0.0
      %v8732 = vsel %vm8426, %v8332, 0.0
      %v8733 = vsel %vm8427, %v8333, 0.0
      %v8734 = vsel %vm8428, %v8334, 0.0
      %v8735 = vsel %vm8429, %v8335, 0.0
      %v8736 = vsel %vm8430, %v8336, 0.0
      %v8737 = vsel %vm8431, %v8337, 0.0
      %v8738 = vsel %vm8432, %v8338, 0.0
      %v8739 = vsel %vm8433, %v8339, 0.0
      %v8740 = vsel %vm8434, %v8340, 0.0
      %v8741 = vsel %vm8435, %v8341, 0.0
      %v8742 = vsel %vm8436, %v8342, 0.0
      %v8743 = vsel %vm8437, %v8343, 0.0
      %v8744 = vsel %vm8438, %v8344, 0.0
      %v8745 = vsel %vm8439, %v8345, 0.0
      %v8746 = vsel %vm8440, %v8346, 0.0
      %v8747 = vsel %vm8441, %v8347, 0.0
      %v8748 = vsel %vm8442, %v8716, 0.0
      %v8749 = vsel %vm8443, %v8717, 0.0
      %v8750 = vlaneseq
      %v8751 = vshrl.u32 %v8750, 7
      %v8752 = vsub.s32 5, %v8751
      %v8753 = vrot.slane %v7986, %v8752
      %v8754 = vmul.f32 %v8718, %v8753
      %v8755 = vmul.f32 %v8719, %v8753
      %v8756 = vmul.f32 %v8720, %v8753
      %v8757 = vmul.f32 %v8721, %v8753
      %v8758 = vmul.f32 %v8722, %v8753
      %v8759 = vmul.f32 %v8723, %v8753
      %v8760 = vmul.f32 %v8724, %v8753
      %v8761 = vmul.f32 %v8725, %v8753
      %v8762 = vmul.f32 %v8726, %v8753
      %v8763 = vmul.f32 %v8727, %v8753
      %v8764 = vmul.f32 %v8728, %v8753
      %v8765 = vmul.f32 %v8729, %v8753
      %v8766 = vmul.f32 %v8730, %v8753
      %v8767 = vmul.f32 %v8731, %v8753
      %v8768 = vmul.f32 %v8732, %v8753
      %v8769 = vmul.f32 %v8733, %v8753
      %v8770 = vmul.f32 %v8734, %v8753
      %v8771 = vmul.f32 %v8735, %v8753
      %v8772 = vmul.f32 %v8736, %v8753
      %v8773 = vmul.f32 %v8737, %v8753
      %v8774 = vmul.f32 %v8738, %v8753
      %v8775 = vmul.f32 %v8739, %v8753
      %v8776 = vmul.f32 %v8740, %v8753
      %v8777 = vmul.f32 %v8741, %v8753
      %v8778 = vmul.f32 %v8742, %v8753
      %v8779 = vmul.f32 %v8743, %v8753
      %v8780 = vmul.f32 %v8744, %v8753
      %v8781 = vmul.f32 %v8745, %v8753
      %v8782 = vmul.f32 %v8746, %v8753
      %v8783 = vmul.f32 %v8747, %v8753
      %v8784 = vmul.f32 %v8748, %v8753
      %v8785 = vmul.f32 %v8749, %v8753
      %v8786 = vadd.f32 %v8684, %v8754
      %v8787 = vadd.f32 %v8685, %v8755
      %v8788 = vadd.f32 %v8686, %v8756
      %v8789 = vadd.f32 %v8687, %v8757
      %v8790 = vadd.f32 %v8688, %v8758
      %v8791 = vadd.f32 %v8689, %v8759
      %v8792 = vadd.f32 %v8690, %v8760
      %v8793 = vadd.f32 %v8691, %v8761
      %v8794 = vadd.f32 %v8692, %v8762
      %v8795 = vadd.f32 %v8693, %v8763
      %v8796 = vadd.f32 %v8694, %v8764
      %v8797 = vadd.f32 %v8695, %v8765
      %v8798 = vadd.f32 %v8696, %v8766
      %v8799 = vadd.f32 %v8697, %v8767
      %v8800 = vadd.f32 %v8698, %v8768
      %v8801 = vadd.f32 %v8699, %v8769
      %v8802 = vadd.f32 %v8700, %v8770
      %v8803 = vadd.f32 %v8701, %v8771
      %v8804 = vadd.f32 %v8702, %v8772
      %v8805 = vadd.f32 %v8703, %v8773
      %v8806 = vadd.f32 %v8704, %v8774
      %v8807 = vadd.f32 %v8705, %v8775
      %v8808 = vadd.f32 %v8706, %v8776
      %v8809 = vadd.f32 %v8707, %v8777
      %v8810 = vadd.f32 %v8708, %v8778
      %v8811 = vadd.f32 %v8709, %v8779
      %v8812 = vadd.f32 %v8710, %v8780
      %v8813 = vadd.f32 %v8711, %v8781
      %v8814 = vadd.f32 %v8712, %v8782
      %v8815 = vadd.f32 %v8713, %v8783
      %v8816 = vadd.f32 %v8714, %v8784
      %v8817 = vadd.f32 %v8715, %v8785
      %v8818 = vld [vmem:[#allocation4 + $0x117] sm:$0xff]
      %v8819 = vld [vmem:[#allocation4 + $0x11f] sm:$0xff]
      %v8820 = vsel %vm8084, %v7992, 0.0
      %v8821 = vsel %vm8085, %v7993, 0.0
      %v8822 = vsel %vm8086, %v7994, 0.0
      %v8823 = vsel %vm8087, %v7995, 0.0
      %v8824 = vsel %vm8088, %v7996, 0.0
      %v8825 = vsel %vm8089, %v7997, 0.0
      %v8826 = vsel %vm8090, %v7998, 0.0
      %v8827 = vsel %vm8091, %v7999, 0.0
      %v8828 = vsel %vm8092, %v8000, 0.0
      %v8829 = vsel %vm8093, %v8001, 0.0
      %v8830 = vsel %vm8094, %v8002, 0.0
      %v8831 = vsel %vm8095, %v8003, 0.0
      %v8832 = vsel %vm8096, %v8004, 0.0
      %v8833 = vsel %vm8097, %v8005, 0.0
      %v8834 = vsel %vm8098, %v8006, 0.0
      %v8835 = vsel %vm8099, %v8007, 0.0
      %v8836 = vsel %vm8100, %v8008, 0.0
      %v8837 = vsel %vm8101, %v8009, 0.0
      %v8838 = vsel %vm8102, %v8010, 0.0
      %v8839 = vsel %vm8103, %v8011, 0.0
      %v8840 = vsel %vm8104, %v8012, 0.0
      %v8841 = vsel %vm8105, %v8013, 0.0
      %v8842 = vsel %vm8106, %v8014, 0.0
      %v8843 = vsel %vm8107, %v8015, 0.0
      %v8844 = vsel %vm8108, %v8016, 0.0
      %v8845 = vsel %vm8109, %v8017, 0.0
      %v8846 = vsel %vm8110, %v8018, 0.0
      %v8847 = vsel %vm8111, %v8019, 0.0
      %v8848 = vsel %vm8112, %v8544, 0.0
      %v8849 = vsel %vm8113, %v8545, 0.0
      %v8850 = vsel %vm8114, %v8818, 0.0
      %v8851 = vsel %vm8115, %v8819, 0.0
      %v8852 = vlaneseq
      %v8853 = vshrl.u32 %v8852, 7
      %v8854 = vsub.s32 6, %v8853
      %v8855 = vrot.slane %v7986, %v8854
      %v8856 = vmul.f32 %v8820, %v8855
      %v8857 = vmul.f32 %v8821, %v8855
      %v8858 = vmul.f32 %v8822, %v8855
      %v8859 = vmul.f32 %v8823, %v8855
      %v8860 = vmul.f32 %v8824, %v8855
      %v8861 = vmul.f32 %v8825, %v8855
      %v8862 = vmul.f32 %v8826, %v8855
      %v8863 = vmul.f32 %v8827, %v8855
      %v8864 = vmul.f32 %v8828, %v8855
      %v8865 = vmul.f32 %v8829, %v8855
      %v8866 = vmul.f32 %v8830, %v8855
      %v8867 = vmul.f32 %v8831, %v8855
      %v8868 = vmul.f32 %v8832, %v8855
      %v8869 = vmul.f32 %v8833, %v8855
      %v8870 = vmul.f32 %v8834, %v8855
      %v8871 = vmul.f32 %v8835, %v8855
      %v8872 = vmul.f32 %v8836, %v8855
      %v8873 = vmul.f32 %v8837, %v8855
      %v8874 = vmul.f32 %v8838, %v8855
      %v8875 = vmul.f32 %v8839, %v8855
      %v8876 = vmul.f32 %v8840, %v8855
      %v8877 = vmul.f32 %v8841, %v8855
      %v8878 = vmul.f32 %v8842, %v8855
      %v8879 = vmul.f32 %v8843, %v8855
      %v8880 = vmul.f32 %v8844, %v8855
      %v8881 = vmul.f32 %v8845, %v8855
      %v8882 = vmul.f32 %v8846, %v8855
      %v8883 = vmul.f32 %v8847, %v8855
      %v8884 = vmul.f32 %v8848, %v8855
      %v8885 = vmul.f32 %v8849, %v8855
      %v8886 = vmul.f32 %v8850, %v8855
      %v8887 = vmul.f32 %v8851, %v8855
      %v8888 = vadd.f32 %v8786, %v8856
      %v8889 = vadd.f32 %v8787, %v8857
      %v8890 = vadd.f32 %v8788, %v8858
      %v8891 = vadd.f32 %v8789, %v8859
      %v8892 = vadd.f32 %v8790, %v8860
      %v8893 = vadd.f32 %v8791, %v8861
      %v8894 = vadd.f32 %v8792, %v8862
      %v8895 = vadd.f32 %v8793, %v8863
      %v8896 = vadd.f32 %v8794, %v8864
      %v8897 = vadd.f32 %v8795, %v8865
      %v8898 = vadd.f32 %v8796, %v8866
      %v8899 = vadd.f32 %v8797, %v8867
      %v8900 = vadd.f32 %v8798, %v8868
      %v8901 = vadd.f32 %v8799, %v8869
      %v8902 = vadd.f32 %v8800, %v8870
      %v8903 = vadd.f32 %v8801, %v8871
      %v8904 = vadd.f32 %v8802, %v8872
      %v8905 = vadd.f32 %v8803, %v8873
      %v8906 = vadd.f32 %v8804, %v8874
      %v8907 = vadd.f32 %v8805, %v8875
      %v8908 = vadd.f32 %v8806, %v8876
      %v8909 = vadd.f32 %v8807, %v8877
      %v8910 = vadd.f32 %v8808, %v8878
      %v8911 = vadd.f32 %v8809, %v8879
      %v8912 = vadd.f32 %v8810, %v8880
      %v8913 = vadd.f32 %v8811, %v8881
      %v8914 = vadd.f32 %v8812, %v8882
      %v8915 = vadd.f32 %v8813, %v8883
      %v8916 = vadd.f32 %v8814, %v8884
      %v8917 = vadd.f32 %v8815, %v8885
      %v8918 = vadd.f32 %v8816, %v8886
      %v8919 = vadd.f32 %v8817, %v8887
      %v8920 = vld [vmem:[#allocation4 + $0x118] sm:$0xff]
      %v8921 = vld [vmem:[#allocation4 + $0x120] sm:$0xff]
      %v8922 = vlaneseq
      %v8923 = vshrl.u32 %v8922, 7
      %v8924 = vsub.s32 7, %v8923
      %v8925 = vrot.slane %v7986, %v8924
      %v8926 = vmul.f32 %v8220, %v8925
      %v8927 = vmul.f32 %v8221, %v8925
      %v8928 = vmul.f32 %v8222, %v8925
      %v8929 = vmul.f32 %v8223, %v8925
      %v8930 = vmul.f32 %v8224, %v8925
      %v8931 = vmul.f32 %v8225, %v8925
      %v8932 = vmul.f32 %v8226, %v8925
      %v8933 = vmul.f32 %v8227, %v8925
      %v8934 = vmul.f32 %v8228, %v8925
      %v8935 = vmul.f32 %v8229, %v8925
      %v8936 = vmul.f32 %v8230, %v8925
      %v8937 = vmul.f32 %v8231, %v8925
      %v8938 = vmul.f32 %v8232, %v8925
      %v8939 = vmul.f32 %v8233, %v8925
      %v8940 = vmul.f32 %v8234, %v8925
      %v8941 = vmul.f32 %v8235, %v8925
      %v8942 = vmul.f32 %v8236, %v8925
      %v8943 = vmul.f32 %v8237, %v8925
      %v8944 = vmul.f32 %v8238, %v8925
      %v8945 = vmul.f32 %v8239, %v8925
      %v8946 = vmul.f32 %v8240, %v8925
      %v8947 = vmul.f32 %v8241, %v8925
      %v8948 = vmul.f32 %v8242, %v8925
      %v8949 = vmul.f32 %v8243, %v8925
      %v8950 = vmul.f32 %v8244, %v8925
      %v8951 = vmul.f32 %v8245, %v8925
      %v8952 = vmul.f32 %v8246, %v8925
      %v8953 = vmul.f32 %v8247, %v8925
      %v8954 = vmul.f32 %v8646, %v8925
      %v8955 = vmul.f32 %v8647, %v8925
      %v8956 = vmul.f32 %v8920, %v8925
      %v8957 = vmul.f32 %v8921, %v8925
      %v8958 = vadd.f32 %v8888, %v8926
      %v8959 = vadd.f32 %v8889, %v8927
      %v8960 = vadd.f32 %v8890, %v8928
      %v8961 = vadd.f32 %v8891, %v8929
      %v8962 = vadd.f32 %v8892, %v8930
      %v8963 = vadd.f32 %v8893, %v8931
      %v8964 = vadd.f32 %v8894, %v8932
      %v8965 = vadd.f32 %v8895, %v8933
      %v8966 = vadd.f32 %v8896, %v8934
      %v8967 = vadd.f32 %v8897, %v8935
      %v8968 = vadd.f32 %v8898, %v8936
      %v8969 = vadd.f32 %v8899, %v8937
      %v8970 = vadd.f32 %v8900, %v8938
      %v8971 = vadd.f32 %v8901, %v8939
      %v8972 = vadd.f32 %v8902, %v8940
      %v8973 = vadd.f32 %v8903, %v8941
      %v8974 = vadd.f32 %v8904, %v8942
      %v8975 = vadd.f32 %v8905, %v8943
      %v8976 = vadd.f32 %v8906, %v8944
      %v8977 = vadd.f32 %v8907, %v8945
      %v8978 = vadd.f32 %v8908, %v8946
      %v8979 = vadd.f32 %v8909, %v8947
      %v8980 = vadd.f32 %v8910, %v8948
      %v8981 = vadd.f32 %v8911, %v8949
      %v8982 = vadd.f32 %v8912, %v8950
      %v8983 = vadd.f32 %v8913, %v8951
      %v8984 = vadd.f32 %v8914, %v8952
      %v8985 = vadd.f32 %v8915, %v8953
      %v8986 = vadd.f32 %v8916, %v8954
      %v8987 = vadd.f32 %v8917, %v8955
      %v8988 = vadd.f32 %v8918, %v8956
      %v8989 = vadd.f32 %v8919, %v8957
      %v8990 = vld [vmem:[#allocation4 + $0x119] sm:$0xff]
      %v8991 = vld [vmem:[#allocation4 + $0x121] sm:$0xff]
      %v8992 = vsel %vm8412, %v8320, 0.0
      %v8993 = vsel %vm8413, %v8321, 0.0
      %v8994 = vsel %vm8414, %v8322, 0.0
      %v8995 = vsel %vm8415, %v8323, 0.0
      %v8996 = vsel %vm8416, %v8324, 0.0
      %v8997 = vsel %vm8417, %v8325, 0.0
      %v8998 = vsel %vm8418, %v8326, 0.0
      %v8999 = vsel %vm8419, %v8327, 0.0
      %v9000 = vsel %vm8420, %v8328, 0.0
      %v9001 = vsel %vm8421, %v8329, 0.0
      %v9002 = vsel %vm8422, %v8330, 0.0
      %v9003 = vsel %vm8423, %v8331, 0.0
      %v9004 = vsel %vm8424, %v8332, 0.0
      %v9005 = vsel %vm8425, %v8333, 0.0
      %v9006 = vsel %vm8426, %v8334, 0.0
      %v9007 = vsel %vm8427, %v8335, 0.0
      %v9008 = vsel %vm8428, %v8336, 0.0
      %v9009 = vsel %vm8429, %v8337, 0.0
      %v9010 = vsel %vm8430, %v8338, 0.0
      %v9011 = vsel %vm8431, %v8339, 0.0
      %v9012 = vsel %vm8432, %v8340, 0.0
      %v9013 = vsel %vm8433, %v8341, 0.0
      %v9014 = vsel %vm8434, %v8342, 0.0
      %v9015 = vsel %vm8435, %v8343, 0.0
      %v9016 = vsel %vm8436, %v8344, 0.0
      %v9017 = vsel %vm8437, %v8345, 0.0
      %v9018 = vsel %vm8438, %v8346, 0.0
      %v9019 = vsel %vm8439, %v8347, 0.0
      %v9020 = vsel %vm8440, %v8716, 0.0
      %v9021 = vsel %vm8441, %v8717, 0.0
      %v9022 = vsel %vm8442, %v8990, 0.0
      %v9023 = vsel %vm8443, %v8991, 0.0
      %v9024 = vlaneseq
      %v9025 = vshrl.u32 %v9024, 7
      %v9026 = vsub.s32 0, %v9025
      %v9027 = vrot.slane %v7987, %v9026
      %v9028 = vmul.f32 %v8992, %v9027
      %v9029 = vmul.f32 %v8993, %v9027
      %v9030 = vmul.f32 %v8994, %v9027
      %v9031 = vmul.f32 %v8995, %v9027
      %v9032 = vmul.f32 %v8996, %v9027
      %v9033 = vmul.f32 %v8997, %v9027
      %v9034 = vmul.f32 %v8998, %v9027
      %v9035 = vmul.f32 %v8999, %v9027
      %v9036 = vmul.f32 %v9000, %v9027
      %v9037 = vmul.f32 %v9001, %v9027
      %v9038 = vmul.f32 %v9002, %v9027
      %v9039 = vmul.f32 %v9003, %v9027
      %v9040 = vmul.f32 %v9004, %v9027
      %v9041 = vmul.f32 %v9005, %v9027
      %v9042 = vmul.f32 %v9006, %v9027
      %v9043 = vmul.f32 %v9007, %v9027
      %v9044 = vmul.f32 %v9008, %v9027
      %v9045 = vmul.f32 %v9009, %v9027
      %v9046 = vmul.f32 %v9010, %v9027
      %v9047 = vmul.f32 %v9011, %v9027
      %v9048 = vmul.f32 %v9012, %v9027
      %v9049 = vmul.f32 %v9013, %v9027
      %v9050 = vmul.f32 %v9014, %v9027
      %v9051 = vmul.f32 %v9015, %v9027
      %v9052 = vmul.f32 %v9016, %v9027
      %v9053 = vmul.f32 %v9017, %v9027
      %v9054 = vmul.f32 %v9018, %v9027
      %v9055 = vmul.f32 %v9019, %v9027
      %v9056 = vmul.f32 %v9020, %v9027
      %v9057 = vmul.f32 %v9021, %v9027
      %v9058 = vmul.f32 %v9022, %v9027
      %v9059 = vmul.f32 %v9023, %v9027
      %v9060 = vadd.f32 %v8958, %v9028
      %v9061 = vadd.f32 %v8959, %v9029
      %v9062 = vadd.f32 %v8960, %v9030
      %v9063 = vadd.f32 %v8961, %v9031
      %v9064 = vadd.f32 %v8962, %v9032
      %v9065 = vadd.f32 %v8963, %v9033
      %v9066 = vadd.f32 %v8964, %v9034
      %v9067 = vadd.f32 %v8965, %v9035
      %v9068 = vadd.f32 %v8966, %v9036
      %v9069 = vadd.f32 %v8967, %v9037
      %v9070 = vadd.f32 %v8968, %v9038
      %v9071 = vadd.f32 %v8969, %v9039
      %v9072 = vadd.f32 %v8970, %v9040
      %v9073 = vadd.f32 %v8971, %v9041
      %v9074 = vadd.f32 %v8972, %v9042
      %v9075 = vadd.f32 %v8973, %v9043
      %v9076 = vadd.f32 %v8974, %v9044
      %v9077 = vadd.f32 %v8975, %v9045
      %v9078 = vadd.f32 %v8976, %v9046
      %v9079 = vadd.f32 %v8977, %v9047
      %v9080 = vadd.f32 %v8978, %v9048
      %v9081 = vadd.f32 %v8979, %v9049
      %v9082 = vadd.f32 %v8980, %v9050
      %v9083 = vadd.f32 %v8981, %v9051
      %v9084 = vadd.f32 %v8982, %v9052
      %v9085 = vadd.f32 %v8983, %v9053
      %v9086 = vadd.f32 %v8984, %v9054
      %v9087 = vadd.f32 %v8985, %v9055
      %v9088 = vadd.f32 %v8986, %v9056
      %v9089 = vadd.f32 %v8987, %v9057
      %v9090 = vadd.f32 %v8988, %v9058
      %v9091 = vadd.f32 %v8989, %v9059
      %v9092 = vsel %vm1590, %v9060, 0.0
      %9093 = vadd.xlane.f32.xlu0 %v9092
      %v9094 = vpop.xlane.xlu0 %9093
      %v9095 = vsel %vm1590, %v9061, 0.0
      %9096 = vadd.xlane.f32.xlu0 %v9095
      %v9097 = vpop.xlane.xlu0 %9096
      %v9098 = vsel %vm1590, %v9062, 0.0
      %9099 = vadd.xlane.f32.xlu0 %v9098
      %v9100 = vpop.xlane.xlu0 %9099
      %v9101 = vsel %vm1590, %v9063, 0.0
      %9102 = vadd.xlane.f32.xlu0 %v9101
      %v9103 = vpop.xlane.xlu0 %9102
      %v9104 = vsel %vm1590, %v9064, 0.0
      %9105 = vadd.xlane.f32.xlu0 %v9104
      %v9106 = vpop.xlane.xlu0 %9105
      %v9107 = vsel %vm1590, %v9065, 0.0
      %9108 = vadd.xlane.f32.xlu0 %v9107
      %v9109 = vpop.xlane.xlu0 %9108
      %v9110 = vsel %vm1590, %v9066, 0.0
      %9111 = vadd.xlane.f32.xlu0 %v9110
      %v9112 = vpop.xlane.xlu0 %9111
      %v9113 = vsel %vm1590, %v9067, 0.0
      %9114 = vadd.xlane.f32.xlu0 %v9113
      %v9115 = vpop.xlane.xlu0 %9114
      %v9116 = vsel %vm1590, %v9068, 0.0
      %9117 = vadd.xlane.f32.xlu0 %v9116
      %v9118 = vpop.xlane.xlu0 %9117
      %v9119 = vsel %vm1590, %v9069, 0.0
      %9120 = vadd.xlane.f32.xlu0 %v9119
      %v9121 = vpop.xlane.xlu0 %9120
      %v9122 = vsel %vm1590, %v9070, 0.0
      %9123 = vadd.xlane.f32.xlu0 %v9122
      %v9124 = vpop.xlane.xlu0 %9123
      %v9125 = vsel %vm1590, %v9071, 0.0
      %9126 = vadd.xlane.f32.xlu0 %v9125
      %v9127 = vpop.xlane.xlu0 %9126
      %v9128 = vsel %vm1590, %v9072, 0.0
      %9129 = vadd.xlane.f32.xlu0 %v9128
      %v9130 = vpop.xlane.xlu0 %9129
      %v9131 = vsel %vm1590, %v9073, 0.0
      %9132 = vadd.xlane.f32.xlu0 %v9131
      %v9133 = vpop.xlane.xlu0 %9132
      %v9134 = vsel %vm1590, %v9074, 0.0
      %9135 = vadd.xlane.f32.xlu0 %v9134
      %v9136 = vpop.xlane.xlu0 %9135
      %v9137 = vsel %vm1590, %v9075, 0.0
      %9138 = vadd.xlane.f32.xlu0 %v9137
      %v9139 = vpop.xlane.xlu0 %9138
      %v9140 = vsel %vm1590, %v9076, 0.0
      %9141 = vadd.xlane.f32.xlu0 %v9140
      %v9142 = vpop.xlane.xlu0 %9141
      %v9143 = vsel %vm1590, %v9077, 0.0
      %9144 = vadd.xlane.f32.xlu0 %v9143
      %v9145 = vpop.xlane.xlu0 %9144
      %v9146 = vsel %vm1590, %v9078, 0.0
      %9147 = vadd.xlane.f32.xlu0 %v9146
      %v9148 = vpop.xlane.xlu0 %9147
      %v9149 = vsel %vm1590, %v9079, 0.0
      %9150 = vadd.xlane.f32.xlu0 %v9149
      %v9151 = vpop.xlane.xlu0 %9150
      %v9152 = vsel %vm1590, %v9080, 0.0
      %9153 = vadd.xlane.f32.xlu0 %v9152
      %v9154 = vpop.xlane.xlu0 %9153
      %v9155 = vsel %vm1590, %v9081, 0.0
      %9156 = vadd.xlane.f32.xlu0 %v9155
      %v9157 = vpop.xlane.xlu0 %9156
      %v9158 = vsel %vm1590, %v9082, 0.0
      %9159 = vadd.xlane.f32.xlu0 %v9158
      %v9160 = vpop.xlane.xlu0 %9159
      %v9161 = vsel %vm1590, %v9083, 0.0
      %9162 = vadd.xlane.f32.xlu0 %v9161
      %v9163 = vpop.xlane.xlu0 %9162
      %v9164 = vsel %vm1590, %v9084, 0.0
      %9165 = vadd.xlane.f32.xlu0 %v9164
      %v9166 = vpop.xlane.xlu0 %9165
      %v9167 = vsel %vm1590, %v9085, 0.0
      %9168 = vadd.xlane.f32.xlu0 %v9167
      %v9169 = vpop.xlane.xlu0 %9168
      %v9170 = vsel %vm1590, %v9086, 0.0
      %9171 = vadd.xlane.f32.xlu0 %v9170
      %v9172 = vpop.xlane.xlu0 %9171
      %v9173 = vsel %vm1590, %v9087, 0.0
      %9174 = vadd.xlane.f32.xlu0 %v9173
      %v9175 = vpop.xlane.xlu0 %9174
      %v9176 = vsel %vm1590, %v9088, 0.0
      %9177 = vadd.xlane.f32.xlu0 %v9176
      %v9178 = vpop.xlane.xlu0 %9177
      %v9179 = vsel %vm1590, %v9089, 0.0
      %9180 = vadd.xlane.f32.xlu0 %v9179
      %v9181 = vpop.xlane.xlu0 %9180
      %v9182 = vsel %vm1590, %v9090, 0.0
      %9183 = vadd.xlane.f32.xlu0 %v9182
      %v9184 = vpop.xlane.xlu0 %9183
      %v9185 = vsel %vm1590, %v9091, 0.0
      %9186 = vadd.xlane.f32.xlu0 %v9185
      %v9187 = vpop.xlane.xlu0 %9186
      %v9188 = vld [vmem:[#allocation5] sm:$0x1]
      %v9190 = vlaneseq
      %v9191 = vshrl.u32 %v9190, 7
      %v9192 = vsub.s32 0, %v9191
      %v9193 = vrot.slane %v9188, %v9192
      %v9195 = vadd.f32 %v9094, %v9193
      %v9196 = vadd.f32 %v9097, %v9193
      %v9197 = vadd.f32 %v9100, %v9193
      %v9198 = vadd.f32 %v9103, %v9193
      %v9199 = vadd.f32 %v9106, %v9193
      %v9200 = vadd.f32 %v9109, %v9193
      %v9201 = vadd.f32 %v9112, %v9193
      %v9202 = vadd.f32 %v9115, %v9193
      %v9203 = vadd.f32 %v9118, %v9193
      %v9204 = vadd.f32 %v9121, %v9193
      %v9205 = vadd.f32 %v9124, %v9193
      %v9206 = vadd.f32 %v9127, %v9193
      %v9207 = vadd.f32 %v9130, %v9193
      %v9208 = vadd.f32 %v9133, %v9193
      %v9209 = vadd.f32 %v9136, %v9193
      %v9210 = vadd.f32 %v9139, %v9193
      %v9211 = vadd.f32 %v9142, %v9193
      %v9212 = vadd.f32 %v9145, %v9193
      %v9213 = vadd.f32 %v9148, %v9193
      %v9214 = vadd.f32 %v9151, %v9193
      %v9215 = vadd.f32 %v9154, %v9193
      %v9216 = vadd.f32 %v9157, %v9193
      %v9217 = vadd.f32 %v9160, %v9193
      %v9218 = vadd.f32 %v9163, %v9193
      %v9219 = vadd.f32 %v9166, %v9193
      %v9220 = vadd.f32 %v9169, %v9193
      %v9221 = vadd.f32 %v9172, %v9193
      %v9222 = vadd.f32 %v9175, %v9193
      %v9223 = vadd.f32 %v9178, %v9193
      %v9224 = vadd.f32 %v9181, %v9193
      %v9225 = vadd.f32 %v9184, %v9193
      %v9226 = vadd.f32 %v9187, %v9193
      %v9227 = vtanh.pop %v9195
      %v9228 = vtanh.pop %v9196
      %v9229 = vtanh.pop %v9197
      %v9230 = vtanh.pop %v9198
      %v9231 = vtanh.pop %v9199
      %v9232 = vtanh.pop %v9200
      %v9233 = vtanh.pop %v9201
      %v9234 = vtanh.pop %v9202
      %v9235 = vtanh.pop %v9203
      %v9236 = vtanh.pop %v9204
      %v9237 = vtanh.pop %v9205
      %v9238 = vtanh.pop %v9206
      %v9239 = vtanh.pop %v9207
      %v9240 = vtanh.pop %v9208
      %v9241 = vtanh.pop %v9209
      %v9242 = vtanh.pop %v9210
      %v9243 = vtanh.pop %v9211
      %v9244 = vtanh.pop %v9212
      %v9245 = vtanh.pop %v9213
      %v9246 = vtanh.pop %v9214
      %v9247 = vtanh.pop %v9215
      %v9248 = vtanh.pop %v9216
      %v9249 = vtanh.pop %v9217
      %v9250 = vtanh.pop %v9218
      %v9251 = vtanh.pop %v9219
      %v9252 = vtanh.pop %v9220
      %v9253 = vtanh.pop %v9221
      %v9254 = vtanh.pop %v9222
      %v9255 = vtanh.pop %v9223
      %v9256 = vtanh.pop %v9224
      %v9257 = vtanh.pop %v9225
      %v9258 = vtanh.pop %v9226
      %v9259 = vmul.f32 %v9227, 1500.0
      %v9260 = vmul.f32 %v9228, 1500.0
      %v9261 = vmul.f32 %v9229, 1500.0
      %v9262 = vmul.f32 %v9230, 1500.0
      %v9263 = vmul.f32 %v9231, 1500.0
      %v9264 = vmul.f32 %v9232, 1500.0
      %v9265 = vmul.f32 %v9233, 1500.0
      %v9266 = vmul.f32 %v9234, 1500.0
      %v9267 = vmul.f32 %v9235, 1500.0
      %v9268 = vmul.f32 %v9236, 1500.0
      %v9269 = vmul.f32 %v9237, 1500.0
      %v9270 = vmul.f32 %v9238, 1500.0
      %v9271 = vmul.f32 %v9239, 1500.0
      %v9272 = vmul.f32 %v9240, 1500.0
      %v9273 = vmul.f32 %v9241, 1500.0
      %v9274 = vmul.f32 %v9242, 1500.0
      %v9275 = vmul.f32 %v9243, 1500.0
      %v9276 = vmul.f32 %v9244, 1500.0
      %v9277 = vmul.f32 %v9245, 1500.0
      %v9278 = vmul.f32 %v9246, 1500.0
      %v9279 = vmul.f32 %v9247, 1500.0
      %v9280 = vmul.f32 %v9248, 1500.0
      %v9281 = vmul.f32 %v9249, 1500.0
      %v9282 = vmul.f32 %v9250, 1500.0
      %v9283 = vmul.f32 %v9251, 1500.0
      %v9284 = vmul.f32 %v9252, 1500.0
      %v9285 = vmul.f32 %v9253, 1500.0
      %v9286 = vmul.f32 %v9254, 1500.0
      %v9287 = vmul.f32 %v9255, 1500.0
      %v9288 = vmul.f32 %v9256, 1500.0
      %v9289 = vmul.f32 %v9257, 1500.0
      %v9290 = vmul.f32 %v9258, 1500.0
      %v9291 = vadd.f32 %v9259, 3000.0
      %v9292 = vadd.f32 %v9260, 3000.0
      %v9293 = vadd.f32 %v9261, 3000.0
      %v9294 = vadd.f32 %v9262, 3000.0
      %v9295 = vadd.f32 %v9263, 3000.0
      %v9296 = vadd.f32 %v9264, 3000.0
      %v9297 = vadd.f32 %v9265, 3000.0
      %v9298 = vadd.f32 %v9266, 3000.0
      %v9299 = vadd.f32 %v9267, 3000.0
      %v9300 = vadd.f32 %v9268, 3000.0
      %v9301 = vadd.f32 %v9269, 3000.0
      %v9302 = vadd.f32 %v9270, 3000.0
      %v9303 = vadd.f32 %v9271, 3000.0
      %v9304 = vadd.f32 %v9272, 3000.0
      %v9305 = vadd.f32 %v9273, 3000.0
      %v9306 = vadd.f32 %v9274, 3000.0
      %v9307 = vadd.f32 %v9275, 3000.0
      %v9308 = vadd.f32 %v9276, 3000.0
      %v9309 = vadd.f32 %v9277, 3000.0
      %v9310 = vadd.f32 %v9278, 3000.0
      %v9311 = vadd.f32 %v9279, 3000.0
      %v9312 = vadd.f32 %v9280, 3000.0
      %v9313 = vadd.f32 %v9281, 3000.0
      %v9314 = vadd.f32 %v9282, 3000.0
      %v9315 = vadd.f32 %v9283, 3000.0
      %v9316 = vadd.f32 %v9284, 3000.0
      %v9317 = vadd.f32 %v9285, 3000.0
      %v9318 = vadd.f32 %v9286, 3000.0
      %v9319 = vadd.f32 %v9287, 3000.0
      %v9320 = vadd.f32 %v9288, 3000.0
      %v9321 = vadd.f32 %v9289, 3000.0
      %v9322 = vadd.f32 %v9290, 3000.0
      %vm9323 = vcmask 7168
      %9324 = vst.msk [vmem:[%s631] sm:$0xff] %vm9323, %v9291
      %9325 = vst.msk [vmem:[%s631 + $0x8] sm:$0xff] %vm9323, %v9292
      %9326 = vst.msk [vmem:[%s631 + $0x10] sm:$0xff] %vm9323, %v9293
      %9327 = vst.msk [vmem:[%s631 + $0x18] sm:$0xff] %vm9323, %v9294
      %9328 = vst.msk [vmem:[%s631 + $0x20] sm:$0xff] %vm9323, %v9295
      %9329 = vst.msk [vmem:[%s631 + $0x28] sm:$0xff] %vm9323, %v9296
      %9330 = vst.msk [vmem:[%s631 + $0x30] sm:$0xff] %vm9323, %v9297
      %9331 = vst.msk [vmem:[%s631 + $0x38] sm:$0xff] %vm9323, %v9298
      %9332 = vst.msk [vmem:[%s631 + $0x40] sm:$0xff] %vm9323, %v9299
      %9333 = vst.msk [vmem:[%s631 + $0x48] sm:$0xff] %vm9323, %v9300
      %9334 = vst.msk [vmem:[%s631 + $0x50] sm:$0xff] %vm9323, %v9301
      %9335 = vst.msk [vmem:[%s631 + $0x58] sm:$0xff] %vm9323, %v9302
      %9336 = vst.msk [vmem:[%s631 + $0x60] sm:$0xff] %vm9323, %v9303
      %9337 = vst.msk [vmem:[%s631 + $0x68] sm:$0xff] %vm9323, %v9304
      %9338 = vst.msk [vmem:[%s631 + $0x70] sm:$0xff] %vm9323, %v9305
      %9339 = vst.msk [vmem:[%s631 + $0x78] sm:$0xff] %vm9323, %v9306
      %9340 = vst.msk [vmem:[%s631 + $0x80] sm:$0xff] %vm9323, %v9307
      %9341 = vst.msk [vmem:[%s631 + $0x88] sm:$0xff] %vm9323, %v9308
      %9342 = vst.msk [vmem:[%s631 + $0x90] sm:$0xff] %vm9323, %v9309
      %9343 = vst.msk [vmem:[%s631 + $0x98] sm:$0xff] %vm9323, %v9310
      %9344 = vst.msk [vmem:[%s631 + $0xa0] sm:$0xff] %vm9323, %v9311
      %9345 = vst.msk [vmem:[%s631 + $0xa8] sm:$0xff] %vm9323, %v9312
      %9346 = vst.msk [vmem:[%s631 + $0xb0] sm:$0xff] %vm9323, %v9313
      %9347 = vst.msk [vmem:[%s631 + $0xb8] sm:$0xff] %vm9323, %v9314
      %9348 = vst.msk [vmem:[%s631 + $0xc0] sm:$0xff] %vm9323, %v9315
      %9349 = vst.msk [vmem:[%s631 + $0xc8] sm:$0xff] %vm9323, %v9316
      %9350 = vst.msk [vmem:[%s631 + $0xd0] sm:$0xff] %vm9323, %v9317
      %9351 = vst.msk [vmem:[%s631 + $0xd8] sm:$0xff] %vm9323, %v9318
      %9352 = vst.msk [vmem:[%s631 + $0xe0] sm:$0xff] %vm9323, %v9319
      %9353 = vst.msk [vmem:[%s631 + $0xe8] sm:$0xff] %vm9323, %v9320
      %9354 = vst.msk [vmem:[%s631 + $0xf0] sm:$0xff] %vm9323, %v9321
      %9355 = vst.msk [vmem:[%s631 + $0xf8] sm:$0xff] %vm9323, %v9322
      %p9356 = scmp.lt.s32.totalorder %s33, 1
      %s9357 = scalar_select %p9356, %s33, 1
      %s9358 = smul.addr %s9357, 32
      %s9359 = smul.addr %s9358, 8
      %s9360 = scalar_lea.vmem %s20, %s9359
      // Predicated region
      $region101: #{generator_forward.1} parent=99 // pred_check
        %p9361 = pneg %p476
      $region102: #{generator_forward.1} parent=99 // pred_check_branch
        %9363 = sbr.rel (%p9361) target = $region104
      $region103: #{generator_forward.1} parent=99 // pred_region
        _
      $region104: #{generator_forward.1} parent=99 // pred_fallthru
        _
    $region100: #{generator_forward.1} parent=5 // pred_fallthru
      _
    %p9364 = scmp.le.s32.totalorder 2, %s28
    // Predicated region
    $region105: #{generator_forward.1} parent=5 // pred_check
      %p9365 = pneg %p9364
    $region106: #{generator_forward.1} parent=5 // pred_check_branch
      %9367 = sbr.rel (%p9365) target = $region108
    $region107: #{generator_forward.1} parent=5 // pred_region
      %s9368 = ssub.s32 %s28, 2
      // Predicated region
      $region109: #{generator_forward.1} parent=107 // pred_check
        %p9369 = pneg %p482
      $region110: #{generator_forward.1} parent=107 // pred_check_branch
        %9371 = sbr.rel (%p9369) target = $region112
      $region111: #{generator_forward.1} parent=107 // pred_region
        %p9372 = scmp.lt.s32.totalorder %s34, 1
        %s9373 = scalar_select %p9372, %s34, 1
        %s9374 = smul.addr %s9373, 32
        %s9375 = smul.addr %s9374, 8
        %s9376 = scalar_lea.vmem %s20, %s9375
      $region112: #{generator_forward.1} parent=107 // pred_fallthru
        _
    $region108: #{generator_forward.1} parent=5 // pred_fallthru
      _
  $region6: #{generator_forward.1} parent=0 // loop_footer
    %s32 = sadd.s32 1, %s28
  $region7: #{generator_forward.1} parent=0 // loop_footer_branch
    %27 = sbr.rel target = $region3
  $region8: #{generator_forward.1} parent=0 // loop_exit
    _

</llo_original>
